<compile_context>
chip_gen: v5e
topology: v5e:2x2
jax: 0.10.0
libtpu: 0.0.40
codegen_flags: <defaults>
</compile_context>

<pallas_src>
import jax
import jax.numpy as jnp
from jax import lax
from jax.experimental import pallas as pl
from jax.experimental.pallas import tpu as pltpu


def conv_pool_add_kernel(w_ref, b_ref, x_ref, p_ref, s0_ref, s1_ref, c01_ref,
                         out_ref):
    # w_ref  : SMEM f32[27]              flattened OIHW conv weight (1,3,3,3)
    # b_ref  : SMEM f32[1]               conv bias
    # x_ref  : VMEM f32[Nb, 3, Hp, Wp]   Nb images, packed (H,W) -> (H/2, 2W)
    # p_ref  : VMEM f32[Nb, 1, 2H, 2W]   padding1 (natural, lane-dense)
    # s0/s1  : VMEM f32[Hp, 2H]          0/1 row-selection matrices (MXU)
    # c01    : VMEM f32[2W, Wp]          0/1 even-col compaction -> both halves
    # out_ref: VMEM f32[Nb, 1, Hp, Wp]   packed conv + pool + bias
    Nb, C, Hp, Wp = x_ref.shape
    W = Wp // 2                           # original image width
    H2, W2 = p_ref.shape[2], p_ref.shape[3]

    # Masks / iotas hoisted out of the per-image loop.
    lane = lax.broadcasted_iota(jnp.int32, (Hp, Wp), 1)
    sub = lax.broadcasted_iota(jnp.int32, (Hp, Wp), 0)
    colmod = lane % W
    is_hi = lane >= W                     # lanes holding odd original rows
    left_ok = colmod > 0
    right_ok = colmod < W - 1
    not_top = sub > 0
    not_bot = sub < Hp - 1

    wv = [w_ref[i] for i in range(C * 9)]   # 27 scalar weights from SMEM
    bias = b_ref[0]
    s0 = s0_ref[...]
    s1 = s1_ref[...]
    c01 = c01_ref[...]

    for b in range(Nb):
        planes = [x_ref[b, c] for c in range(C)]

        # Channel-combined tap for kernel position (ky, kx).
        def tap(ky, kx):
            acc = wv[ky * 3 + kx] * planes[0]
            for c in range(1, C):
                acc = acc + wv[c * 9 + ky * 3 + kx] * planes[c]
            return acc

        # ---- streamed 3x3 conv: one kernel row at a time -----------------
        conv = None
        for ky in range(3):
            left = jnp.where(left_ok,
                             pltpu.roll(tap(ky, 0), shift=1, axis=1), 0.0)
            right = jnp.where(right_ok,
                              pltpu.roll(tap(ky, 2), shift=Wp - 1, axis=1), 0.0)
            a = tap(ky, 1) + left + right
            if ky == 0:
                # needs input row r-1: swap 64-lane halves, previous sublane
                t = pltpu.roll(a, shift=W, axis=1)
                tu = pltpu.roll(t, shift=1, axis=0)
                contrib = jnp.where(is_hi, t, jnp.where(not_top, tu, 0.0))
            elif ky == 1:
                contrib = a
            else:
                # needs input row r+1: swap halves, next sublane
                t = pltpu.roll(a, shift=W, axis=1)
                td = pltpu.roll(t, shift=Hp - 1, axis=0)
                contrib = jnp.where(is_hi, jnp.where(not_bot, td, 0.0), t)
            conv = contrib if conv is None else conv + contrib

        # ---- fused 2x2 max pool of padding1, packed to (Hp, Wp) ----------
        p = p_ref[b, 0]                                        # (2H, 2W)
        m = jnp.maximum(p, pltpu.roll(p, shift=W2 - 1, axis=1))
        m = jnp.maximum(m, pltpu.roll(m, shift=H2 - 1, axis=0))
        # Exact 0/1 selection matmuls on the MXU (single 1.0 per row/col).
        mcc = jnp.dot(m, c01, precision=lax.Precision.HIGHEST,
                      preferred_element_type=jnp.float32)
        pool_lo = jnp.dot(s0, mcc, precision=lax.Precision.HIGHEST,
                          preferred_element_type=jnp.float32)
        pool_hi = jnp.dot(s1, mcc, precision=lax.Precision.HIGHEST,
                          preferred_element_type=jnp.float32)
        pooled = jnp.where(is_hi, pool_hi, pool_lo)

        out_ref[b, 0] = conv + pooled + bias


def _selection_matrices(H, W):
    """Exact 0/1 matrices mapping the 2x2-max map into the packed layout."""
    Hp, H2, Wp, W2 = H // 2, 2 * H, 2 * W, 2 * W
    s = jnp.arange(Hp)[:, None]
    i = jnp.arange(H2)[None, :]
    s0 = (i == 4 * s).astype(jnp.float32)           # picks rows 4s
    s1 = (i == 4 * s + 2).astype(jnp.float32)       # picks rows 4s + 2
    k = jnp.arange(W2)[:, None]
    l = jnp.arange(Wp)[None, :]
    c01 = (k == 2 * (l % W)).astype(jnp.float32)    # even cols -> both halves
    return s0, s1, c01


@jax.jit
def model_forward(x1, padding1, weight, bias):
    """x1: (N,3,H,W), padding1: (N,1,2H,2W), weight: (1,3,3,3), bias: (1,)."""
    N, C, H, W = x1.shape
    H2, W2 = 2 * H, 2 * W
    assert padding1.shape == (N, 1, H2, W2), padding1.shape
    assert H % 2 == 0

    Hp, Wp = H // 2, 2 * W                # packed plane: 2 image rows / sublane row

    # Images per block: big enough to amortize per-step overhead, small enough
    # to keep >= 2 grid steps (both v7x TensorCores) whenever N >= 2.
    Nb = 1
    for cand in (8, 4, 2):
        if N % cand == 0 and N // cand >= 2:
            Nb = cand
            break

    w_flat = weight.astype(jnp.float32).reshape(-1)        # (27,) -> SMEM
    b = bias.astype(jnp.float32).reshape(1)                # (1,)  -> SMEM

    # Free row-major (H, W) -> (H/2, 2W) repack: fills all 128 lanes at W=64.
    x_packed = x1.astype(jnp.float32).reshape(N, C, Hp, Wp)
    p = padding1.astype(jnp.float32)
    s0, s1, c01 = _selection_matrices(H, W)

    out_packed = pl.pallas_call(
        conv_pool_add_kernel,
        out_shape=jax.ShapeDtypeStruct((N, 1, Hp, Wp), jnp.float32),
        grid=(N // Nb,),
        in_specs=[
            pl.BlockSpec(memory_space=pltpu.MemorySpace.SMEM),     # weights
            pl.BlockSpec(memory_space=pltpu.MemorySpace.SMEM),     # bias
            pl.BlockSpec((Nb, C, Hp, Wp), lambda n: (n, 0, 0, 0)),  # x (packed)
            pl.BlockSpec((Nb, 1, H2, W2), lambda n: (n, 0, 0, 0)),  # padding1
            pl.BlockSpec((Hp, H2), lambda n: (0, 0)),               # s0
            pl.BlockSpec((Hp, H2), lambda n: (0, 0)),               # s1
            pl.BlockSpec((W2, Wp), lambda n: (0, 0)),               # c01
        ],
        out_specs=pl.BlockSpec((Nb, 1, Hp, Wp), lambda n: (n, 0, 0, 0)),
        compiler_params=pltpu.CompilerParams(
            dimension_semantics=("parallel",)),
    )(w_flat, b, x_packed, p, s0, s1, c01)

    # Free inverse repack back to the natural NCHW layout.
    return out_packed.reshape(N, 1, H, W)


def reference_forward(x1, padding1, weight, bias):
    v1 = lax.conv_general_dilated(
        x1, weight, window_strides=(1, 1), padding=((1, 1), (1, 1)),
        dimension_numbers=("NCHW", "OIHW", "NCHW"),
        precision=lax.Precision.HIGHEST)
    v1 = v1 + bias.reshape(1, 1, 1, 1)
    N, _, H2, W2 = padding1.shape
    pool = padding1.reshape(N, 1, H2 // 2, 2, W2 // 2, 2).max(axis=(3, 5))
    return v1 + pool


if __name__ == "__main__":
    key = jax.random.PRNGKey(0)
    k_x, k_p, k_w, k_b = jax.random.split(key, 4)

    # Spec spatial shape (3 x 64 x 64); N=8 exercises the batched grid
    # (Nb=4 images/step, 2 grid steps -> both v7x TensorCores).
    N, C, H, W = 8, 3, 64, 64
    x1 = jax.random.normal(k_x, (N, C, H, W), dtype=jnp.float32)
    padding1 = jax.random.normal(k_p, (N, 1, 2 * H, 2 * W), dtype=jnp.float32)

    # Deterministic Conv2d(3, 1, 3) parameters.
    weight = 0.1 * jax.random.normal(k_w, (1, C, 3, 3), dtype=jnp.float32)
    bias = 0.1 * jax.random.normal(k_b, (1,), dtype=jnp.float32)

    out = jax.block_until_ready(model_forward(x1, padding1, weight, bias))

    ref = reference_forward(x1, padding1, weight, bias)
    assert out.shape == (N, 1, H, W), out.shape
    err = float(jnp.max(jnp.abs(out - ref)))
    assert jnp.allclose(out, ref, atol=1e-4, rtol=1e-4), err

    print("KERNEL_OK")
</pallas_src>

<mosaic_0001>
module attributes {stable_mosaic.version = 11 : i64} {
  func.func @conv_pool_add_kernel(%arg0: i32, %arg1: memref<27xf32, #tpu.memory_space<smem>>, %arg2: memref<1xf32, #tpu.memory_space<smem>>, %arg3: memref<4x3x32x128xf32, #tpu.memory_space<vmem>>, %arg4: memref<4x1x128x128xf32, #tpu.memory_space<vmem>>, %arg5: memref<32x128xf32, #tpu.memory_space<vmem>>, %arg6: memref<32x128xf32, #tpu.memory_space<vmem>>, %arg7: memref<128x128xf32, #tpu.memory_space<vmem>>, %arg8: memref<4x1x32x128xf32, #tpu.memory_space<vmem>>) attributes {dimension_semantics = [#tpu.dimension_semantics<parallel>], iteration_bounds = array<i64: 2>, scalar_prefetch = 0 : i64, scratch_operands = 0 : i64, tpu.core_type = #tpu.core_type<tc>, window_params = [{transform_indices = @transform_0, window_bounds = array<i64: 27>}, {transform_indices = @transform_1, window_bounds = array<i64: 1>}, {transform_indices = @transform_2, window_bounds = array<i64: 4, 3, 32, 128>}, {transform_indices = @transform_3, window_bounds = array<i64: 4, 1, 128, 128>}, {pipeline_mode = #tpu.pipeline_mode<synchronous>, transform_indices = @transform_4, window_bounds = array<i64: 32, 128>}, {pipeline_mode = #tpu.pipeline_mode<synchronous>, transform_indices = @transform_5, window_bounds = array<i64: 32, 128>}, {pipeline_mode = #tpu.pipeline_mode<synchronous>, transform_indices = @transform_6, window_bounds = array<i64: 128, 128>}, {transform_indices = @transform_7, window_bounds = array<i64: 4, 1, 32, 128>}]} {
    %0 = tpu.iota {dimensions = array<i32: 1>} : vector<32x128xi32>
    %1 = tpu.iota {dimensions = array<i32: 0>} : vector<32x128xi32>
    %c64_i32 = arith.constant 64 : i32
    %c0_i32 = arith.constant 0 : i32
    %2 = arith.cmpi eq, %c64_i32, %c0_i32 : i32
    %c1_i32 = arith.constant 1 : i32
    %3 = arith.select %2, %c1_i32, %c64_i32 : i32
    %4 = vector.broadcast %3 : i32 to vector<32x128xi32>
    %5 = arith.remsi %0, %4 : vector<32x128xi32>
    %c0_i32_0 = arith.constant 0 : i32
    %6 = vector.broadcast %c0_i32_0 : i32 to vector<32x128xi32>
    %7 = arith.cmpi ne, %5, %6 : vector<32x128xi32>
    %c0_i32_1 = arith.constant 0 : i32
    %8 = vector.broadcast %c0_i32_1 : i32 to vector<32x128xi32>
    %9 = arith.cmpi slt, %5, %8 : vector<32x128xi32>
    %c0_i32_2 = arith.constant 0 : i32
    %10 = arith.cmpi slt, %3, %c0_i32_2 : i32
    %11 = vector.broadcast %10 : i1 to vector<32x128xi1>
    %12 = vector.broadcast %11 : vector<32x128xi1> to vector<32x128xi1>
    %13 = arith.xori %9, %12 : vector<32x128xi1>
    %14 = arith.andi %13, %7 : vector<32x128xi1>
    %15 = vector.broadcast %3 : i32 to vector<32x128xi32>
    %16 = arith.addi %5, %15 : vector<32x128xi32>
    %17 = arith.select %14, %16, %5 : vector<32x128xi1>, vector<32x128xi32>
    %c64_i32_3 = arith.constant 64 : i32
    %18 = vector.broadcast %c64_i32_3 : i32 to vector<32x128xi32>
    %19 = arith.cmpi sge, %0, %18 : vector<32x128xi32>
    %c0_i32_4 = arith.constant 0 : i32
    %20 = vector.broadcast %c0_i32_4 : i32 to vector<32x128xi32>
    %21 = arith.cmpi sgt, %17, %20 : vector<32x128xi32>
    %c63_i32 = arith.constant 63 : i32
    %22 = vector.broadcast %c63_i32 : i32 to vector<32x128xi32>
    %23 = arith.cmpi slt, %17, %22 : vector<32x128xi32>
    %c0_i32_5 = arith.constant 0 : i32
    %24 = vector.broadcast %c0_i32_5 : i32 to vector<32x128xi32>
    %25 = arith.cmpi sgt, %1, %24 : vector<32x128xi32>
    %c31_i32 = arith.constant 31 : i32
    %26 = vector.broadcast %c31_i32 : i32 to vector<32x128xi32>
    %27 = arith.cmpi slt, %1, %26 : vector<32x128xi32>
    %c0 = arith.constant 0 : index
    %28 = memref.load %arg1[%c0] : memref<27xf32, #tpu.memory_space<smem>>
    %c1 = arith.constant 1 : index
    %29 = memref.load %arg1[%c1] : memref<27xf32, #tpu.memory_space<smem>>
    %c2 = arith.constant 2 : index
    %30 = memref.load %arg1[%c2] : memref<27xf32, #tpu.memory_space<smem>>
    %c3 = arith.constant 3 : index
    %31 = memref.load %arg1[%c3] : memref<27xf32, #tpu.memory_space<smem>>
    %c4 = arith.constant 4 : index
    %32 = memref.load %arg1[%c4] : memref<27xf32, #tpu.memory_space<smem>>
    %c5 = arith.constant 5 : index
    %33 = memref.load %arg1[%c5] : memref<27xf32, #tpu.memory_space<smem>>
    %c6 = arith.constant 6 : index
    %34 = memref.load %arg1[%c6] : memref<27xf32, #tpu.memory_space<smem>>
    %c7 = arith.constant 7 : index
    %35 = memref.load %arg1[%c7] : memref<27xf32, #tpu.memory_space<smem>>
    %c8 = arith.constant 8 : index
    %36 = memref.load %arg1[%c8] : memref<27xf32, #tpu.memory_space<smem>>
    %c9 = arith.constant 9 : index
    %37 = memref.load %arg1[%c9] : memref<27xf32, #tpu.memory_space<smem>>
    %c10 = arith.constant 10 : index
    %38 = memref.load %arg1[%c10] : memref<27xf32, #tpu.memory_space<smem>>
    %c11 = arith.constant 11 : index
    %39 = memref.load %arg1[%c11] : memref<27xf32, #tpu.memory_space<smem>>
    %c12 = arith.constant 12 : index
    %40 = memref.load %arg1[%c12] : memref<27xf32, #tpu.memory_space<smem>>
    %c13 = arith.constant 13 : index
    %41 = memref.load %arg1[%c13] : memref<27xf32, #tpu.memory_space<smem>>
    %c14 = arith.constant 14 : index
    %42 = memref.load %arg1[%c14] : memref<27xf32, #tpu.memory_space<smem>>
    %c15 = arith.constant 15 : index
    %43 = memref.load %arg1[%c15] : memref<27xf32, #tpu.memory_space<smem>>
    %c16 = arith.constant 16 : index
    %44 = memref.load %arg1[%c16] : memref<27xf32, #tpu.memory_space<smem>>
    %c17 = arith.constant 17 : index
    %45 = memref.load %arg1[%c17] : memref<27xf32, #tpu.memory_space<smem>>
    %c18 = arith.constant 18 : index
    %46 = memref.load %arg1[%c18] : memref<27xf32, #tpu.memory_space<smem>>
    %c19 = arith.constant 19 : index
    %47 = memref.load %arg1[%c19] : memref<27xf32, #tpu.memory_space<smem>>
    %c20 = arith.constant 20 : index
    %48 = memref.load %arg1[%c20] : memref<27xf32, #tpu.memory_space<smem>>
    %c21 = arith.constant 21 : index
    %49 = memref.load %arg1[%c21] : memref<27xf32, #tpu.memory_space<smem>>
    %c22 = arith.constant 22 : index
    %50 = memref.load %arg1[%c22] : memref<27xf32, #tpu.memory_space<smem>>
    %c23 = arith.constant 23 : index
    %51 = memref.load %arg1[%c23] : memref<27xf32, #tpu.memory_space<smem>>
    %c24 = arith.constant 24 : index
    %52 = memref.load %arg1[%c24] : memref<27xf32, #tpu.memory_space<smem>>
    %c25 = arith.constant 25 : index
    %53 = memref.load %arg1[%c25] : memref<27xf32, #tpu.memory_space<smem>>
    %c26 = arith.constant 26 : index
    %54 = memref.load %arg1[%c26] : memref<27xf32, #tpu.memory_space<smem>>
    %c0_6 = arith.constant 0 : index
    %55 = memref.load %arg2[%c0_6] : memref<1xf32, #tpu.memory_space<smem>>
    %c0_7 = arith.constant 0 : index
    %c0_8 = arith.constant 0 : index
    %56 = vector.load %arg5[%c0_7, %c0_8] : memref<32x128xf32, #tpu.memory_space<vmem>>, vector<32x128xf32>
    %c0_9 = arith.constant 0 : index
    %c0_10 = arith.constant 0 : index
    %57 = vector.load %arg6[%c0_9, %c0_10] : memref<32x128xf32, #tpu.memory_space<vmem>>, vector<32x128xf32>
    %c0_11 = arith.constant 0 : index
    %c0_12 = arith.constant 0 : index
    %58 = vector.load %arg7[%c0_11, %c0_12] : memref<128x128xf32, #tpu.memory_space<vmem>>, vector<128x128xf32>
    %c0_13 = arith.constant 0 : index
    %c0_14 = arith.constant 0 : index
    %c0_15 = arith.constant 0 : index
    %c0_16 = arith.constant 0 : index
    %59 = vector.load %arg3[%c0_13, %c0_14, %c0_15, %c0_16] : memref<4x3x32x128xf32, #tpu.memory_space<vmem>>, vector<1x1x32x128xf32>
    %60 = vector.shape_cast %59 : vector<1x1x32x128xf32> to vector<32x128xf32>
    %c0_17 = arith.constant 0 : index
    %c1_18 = arith.constant 1 : index
    %c0_19 = arith.constant 0 : index
    %c0_20 = arith.constant 0 : index
    %61 = vector.load %arg3[%c0_17, %c1_18, %c0_19, %c0_20] : memref<4x3x32x128xf32, #tpu.memory_space<vmem>>, vector<1x1x32x128xf32>
    %62 = vector.shape_cast %61 : vector<1x1x32x128xf32> to vector<32x128xf32>
    %c0_21 = arith.constant 0 : index
    %c2_22 = arith.constant 2 : index
    %c0_23 = arith.constant 0 : index
    %c0_24 = arith.constant 0 : index
    %63 = vector.load %arg3[%c0_21, %c2_22, %c0_23, %c0_24] : memref<4x3x32x128xf32, #tpu.memory_space<vmem>>, vector<1x1x32x128xf32>
    %64 = vector.shape_cast %63 : vector<1x1x32x128xf32> to vector<32x128xf32>
    %65 = vector.broadcast %28 : f32 to vector<32x128xf32>
    %66 = arith.mulf %65, %60 : vector<32x128xf32>
    %67 = vector.broadcast %37 : f32 to vector<32x128xf32>
    %68 = arith.mulf %67, %62 : vector<32x128xf32>
    %69 = arith.addf %66, %68 : vector<32x128xf32>
    %70 = vector.broadcast %46 : f32 to vector<32x128xf32>
    %71 = arith.mulf %70, %64 : vector<32x128xf32>
    %72 = arith.addf %69, %71 : vector<32x128xf32>
    %c1_i32_25 = arith.constant 1 : i32
    %73 = tpu.dynamic_rotate %72 by %c1_i32_25 dim 1 : vector<32x128xf32>, i32 -> vector<32x128xf32>
    %cst = arith.constant 0.000000e+00 : f32
    %74 = vector.broadcast %cst : f32 to vector<32x128xf32>
    %75 = arith.select %21, %73, %74 : vector<32x128xi1>, vector<32x128xf32>
    %76 = vector.broadcast %30 : f32 to vector<32x128xf32>
    %77 = arith.mulf %76, %60 : vector<32x128xf32>
    %78 = vector.broadcast %39 : f32 to vector<32x128xf32>
    %79 = arith.mulf %78, %62 : vector<32x128xf32>
    %80 = arith.addf %77, %79 : vector<32x128xf32>
    %81 = vector.broadcast %48 : f32 to vector<32x128xf32>
    %82 = arith.mulf %81, %64 : vector<32x128xf32>
    %83 = arith.addf %80, %82 : vector<32x128xf32>
    %c127_i32 = arith.constant 127 : i32
    %84 = tpu.dynamic_rotate %83 by %c127_i32 dim 1 : vector<32x128xf32>, i32 -> vector<32x128xf32>
    %cst_26 = arith.constant 0.000000e+00 : f32
    %85 = vector.broadcast %cst_26 : f32 to vector<32x128xf32>
    %86 = arith.select %23, %84, %85 : vector<32x128xi1>, vector<32x128xf32>
    %87 = vector.broadcast %29 : f32 to vector<32x128xf32>
    %88 = arith.mulf %87, %60 : vector<32x128xf32>
    %89 = vector.broadcast %38 : f32 to vector<32x128xf32>
    %90 = arith.mulf %89, %62 : vector<32x128xf32>
    %91 = arith.addf %88, %90 : vector<32x128xf32>
    %92 = vector.broadcast %47 : f32 to vector<32x128xf32>
    %93 = arith.mulf %92, %64 : vector<32x128xf32>
    %94 = arith.addf %91, %93 : vector<32x128xf32>
    %95 = arith.addf %94, %75 : vector<32x128xf32>
    %96 = arith.addf %95, %86 : vector<32x128xf32>
    %c64_i32_27 = arith.constant 64 : i32
    %97 = tpu.dynamic_rotate %96 by %c64_i32_27 dim 1 : vector<32x128xf32>, i32 -> vector<32x128xf32>
    %c1_i32_28 = arith.constant 1 : i32
    %98 = tpu.dynamic_rotate %97 by %c1_i32_28 dim 0 : vector<32x128xf32>, i32 -> vector<32x128xf32>
    %cst_29 = arith.constant 0.000000e+00 : f32
    %99 = vector.broadcast %cst_29 : f32 to vector<32x128xf32>
    %100 = arith.select %25, %98, %99 : vector<32x128xi1>, vector<32x128xf32>
    %101 = arith.select %19, %97, %100 : vector<32x128xi1>, vector<32x128xf32>
    %102 = vector.broadcast %31 : f32 to vector<32x128xf32>
    %103 = arith.mulf %102, %60 : vector<32x128xf32>
    %104 = vector.broadcast %40 : f32 to vector<32x128xf32>
    %105 = arith.mulf %104, %62 : vector<32x128xf32>
    %106 = arith.addf %103, %105 : vector<32x128xf32>
    %107 = vector.broadcast %49 : f32 to vector<32x128xf32>
    %108 = arith.mulf %107, %64 : vector<32x128xf32>
    %109 = arith.addf %106, %108 : vector<32x128xf32>
    %c1_i32_30 = arith.constant 1 : i32
    %110 = tpu.dynamic_rotate %109 by %c1_i32_30 dim 1 : vector<32x128xf32>, i32 -> vector<32x128xf32>
    %cst_31 = arith.constant 0.000000e+00 : f32
    %111 = vector.broadcast %cst_31 : f32 to vector<32x128xf32>
    %112 = arith.select %21, %110, %111 : vector<32x128xi1>, vector<32x128xf32>
    %113 = vector.broadcast %33 : f32 to vector<32x128xf32>
    %114 = arith.mulf %113, %60 : vector<32x128xf32>
    %115 = vector.broadcast %42 : f32 to vector<32x128xf32>
    %116 = arith.mulf %115, %62 : vector<32x128xf32>
    %117 = arith.addf %114, %116 : vector<32x128xf32>
    %118 = vector.broadcast %51 : f32 to vector<32x128xf32>
    %119 = arith.mulf %118, %64 : vector<32x128xf32>
    %120 = arith.addf %117, %119 : vector<32x128xf32>
    %c127_i32_32 = arith.constant 127 : i32
    %121 = tpu.dynamic_rotate %120 by %c127_i32_32 dim 1 : vector<32x128xf32>, i32 -> vector<32x128xf32>
    %cst_33 = arith.constant 0.000000e+00 : f32
    %122 = vector.broadcast %cst_33 : f32 to vector<32x128xf32>
    %123 = arith.select %23, %121, %122 : vector<32x128xi1>, vector<32x128xf32>
    %124 = vector.broadcast %32 : f32 to vector<32x128xf32>
    %125 = arith.mulf %124, %60 : vector<32x128xf32>
    %126 = vector.broadcast %41 : f32 to vector<32x128xf32>
    %127 = arith.mulf %126, %62 : vector<32x128xf32>
    %128 = arith.addf %125, %127 : vector<32x128xf32>
    %129 = vector.broadcast %50 : f32 to vector<32x128xf32>
    %130 = arith.mulf %129, %64 : vector<32x128xf32>
    %131 = arith.addf %128, %130 : vector<32x128xf32>
    %132 = arith.addf %131, %112 : vector<32x128xf32>
    %133 = arith.addf %132, %123 : vector<32x128xf32>
    %134 = arith.addf %101, %133 : vector<32x128xf32>
    %135 = vector.broadcast %34 : f32 to vector<32x128xf32>
    %136 = arith.mulf %135, %60 : vector<32x128xf32>
    %137 = vector.broadcast %43 : f32 to vector<32x128xf32>
    %138 = arith.mulf %137, %62 : vector<32x128xf32>
    %139 = arith.addf %136, %138 : vector<32x128xf32>
    %140 = vector.broadcast %52 : f32 to vector<32x128xf32>
    %141 = arith.mulf %140, %64 : vector<32x128xf32>
    %142 = arith.addf %139, %141 : vector<32x128xf32>
    %c1_i32_34 = arith.constant 1 : i32
    %143 = tpu.dynamic_rotate %142 by %c1_i32_34 dim 1 : vector<32x128xf32>, i32 -> vector<32x128xf32>
    %cst_35 = arith.constant 0.000000e+00 : f32
    %144 = vector.broadcast %cst_35 : f32 to vector<32x128xf32>
    %145 = arith.select %21, %143, %144 : vector<32x128xi1>, vector<32x128xf32>
    %146 = vector.broadcast %36 : f32 to vector<32x128xf32>
    %147 = arith.mulf %146, %60 : vector<32x128xf32>
    %148 = vector.broadcast %45 : f32 to vector<32x128xf32>
    %149 = arith.mulf %148, %62 : vector<32x128xf32>
    %150 = arith.addf %147, %149 : vector<32x128xf32>
    %151 = vector.broadcast %54 : f32 to vector<32x128xf32>
    %152 = arith.mulf %151, %64 : vector<32x128xf32>
    %153 = arith.addf %150, %152 : vector<32x128xf32>
    %c127_i32_36 = arith.constant 127 : i32
    %154 = tpu.dynamic_rotate %153 by %c127_i32_36 dim 1 : vector<32x128xf32>, i32 -> vector<32x128xf32>
    %cst_37 = arith.constant 0.000000e+00 : f32
    %155 = vector.broadcast %cst_37 : f32 to vector<32x128xf32>
    %156 = arith.select %23, %154, %155 : vector<32x128xi1>, vector<32x128xf32>
    %157 = vector.broadcast %35 : f32 to vector<32x128xf32>
    %158 = arith.mulf %157, %60 : vector<32x128xf32>
    %159 = vector.broadcast %44 : f32 to vector<32x128xf32>
    %160 = arith.mulf %159, %62 : vector<32x128xf32>
    %161 = arith.addf %158, %160 : vector<32x128xf32>
    %162 = vector.broadcast %53 : f32 to vector<32x128xf32>
    %163 = arith.mulf %162, %64 : vector<32x128xf32>
    %164 = arith.addf %161, %163 : vector<32x128xf32>
    %165 = arith.addf %164, %145 : vector<32x128xf32>
    %166 = arith.addf %165, %156 : vector<32x128xf32>
    %c64_i32_38 = arith.constant 64 : i32
    %167 = tpu.dynamic_rotate %166 by %c64_i32_38 dim 1 : vector<32x128xf32>, i32 -> vector<32x128xf32>
    %c31_i32_39 = arith.constant 31 : i32
    %168 = tpu.dynamic_rotate %167 by %c31_i32_39 dim 0 : vector<32x128xf32>, i32 -> vector<32x128xf32>
    %cst_40 = arith.constant 0.000000e+00 : f32
    %169 = vector.broadcast %cst_40 : f32 to vector<32x128xf32>
    %170 = arith.select %27, %168, %169 : vector<32x128xi1>, vector<32x128xf32>
    %171 = arith.select %19, %170, %167 : vector<32x128xi1>, vector<32x128xf32>
    %172 = arith.addf %134, %171 : vector<32x128xf32>
    %c0_41 = arith.constant 0 : index
    %c0_42 = arith.constant 0 : index
    %c0_43 = arith.constant 0 : index
    %c0_44 = arith.constant 0 : index
    %173 = vector.load %arg4[%c0_41, %c0_42, %c0_43, %c0_44] : memref<4x1x128x128xf32, #tpu.memory_space<vmem>>, vector<1x1x128x128xf32>
    %174 = vector.shape_cast %173 : vector<1x1x128x128xf32> to vector<128x128xf32>
    %c127_i32_45 = arith.constant 127 : i32
    %175 = tpu.dynamic_rotate %174 by %c127_i32_45 dim 1 : vector<128x128xf32>, i32 -> vector<128x128xf32>
    %176 = arith.maximumf %174, %175 : vector<128x128xf32>
    %c127_i32_46 = arith.constant 127 : i32
    %177 = tpu.dynamic_rotate %176 by %c127_i32_46 dim 0 : vector<128x128xf32>, i32 -> vector<128x128xf32>
    %178 = arith.maximumf %176, %177 : vector<128x128xf32>
    %cst_47 = arith.constant dense<0.000000e+00> : vector<128x128xf32>
    %179 = tpu.matmul %178, %58, %cst_47 {dimension_numbers = #tpu.dot_dimension_numbers<[1], [0], [0], [1], [0, 0, 1, 1], [], []>, precision = #tpu.contract_precision<fp32>} : vector<128x128xf32>, vector<128x128xf32>, vector<128x128xf32> -> vector<128x128xf32>
    %cst_48 = arith.constant dense<0.000000e+00> : vector<32x128xf32>
    %180 = tpu.matmul %56, %179, %cst_48 {dimension_numbers = #tpu.dot_dimension_numbers<[1], [0], [0], [1], [0, 0, 1, 1], [], []>, precision = #tpu.contract_precision<fp32>} : vector<32x128xf32>, vector<128x128xf32>, vector<32x128xf32> -> vector<32x128xf32>
    %cst_49 = arith.constant dense<0.000000e+00> : vector<32x128xf32>
    %181 = tpu.matmul %57, %179, %cst_49 {dimension_numbers = #tpu.dot_dimension_numbers<[1], [0], [0], [1], [0, 0, 1, 1], [], []>, precision = #tpu.contract_precision<fp32>} : vector<32x128xf32>, vector<128x128xf32>, vector<32x128xf32> -> vector<32x128xf32>
    %182 = arith.select %19, %181, %180 : vector<32x128xi1>, vector<32x128xf32>
    %183 = arith.addf %172, %182 : vector<32x128xf32>
    %184 = vector.broadcast %55 : f32 to vector<32x128xf32>
    %185 = arith.addf %183, %184 : vector<32x128xf32>
    %c0_50 = arith.constant 0 : index
    %c0_51 = arith.constant 0 : index
    %c0_52 = arith.constant 0 : index
    %c0_53 = arith.constant 0 : index
    %186 = vector.load %arg8[%c0_50, %c0_51, %c0_52, %c0_53] : memref<4x1x32x128xf32, #tpu.memory_space<vmem>>, vector<1x1x32x128xf32>
    %187 = vector.shape_cast %186 : vector<1x1x32x128xf32> to vector<32x128xf32>
    %188 = vector.shape_cast %185 : vector<32x128xf32> to vector<1x1x32x128xf32>
    tpu.vector_store %arg8[%c0_50, %c0_51, %c0_52, %c0_53], %188 {strides = array<i32>} : memref<4x1x32x128xf32, #tpu.memory_space<vmem>>, vector<1x1x32x128xf32>,
    %c1_54 = arith.constant 1 : index
    %c0_55 = arith.constant 0 : index
    %c0_56 = arith.constant 0 : index
    %c0_57 = arith.constant 0 : index
    %189 = vector.load %arg3[%c1_54, %c0_55, %c0_56, %c0_57] : memref<4x3x32x128xf32, #tpu.memory_space<vmem>>, vector<1x1x32x128xf32>
    %190 = vector.shape_cast %189 : vector<1x1x32x128xf32> to vector<32x128xf32>
    %c1_58 = arith.constant 1 : index
    %c1_59 = arith.constant 1 : index
    %c0_60 = arith.constant 0 : index
    %c0_61 = arith.constant 0 : index
    %191 = vector.load %arg3[%c1_58, %c1_59, %c0_60, %c0_61] : memref<4x3x32x128xf32, #tpu.memory_space<vmem>>, vector<1x1x32x128xf32>
    %192 = vector.shape_cast %191 : vector<1x1x32x128xf32> to vector<32x128xf32>
    %c1_62 = arith.constant 1 : index
    %c2_63 = arith.constant 2 : index
    %c0_64 = arith.constant 0 : index
    %c0_65 = arith.constant 0 : index
    %193 = vector.load %arg3[%c1_62, %c2_63, %c0_64, %c0_65] : memref<4x3x32x128xf32, #tpu.memory_space<vmem>>, vector<1x1x32x128xf32>
    %194 = vector.shape_cast %193 : vector<1x1x32x128xf32> to vector<32x128xf32>
    %195 = vector.broadcast %28 : f32 to vector<32x128xf32>
    %196 = arith.mulf %195, %190 : vector<32x128xf32>
    %197 = vector.broadcast %37 : f32 to vector<32x128xf32>
    %198 = arith.mulf %197, %192 : vector<32x128xf32>
    %199 = arith.addf %196, %198 : vector<32x128xf32>
    %200 = vector.broadcast %46 : f32 to vector<32x128xf32>
    %201 = arith.mulf %200, %194 : vector<32x128xf32>
    %202 = arith.addf %199, %201 : vector<32x128xf32>
    %c1_i32_66 = arith.constant 1 : i32
    %203 = tpu.dynamic_rotate %202 by %c1_i32_66 dim 1 : vector<32x128xf32>, i32 -> vector<32x128xf32>
    %cst_67 = arith.constant 0.000000e+00 : f32
    %204 = vector.broadcast %cst_67 : f32 to vector<32x128xf32>
    %205 = arith.select %21, %203, %204 : vector<32x128xi1>, vector<32x128xf32>
    %206 = vector.broadcast %30 : f32 to vector<32x128xf32>
    %207 = arith.mulf %206, %190 : vector<32x128xf32>
    %208 = vector.broadcast %39 : f32 to vector<32x128xf32>
    %209 = arith.mulf %208, %192 : vector<32x128xf32>
    %210 = arith.addf %207, %209 : vector<32x128xf32>
    %211 = vector.broadcast %48 : f32 to vector<32x128xf32>
    %212 = arith.mulf %211, %194 : vector<32x128xf32>
    %213 = arith.addf %210, %212 : vector<32x128xf32>
    %c127_i32_68 = arith.constant 127 : i32
    %214 = tpu.dynamic_rotate %213 by %c127_i32_68 dim 1 : vector<32x128xf32>, i32 -> vector<32x128xf32>
    %cst_69 = arith.constant 0.000000e+00 : f32
    %215 = vector.broadcast %cst_69 : f32 to vector<32x128xf32>
    %216 = arith.select %23, %214, %215 : vector<32x128xi1>, vector<32x128xf32>
    %217 = vector.broadcast %29 : f32 to vector<32x128xf32>
    %218 = arith.mulf %217, %190 : vector<32x128xf32>
    %219 = vector.broadcast %38 : f32 to vector<32x128xf32>
    %220 = arith.mulf %219, %192 : vector<32x128xf32>
    %221 = arith.addf %218, %220 : vector<32x128xf32>
    %222 = vector.broadcast %47 : f32 to vector<32x128xf32>
    %223 = arith.mulf %222, %194 : vector<32x128xf32>
    %224 = arith.addf %221, %223 : vector<32x128xf32>
    %225 = arith.addf %224, %205 : vector<32x128xf32>
    %226 = arith.addf %225, %216 : vector<32x128xf32>
    %c64_i32_70 = arith.constant 64 : i32
    %227 = tpu.dynamic_rotate %226 by %c64_i32_70 dim 1 : vector<32x128xf32>, i32 -> vector<32x128xf32>
    %c1_i32_71 = arith.constant 1 : i32
    %228 = tpu.dynamic_rotate %227 by %c1_i32_71 dim 0 : vector<32x128xf32>, i32 -> vector<32x128xf32>
    %cst_72 = arith.constant 0.000000e+00 : f32
    %229 = vector.broadcast %cst_72 : f32 to vector<32x128xf32>
    %230 = arith.select %25, %228, %229 : vector<32x128xi1>, vector<32x128xf32>
    %231 = arith.select %19, %227, %230 : vector<32x128xi1>, vector<32x128xf32>
    %232 = vector.broadcast %31 : f32 to vector<32x128xf32>
    %233 = arith.mulf %232, %190 : vector<32x128xf32>
    %234 = vector.broadcast %40 : f32 to vector<32x128xf32>
    %235 = arith.mulf %234, %192 : vector<32x128xf32>
    %236 = arith.addf %233, %235 : vector<32x128xf32>
    %237 = vector.broadcast %49 : f32 to vector<32x128xf32>
    %238 = arith.mulf %237, %194 : vector<32x128xf32>
    %239 = arith.addf %236, %238 : vector<32x128xf32>
    %c1_i32_73 = arith.constant 1 : i32
    %240 = tpu.dynamic_rotate %239 by %c1_i32_73 dim 1 : vector<32x128xf32>, i32 -> vector<32x128xf32>
    %cst_74 = arith.constant 0.000000e+00 : f32
    %241 = vector.broadcast %cst_74 : f32 to vector<32x128xf32>
    %242 = arith.select %21, %240, %241 : vector<32x128xi1>, vector<32x128xf32>
    %243 = vector.broadcast %33 : f32 to vector<32x128xf32>
    %244 = arith.mulf %243, %190 : vector<32x128xf32>
    %245 = vector.broadcast %42 : f32 to vector<32x128xf32>
    %246 = arith.mulf %245, %192 : vector<32x128xf32>
    %247 = arith.addf %244, %246 : vector<32x128xf32>
    %248 = vector.broadcast %51 : f32 to vector<32x128xf32>
    %249 = arith.mulf %248, %194 : vector<32x128xf32>
    %250 = arith.addf %247, %249 : vector<32x128xf32>
    %c127_i32_75 = arith.constant 127 : i32
    %251 = tpu.dynamic_rotate %250 by %c127_i32_75 dim 1 : vector<32x128xf32>, i32 -> vector<32x128xf32>
    %cst_76 = arith.constant 0.000000e+00 : f32
    %252 = vector.broadcast %cst_76 : f32 to vector<32x128xf32>
    %253 = arith.select %23, %251, %252 : vector<32x128xi1>, vector<32x128xf32>
    %254 = vector.broadcast %32 : f32 to vector<32x128xf32>
    %255 = arith.mulf %254, %190 : vector<32x128xf32>
    %256 = vector.broadcast %41 : f32 to vector<32x128xf32>
    %257 = arith.mulf %256, %192 : vector<32x128xf32>
    %258 = arith.addf %255, %257 : vector<32x128xf32>
    %259 = vector.broadcast %50 : f32 to vector<32x128xf32>
    %260 = arith.mulf %259, %194 : vector<32x128xf32>
    %261 = arith.addf %258, %260 : vector<32x128xf32>
    %262 = arith.addf %261, %242 : vector<32x128xf32>
    %263 = arith.addf %262, %253 : vector<32x128xf32>
    %264 = arith.addf %231, %263 : vector<32x128xf32>
    %265 = vector.broadcast %34 : f32 to vector<32x128xf32>
    %266 = arith.mulf %265, %190 : vector<32x128xf32>
    %267 = vector.broadcast %43 : f32 to vector<32x128xf32>
    %268 = arith.mulf %267, %192 : vector<32x128xf32>
    %269 = arith.addf %266, %268 : vector<32x128xf32>
    %270 = vector.broadcast %52 : f32 to vector<32x128xf32>
    %271 = arith.mulf %270, %194 : vector<32x128xf32>
    %272 = arith.addf %269, %271 : vector<32x128xf32>
    %c1_i32_77 = arith.constant 1 : i32
    %273 = tpu.dynamic_rotate %272 by %c1_i32_77 dim 1 : vector<32x128xf32>, i32 -> vector<32x128xf32>
    %cst_78 = arith.constant 0.000000e+00 : f32
    %274 = vector.broadcast %cst_78 : f32 to vector<32x128xf32>
    %275 = arith.select %21, %273, %274 : vector<32x128xi1>, vector<32x128xf32>
    %276 = vector.broadcast %36 : f32 to vector<32x128xf32>
    %277 = arith.mulf %276, %190 : vector<32x128xf32>
    %278 = vector.broadcast %45 : f32 to vector<32x128xf32>
    %279 = arith.mulf %278, %192 : vector<32x128xf32>
    %280 = arith.addf %277, %279 : vector<32x128xf32>
    %281 = vector.broadcast %54 : f32 to vector<32x128xf32>
    %282 = arith.mulf %281, %194 : vector<32x128xf32>
    %283 = arith.addf %280, %282 : vector<32x128xf32>
    %c127_i32_79 = arith.constant 127 : i32
    %284 = tpu.dynamic_rotate %283 by %c127_i32_79 dim 1 : vector<32x128xf32>, i32 -> vector<32x128xf32>
    %cst_80 = arith.constant 0.000000e+00 : f32
    %285 = vector.broadcast %cst_80 : f32 to vector<32x128xf32>
    %286 = arith.select %23, %284, %285 : vector<32x128xi1>, vector<32x128xf32>
    %287 = vector.broadcast %35 : f32 to vector<32x128xf32>
    %288 = arith.mulf %287, %190 : vector<32x128xf32>
    %289 = vector.broadcast %44 : f32 to vector<32x128xf32>
    %290 = arith.mulf %289, %192 : vector<32x128xf32>
    %291 = arith.addf %288, %290 : vector<32x128xf32>
    %292 = vector.broadcast %53 : f32 to vector<32x128xf32>
    %293 = arith.mulf %292, %194 : vector<32x128xf32>
    %294 = arith.addf %291, %293 : vector<32x128xf32>
    %295 = arith.addf %294, %275 : vector<32x128xf32>
    %296 = arith.addf %295, %286 : vector<32x128xf32>
    %c64_i32_81 = arith.constant 64 : i32
    %297 = tpu.dynamic_rotate %296 by %c64_i32_81 dim 1 : vector<32x128xf32>, i32 -> vector<32x128xf32>
    %c31_i32_82 = arith.constant 31 : i32
    %298 = tpu.dynamic_rotate %297 by %c31_i32_82 dim 0 : vector<32x128xf32>, i32 -> vector<32x128xf32>
    %cst_83 = arith.constant 0.000000e+00 : f32
    %299 = vector.broadcast %cst_83 : f32 to vector<32x128xf32>
    %300 = arith.select %27, %298, %299 : vector<32x128xi1>, vector<32x128xf32>
    %301 = arith.select %19, %300, %297 : vector<32x128xi1>, vector<32x128xf32>
    %302 = arith.addf %264, %301 : vector<32x128xf32>
    %c1_84 = arith.constant 1 : index
    %c0_85 = arith.constant 0 : index
    %c0_86 = arith.constant 0 : index
    %c0_87 = arith.constant 0 : index
    %303 = vector.load %arg4[%c1_84, %c0_85, %c0_86, %c0_87] : memref<4x1x128x128xf32, #tpu.memory_space<vmem>>, vector<1x1x128x128xf32>
    %304 = vector.shape_cast %303 : vector<1x1x128x128xf32> to vector<128x128xf32>
    %c127_i32_88 = arith.constant 127 : i32
    %305 = tpu.dynamic_rotate %304 by %c127_i32_88 dim 1 : vector<128x128xf32>, i32 -> vector<128x128xf32>
    %306 = arith.maximumf %304, %305 : vector<128x128xf32>
    %c127_i32_89 = arith.constant 127 : i32
    %307 = tpu.dynamic_rotate %306 by %c127_i32_89 dim 0 : vector<128x128xf32>, i32 -> vector<128x128xf32>
    %308 = arith.maximumf %306, %307 : vector<128x128xf32>
    %cst_90 = arith.constant dense<0.000000e+00> : vector<128x128xf32>
    %309 = tpu.matmul %308, %58, %cst_90 {dimension_numbers = #tpu.dot_dimension_numbers<[1], [0], [0], [1], [0, 0, 1, 1], [], []>, precision = #tpu.contract_precision<fp32>} : vector<128x128xf32>, vector<128x128xf32>, vector<128x128xf32> -> vector<128x128xf32>
    %cst_91 = arith.constant dense<0.000000e+00> : vector<32x128xf32>
    %310 = tpu.matmul %56, %309, %cst_91 {dimension_numbers = #tpu.dot_dimension_numbers<[1], [0], [0], [1], [0, 0, 1, 1], [], []>, precision = #tpu.contract_precision<fp32>} : vector<32x128xf32>, vector<128x128xf32>, vector<32x128xf32> -> vector<32x128xf32>
    %cst_92 = arith.constant dense<0.000000e+00> : vector<32x128xf32>
    %311 = tpu.matmul %57, %309, %cst_92 {dimension_numbers = #tpu.dot_dimension_numbers<[1], [0], [0], [1], [0, 0, 1, 1], [], []>, precision = #tpu.contract_precision<fp32>} : vector<32x128xf32>, vector<128x128xf32>, vector<32x128xf32> -> vector<32x128xf32>
    %312 = arith.select %19, %311, %310 : vector<32x128xi1>, vector<32x128xf32>
    %313 = arith.addf %302, %312 : vector<32x128xf32>
    %314 = vector.broadcast %55 : f32 to vector<32x128xf32>
    %315 = arith.addf %313, %314 : vector<32x128xf32>
    %c1_93 = arith.constant 1 : index
    %c0_94 = arith.constant 0 : index
    %c0_95 = arith.constant 0 : index
    %c0_96 = arith.constant 0 : index
    %316 = vector.load %arg8[%c1_93, %c0_94, %c0_95, %c0_96] : memref<4x1x32x128xf32, #tpu.memory_space<vmem>>, vector<1x1x32x128xf32>
    %317 = vector.shape_cast %316 : vector<1x1x32x128xf32> to vector<32x128xf32>
    %318 = vector.shape_cast %315 : vector<32x128xf32> to vector<1x1x32x128xf32>
    tpu.vector_store %arg8[%c1_93, %c0_94, %c0_95, %c0_96], %318 {strides = array<i32>} : memref<4x1x32x128xf32, #tpu.memory_space<vmem>>, vector<1x1x32x128xf32>,
    %c2_97 = arith.constant 2 : index
    %c0_98 = arith.constant 0 : index
    %c0_99 = arith.constant 0 : index
    %c0_100 = arith.constant 0 : index
    %319 = vector.load %arg3[%c2_97, %c0_98, %c0_99, %c0_100] : memref<4x3x32x128xf32, #tpu.memory_space<vmem>>, vector<1x1x32x128xf32>
    %320 = vector.shape_cast %319 : vector<1x1x32x128xf32> to vector<32x128xf32>
    %c2_101 = arith.constant 2 : index
    %c1_102 = arith.constant 1 : index
    %c0_103 = arith.constant 0 : index
    %c0_104 = arith.constant 0 : index
    %321 = vector.load %arg3[%c2_101, %c1_102, %c0_103, %c0_104] : memref<4x3x32x128xf32, #tpu.memory_space<vmem>>, vector<1x1x32x128xf32>
    %322 = vector.shape_cast %321 : vector<1x1x32x128xf32> to vector<32x128xf32>
    %c2_105 = arith.constant 2 : index
    %c2_106 = arith.constant 2 : index
    %c0_107 = arith.constant 0 : index
    %c0_108 = arith.constant 0 : index
    %323 = vector.load %arg3[%c2_105, %c2_106, %c0_107, %c0_108] : memref<4x3x32x128xf32, #tpu.memory_space<vmem>>, vector<1x1x32x128xf32>
    %324 = vector.shape_cast %323 : vector<1x1x32x128xf32> to vector<32x128xf32>
    %325 = vector.broadcast %28 : f32 to vector<32x128xf32>
    %326 = arith.mulf %325, %320 : vector<32x128xf32>
    %327 = vector.broadcast %37 : f32 to vector<32x128xf32>
    %328 = arith.mulf %327, %322 : vector<32x128xf32>
    %329 = arith.addf %326, %328 : vector<32x128xf32>
    %330 = vector.broadcast %46 : f32 to vector<32x128xf32>
    %331 = arith.mulf %330, %324 : vector<32x128xf32>
    %332 = arith.addf %329, %331 : vector<32x128xf32>
    %c1_i32_109 = arith.constant 1 : i32
    %333 = tpu.dynamic_rotate %332 by %c1_i32_109 dim 1 : vector<32x128xf32>, i32 -> vector<32x128xf32>
    %cst_110 = arith.constant 0.000000e+00 : f32
    %334 = vector.broadcast %cst_110 : f32 to vector<32x128xf32>
    %335 = arith.select %21, %333, %334 : vector<32x128xi1>, vector<32x128xf32>
    %336 = vector.broadcast %30 : f32 to vector<32x128xf32>
    %337 = arith.mulf %336, %320 : vector<32x128xf32>
    %338 = vector.broadcast %39 : f32 to vector<32x128xf32>
    %339 = arith.mulf %338, %322 : vector<32x128xf32>
    %340 = arith.addf %337, %339 : vector<32x128xf32>
    %341 = vector.broadcast %48 : f32 to vector<32x128xf32>
    %342 = arith.mulf %341, %324 : vector<32x128xf32>
    %343 = arith.addf %340, %342 : vector<32x128xf32>
    %c127_i32_111 = arith.constant 127 : i32
    %344 = tpu.dynamic_rotate %343 by %c127_i32_111 dim 1 : vector<32x128xf32>, i32 -> vector<32x128xf32>
    %cst_112 = arith.constant 0.000000e+00 : f32
    %345 = vector.broadcast %cst_112 : f32 to vector<32x128xf32>
    %346 = arith.select %23, %344, %345 : vector<32x128xi1>, vector<32x128xf32>
    %347 = vector.broadcast %29 : f32 to vector<32x128xf32>
    %348 = arith.mulf %347, %320 : vector<32x128xf32>
    %349 = vector.broadcast %38 : f32 to vector<32x128xf32>
    %350 = arith.mulf %349, %322 : vector<32x128xf32>
    %351 = arith.addf %348, %350 : vector<32x128xf32>
    %352 = vector.broadcast %47 : f32 to vector<32x128xf32>
    %353 = arith.mulf %352, %324 : vector<32x128xf32>
    %354 = arith.addf %351, %353 : vector<32x128xf32>
    %355 = arith.addf %354, %335 : vector<32x128xf32>
    %356 = arith.addf %355, %346 : vector<32x128xf32>
    %c64_i32_113 = arith.constant 64 : i32
    %357 = tpu.dynamic_rotate %356 by %c64_i32_113 dim 1 : vector<32x128xf32>, i32 -> vector<32x128xf32>
    %c1_i32_114 = arith.constant 1 : i32
    %358 = tpu.dynamic_rotate %357 by %c1_i32_114 dim 0 : vector<32x128xf32>, i32 -> vector<32x128xf32>
    %cst_115 = arith.constant 0.000000e+00 : f32
    %359 = vector.broadcast %cst_115 : f32 to vector<32x128xf32>
    %360 = arith.select %25, %358, %359 : vector<32x128xi1>, vector<32x128xf32>
    %361 = arith.select %19, %357, %360 : vector<32x128xi1>, vector<32x128xf32>
    %362 = vector.broadcast %31 : f32 to vector<32x128xf32>
    %363 = arith.mulf %362, %320 : vector<32x128xf32>
    %364 = vector.broadcast %40 : f32 to vector<32x128xf32>
    %365 = arith.mulf %364, %322 : vector<32x128xf32>
    %366 = arith.addf %363, %365 : vector<32x128xf32>
    %367 = vector.broadcast %49 : f32 to vector<32x128xf32>
    %368 = arith.mulf %367, %324 : vector<32x128xf32>
    %369 = arith.addf %366, %368 : vector<32x128xf32>
    %c1_i32_116 = arith.constant 1 : i32
    %370 = tpu.dynamic_rotate %369 by %c1_i32_116 dim 1 : vector<32x128xf32>, i32 -> vector<32x128xf32>
    %cst_117 = arith.constant 0.000000e+00 : f32
    %371 = vector.broadcast %cst_117 : f32 to vector<32x128xf32>
    %372 = arith.select %21, %370, %371 : vector<32x128xi1>, vector<32x128xf32>
    %373 = vector.broadcast %33 : f32 to vector<32x128xf32>
    %374 = arith.mulf %373, %320 : vector<32x128xf32>
    %375 = vector.broadcast %42 : f32 to vector<32x128xf32>
    %376 = arith.mulf %375, %322 : vector<32x128xf32>
    %377 = arith.addf %374, %376 : vector<32x128xf32>
    %378 = vector.broadcast %51 : f32 to vector<32x128xf32>
    %379 = arith.mulf %378, %324 : vector<32x128xf32>
    %380 = arith.addf %377, %379 : vector<32x128xf32>
    %c127_i32_118 = arith.constant 127 : i32
    %381 = tpu.dynamic_rotate %380 by %c127_i32_118 dim 1 : vector<32x128xf32>, i32 -> vector<32x128xf32>
    %cst_119 = arith.constant 0.000000e+00 : f32
    %382 = vector.broadcast %cst_119 : f32 to vector<32x128xf32>
    %383 = arith.select %23, %381, %382 : vector<32x128xi1>, vector<32x128xf32>
    %384 = vector.broadcast %32 : f32 to vector<32x128xf32>
    %385 = arith.mulf %384, %320 : vector<32x128xf32>
    %386 = vector.broadcast %41 : f32 to vector<32x128xf32>
    %387 = arith.mulf %386, %322 : vector<32x128xf32>
    %388 = arith.addf %385, %387 : vector<32x128xf32>
    %389 = vector.broadcast %50 : f32 to vector<32x128xf32>
    %390 = arith.mulf %389, %324 : vector<32x128xf32>
    %391 = arith.addf %388, %390 : vector<32x128xf32>
    %392 = arith.addf %391, %372 : vector<32x128xf32>
    %393 = arith.addf %392, %383 : vector<32x128xf32>
    %394 = arith.addf %361, %393 : vector<32x128xf32>
    %395 = vector.broadcast %34 : f32 to vector<32x128xf32>
    %396 = arith.mulf %395, %320 : vector<32x128xf32>
    %397 = vector.broadcast %43 : f32 to vector<32x128xf32>
    %398 = arith.mulf %397, %322 : vector<32x128xf32>
    %399 = arith.addf %396, %398 : vector<32x128xf32>
    %400 = vector.broadcast %52 : f32 to vector<32x128xf32>
    %401 = arith.mulf %400, %324 : vector<32x128xf32>
    %402 = arith.addf %399, %401 : vector<32x128xf32>
    %c1_i32_120 = arith.constant 1 : i32
    %403 = tpu.dynamic_rotate %402 by %c1_i32_120 dim 1 : vector<32x128xf32>, i32 -> vector<32x128xf32>
    %cst_121 = arith.constant 0.000000e+00 : f32
    %404 = vector.broadcast %cst_121 : f32 to vector<32x128xf32>
    %405 = arith.select %21, %403, %404 : vector<32x128xi1>, vector<32x128xf32>
    %406 = vector.broadcast %36 : f32 to vector<32x128xf32>
    %407 = arith.mulf %406, %320 : vector<32x128xf32>
    %408 = vector.broadcast %45 : f32 to vector<32x128xf32>
    %409 = arith.mulf %408, %322 : vector<32x128xf32>
    %410 = arith.addf %407, %409 : vector<32x128xf32>
    %411 = vector.broadcast %54 : f32 to vector<32x128xf32>
    %412 = arith.mulf %411, %324 : vector<32x128xf32>
    %413 = arith.addf %410, %412 : vector<32x128xf32>
    %c127_i32_122 = arith.constant 127 : i32
    %414 = tpu.dynamic_rotate %413 by %c127_i32_122 dim 1 : vector<32x128xf32>, i32 -> vector<32x128xf32>
    %cst_123 = arith.constant 0.000000e+00 : f32
    %415 = vector.broadcast %cst_123 : f32 to vector<32x128xf32>
    %416 = arith.select %23, %414, %415 : vector<32x128xi1>, vector<32x128xf32>
    %417 = vector.broadcast %35 : f32 to vector<32x128xf32>
    %418 = arith.mulf %417, %320 : vector<32x128xf32>
    %419 = vector.broadcast %44 : f32 to vector<32x128xf32>
    %420 = arith.mulf %419, %322 : vector<32x128xf32>
    %421 = arith.addf %418, %420 : vector<32x128xf32>
    %422 = vector.broadcast %53 : f32 to vector<32x128xf32>
    %423 = arith.mulf %422, %324 : vector<32x128xf32>
    %424 = arith.addf %421, %423 : vector<32x128xf32>
    %425 = arith.addf %424, %405 : vector<32x128xf32>
    %426 = arith.addf %425, %416 : vector<32x128xf32>
    %c64_i32_124 = arith.constant 64 : i32
    %427 = tpu.dynamic_rotate %426 by %c64_i32_124 dim 1 : vector<32x128xf32>, i32 -> vector<32x128xf32>
    %c31_i32_125 = arith.constant 31 : i32
    %428 = tpu.dynamic_rotate %427 by %c31_i32_125 dim 0 : vector<32x128xf32>, i32 -> vector<32x128xf32>
    %cst_126 = arith.constant 0.000000e+00 : f32
    %429 = vector.broadcast %cst_126 : f32 to vector<32x128xf32>
    %430 = arith.select %27, %428, %429 : vector<32x128xi1>, vector<32x128xf32>
    %431 = arith.select %19, %430, %427 : vector<32x128xi1>, vector<32x128xf32>
    %432 = arith.addf %394, %431 : vector<32x128xf32>
    %c2_127 = arith.constant 2 : index
    %c0_128 = arith.constant 0 : index
    %c0_129 = arith.constant 0 : index
    %c0_130 = arith.constant 0 : index
    %433 = vector.load %arg4[%c2_127, %c0_128, %c0_129, %c0_130] : memref<4x1x128x128xf32, #tpu.memory_space<vmem>>, vector<1x1x128x128xf32>
    %434 = vector.shape_cast %433 : vector<1x1x128x128xf32> to vector<128x128xf32>
    %c127_i32_131 = arith.constant 127 : i32
    %435 = tpu.dynamic_rotate %434 by %c127_i32_131 dim 1 : vector<128x128xf32>, i32 -> vector<128x128xf32>
    %436 = arith.maximumf %434, %435 : vector<128x128xf32>
    %c127_i32_132 = arith.constant 127 : i32
    %437 = tpu.dynamic_rotate %436 by %c127_i32_132 dim 0 : vector<128x128xf32>, i32 -> vector<128x128xf32>
    %438 = arith.maximumf %436, %437 : vector<128x128xf32>
    %cst_133 = arith.constant dense<0.000000e+00> : vector<128x128xf32>
    %439 = tpu.matmul %438, %58, %cst_133 {dimension_numbers = #tpu.dot_dimension_numbers<[1], [0], [0], [1], [0, 0, 1, 1], [], []>, precision = #tpu.contract_precision<fp32>} : vector<128x128xf32>, vector<128x128xf32>, vector<128x128xf32> -> vector<128x128xf32>
    %cst_134 = arith.constant dense<0.000000e+00> : vector<32x128xf32>
    %440 = tpu.matmul %56, %439, %cst_134 {dimension_numbers = #tpu.dot_dimension_numbers<[1], [0], [0], [1], [0, 0, 1, 1], [], []>, precision = #tpu.contract_precision<fp32>} : vector<32x128xf32>, vector<128x128xf32>, vector<32x128xf32> -> vector<32x128xf32>
    %cst_135 = arith.constant dense<0.000000e+00> : vector<32x128xf32>
    %441 = tpu.matmul %57, %439, %cst_135 {dimension_numbers = #tpu.dot_dimension_numbers<[1], [0], [0], [1], [0, 0, 1, 1], [], []>, precision = #tpu.contract_precision<fp32>} : vector<32x128xf32>, vector<128x128xf32>, vector<32x128xf32> -> vector<32x128xf32>
    %442 = arith.select %19, %441, %440 : vector<32x128xi1>, vector<32x128xf32>
    %443 = arith.addf %432, %442 : vector<32x128xf32>
    %444 = vector.broadcast %55 : f32 to vector<32x128xf32>
    %445 = arith.addf %443, %444 : vector<32x128xf32>
    %c2_136 = arith.constant 2 : index
    %c0_137 = arith.constant 0 : index
    %c0_138 = arith.constant 0 : index
    %c0_139 = arith.constant 0 : index
    %446 = vector.load %arg8[%c2_136, %c0_137, %c0_138, %c0_139] : memref<4x1x32x128xf32, #tpu.memory_space<vmem>>, vector<1x1x32x128xf32>
    %447 = vector.shape_cast %446 : vector<1x1x32x128xf32> to vector<32x128xf32>
    %448 = vector.shape_cast %445 : vector<32x128xf32> to vector<1x1x32x128xf32>
    tpu.vector_store %arg8[%c2_136, %c0_137, %c0_138, %c0_139], %448 {strides = array<i32>} : memref<4x1x32x128xf32, #tpu.memory_space<vmem>>, vector<1x1x32x128xf32>,
    %c3_140 = arith.constant 3 : index
    %c0_141 = arith.constant 0 : index
    %c0_142 = arith.constant 0 : index
    %c0_143 = arith.constant 0 : index
    %449 = vector.load %arg3[%c3_140, %c0_141, %c0_142, %c0_143] : memref<4x3x32x128xf32, #tpu.memory_space<vmem>>, vector<1x1x32x128xf32>
    %450 = vector.shape_cast %449 : vector<1x1x32x128xf32> to vector<32x128xf32>
    %c3_144 = arith.constant 3 : index
    %c1_145 = arith.constant 1 : index
    %c0_146 = arith.constant 0 : index
    %c0_147 = arith.constant 0 : index
    %451 = vector.load %arg3[%c3_144, %c1_145, %c0_146, %c0_147] : memref<4x3x32x128xf32, #tpu.memory_space<vmem>>, vector<1x1x32x128xf32>
    %452 = vector.shape_cast %451 : vector<1x1x32x128xf32> to vector<32x128xf32>
    %c3_148 = arith.constant 3 : index
    %c2_149 = arith.constant 2 : index
    %c0_150 = arith.constant 0 : index
    %c0_151 = arith.constant 0 : index
    %453 = vector.load %arg3[%c3_148, %c2_149, %c0_150, %c0_151] : memref<4x3x32x128xf32, #tpu.memory_space<vmem>>, vector<1x1x32x128xf32>
    %454 = vector.shape_cast %453 : vector<1x1x32x128xf32> to vector<32x128xf32>
    %455 = vector.broadcast %28 : f32 to vector<32x128xf32>
    %456 = arith.mulf %455, %450 : vector<32x128xf32>
    %457 = vector.broadcast %37 : f32 to vector<32x128xf32>
    %458 = arith.mulf %457, %452 : vector<32x128xf32>
    %459 = arith.addf %456, %458 : vector<32x128xf32>
    %460 = vector.broadcast %46 : f32 to vector<32x128xf32>
    %461 = arith.mulf %460, %454 : vector<32x128xf32>
    %462 = arith.addf %459, %461 : vector<32x128xf32>
    %c1_i32_152 = arith.constant 1 : i32
    %463 = tpu.dynamic_rotate %462 by %c1_i32_152 dim 1 : vector<32x128xf32>, i32 -> vector<32x128xf32>
    %cst_153 = arith.constant 0.000000e+00 : f32
    %464 = vector.broadcast %cst_153 : f32 to vector<32x128xf32>
    %465 = arith.select %21, %463, %464 : vector<32x128xi1>, vector<32x128xf32>
    %466 = vector.broadcast %30 : f32 to vector<32x128xf32>
    %467 = arith.mulf %466, %450 : vector<32x128xf32>
    %468 = vector.broadcast %39 : f32 to vector<32x128xf32>
    %469 = arith.mulf %468, %452 : vector<32x128xf32>
    %470 = arith.addf %467, %469 : vector<32x128xf32>
    %471 = vector.broadcast %48 : f32 to vector<32x128xf32>
    %472 = arith.mulf %471, %454 : vector<32x128xf32>
    %473 = arith.addf %470, %472 : vector<32x128xf32>
    %c127_i32_154 = arith.constant 127 : i32
    %474 = tpu.dynamic_rotate %473 by %c127_i32_154 dim 1 : vector<32x128xf32>, i32 -> vector<32x128xf32>
    %cst_155 = arith.constant 0.000000e+00 : f32
    %475 = vector.broadcast %cst_155 : f32 to vector<32x128xf32>
    %476 = arith.select %23, %474, %475 : vector<32x128xi1>, vector<32x128xf32>
    %477 = vector.broadcast %29 : f32 to vector<32x128xf32>
    %478 = arith.mulf %477, %450 : vector<32x128xf32>
    %479 = vector.broadcast %38 : f32 to vector<32x128xf32>
    %480 = arith.mulf %479, %452 : vector<32x128xf32>
    %481 = arith.addf %478, %480 : vector<32x128xf32>
    %482 = vector.broadcast %47 : f32 to vector<32x128xf32>
    %483 = arith.mulf %482, %454 : vector<32x128xf32>
    %484 = arith.addf %481, %483 : vector<32x128xf32>
    %485 = arith.addf %484, %465 : vector<32x128xf32>
    %486 = arith.addf %485, %476 : vector<32x128xf32>
    %c64_i32_156 = arith.constant 64 : i32
    %487 = tpu.dynamic_rotate %486 by %c64_i32_156 dim 1 : vector<32x128xf32>, i32 -> vector<32x128xf32>
    %c1_i32_157 = arith.constant 1 : i32
    %488 = tpu.dynamic_rotate %487 by %c1_i32_157 dim 0 : vector<32x128xf32>, i32 -> vector<32x128xf32>
    %cst_158 = arith.constant 0.000000e+00 : f32
    %489 = vector.broadcast %cst_158 : f32 to vector<32x128xf32>
    %490 = arith.select %25, %488, %489 : vector<32x128xi1>, vector<32x128xf32>
    %491 = arith.select %19, %487, %490 : vector<32x128xi1>, vector<32x128xf32>
    %492 = vector.broadcast %31 : f32 to vector<32x128xf32>
    %493 = arith.mulf %492, %450 : vector<32x128xf32>
    %494 = vector.broadcast %40 : f32 to vector<32x128xf32>
    %495 = arith.mulf %494, %452 : vector<32x128xf32>
    %496 = arith.addf %493, %495 : vector<32x128xf32>
    %497 = vector.broadcast %49 : f32 to vector<32x128xf32>
    %498 = arith.mulf %497, %454 : vector<32x128xf32>
    %499 = arith.addf %496, %498 : vector<32x128xf32>
    %c1_i32_159 = arith.constant 1 : i32
    %500 = tpu.dynamic_rotate %499 by %c1_i32_159 dim 1 : vector<32x128xf32>, i32 -> vector<32x128xf32>
    %cst_160 = arith.constant 0.000000e+00 : f32
    %501 = vector.broadcast %cst_160 : f32 to vector<32x128xf32>
    %502 = arith.select %21, %500, %501 : vector<32x128xi1>, vector<32x128xf32>
    %503 = vector.broadcast %33 : f32 to vector<32x128xf32>
    %504 = arith.mulf %503, %450 : vector<32x128xf32>
    %505 = vector.broadcast %42 : f32 to vector<32x128xf32>
    %506 = arith.mulf %505, %452 : vector<32x128xf32>
    %507 = arith.addf %504, %506 : vector<32x128xf32>
    %508 = vector.broadcast %51 : f32 to vector<32x128xf32>
    %509 = arith.mulf %508, %454 : vector<32x128xf32>
    %510 = arith.addf %507, %509 : vector<32x128xf32>
    %c127_i32_161 = arith.constant 127 : i32
    %511 = tpu.dynamic_rotate %510 by %c127_i32_161 dim 1 : vector<32x128xf32>, i32 -> vector<32x128xf32>
    %cst_162 = arith.constant 0.000000e+00 : f32
    %512 = vector.broadcast %cst_162 : f32 to vector<32x128xf32>
    %513 = arith.select %23, %511, %512 : vector<32x128xi1>, vector<32x128xf32>
    %514 = vector.broadcast %32 : f32 to vector<32x128xf32>
    %515 = arith.mulf %514, %450 : vector<32x128xf32>
    %516 = vector.broadcast %41 : f32 to vector<32x128xf32>
    %517 = arith.mulf %516, %452 : vector<32x128xf32>
    %518 = arith.addf %515, %517 : vector<32x128xf32>
    %519 = vector.broadcast %50 : f32 to vector<32x128xf32>
    %520 = arith.mulf %519, %454 : vector<32x128xf32>
    %521 = arith.addf %518, %520 : vector<32x128xf32>
    %522 = arith.addf %521, %502 : vector<32x128xf32>
    %523 = arith.addf %522, %513 : vector<32x128xf32>
    %524 = arith.addf %491, %523 : vector<32x128xf32>
    %525 = vector.broadcast %34 : f32 to vector<32x128xf32>
    %526 = arith.mulf %525, %450 : vector<32x128xf32>
    %527 = vector.broadcast %43 : f32 to vector<32x128xf32>
    %528 = arith.mulf %527, %452 : vector<32x128xf32>
    %529 = arith.addf %526, %528 : vector<32x128xf32>
    %530 = vector.broadcast %52 : f32 to vector<32x128xf32>
    %531 = arith.mulf %530, %454 : vector<32x128xf32>
    %532 = arith.addf %529, %531 : vector<32x128xf32>
    %c1_i32_163 = arith.constant 1 : i32
    %533 = tpu.dynamic_rotate %532 by %c1_i32_163 dim 1 : vector<32x128xf32>, i32 -> vector<32x128xf32>
    %cst_164 = arith.constant 0.000000e+00 : f32
    %534 = vector.broadcast %cst_164 : f32 to vector<32x128xf32>
    %535 = arith.select %21, %533, %534 : vector<32x128xi1>, vector<32x128xf32>
    %536 = vector.broadcast %36 : f32 to vector<32x128xf32>
    %537 = arith.mulf %536, %450 : vector<32x128xf32>
    %538 = vector.broadcast %45 : f32 to vector<32x128xf32>
    %539 = arith.mulf %538, %452 : vector<32x128xf32>
    %540 = arith.addf %537, %539 : vector<32x128xf32>
    %541 = vector.broadcast %54 : f32 to vector<32x128xf32>
    %542 = arith.mulf %541, %454 : vector<32x128xf32>
    %543 = arith.addf %540, %542 : vector<32x128xf32>
    %c127_i32_165 = arith.constant 127 : i32
    %544 = tpu.dynamic_rotate %543 by %c127_i32_165 dim 1 : vector<32x128xf32>, i32 -> vector<32x128xf32>
    %cst_166 = arith.constant 0.000000e+00 : f32
    %545 = vector.broadcast %cst_166 : f32 to vector<32x128xf32>
    %546 = arith.select %23, %544, %545 : vector<32x128xi1>, vector<32x128xf32>
    %547 = vector.broadcast %35 : f32 to vector<32x128xf32>
    %548 = arith.mulf %547, %450 : vector<32x128xf32>
    %549 = vector.broadcast %44 : f32 to vector<32x128xf32>
    %550 = arith.mulf %549, %452 : vector<32x128xf32>
    %551 = arith.addf %548, %550 : vector<32x128xf32>
    %552 = vector.broadcast %53 : f32 to vector<32x128xf32>
    %553 = arith.mulf %552, %454 : vector<32x128xf32>
    %554 = arith.addf %551, %553 : vector<32x128xf32>
    %555 = arith.addf %554, %535 : vector<32x128xf32>
    %556 = arith.addf %555, %546 : vector<32x128xf32>
    %c64_i32_167 = arith.constant 64 : i32
    %557 = tpu.dynamic_rotate %556 by %c64_i32_167 dim 1 : vector<32x128xf32>, i32 -> vector<32x128xf32>
    %c31_i32_168 = arith.constant 31 : i32
    %558 = tpu.dynamic_rotate %557 by %c31_i32_168 dim 0 : vector<32x128xf32>, i32 -> vector<32x128xf32>
    %cst_169 = arith.constant 0.000000e+00 : f32
    %559 = vector.broadcast %cst_169 : f32 to vector<32x128xf32>
    %560 = arith.select %27, %558, %559 : vector<32x128xi1>, vector<32x128xf32>
    %561 = arith.select %19, %560, %557 : vector<32x128xi1>, vector<32x128xf32>
    %562 = arith.addf %524, %561 : vector<32x128xf32>
    %c3_170 = arith.constant 3 : index
    %c0_171 = arith.constant 0 : index
    %c0_172 = arith.constant 0 : index
    %c0_173 = arith.constant 0 : index
    %563 = vector.load %arg4[%c3_170, %c0_171, %c0_172, %c0_173] : memref<4x1x128x128xf32, #tpu.memory_space<vmem>>, vector<1x1x128x128xf32>
    %564 = vector.shape_cast %563 : vector<1x1x128x128xf32> to vector<128x128xf32>
    %c127_i32_174 = arith.constant 127 : i32
    %565 = tpu.dynamic_rotate %564 by %c127_i32_174 dim 1 : vector<128x128xf32>, i32 -> vector<128x128xf32>
    %566 = arith.maximumf %564, %565 : vector<128x128xf32>
    %c127_i32_175 = arith.constant 127 : i32
    %567 = tpu.dynamic_rotate %566 by %c127_i32_175 dim 0 : vector<128x128xf32>, i32 -> vector<128x128xf32>
    %568 = arith.maximumf %566, %567 : vector<128x128xf32>
    %cst_176 = arith.constant dense<0.000000e+00> : vector<128x128xf32>
    %569 = tpu.matmul %568, %58, %cst_176 {dimension_numbers = #tpu.dot_dimension_numbers<[1], [0], [0], [1], [0, 0, 1, 1], [], []>, precision = #tpu.contract_precision<fp32>} : vector<128x128xf32>, vector<128x128xf32>, vector<128x128xf32> -> vector<128x128xf32>
    %cst_177 = arith.constant dense<0.000000e+00> : vector<32x128xf32>
    %570 = tpu.matmul %56, %569, %cst_177 {dimension_numbers = #tpu.dot_dimension_numbers<[1], [0], [0], [1], [0, 0, 1, 1], [], []>, precision = #tpu.contract_precision<fp32>} : vector<32x128xf32>, vector<128x128xf32>, vector<32x128xf32> -> vector<32x128xf32>
    %cst_178 = arith.constant dense<0.000000e+00> : vector<32x128xf32>
    %571 = tpu.matmul %57, %569, %cst_178 {dimension_numbers = #tpu.dot_dimension_numbers<[1], [0], [0], [1], [0, 0, 1, 1], [], []>, precision = #tpu.contract_precision<fp32>} : vector<32x128xf32>, vector<128x128xf32>, vector<32x128xf32> -> vector<32x128xf32>
    %572 = arith.select %19, %571, %570 : vector<32x128xi1>, vector<32x128xf32>
    %573 = arith.addf %562, %572 : vector<32x128xf32>
    %574 = vector.broadcast %55 : f32 to vector<32x128xf32>
    %575 = arith.addf %573, %574 : vector<32x128xf32>
    %c3_179 = arith.constant 3 : index
    %c0_180 = arith.constant 0 : index
    %c0_181 = arith.constant 0 : index
    %c0_182 = arith.constant 0 : index
    %576 = vector.load %arg8[%c3_179, %c0_180, %c0_181, %c0_182] : memref<4x1x32x128xf32, #tpu.memory_space<vmem>>, vector<1x1x32x128xf32>
    %577 = vector.shape_cast %576 : vector<1x1x32x128xf32> to vector<32x128xf32>
    %578 = vector.shape_cast %575 : vector<32x128xf32> to vector<1x1x32x128xf32>
    tpu.vector_store %arg8[%c3_179, %c0_180, %c0_181, %c0_182], %578 {strides = array<i32>} : memref<4x1x32x128xf32, #tpu.memory_space<vmem>>, vector<1x1x32x128xf32>,
    return
  }
  func.func @transform_0(%arg0: i32) -> i32 {
    %c0_i32 = arith.constant 0 : i32
    %c0_i32_0 = arith.constant 0 : i32
    return %c0_i32 : i32
  }
  func.func @transform_1(%arg0: i32) -> i32 {
    %c0_i32 = arith.constant 0 : i32
    %c0_i32_0 = arith.constant 0 : i32
    return %c0_i32 : i32
  }
  func.func @transform_2(%arg0: i32) -> (i32, i32, i32, i32) {
    %c0_i32 = arith.constant 0 : i32
    %c0_i32_0 = arith.constant 0 : i32
    %c0_i32_1 = arith.constant 0 : i32
    %c0_i32_2 = arith.constant 0 : i32
    return %arg0, %c0_i32, %c0_i32_0, %c0_i32_1 : i32, i32, i32, i32
  }
  func.func @transform_3(%arg0: i32) -> (i32, i32, i32, i32) {
    %c0_i32 = arith.constant 0 : i32
    %c0_i32_0 = arith.constant 0 : i32
    %c0_i32_1 = arith.constant 0 : i32
    %c0_i32_2 = arith.constant 0 : i32
    return %arg0, %c0_i32, %c0_i32_0, %c0_i32_1 : i32, i32, i32, i32
  }
  func.func @transform_4(%arg0: i32) -> (i32, i32) {
    %c0_i32 = arith.constant 0 : i32
    %c0_i32_0 = arith.constant 0 : i32
    %c0_i32_1 = arith.constant 0 : i32
    return %c0_i32, %c0_i32_0 : i32, i32
  }
  func.func @transform_5(%arg0: i32) -> (i32, i32) {
    %c0_i32 = arith.constant 0 : i32
    %c0_i32_0 = arith.constant 0 : i32
    %c0_i32_1 = arith.constant 0 : i32
    return %c0_i32, %c0_i32_0 : i32, i32
  }
  func.func @transform_6(%arg0: i32) -> (i32, i32) {
    %c0_i32 = arith.constant 0 : i32
    %c0_i32_0 = arith.constant 0 : i32
    %c0_i32_1 = arith.constant 0 : i32
    return %c0_i32, %c0_i32_0 : i32, i32
  }
  func.func @transform_7(%arg0: i32) -> (i32, i32, i32, i32) {
    %c0_i32 = arith.constant 0 : i32
    %c0_i32_0 = arith.constant 0 : i32
    %c0_i32_1 = arith.constant 0 : i32
    %c0_i32_2 = arith.constant 0 : i32
    return %arg0, %c0_i32, %c0_i32_0, %c0_i32_1 : i32, i32, i32, i32
  }
}

</mosaic_0001>

<llo_original>
// kernel: model_forward.1
$region0: #{model_forward.1}
  #allocation0 [shape = 'u32[]', space=smem, size = 0x4, offset = 0x4, fixed_abs, tag = 'smem constant byte address 0x4 - core index']
  #allocation1 [shape = 'u32[72,128]{1,0:T(1,128)}', space=vmem, size = 0x9000, scoped, tag = 'internal scratch']
  #allocation2 [shape = 'f32[1]{0:T(128)S(6)}', space=smem, size = 0x200, scoped, tag = 'scoped memory for model_forward.1']
  %s0 = inlined_call_operand.vmem [shape: f32[27], index: 0, kind: input, shape index: {}]
  %s1 = inlined_call_operand.<no memory space> [shape: f32[1], index: 1, kind: input, shape index: {}]
  %s2 = inlined_call_operand.vmem [shape: f32[8,3,32,128], index: 2, kind: input, shape index: {}]
  %s3 = inlined_call_operand.vmem [shape: f32[8,1,128,128], index: 3, kind: input, shape index: {}]
  %s4 = inlined_call_operand.vmem [shape: f32[32,128], index: 4, kind: input, shape index: {}]
  %s5 = inlined_call_operand.vmem [shape: f32[32,128], index: 5, kind: input, shape index: {}]
  %s6 = inlined_call_operand.vmem [shape: f32[128,128], index: 6, kind: input, shape index: {}]
  %s7 = inlined_call_operand.vmem [shape: f32[8,1,32,128], index: 7, kind: output, shape index: {}]
  %s8 = sld [smem:[#allocation0]]
  $region65: #{model_forward.1} parent=0
    _
  %s10 = ssub.s32 1, %s8
  %s11 = scalar_select 0, %s10, %s8
  %12 = sst [smem:[#allocation2]] %s1
  $region1: #{model_forward.1} parent=0
    #allocation3 [shape = 'u8[512]{0}', space=smem, size = 0x200, scoped, tag = 'input window, operand 0, single buffered']
    #allocation4 [shape = 's32[2]{0}', space=sflag, size = 0x8, scoped, tag = 'scoped memory for model_forward.1']
    %13 = vsyncpa [#allocation4], 0
    loop: start=0, step=1, limit=4
    $region2: #{model_forward.1} parent=1 // loop_pre_header
      _
    $region3: #{model_forward.1} parent=1 // loop_header
      %s15 = sphi 0, %s19
      %p16 = scmp.ge.s32.totalorder %s15, 4
      %s23 = sphi 0, %s23
      %s25 = sphi 0, %s23
      %s26 = sphi 0, %s25
      %s40 = sphi 0, %s26
      %s44 = sphi 0, %s44
      %s46 = sphi 0, %s44
      %s47 = sphi 0, %s46
      %s61 = sphi 0, %s47
      %s67 = sphi 0, %s69
      %s70 = sphi 0, %s67
      %s71 = sphi 0, %s70
      %s87 = sphi 0, %s71
      %s93 = sphi 0, %s95
      %s96 = sphi 0, %s93
      %s97 = sphi 0, %s96
      %s113 = sphi 0, %s97
      %s117 = sphi 0, %s117
      %s119 = sphi 0, %s117
      %s120 = sphi 0, %s119
      %s134 = sphi 0, %s120
      %s138 = sphi 0, %s138
      %s140 = sphi 0, %s138
      %s141 = sphi 0, %s140
      %s155 = sphi 0, %s141
      %s159 = sphi 0, %s159
      %s161 = sphi 0, %s159
      %s162 = sphi 0, %s161
      %s176 = sphi 0, %s162
      %s182 = sphi 0, %s184
      %s185 = sphi 0, %s182
      %s186 = sphi 0, %s185
      %s202 = sphi 0, %s186
    $region4: #{model_forward.1} parent=1 // loop_header_branch
      %18 = sbr.rel (%p16) target = $region8
    $region5: #{model_forward.1} parent=1 // loop_body
      %s20 = ssub.s32 %s15, 1
      %s21 = ssub.s32 %s15, 2
      %s22 = sadd.s32 %s15, 1
      %s24 = sadd.s32 %s23, 1
      %p27 = scmp.eq.s32.totalorder %s15, 1
      %p28 = scmp.ne.s32.totalorder %s23, %s25
      %p29 = scmp.eq.s32.totalorder %s15, 0
      %p30 = por %p28, %p29
      %p31 = scmp.ne.s32.totalorder %s23, %s25
      %p32 = scmp.eq.s32.totalorder %s20, 1
      %p33 = por %p31, %p32
      %p34 = scmp.ne.s32.totalorder %s25, %s26
      %p35 = scmp.eq.s32.totalorder %s20, 0
      %p36 = por %p34, %p35
      %p37 = scmp.ne.s32.totalorder %s25, %s26
      %p38 = scmp.eq.s32.totalorder %s21, 1
      %p39 = por %p37, %p38
      %p41 = scmp.ne.s32.totalorder %s26, %s40
      %p42 = scmp.eq.s32.totalorder %s21, 0
      %p43 = por %p41, %p42
      %s45 = sadd.s32 %s44, 1
      %p48 = scmp.eq.s32.totalorder %s15, 1
      %p49 = scmp.ne.s32.totalorder %s44, %s46
      %p50 = scmp.eq.s32.totalorder %s15, 0
      %p51 = por %p49, %p50
      %p52 = scmp.ne.s32.totalorder %s44, %s46
      %p53 = scmp.eq.s32.totalorder %s20, 1
      %p54 = por %p52, %p53
      %p55 = scmp.ne.s32.totalorder %s46, %s47
      %p56 = scmp.eq.s32.totalorder %s20, 0
      %p57 = por %p55, %p56
      %p58 = scmp.ne.s32.totalorder %s46, %s47
      %p59 = scmp.eq.s32.totalorder %s21, 1
      %p60 = por %p58, %p59
      %p62 = scmp.ne.s32.totalorder %s47, %s61
      %p63 = scmp.eq.s32.totalorder %s21, 0
      %p64 = por %p62, %p63
      %s65 = ssub.s32 %s15, %s22
      %p66 = scmp.eq.s32.totalorder %s65, 0
      %s68 = sadd.s32 %s67, 1
      %s69 = scalar_select %p66, %s67, %s68
      %p72 = pneg %p66
      %p73 = scmp.eq.s32.totalorder %s15, 1
      %p74 = por %p72, %p73
      %p75 = scmp.ne.s32.totalorder %s67, %s70
      %p76 = scmp.eq.s32.totalorder %s15, 0
      %p77 = por %p75, %p76
      %p78 = scmp.ne.s32.totalorder %s67, %s70
      %p79 = scmp.eq.s32.totalorder %s20, 1
      %p80 = por %p78, %p79
      %p81 = scmp.ne.s32.totalorder %s70, %s71
      %p82 = scmp.eq.s32.totalorder %s20, 0
      %p83 = por %p81, %p82
      %p84 = scmp.ne.s32.totalorder %s70, %s71
      %p85 = scmp.eq.s32.totalorder %s21, 1
      %p86 = por %p84, %p85
      %p88 = scmp.ne.s32.totalorder %s71, %s87
      %p89 = scmp.eq.s32.totalorder %s21, 0
      %p90 = por %p88, %p89
      %s91 = ssub.s32 %s15, %s22
      %p92 = scmp.eq.s32.totalorder %s91, 0
      %s94 = sadd.s32 %s93, 1
      %s95 = scalar_select %p92, %s93, %s94
      %p98 = pneg %p92
      %p99 = scmp.eq.s32.totalorder %s15, 1
      %p100 = por %p98, %p99
      %p101 = scmp.ne.s32.totalorder %s93, %s96
      %p102 = scmp.eq.s32.totalorder %s15, 0
      %p103 = por %p101, %p102
      %p104 = scmp.ne.s32.totalorder %s93, %s96
      %p105 = scmp.eq.s32.totalorder %s20, 1
      %p106 = por %p104, %p105
      %p107 = scmp.ne.s32.totalorder %s96, %s97
      %p108 = scmp.eq.s32.totalorder %s20, 0
      %p109 = por %p107, %p108
      %p110 = scmp.ne.s32.totalorder %s96, %s97
      %p111 = scmp.eq.s32.totalorder %s21, 1
      %p112 = por %p110, %p111
      %p114 = scmp.ne.s32.totalorder %s97, %s113
      %p115 = scmp.eq.s32.totalorder %s21, 0
      %p116 = por %p114, %p115
      %s118 = sadd.s32 %s117, 1
      %p121 = scmp.eq.s32.totalorder %s15, 1
      %p122 = scmp.ne.s32.totalorder %s117, %s119
      %p123 = scmp.eq.s32.totalorder %s15, 0
      %p124 = por %p122, %p123
      %p125 = scmp.ne.s32.totalorder %s117, %s119
      %p126 = scmp.eq.s32.totalorder %s20, 1
      %p127 = por %p125, %p126
      %p128 = scmp.ne.s32.totalorder %s119, %s120
      %p129 = scmp.eq.s32.totalorder %s20, 0
      %p130 = por %p128, %p129
      %p131 = scmp.ne.s32.totalorder %s119, %s120
      %p132 = scmp.eq.s32.totalorder %s21, 1
      %p133 = por %p131, %p132
      %p135 = scmp.ne.s32.totalorder %s120, %s134
      %p136 = scmp.eq.s32.totalorder %s21, 0
      %p137 = por %p135, %p136
      %s139 = sadd.s32 %s138, 1
      %p142 = scmp.eq.s32.totalorder %s15, 1
      %p143 = scmp.ne.s32.totalorder %s138, %s140
      %p144 = scmp.eq.s32.totalorder %s15, 0
      %p145 = por %p143, %p144
      %p146 = scmp.ne.s32.totalorder %s138, %s140
      %p147 = scmp.eq.s32.totalorder %s20, 1
      %p148 = por %p146, %p147
      %p149 = scmp.ne.s32.totalorder %s140, %s141
      %p150 = scmp.eq.s32.totalorder %s20, 0
      %p151 = por %p149, %p150
      %p152 = scmp.ne.s32.totalorder %s140, %s141
      %p153 = scmp.eq.s32.totalorder %s21, 1
      %p154 = por %p152, %p153
      %p156 = scmp.ne.s32.totalorder %s141, %s155
      %p157 = scmp.eq.s32.totalorder %s21, 0
      %p158 = por %p156, %p157
      %s160 = sadd.s32 %s159, 1
      %p163 = scmp.eq.s32.totalorder %s15, 1
      %p164 = scmp.ne.s32.totalorder %s159, %s161
      %p165 = scmp.eq.s32.totalorder %s15, 0
      %p166 = por %p164, %p165
      %p167 = scmp.ne.s32.totalorder %s159, %s161
      %p168 = scmp.eq.s32.totalorder %s20, 1
      %p169 = por %p167, %p168
      %p170 = scmp.ne.s32.totalorder %s161, %s162
      %p171 = scmp.eq.s32.totalorder %s20, 0
      %p172 = por %p170, %p171
      %p173 = scmp.ne.s32.totalorder %s161, %s162
      %p174 = scmp.eq.s32.totalorder %s21, 1
      %p175 = por %p173, %p174
      %p177 = scmp.ne.s32.totalorder %s162, %s176
      %p178 = scmp.eq.s32.totalorder %s21, 0
      %p179 = por %p177, %p178
      %s180 = ssub.s32 %s15, %s22
      %p181 = scmp.eq.s32.totalorder %s180, 0
      %s183 = sadd.s32 %s182, 1
      %s184 = scalar_select %p181, %s182, %s183
      %p187 = pneg %p181
      %p188 = scmp.eq.s32.totalorder %s15, 1
      %p189 = por %p187, %p188
      %p190 = scmp.ne.s32.totalorder %s182, %s185
      %p191 = scmp.eq.s32.totalorder %s15, 0
      %p192 = por %p190, %p191
      %p193 = scmp.ne.s32.totalorder %s182, %s185
      %p194 = scmp.eq.s32.totalorder %s20, 1
      %p195 = por %p193, %p194
      %p196 = scmp.ne.s32.totalorder %s185, %s186
      %p197 = scmp.eq.s32.totalorder %s20, 0
      %p198 = por %p196, %p197
      %p199 = scmp.ne.s32.totalorder %s185, %s186
      %p200 = scmp.eq.s32.totalorder %s21, 1
      %p201 = por %p199, %p200
      %p203 = scmp.ne.s32.totalorder %s186, %s202
      %p204 = scmp.eq.s32.totalorder %s21, 0
      %p205 = por %p203, %p204
      %p206 = scmp.le.s32.totalorder 1, %s15
      %p207 = scmp.lt.s32.totalorder %s15, 3
      %p208 = pnand %p206, %p207
      %p209 = pneg %p208
      // Predicated region
      $region9: #{model_forward.1} parent=5 // pred_check
        _
      $region10: #{model_forward.1} parent=5 // pred_check_branch
        %211 = sbr.rel (%p208) target = $region12
      $region11: #{model_forward.1} parent=5 // pred_region
        %s212 = ssub.s32 %s15, 1
        // Predicated region
        $region13: #{model_forward.1} parent=11 // pred_check
          %p213 = pneg %p36
        $region14: #{model_forward.1} parent=11 // pred_check_branch
          %215 = sbr.rel (%p213) target = $region16
        $region15: #{model_forward.1} parent=11 // pred_region
          %217 = vsyncadd [#allocation4], 0
          %s219 = sshll.u32 %s0, 4
          %s220 = int_to_ptr.vmem [resolvable:$true] %s219
          %222 = dma.vmem_to_smem %s220, 16, [#allocation3], [#allocation4]
        $region16: #{model_forward.1} parent=11 // pred_fallthru
          _
        // Predicated region
        $region17: #{model_forward.1} parent=11 // pred_check
          %p223 = pneg %p57
        $region18: #{model_forward.1} parent=11 // pred_check_branch
          %225 = sbr.rel (%p223) target = $region20
        $region19: #{model_forward.1} parent=11 // pred_region
          _
        $region20: #{model_forward.1} parent=11 // pred_fallthru
          _
        // Predicated region
        $region21: #{model_forward.1} parent=11 // pred_check
          %p226 = pneg %p130
        $region22: #{model_forward.1} parent=11 // pred_check_branch
          %228 = sbr.rel (%p226) target = $region24
        $region23: #{model_forward.1} parent=11 // pred_region
          _
        $region24: #{model_forward.1} parent=11 // pred_fallthru
          _
        // Predicated region
        $region25: #{model_forward.1} parent=11 // pred_check
          %p229 = pneg %p151
        $region26: #{model_forward.1} parent=11 // pred_check_branch
          %231 = sbr.rel (%p229) target = $region28
        $region27: #{model_forward.1} parent=11 // pred_region
          _
        $region28: #{model_forward.1} parent=11 // pred_fallthru
          _
        // Predicated region
        $region29: #{model_forward.1} parent=11 // pred_check
          %p232 = pneg %p172
        $region30: #{model_forward.1} parent=11 // pred_check_branch
          %234 = sbr.rel (%p232) target = $region32
        $region31: #{model_forward.1} parent=11 // pred_region
          _
        $region32: #{model_forward.1} parent=11 // pred_fallthru
          _
      $region12: #{model_forward.1} parent=5 // pred_fallthru
        _
      %p235 = scmp.lt.s32.totalorder %s15, 2
      // Predicated region
      $region33: #{model_forward.1} parent=5 // pred_check
        %p236 = pneg %p235
      $region34: #{model_forward.1} parent=5 // pred_check_branch
        %238 = sbr.rel (%p236) target = $region36
      $region35: #{model_forward.1} parent=5 // pred_region
        // Predicated region
        $region37: #{model_forward.1} parent=35 // pred_check
          %p239 = pneg %p77
        $region38: #{model_forward.1} parent=35 // pred_check_branch
          %241 = sbr.rel (%p239) target = $region40
        $region39: #{model_forward.1} parent=35 // pred_region
          %s242 = smul.u32 4, %s15
          %p243 = scmp.lt.s32.totalorder %s242, 7
          %s244 = scalar_select %p243, %s242, 7
          %s245 = smul.addr %s244, 12
          %s246 = smul.addr %s245, 8
          %s247 = scalar_lea.vmem %s2, %s246
          %s248 = smul.u32 4, %s15
        $region40: #{model_forward.1} parent=35 // pred_fallthru
          _
        // Predicated region
        $region41: #{model_forward.1} parent=35 // pred_check
          %p249 = pneg %p103
        $region42: #{model_forward.1} parent=35 // pred_check_branch
          %251 = sbr.rel (%p249) target = $region44
        $region43: #{model_forward.1} parent=35 // pred_region
          %s252 = smul.u32 4, %s15
          %p253 = scmp.lt.s32.totalorder %s252, 7
          %s254 = scalar_select %p253, %s252, 7
          %s255 = smul.addr %s254, 16
          %s256 = smul.addr %s255, 8
          %s257 = scalar_lea.vmem %s3, %s256
          %s258 = smul.u32 4, %s15
        $region44: #{model_forward.1} parent=35 // pred_fallthru
          _
      $region36: #{model_forward.1} parent=5 // pred_fallthru
        _
      %p259 = scmp.le.s32.totalorder 1, %s15
      %p260 = scmp.lt.s32.totalorder %s15, 3
      %p261 = pnand %p259, %p260
      %p262 = pneg %p261
      // Predicated region
      $region45: #{model_forward.1} parent=5 // pred_check
        _
      $region46: #{model_forward.1} parent=5 // pred_check_branch
        %264 = sbr.rel (%p261) target = $region48
      $region47: #{model_forward.1} parent=5 // pred_region
        %s265 = ssub.s32 %s15, 1
        // Predicated region
        $region49: #{model_forward.1} parent=47 // pred_check
          %p266 = pneg %p36
        $region50: #{model_forward.1} parent=47 // pred_check_branch
          %268 = sbr.rel (%p266) target = $region52
        $region51: #{model_forward.1} parent=47 // pred_region
          %270 = dma.done [#allocation4], 16
        $region52: #{model_forward.1} parent=47 // pred_fallthru
          _
        %271 = sfence
        %p272 = pneg %p36
        %p273 = pneg %p33
        %p274 = pneg %p57
        %p275 = pneg %p54
        %s276 = smul.u32 4, %s20
        %p277 = scmp.lt.s32.totalorder %s276, 7
        %s278 = scalar_select %p277, %s276, 7
        %s279 = smul.addr %s278, 12
        %s280 = smul.addr %s279, 8
        %s281 = scalar_lea.vmem %s2, %s280
        %p282 = pneg %p83
        %p283 = pneg %p80
        %s284 = smul.u32 4, %s20
        %p285 = scmp.lt.s32.totalorder %s284, 7
        %s286 = scalar_select %p285, %s284, 7
        %s287 = smul.addr %s286, 16
        %s288 = smul.addr %s287, 8
        %s289 = scalar_lea.vmem %s3, %s288
        %p290 = pneg %p109
        %p291 = pneg %p106
        %p292 = pneg %p130
        %p293 = pneg %p127
        %p294 = pneg %p151
        %p295 = pneg %p148
        %p296 = pneg %p172
        %p297 = pneg %p169
        %p298 = pneg %p198
        %p299 = pneg %p195
        %s300 = smul.u32 4, %s20
        %p301 = scmp.lt.s32.totalorder %s300, 7
        %s302 = scalar_select %p301, %s300, 7
        %s303 = smul.addr %s302, 4
        %s304 = smul.addr %s303, 8
        %s305 = scalar_lea.vmem %s7, %s304
        %s306 = smul.u32 4, %s20
        %p307 = scmp.lt.s32.totalorder %s306, 7
        %s308 = scalar_select %p307, %s306, 7
        %s309 = smul.addr %s308, 12
        %s310 = smul.addr %s309, 8
        %s311 = scalar_lea.vmem %s2, %s310
        %s312 = smul.u32 4, %s20
        %s313 = smul.u32 4, %s20
        %p314 = scmp.lt.s32.totalorder %s313, 7
        %s315 = scalar_select %p314, %s313, 7
        %s316 = smul.addr %s315, 16
        %s317 = smul.addr %s316, 8
        %s318 = scalar_lea.vmem %s3, %s317
        %s319 = smul.u32 4, %s20
        %s320 = smul.u32 4, %s20
        %p321 = scmp.lt.s32.totalorder %s320, 7
        %s322 = scalar_select %p321, %s320, 7
        %s323 = smul.addr %s322, 4
        %s324 = smul.addr %s323, 8
        %s325 = scalar_lea.vmem %s7, %s324
        %s326 = smul.u32 4, %s20
        %v327 = vlaneseq
        %v328 = vand.u32 %v327, 127
        %v329 = vlaneseq
        %v330 = vshrl.u32 %v329, 7
        %v331 = vadd.s32 %v330, 8
        %v332 = vadd.s32 %v330, 16
        %v333 = vadd.s32 %v330, 24
        %vm334 = vcmp.lt.s32.totalorder %v328, 0
        %v335 = vsub.s32 0, %v328
        %v336 = vsel %vm334, %v335, %v328
        %v337 = vshrl.u32 %v336, 6
        %v338 = vand.u32 %v336, 63
        %v339 = vsub.s32 0, %v338
        %v340 = vsel %vm334, %v339, %v338
        %vm341 = vcmp.ne.s32.totalorder %v340, 0
        %vm342 = vcmp.lt.s32.totalorder %v340, 0
        %vm343 = vmand %vm342, %vm341
        %v344 = vadd.s32 %v340, 64
        %v345 = vsel %vm343, %v344, %v340
        %vm346 = vcmp.ge.s32.totalorder %v328, 64
        %vm347 = vcmp.gt.s32.totalorder %v345, 0
        %vm348 = vcmp.lt.s32.totalorder %v345, 63
        %vm349 = vcmp.gt.s32.totalorder %v330, 0
        %vm350 = vcmp.gt.s32.totalorder %v331, 0
        %vm351 = vcmp.gt.s32.totalorder %v332, 0
        %vm352 = vcmp.gt.s32.totalorder %v333, 0
        %vm353 = vcmp.lt.s32.totalorder %v330, 31
        %vm354 = vcmp.lt.s32.totalorder %v331, 31
        %vm355 = vcmp.lt.s32.totalorder %v332, 31
        %vm356 = vcmp.lt.s32.totalorder %v333, 31
        %s357 = sld [smem:[#allocation3]]
        %s358 = sld [smem:[#allocation3 + $0x1]]
        %s359 = sld [smem:[#allocation3 + $0x2]]
        %s360 = sld [smem:[#allocation3 + $0x3]]
        %s361 = sld [smem:[#allocation3 + $0x4]]
        %s362 = sld [smem:[#allocation3 + $0x5]]
        %s363 = sld [smem:[#allocation3 + $0x6]]
        %s364 = sld [smem:[#allocation3 + $0x7]]
        %s365 = sld [smem:[#allocation3 + $0x8]]
        %s366 = sld [smem:[#allocation3 + $0x9]]
        %s367 = sld [smem:[#allocation3 + $0xa]]
        %s368 = sld [smem:[#allocation3 + $0xb]]
        %s369 = sld [smem:[#allocation3 + $0xc]]
        %s370 = sld [smem:[#allocation3 + $0xd]]
        %s371 = sld [smem:[#allocation3 + $0xe]]
        %s372 = sld [smem:[#allocation3 + $0xf]]
        %s373 = sld [smem:[#allocation3 + $0x10]]
        %s374 = sld [smem:[#allocation3 + $0x11]]
        %s375 = sld [smem:[#allocation3 + $0x12]]
        %s376 = sld [smem:[#allocation3 + $0x13]]
        %s377 = sld [smem:[#allocation3 + $0x14]]
        %s378 = sld [smem:[#allocation3 + $0x15]]
        %s379 = sld [smem:[#allocation3 + $0x16]]
        %s380 = sld [smem:[#allocation3 + $0x17]]
        %s381 = sld [smem:[#allocation3 + $0x18]]
        %s382 = sld [smem:[#allocation3 + $0x19]]
        %s383 = sld [smem:[#allocation3 + $0x1a]]
        %s384 = sld [smem:[#allocation2]]
        %v385 = vld [vmem:[%s4] sm:$0xff]
        %v386 = vld [vmem:[%s4 + $0x8] sm:$0xff]
        %v387 = vld [vmem:[%s4 + $0x10] sm:$0xff]
        %v388 = vld [vmem:[%s4 + $0x18] sm:$0xff]
        %v389 = vld [vmem:[%s5] sm:$0xff]
        %v390 = vld [vmem:[%s5 + $0x8] sm:$0xff]
        %v391 = vld [vmem:[%s5 + $0x10] sm:$0xff]
        %v392 = vld [vmem:[%s5 + $0x18] sm:$0xff]
        %v393 = vld [vmem:[%s6] sm:$0xff]
        %v394 = vld [vmem:[%s6 + $0x8] sm:$0xff]
        %v395 = vld [vmem:[%s6 + $0x10] sm:$0xff]
        %v396 = vld [vmem:[%s6 + $0x18] sm:$0xff]
        %v397 = vld [vmem:[%s6 + $0x20] sm:$0xff]
        %v398 = vld [vmem:[%s6 + $0x28] sm:$0xff]
        %v399 = vld [vmem:[%s6 + $0x30] sm:$0xff]
        %v400 = vld [vmem:[%s6 + $0x38] sm:$0xff]
        %v401 = vld [vmem:[%s6 + $0x40] sm:$0xff]
        %v402 = vld [vmem:[%s6 + $0x48] sm:$0xff]
        %v403 = vld [vmem:[%s6 + $0x50] sm:$0xff]
        %v404 = vld [vmem:[%s6 + $0x58] sm:$0xff]
        %v405 = vld [vmem:[%s6 + $0x60] sm:$0xff]
        %v406 = vld [vmem:[%s6 + $0x68] sm:$0xff]
        %v407 = vld [vmem:[%s6 + $0x70] sm:$0xff]
        %v408 = vld [vmem:[%s6 + $0x78] sm:$0xff]
        %v409 = vld [vmem:[%s311] sm:$0xff]
        %v410 = vld [vmem:[%s311 + $0x8] sm:$0xff]
        %v411 = vld [vmem:[%s311 + $0x10] sm:$0xff]
        %v412 = vld [vmem:[%s311 + $0x18] sm:$0xff]
        %s413 = scalar_lea.vmem %s311, 32
        %v414 = vld [vmem:[%s413] sm:$0xff]
        %v415 = vld [vmem:[%s413 + $0x8] sm:$0xff]
        %v416 = vld [vmem:[%s413 + $0x10] sm:$0xff]
        %v417 = vld [vmem:[%s413 + $0x18] sm:$0xff]
        %s418 = scalar_lea.vmem %s311, 64
        %v419 = vld [vmem:[%s418] sm:$0xff]
        %v420 = vld [vmem:[%s418 + $0x8] sm:$0xff]
        %v421 = vld [vmem:[%s418 + $0x10] sm:$0xff]
        %v422 = vld [vmem:[%s418 + $0x18] sm:$0xff]
        %v423 = vstv %s357
        %v424 = vmul.f32 %v423, %v409
        %v425 = vmul.f32 %v423, %v410
        %v426 = vmul.f32 %v423, %v411
        %v427 = vmul.f32 %v423, %v412
        %v428 = vstv %s366
        %v429 = vmul.f32 %v428, %v414
        %v430 = vmul.f32 %v428, %v415
        %v431 = vmul.f32 %v428, %v416
        %v432 = vmul.f32 %v428, %v417
        %v433 = vadd.f32 %v424, %v429
        %v434 = vadd.f32 %v425, %v430
        %v435 = vadd.f32 %v426, %v431
        %v436 = vadd.f32 %v427, %v432
        %v437 = vstv %s375
        %v438 = vmul.f32 %v437, %v419
        %v439 = vmul.f32 %v437, %v420
        %v440 = vmul.f32 %v437, %v421
        %v441 = vmul.f32 %v437, %v422
        %v442 = vadd.f32 %v433, %v438
        %v443 = vadd.f32 %v434, %v439
        %v444 = vadd.f32 %v435, %v440
        %v445 = vadd.f32 %v436, %v441
        %446 = vrot.lane.b32.xlu0 %v442, 1
        %v447 = vpop.permute.xlu0 %446
        %448 = vrot.lane.b32.xlu0 %v443, 1
        %v449 = vpop.permute.xlu0 %448
        %450 = vrot.lane.b32.xlu0 %v444, 1
        %v451 = vpop.permute.xlu0 %450
        %452 = vrot.lane.b32.xlu0 %v445, 1
        %v453 = vpop.permute.xlu0 %452
        %v454 = vsel %vm347, %v447, 0.0
        %v455 = vsel %vm347, %v449, 0.0
        %v456 = vsel %vm347, %v451, 0.0
        %v457 = vsel %vm347, %v453, 0.0
        %v458 = vstv %s359
        %v459 = vmul.f32 %v458, %v409
        %v460 = vmul.f32 %v458, %v410
        %v461 = vmul.f32 %v458, %v411
        %v462 = vmul.f32 %v458, %v412
        %v463 = vstv %s368
        %v464 = vmul.f32 %v463, %v414
        %v465 = vmul.f32 %v463, %v415
        %v466 = vmul.f32 %v463, %v416
        %v467 = vmul.f32 %v463, %v417
        %v468 = vadd.f32 %v459, %v464
        %v469 = vadd.f32 %v460, %v465
        %v470 = vadd.f32 %v461, %v466
        %v471 = vadd.f32 %v462, %v467
        %v472 = vstv %s377
        %v473 = vmul.f32 %v472, %v419
        %v474 = vmul.f32 %v472, %v420
        %v475 = vmul.f32 %v472, %v421
        %v476 = vmul.f32 %v472, %v422
        %v477 = vadd.f32 %v468, %v473
        %v478 = vadd.f32 %v469, %v474
        %v479 = vadd.f32 %v470, %v475
        %v480 = vadd.f32 %v471, %v476
        %481 = vrot.lane.b32.xlu0 %v477, 127
        %v482 = vpop.permute.xlu0 %481
        %483 = vrot.lane.b32.xlu0 %v478, 127
        %v484 = vpop.permute.xlu0 %483
        %485 = vrot.lane.b32.xlu0 %v479, 127
        %v486 = vpop.permute.xlu0 %485
        %487 = vrot.lane.b32.xlu0 %v480, 127
        %v488 = vpop.permute.xlu0 %487
        %v489 = vsel %vm348, %v482, 0.0
        %v490 = vsel %vm348, %v484, 0.0
        %v491 = vsel %vm348, %v486, 0.0
        %v492 = vsel %vm348, %v488, 0.0
        %v493 = vstv %s358
        %v494 = vmul.f32 %v493, %v409
        %v495 = vmul.f32 %v493, %v410
        %v496 = vmul.f32 %v493, %v411
        %v497 = vmul.f32 %v493, %v412
        %v498 = vstv %s367
        %v499 = vmul.f32 %v498, %v414
        %v500 = vmul.f32 %v498, %v415
        %v501 = vmul.f32 %v498, %v416
        %v502 = vmul.f32 %v498, %v417
        %v503 = vadd.f32 %v494, %v499
        %v504 = vadd.f32 %v495, %v500
        %v505 = vadd.f32 %v496, %v501
        %v506 = vadd.f32 %v497, %v502
        %v507 = vstv %s376
        %v508 = vmul.f32 %v507, %v419
        %v509 = vmul.f32 %v507, %v420
        %v510 = vmul.f32 %v507, %v421
        %v511 = vmul.f32 %v507, %v422
        %v512 = vadd.f32 %v503, %v508
        %v513 = vadd.f32 %v504, %v509
        %v514 = vadd.f32 %v505, %v510
        %v515 = vadd.f32 %v506, %v511
        %v516 = vadd.f32 %v512, %v454
        %v517 = vadd.f32 %v513, %v455
        %v518 = vadd.f32 %v514, %v456
        %v519 = vadd.f32 %v515, %v457
        %v520 = vadd.f32 %v516, %v489
        %v521 = vadd.f32 %v517, %v490
        %v522 = vadd.f32 %v518, %v491
        %v523 = vadd.f32 %v519, %v492
        %524 = vrot.lane.b32.xlu0 %v520, 64
        %v525 = vpop.permute.xlu0 %524
        %526 = vrot.lane.b32.xlu0 %v521, 64
        %v527 = vpop.permute.xlu0 %526
        %528 = vrot.lane.b32.xlu0 %v522, 64
        %v529 = vpop.permute.xlu0 %528
        %530 = vrot.lane.b32.xlu0 %v523, 64
        %v531 = vpop.permute.xlu0 %530
        %v532 = vrot.slane %v525, 7
        %v533 = vrot.slane %v527, 7
        %v534 = vrot.slane %v529, 7
        %v535 = vrot.slane %v531, 7
        %vm536 = vcmp.lt.s32.totalorder %v330, 1
        %v537 = vsel %vm536, %v534, %v535
        %v538 = vsel %vm536, %v533, %v534
        %v539 = vsel %vm536, %v532, %v533
        %v540 = vsel %vm536, %v535, %v532
        %v541 = vsel %vm349, %v540, 0.0
        %v542 = vsel %vm350, %v539, 0.0
        %v543 = vsel %vm351, %v538, 0.0
        %v544 = vsel %vm352, %v537, 0.0
        %v545 = vsel %vm346, %v525, %v541
        %v546 = vsel %vm346, %v527, %v542
        %v547 = vsel %vm346, %v529, %v543
        %v548 = vsel %vm346, %v531, %v544
        %v549 = vstv %s360
        %v550 = vmul.f32 %v549, %v409
        %v551 = vmul.f32 %v549, %v410
        %v552 = vmul.f32 %v549, %v411
        %v553 = vmul.f32 %v549, %v412
        %v554 = vstv %s369
        %v555 = vmul.f32 %v554, %v414
        %v556 = vmul.f32 %v554, %v415
        %v557 = vmul.f32 %v554, %v416
        %v558 = vmul.f32 %v554, %v417
        %v559 = vadd.f32 %v550, %v555
        %v560 = vadd.f32 %v551, %v556
        %v561 = vadd.f32 %v552, %v557
        %v562 = vadd.f32 %v553, %v558
        %v563 = vstv %s378
        %v564 = vmul.f32 %v563, %v419
        %v565 = vmul.f32 %v563, %v420
        %v566 = vmul.f32 %v563, %v421
        %v567 = vmul.f32 %v563, %v422
        %v568 = vadd.f32 %v559, %v564
        %v569 = vadd.f32 %v560, %v565
        %v570 = vadd.f32 %v561, %v566
        %v571 = vadd.f32 %v562, %v567
        %572 = vrot.lane.b32.xlu0 %v568, 1
        %v573 = vpop.permute.xlu0 %572
        %574 = vrot.lane.b32.xlu0 %v569, 1
        %v575 = vpop.permute.xlu0 %574
        %576 = vrot.lane.b32.xlu0 %v570, 1
        %v577 = vpop.permute.xlu0 %576
        %578 = vrot.lane.b32.xlu0 %v571, 1
        %v579 = vpop.permute.xlu0 %578
        %v580 = vsel %vm347, %v573, 0.0
        %v581 = vsel %vm347, %v575, 0.0
        %v582 = vsel %vm347, %v577, 0.0
        %v583 = vsel %vm347, %v579, 0.0
        %v584 = vstv %s362
        %v585 = vmul.f32 %v584, %v409
        %v586 = vmul.f32 %v584, %v410
        %v587 = vmul.f32 %v584, %v411
        %v588 = vmul.f32 %v584, %v412
        %v589 = vstv %s371
        %v590 = vmul.f32 %v589, %v414
        %v591 = vmul.f32 %v589, %v415
        %v592 = vmul.f32 %v589, %v416
        %v593 = vmul.f32 %v589, %v417
        %v594 = vadd.f32 %v585, %v590
        %v595 = vadd.f32 %v586, %v591
        %v596 = vadd.f32 %v587, %v592
        %v597 = vadd.f32 %v588, %v593
        %v598 = vstv %s380
        %v599 = vmul.f32 %v598, %v419
        %v600 = vmul.f32 %v598, %v420
        %v601 = vmul.f32 %v598, %v421
        %v602 = vmul.f32 %v598, %v422
        %v603 = vadd.f32 %v594, %v599
        %v604 = vadd.f32 %v595, %v600
        %v605 = vadd.f32 %v596, %v601
        %v606 = vadd.f32 %v597, %v602
        %607 = vrot.lane.b32.xlu0 %v603, 127
        %v608 = vpop.permute.xlu0 %607
        %609 = vrot.lane.b32.xlu0 %v604, 127
        %v610 = vpop.permute.xlu0 %609
        %611 = vrot.lane.b32.xlu0 %v605, 127
        %v612 = vpop.permute.xlu0 %611
        %613 = vrot.lane.b32.xlu0 %v606, 127
        %v614 = vpop.permute.xlu0 %613
        %v615 = vsel %vm348, %v608, 0.0
        %v616 = vsel %vm348, %v610, 0.0
        %v617 = vsel %vm348, %v612, 0.0
        %v618 = vsel %vm348, %v614, 0.0
        %v619 = vstv %s361
        %v620 = vmul.f32 %v619, %v409
        %v621 = vmul.f32 %v619, %v410
        %v622 = vmul.f32 %v619, %v411
        %v623 = vmul.f32 %v619, %v412
        %v624 = vstv %s370
        %v625 = vmul.f32 %v624, %v414
        %v626 = vmul.f32 %v624, %v415
        %v627 = vmul.f32 %v624, %v416
        %v628 = vmul.f32 %v624, %v417
        %v629 = vadd.f32 %v620, %v625
        %v630 = vadd.f32 %v621, %v626
        %v631 = vadd.f32 %v622, %v627
        %v632 = vadd.f32 %v623, %v628
        %v633 = vstv %s379
        %v634 = vmul.f32 %v633, %v419
        %v635 = vmul.f32 %v633, %v420
        %v636 = vmul.f32 %v633, %v421
        %v637 = vmul.f32 %v633, %v422
        %v638 = vadd.f32 %v629, %v634
        %v639 = vadd.f32 %v630, %v635
        %v640 = vadd.f32 %v631, %v636
        %v641 = vadd.f32 %v632, %v637
        %v642 = vadd.f32 %v638, %v580
        %v643 = vadd.f32 %v639, %v581
        %v644 = vadd.f32 %v640, %v582
        %v645 = vadd.f32 %v641, %v583
        %v646 = vadd.f32 %v642, %v615
        %v647 = vadd.f32 %v643, %v616
        %v648 = vadd.f32 %v644, %v617
        %v649 = vadd.f32 %v645, %v618
        %v650 = vadd.f32 %v545, %v646
        %v651 = vadd.f32 %v546, %v647
        %v652 = vadd.f32 %v547, %v648
        %v653 = vadd.f32 %v548, %v649
        %v654 = vstv %s363
        %v655 = vmul.f32 %v654, %v409
        %v656 = vmul.f32 %v654, %v410
        %v657 = vmul.f32 %v654, %v411
        %v658 = vmul.f32 %v654, %v412
        %v659 = vstv %s372
        %v660 = vmul.f32 %v659, %v414
        %v661 = vmul.f32 %v659, %v415
        %v662 = vmul.f32 %v659, %v416
        %v663 = vmul.f32 %v659, %v417
        %v664 = vadd.f32 %v655, %v660
        %v665 = vadd.f32 %v656, %v661
        %v666 = vadd.f32 %v657, %v662
        %v667 = vadd.f32 %v658, %v663
        %v668 = vstv %s381
        %v669 = vmul.f32 %v668, %v419
        %v670 = vmul.f32 %v668, %v420
        %v671 = vmul.f32 %v668, %v421
        %v672 = vmul.f32 %v668, %v422
        %v673 = vadd.f32 %v664, %v669
        %v674 = vadd.f32 %v665, %v670
        %v675 = vadd.f32 %v666, %v671
        %v676 = vadd.f32 %v667, %v672
        %677 = vrot.lane.b32.xlu0 %v673, 1
        %v678 = vpop.permute.xlu0 %677
        %679 = vrot.lane.b32.xlu0 %v674, 1
        %v680 = vpop.permute.xlu0 %679
        %681 = vrot.lane.b32.xlu0 %v675, 1
        %v682 = vpop.permute.xlu0 %681
        %683 = vrot.lane.b32.xlu0 %v676, 1
        %v684 = vpop.permute.xlu0 %683
        %v685 = vsel %vm347, %v678, 0.0
        %v686 = vsel %vm347, %v680, 0.0
        %v687 = vsel %vm347, %v682, 0.0
        %v688 = vsel %vm347, %v684, 0.0
        %v689 = vstv %s365
        %v690 = vmul.f32 %v689, %v409
        %v691 = vmul.f32 %v689, %v410
        %v692 = vmul.f32 %v689, %v411
        %v693 = vmul.f32 %v689, %v412
        %v694 = vstv %s374
        %v695 = vmul.f32 %v694, %v414
        %v696 = vmul.f32 %v694, %v415
        %v697 = vmul.f32 %v694, %v416
        %v698 = vmul.f32 %v694, %v417
        %v699 = vadd.f32 %v690, %v695
        %v700 = vadd.f32 %v691, %v696
        %v701 = vadd.f32 %v692, %v697
        %v702 = vadd.f32 %v693, %v698
        %v703 = vstv %s383
        %v704 = vmul.f32 %v703, %v419
        %v705 = vmul.f32 %v703, %v420
        %v706 = vmul.f32 %v703, %v421
        %v707 = vmul.f32 %v703, %v422
        %v708 = vadd.f32 %v699, %v704
        %v709 = vadd.f32 %v700, %v705
        %v710 = vadd.f32 %v701, %v706
        %v711 = vadd.f32 %v702, %v707
        %712 = vrot.lane.b32.xlu0 %v708, 127
        %v713 = vpop.permute.xlu0 %712
        %714 = vrot.lane.b32.xlu0 %v709, 127
        %v715 = vpop.permute.xlu0 %714
        %716 = vrot.lane.b32.xlu0 %v710, 127
        %v717 = vpop.permute.xlu0 %716
        %718 = vrot.lane.b32.xlu0 %v711, 127
        %v719 = vpop.permute.xlu0 %718
        %v720 = vsel %vm348, %v713, 0.0
        %v721 = vsel %vm348, %v715, 0.0
        %v722 = vsel %vm348, %v717, 0.0
        %v723 = vsel %vm348, %v719, 0.0
        %v724 = vstv %s364
        %v725 = vmul.f32 %v724, %v409
        %v726 = vmul.f32 %v724, %v410
        %v727 = vmul.f32 %v724, %v411
        %v728 = vmul.f32 %v724, %v412
        %v729 = vstv %s373
        %v730 = vmul.f32 %v729, %v414
        %v731 = vmul.f32 %v729, %v415
        %v732 = vmul.f32 %v729, %v416
        %v733 = vmul.f32 %v729, %v417
        %v734 = vadd.f32 %v725, %v730
        %v735 = vadd.f32 %v726, %v731
        %v736 = vadd.f32 %v727, %v732
        %v737 = vadd.f32 %v728, %v733
        %v738 = vstv %s382
        %v739 = vmul.f32 %v738, %v419
        %v740 = vmul.f32 %v738, %v420
        %v741 = vmul.f32 %v738, %v421
        %v742 = vmul.f32 %v738, %v422
        %v743 = vadd.f32 %v734, %v739
        %v744 = vadd.f32 %v735, %v740
        %v745 = vadd.f32 %v736, %v741
        %v746 = vadd.f32 %v737, %v742
        %v747 = vadd.f32 %v743, %v685
        %v748 = vadd.f32 %v744, %v686
        %v749 = vadd.f32 %v745, %v687
        %v750 = vadd.f32 %v746, %v688
        %v751 = vadd.f32 %v747, %v720
        %v752 = vadd.f32 %v748, %v721
        %v753 = vadd.f32 %v749, %v722
        %v754 = vadd.f32 %v750, %v723
        %755 = vrot.lane.b32.xlu0 %v751, 64
        %v756 = vpop.permute.xlu0 %755
        %757 = vrot.lane.b32.xlu0 %v752, 64
        %v758 = vpop.permute.xlu0 %757
        %759 = vrot.lane.b32.xlu0 %v753, 64
        %v760 = vpop.permute.xlu0 %759
        %761 = vrot.lane.b32.xlu0 %v754, 64
        %v762 = vpop.permute.xlu0 %761
        %v763 = vrot.slane %v756, 1
        %v764 = vrot.slane %v758, 1
        %v765 = vrot.slane %v760, 1
        %v766 = vrot.slane %v762, 1
        %vm767 = vcmp.lt.s32.totalorder %v330, 7
        %v768 = vsel %vm767, %v765, %v766
        %v769 = vsel %vm767, %v764, %v765
        %v770 = vsel %vm767, %v763, %v764
        %v771 = vsel %vm767, %v766, %v763
        %v772 = vsel %vm353, %v770, 0.0
        %v773 = vsel %vm354, %v769, 0.0
        %v774 = vsel %vm355, %v768, 0.0
        %v775 = vsel %vm356, %v771, 0.0
        %v776 = vsel %vm346, %v772, %v756
        %v777 = vsel %vm346, %v773, %v758
        %v778 = vsel %vm346, %v774, %v760
        %v779 = vsel %vm346, %v775, %v762
        %v780 = vadd.f32 %v650, %v776
        %v781 = vadd.f32 %v651, %v777
        %v782 = vadd.f32 %v652, %v778
        %v783 = vadd.f32 %v653, %v779
        %v784 = vld [vmem:[%s318] sm:$0xff]
        %v785 = vld [vmem:[%s318 + $0x8] sm:$0xff]
        %v786 = vld [vmem:[%s318 + $0x10] sm:$0xff]
        %v787 = vld [vmem:[%s318 + $0x18] sm:$0xff]
        %v788 = vld [vmem:[%s318 + $0x20] sm:$0xff]
        %v789 = vld [vmem:[%s318 + $0x28] sm:$0xff]
        %v790 = vld [vmem:[%s318 + $0x30] sm:$0xff]
        %v791 = vld [vmem:[%s318 + $0x38] sm:$0xff]
        %v792 = vld [vmem:[%s318 + $0x40] sm:$0xff]
        %v793 = vld [vmem:[%s318 + $0x48] sm:$0xff]
        %v794 = vld [vmem:[%s318 + $0x50] sm:$0xff]
        %v795 = vld [vmem:[%s318 + $0x58] sm:$0xff]
        %v796 = vld [vmem:[%s318 + $0x60] sm:$0xff]
        %v797 = vld [vmem:[%s318 + $0x68] sm:$0xff]
        %v798 = vld [vmem:[%s318 + $0x70] sm:$0xff]
        %v799 = vld [vmem:[%s318 + $0x78] sm:$0xff]
        %800 = vrot.lane.b32.xlu0 %v784, 127
        %v801 = vpop.permute.xlu0 %800
        %802 = vrot.lane.b32.xlu0 %v785, 127
        %v803 = vpop.permute.xlu0 %802
        %804 = vrot.lane.b32.xlu0 %v786, 127
        %v805 = vpop.permute.xlu0 %804
        %806 = vrot.lane.b32.xlu0 %v787, 127
        %v807 = vpop.permute.xlu0 %806
        %808 = vrot.lane.b32.xlu0 %v788, 127
        %v809 = vpop.permute.xlu0 %808
        %810 = vrot.lane.b32.xlu0 %v789, 127
        %v811 = vpop.permute.xlu0 %810
        %812 = vrot.lane.b32.xlu0 %v790, 127
        %v813 = vpop.permute.xlu0 %812
        %814 = vrot.lane.b32.xlu0 %v791, 127
        %v815 = vpop.permute.xlu0 %814
        %816 = vrot.lane.b32.xlu0 %v792, 127
        %v817 = vpop.permute.xlu0 %816
        %818 = vrot.lane.b32.xlu0 %v793, 127
        %v819 = vpop.permute.xlu0 %818
        %820 = vrot.lane.b32.xlu0 %v794, 127
        %v821 = vpop.permute.xlu0 %820
        %822 = vrot.lane.b32.xlu0 %v795, 127
        %v823 = vpop.permute.xlu0 %822
        %824 = vrot.lane.b32.xlu0 %v796, 127
        %v825 = vpop.permute.xlu0 %824
        %826 = vrot.lane.b32.xlu0 %v797, 127
        %v827 = vpop.permute.xlu0 %826
        %828 = vrot.lane.b32.xlu0 %v798, 127
        %v829 = vpop.permute.xlu0 %828
        %830 = vrot.lane.b32.xlu0 %v799, 127
        %v831 = vpop.permute.xlu0 %830
        %v832 = vmax.f32 %v784, %v801
        %v833 = vmax.f32 %v785, %v803
        %v834 = vmax.f32 %v786, %v805
        %v835 = vmax.f32 %v787, %v807
        %v836 = vmax.f32 %v788, %v809
        %v837 = vmax.f32 %v789, %v811
        %v838 = vmax.f32 %v790, %v813
        %v839 = vmax.f32 %v791, %v815
        %v840 = vmax.f32 %v792, %v817
        %v841 = vmax.f32 %v793, %v819
        %v842 = vmax.f32 %v794, %v821
        %v843 = vmax.f32 %v795, %v823
        %v844 = vmax.f32 %v796, %v825
        %v845 = vmax.f32 %v797, %v827
        %v846 = vmax.f32 %v798, %v829
        %v847 = vmax.f32 %v799, %v831
        %v848 = vrot.slane %v832, 1
        %v849 = vrot.slane %v833, 1
        %v850 = vrot.slane %v834, 1
        %v851 = vrot.slane %v835, 1
        %v852 = vrot.slane %v836, 1
        %v853 = vrot.slane %v837, 1
        %v854 = vrot.slane %v838, 1
        %v855 = vrot.slane %v839, 1
        %v856 = vrot.slane %v840, 1
        %v857 = vrot.slane %v841, 1
        %v858 = vrot.slane %v842, 1
        %v859 = vrot.slane %v843, 1
        %v860 = vrot.slane %v844, 1
        %v861 = vrot.slane %v845, 1
        %v862 = vrot.slane %v846, 1
        %v863 = vrot.slane %v847, 1
        %v864 = vsel %vm767, %v862, %v863
        %v865 = vsel %vm767, %v861, %v862
        %v866 = vsel %vm767, %v860, %v861
        %v867 = vsel %vm767, %v859, %v860
        %v868 = vsel %vm767, %v858, %v859
        %v869 = vsel %vm767, %v857, %v858
        %v870 = vsel %vm767, %v856, %v857
        %v871 = vsel %vm767, %v855, %v856
        %v872 = vsel %vm767, %v854, %v855
        %v873 = vsel %vm767, %v853, %v854
        %v874 = vsel %vm767, %v852, %v853
        %v875 = vsel %vm767, %v851, %v852
        %v876 = vsel %vm767, %v850, %v851
        %v877 = vsel %vm767, %v849, %v850
        %v878 = vsel %vm767, %v848, %v849
        %v879 = vsel %vm767, %v863, %v848
        %v880 = vmax.f32 %v832, %v878
        %v881 = vmax.f32 %v833, %v877
        %v882 = vmax.f32 %v834, %v876
        %v883 = vmax.f32 %v835, %v875
        %v884 = vmax.f32 %v836, %v874
        %v885 = vmax.f32 %v837, %v873
        %v886 = vmax.f32 %v838, %v872
        %v887 = vmax.f32 %v839, %v871
        %v888 = vmax.f32 %v840, %v870
        %v889 = vmax.f32 %v841, %v869
        %v890 = vmax.f32 %v842, %v868
        %v891 = vmax.f32 %v843, %v867
        %v892 = vmax.f32 %v844, %v866
        %v893 = vmax.f32 %v845, %v865
        %v894 = vmax.f32 %v846, %v864
        %v895 = vmax.f32 %v847, %v879
        %v896 = vand.u32 %v408, 4294901760
        %897 = vmatpush.msra.mxu0 %v896
        %v898 = vand.u32 %v407, 4294901760
        %899 = vmatpush.msra.mxu0 %v898
        %v900 = vand.u32 %v406, 4294901760
        %901 = vmatpush.msra.mxu0 %v900
        %v902 = vand.u32 %v405, 4294901760
        %903 = vmatpush.msra.mxu0 %v902
        %v904 = vand.u32 %v404, 4294901760
        %905 = vmatpush.msra.mxu0 %v904
        %v906 = vand.u32 %v403, 4294901760
        %907 = vmatpush.msra.mxu0 %v906
        %v908 = vand.u32 %v402, 4294901760
        %909 = vmatpush.msra.mxu0 %v908
        %v910 = vand.u32 %v401, 4294901760
        %911 = vmatpush.msra.mxu0 %v910
        %v912 = vand.u32 %v400, 4294901760
        %913 = vmatpush.msra.mxu0 %v912
        %v914 = vand.u32 %v399, 4294901760
        %915 = vmatpush.msra.mxu0 %v914
        %v916 = vand.u32 %v398, 4294901760
        %917 = vmatpush.msra.mxu0 %v916
        %v918 = vand.u32 %v397, 4294901760
        %919 = vmatpush.msra.mxu0 %v918
        %v920 = vand.u32 %v396, 4294901760
        %921 = vmatpush.msra.mxu0 %v920
        %v922 = vand.u32 %v395, 4294901760
        %923 = vmatpush.msra.mxu0 %v922
        %v924 = vand.u32 %v394, 4294901760
        %925 = vmatpush.msra.mxu0 %v924
        %v926 = vand.u32 %v393, 4294901760
        %927 = vmatpush.msra.mxu0 %v926
        %v928 = vand.u32 %v880, 4294901760
        %v929 = vsub.f32 %v880, %v928
        %v930 = vand.u32 %v929, 4294901760
        %v931 = vsub.f32 %v929, %v930
        %v932 = vand.u32 %v931, 4294901760
        %933 = vmatmul.f32.gmra.mxu0 %v932
        %v934 = vpop.f32.mrf.mxu0
        %v935 = vadd.f32 0.0, %v934
        %v936 = vand.u32 %v881, 4294901760
        %v937 = vsub.f32 %v881, %v936
        %v938 = vand.u32 %v937, 4294901760
        %v939 = vsub.f32 %v937, %v938
        %v940 = vand.u32 %v939, 4294901760
        %941 = vmatmul.f32.gmra.mxu0 %v940
        %v942 = vpop.f32.mrf.mxu0
        %v943 = vadd.f32 0.0, %v942
        %v944 = vand.u32 %v882, 4294901760
        %v945 = vsub.f32 %v882, %v944
        %v946 = vand.u32 %v945, 4294901760
        %v947 = vsub.f32 %v945, %v946
        %v948 = vand.u32 %v947, 4294901760
        %949 = vmatmul.f32.gmra.mxu0 %v948
        %v950 = vpop.f32.mrf.mxu0
        %v951 = vadd.f32 0.0, %v950
        %v952 = vand.u32 %v883, 4294901760
        %v953 = vsub.f32 %v883, %v952
        %v954 = vand.u32 %v953, 4294901760
        %v955 = vsub.f32 %v953, %v954
        %v956 = vand.u32 %v955, 4294901760
        %957 = vmatmul.f32.gmra.mxu0 %v956
        %v958 = vpop.f32.mrf.mxu0
        %v959 = vadd.f32 0.0, %v958
        %v960 = vand.u32 %v884, 4294901760
        %v961 = vsub.f32 %v884, %v960
        %v962 = vand.u32 %v961, 4294901760
        %v963 = vsub.f32 %v961, %v962
        %v964 = vand.u32 %v963, 4294901760
        %965 = vmatmul.f32.gmra.mxu0 %v964
        %v966 = vpop.f32.mrf.mxu0
        %v967 = vadd.f32 0.0, %v966
        %v968 = vand.u32 %v885, 4294901760
        %v969 = vsub.f32 %v885, %v968
        %v970 = vand.u32 %v969, 4294901760
        %v971 = vsub.f32 %v969, %v970
        %v972 = vand.u32 %v971, 4294901760
        %973 = vmatmul.f32.gmra.mxu0 %v972
        %v974 = vpop.f32.mrf.mxu0
        %v975 = vadd.f32 0.0, %v974
        %v976 = vand.u32 %v886, 4294901760
        %v977 = vsub.f32 %v886, %v976
        %v978 = vand.u32 %v977, 4294901760
        %v979 = vsub.f32 %v977, %v978
        %v980 = vand.u32 %v979, 4294901760
        %981 = vmatmul.f32.gmra.mxu0 %v980
        %v982 = vpop.f32.mrf.mxu0
        %v983 = vadd.f32 0.0, %v982
        %v984 = vand.u32 %v887, 4294901760
        %v985 = vsub.f32 %v887, %v984
        %v986 = vand.u32 %v985, 4294901760
        %v987 = vsub.f32 %v985, %v986
        %v988 = vand.u32 %v987, 4294901760
        %989 = vmatmul.f32.gmra.mxu0 %v988
        %v990 = vpop.f32.mrf.mxu0
        %v991 = vadd.f32 0.0, %v990
        %v992 = vand.u32 %v888, 4294901760
        %v993 = vsub.f32 %v888, %v992
        %v994 = vand.u32 %v993, 4294901760
        %v995 = vsub.f32 %v993, %v994
        %v996 = vand.u32 %v995, 4294901760
        %997 = vmatmul.f32.gmra.mxu0 %v996
        %v998 = vpop.f32.mrf.mxu0
        %v999 = vadd.f32 0.0, %v998
        %v1000 = vand.u32 %v889, 4294901760
        %v1001 = vsub.f32 %v889, %v1000
        %v1002 = vand.u32 %v1001, 4294901760
        %v1003 = vsub.f32 %v1001, %v1002
        %v1004 = vand.u32 %v1003, 4294901760
        %1005 = vmatmul.f32.gmra.mxu0 %v1004
        %v1006 = vpop.f32.mrf.mxu0
        %v1007 = vadd.f32 0.0, %v1006
        %v1008 = vand.u32 %v890, 4294901760
        %v1009 = vsub.f32 %v890, %v1008
        %v1010 = vand.u32 %v1009, 4294901760
        %v1011 = vsub.f32 %v1009, %v1010
        %v1012 = vand.u32 %v1011, 4294901760
        %1013 = vmatmul.f32.gmra.mxu0 %v1012
        %v1014 = vpop.f32.mrf.mxu0
        %v1015 = vadd.f32 0.0, %v1014
        %v1016 = vand.u32 %v891, 4294901760
        %v1017 = vsub.f32 %v891, %v1016
        %v1018 = vand.u32 %v1017, 4294901760
        %v1019 = vsub.f32 %v1017, %v1018
        %v1020 = vand.u32 %v1019, 4294901760
        %1021 = vmatmul.f32.gmra.mxu0 %v1020
        %v1022 = vpop.f32.mrf.mxu0
        %v1023 = vadd.f32 0.0, %v1022
        %v1024 = vand.u32 %v892, 4294901760
        %v1025 = vsub.f32 %v892, %v1024
        %v1026 = vand.u32 %v1025, 4294901760
        %v1027 = vsub.f32 %v1025, %v1026
        %v1028 = vand.u32 %v1027, 4294901760
        %1029 = vmatmul.f32.gmra.mxu0 %v1028
        %v1030 = vpop.f32.mrf.mxu0
        %v1031 = vadd.f32 0.0, %v1030
        %v1032 = vand.u32 %v893, 4294901760
        %v1033 = vsub.f32 %v893, %v1032
        %v1034 = vand.u32 %v1033, 4294901760
        %v1035 = vsub.f32 %v1033, %v1034
        %v1036 = vand.u32 %v1035, 4294901760
        %1037 = vmatmul.f32.gmra.mxu0 %v1036
        %v1038 = vpop.f32.mrf.mxu0
        %v1039 = vadd.f32 0.0, %v1038
        %v1040 = vand.u32 %v894, 4294901760
        %v1041 = vsub.f32 %v894, %v1040
        %v1042 = vand.u32 %v1041, 4294901760
        %v1043 = vsub.f32 %v1041, %v1042
        %v1044 = vand.u32 %v1043, 4294901760
        %1045 = vmatmul.f32.gmra.mxu0 %v1044
        %v1046 = vpop.f32.mrf.mxu0
        %v1047 = vadd.f32 0.0, %v1046
        %v1048 = vand.u32 %v895, 4294901760
        %v1049 = vsub.f32 %v895, %v1048
        %v1050 = vand.u32 %v1049, 4294901760
        %v1051 = vsub.f32 %v1049, %v1050
        %v1052 = vand.u32 %v1051, 4294901760
        %1053 = vmatmul.f32.gmra.mxu0 %v1052
        %v1054 = vpop.f32.mrf.mxu0
        %v1055 = vadd.f32 0.0, %v1054
        %1056 = vdwg.mxu0
        %v1057 = vand.u32 %v408, 4294901760
        %v1058 = vsub.f32 %v408, %v1057
        %v1059 = vand.u32 %v1058, 4294901760
        %v1060 = vsub.f32 %v1058, %v1059
        %v1061 = vand.u32 %v1060, 4294901760
        %1062 = vmatpush.msra.mxu0 %v1061
        %v1063 = vand.u32 %v407, 4294901760
        %v1064 = vsub.f32 %v407, %v1063
        %v1065 = vand.u32 %v1064, 4294901760
        %v1066 = vsub.f32 %v1064, %v1065
        %v1067 = vand.u32 %v1066, 4294901760
        %1068 = vmatpush.msra.mxu0 %v1067
        %v1069 = vand.u32 %v406, 4294901760
        %v1070 = vsub.f32 %v406, %v1069
        %v1071 = vand.u32 %v1070, 4294901760
        %v1072 = vsub.f32 %v1070, %v1071
        %v1073 = vand.u32 %v1072, 4294901760
        %1074 = vmatpush.msra.mxu0 %v1073
        %v1075 = vand.u32 %v405, 4294901760
        %v1076 = vsub.f32 %v405, %v1075
        %v1077 = vand.u32 %v1076, 4294901760
        %v1078 = vsub.f32 %v1076, %v1077
        %v1079 = vand.u32 %v1078, 4294901760
        %1080 = vmatpush.msra.mxu0 %v1079
        %v1081 = vand.u32 %v404, 4294901760
        %v1082 = vsub.f32 %v404, %v1081
        %v1083 = vand.u32 %v1082, 4294901760
        %v1084 = vsub.f32 %v1082, %v1083
        %v1085 = vand.u32 %v1084, 4294901760
        %1086 = vmatpush.msra.mxu0 %v1085
        %v1087 = vand.u32 %v403, 4294901760
        %v1088 = vsub.f32 %v403, %v1087
        %v1089 = vand.u32 %v1088, 4294901760
        %v1090 = vsub.f32 %v1088, %v1089
        %v1091 = vand.u32 %v1090, 4294901760
        %1092 = vmatpush.msra.mxu0 %v1091
        %v1093 = vand.u32 %v402, 4294901760
        %v1094 = vsub.f32 %v402, %v1093
        %v1095 = vand.u32 %v1094, 4294901760
        %v1096 = vsub.f32 %v1094, %v1095
        %v1097 = vand.u32 %v1096, 4294901760
        %1098 = vmatpush.msra.mxu0 %v1097
        %v1099 = vand.u32 %v401, 4294901760
        %v1100 = vsub.f32 %v401, %v1099
        %v1101 = vand.u32 %v1100, 4294901760
        %v1102 = vsub.f32 %v1100, %v1101
        %v1103 = vand.u32 %v1102, 4294901760
        %1104 = vmatpush.msra.mxu0 %v1103
        %v1105 = vand.u32 %v400, 4294901760
        %v1106 = vsub.f32 %v400, %v1105
        %v1107 = vand.u32 %v1106, 4294901760
        %v1108 = vsub.f32 %v1106, %v1107
        %v1109 = vand.u32 %v1108, 4294901760
        %1110 = vmatpush.msra.mxu0 %v1109
        %v1111 = vand.u32 %v399, 4294901760
        %v1112 = vsub.f32 %v399, %v1111
        %v1113 = vand.u32 %v1112, 4294901760
        %v1114 = vsub.f32 %v1112, %v1113
        %v1115 = vand.u32 %v1114, 4294901760
        %1116 = vmatpush.msra.mxu0 %v1115
        %v1117 = vand.u32 %v398, 4294901760
        %v1118 = vsub.f32 %v398, %v1117
        %v1119 = vand.u32 %v1118, 4294901760
        %v1120 = vsub.f32 %v1118, %v1119
        %v1121 = vand.u32 %v1120, 4294901760
        %1122 = vmatpush.msra.mxu0 %v1121
        %v1123 = vand.u32 %v397, 4294901760
        %v1124 = vsub.f32 %v397, %v1123
        %v1125 = vand.u32 %v1124, 4294901760
        %v1126 = vsub.f32 %v1124, %v1125
        %v1127 = vand.u32 %v1126, 4294901760
        %1128 = vmatpush.msra.mxu0 %v1127
        %v1129 = vand.u32 %v396, 4294901760
        %v1130 = vsub.f32 %v396, %v1129
        %v1131 = vand.u32 %v1130, 4294901760
        %v1132 = vsub.f32 %v1130, %v1131
        %v1133 = vand.u32 %v1132, 4294901760
        %1134 = vmatpush.msra.mxu0 %v1133
        %v1135 = vand.u32 %v395, 4294901760
        %v1136 = vsub.f32 %v395, %v1135
        %v1137 = vand.u32 %v1136, 4294901760
        %v1138 = vsub.f32 %v1136, %v1137
        %v1139 = vand.u32 %v1138, 4294901760
        %1140 = vmatpush.msra.mxu0 %v1139
        %v1141 = vand.u32 %v394, 4294901760
        %v1142 = vsub.f32 %v394, %v1141
        %v1143 = vand.u32 %v1142, 4294901760
        %v1144 = vsub.f32 %v1142, %v1143
        %v1145 = vand.u32 %v1144, 4294901760
        %1146 = vmatpush.msra.mxu0 %v1145
        %v1147 = vand.u32 %v393, 4294901760
        %v1148 = vsub.f32 %v393, %v1147
        %v1149 = vand.u32 %v1148, 4294901760
        %v1150 = vsub.f32 %v1148, %v1149
        %v1151 = vand.u32 %v1150, 4294901760
        %1152 = vmatpush.msra.mxu0 %v1151
        %v1153 = vand.u32 %v880, 4294901760
        %1154 = vmatmul.f32.gmra.mxu0 %v1153
        %v1155 = vpop.f32.mrf.mxu0
        %v1156 = vadd.f32 %v935, %v1155
        %v1157 = vand.u32 %v881, 4294901760
        %1158 = vmatmul.f32.gmra.mxu0 %v1157
        %v1159 = vpop.f32.mrf.mxu0
        %v1160 = vadd.f32 %v943, %v1159
        %v1161 = vand.u32 %v882, 4294901760
        %1162 = vmatmul.f32.gmra.mxu0 %v1161
        %v1163 = vpop.f32.mrf.mxu0
        %v1164 = vadd.f32 %v951, %v1163
        %v1165 = vand.u32 %v883, 4294901760
        %1166 = vmatmul.f32.gmra.mxu0 %v1165
        %v1167 = vpop.f32.mrf.mxu0
        %v1168 = vadd.f32 %v959, %v1167
        %v1169 = vand.u32 %v884, 4294901760
        %1170 = vmatmul.f32.gmra.mxu0 %v1169
        %v1171 = vpop.f32.mrf.mxu0
        %v1172 = vadd.f32 %v967, %v1171
        %v1173 = vand.u32 %v885, 4294901760
        %1174 = vmatmul.f32.gmra.mxu0 %v1173
        %v1175 = vpop.f32.mrf.mxu0
        %v1176 = vadd.f32 %v975, %v1175
        %v1177 = vand.u32 %v886, 4294901760
        %1178 = vmatmul.f32.gmra.mxu0 %v1177
        %v1179 = vpop.f32.mrf.mxu0
        %v1180 = vadd.f32 %v983, %v1179
        %v1181 = vand.u32 %v887, 4294901760
        %1182 = vmatmul.f32.gmra.mxu0 %v1181
        %v1183 = vpop.f32.mrf.mxu0
        %v1184 = vadd.f32 %v991, %v1183
        %v1185 = vand.u32 %v888, 4294901760
        %1186 = vmatmul.f32.gmra.mxu0 %v1185
        %v1187 = vpop.f32.mrf.mxu0
        %v1188 = vadd.f32 %v999, %v1187
        %v1189 = vand.u32 %v889, 4294901760
        %1190 = vmatmul.f32.gmra.mxu0 %v1189
        %v1191 = vpop.f32.mrf.mxu0
        %v1192 = vadd.f32 %v1007, %v1191
        %v1193 = vand.u32 %v890, 4294901760
        %1194 = vmatmul.f32.gmra.mxu0 %v1193
        %v1195 = vpop.f32.mrf.mxu0
        %v1196 = vadd.f32 %v1015, %v1195
        %v1197 = vand.u32 %v891, 4294901760
        %1198 = vmatmul.f32.gmra.mxu0 %v1197
        %v1199 = vpop.f32.mrf.mxu0
        %v1200 = vadd.f32 %v1023, %v1199
        %v1201 = vand.u32 %v892, 4294901760
        %1202 = vmatmul.f32.gmra.mxu0 %v1201
        %v1203 = vpop.f32.mrf.mxu0
        %v1204 = vadd.f32 %v1031, %v1203
        %v1205 = vand.u32 %v893, 4294901760
        %1206 = vmatmul.f32.gmra.mxu0 %v1205
        %v1207 = vpop.f32.mrf.mxu0
        %v1208 = vadd.f32 %v1039, %v1207
        %v1209 = vand.u32 %v894, 4294901760
        %1210 = vmatmul.f32.gmra.mxu0 %v1209
        %v1211 = vpop.f32.mrf.mxu0
        %v1212 = vadd.f32 %v1047, %v1211
        %v1213 = vand.u32 %v895, 4294901760
        %1214 = vmatmul.f32.gmra.mxu0 %v1213
        %v1215 = vpop.f32.mrf.mxu0
        %v1216 = vadd.f32 %v1055, %v1215
        %1217 = vdwg.mxu0
        %v1218 = vand.u32 %v408, 4294901760
        %v1219 = vsub.f32 %v408, %v1218
        %1220 = vmatpush.msra.mxu0 %v1219
        %v1221 = vand.u32 %v407, 4294901760
        %v1222 = vsub.f32 %v407, %v1221
        %1223 = vmatpush.msra.mxu0 %v1222
        %v1224 = vand.u32 %v406, 4294901760
        %v1225 = vsub.f32 %v406, %v1224
        %1226 = vmatpush.msra.mxu0 %v1225
        %v1227 = vand.u32 %v405, 4294901760
        %v1228 = vsub.f32 %v405, %v1227
        %1229 = vmatpush.msra.mxu0 %v1228
        %v1230 = vand.u32 %v404, 4294901760
        %v1231 = vsub.f32 %v404, %v1230
        %1232 = vmatpush.msra.mxu0 %v1231
        %v1233 = vand.u32 %v403, 4294901760
        %v1234 = vsub.f32 %v403, %v1233
        %1235 = vmatpush.msra.mxu0 %v1234
        %v1236 = vand.u32 %v402, 4294901760
        %v1237 = vsub.f32 %v402, %v1236
        %1238 = vmatpush.msra.mxu0 %v1237
        %v1239 = vand.u32 %v401, 4294901760
        %v1240 = vsub.f32 %v401, %v1239
        %1241 = vmatpush.msra.mxu0 %v1240
        %v1242 = vand.u32 %v400, 4294901760
        %v1243 = vsub.f32 %v400, %v1242
        %1244 = vmatpush.msra.mxu0 %v1243
        %v1245 = vand.u32 %v399, 4294901760
        %v1246 = vsub.f32 %v399, %v1245
        %1247 = vmatpush.msra.mxu0 %v1246
        %v1248 = vand.u32 %v398, 4294901760
        %v1249 = vsub.f32 %v398, %v1248
        %1250 = vmatpush.msra.mxu0 %v1249
        %v1251 = vand.u32 %v397, 4294901760
        %v1252 = vsub.f32 %v397, %v1251
        %1253 = vmatpush.msra.mxu0 %v1252
        %v1254 = vand.u32 %v396, 4294901760
        %v1255 = vsub.f32 %v396, %v1254
        %1256 = vmatpush.msra.mxu0 %v1255
        %v1257 = vand.u32 %v395, 4294901760
        %v1258 = vsub.f32 %v395, %v1257
        %1259 = vmatpush.msra.mxu0 %v1258
        %v1260 = vand.u32 %v394, 4294901760
        %v1261 = vsub.f32 %v394, %v1260
        %1262 = vmatpush.msra.mxu0 %v1261
        %v1263 = vand.u32 %v393, 4294901760
        %v1264 = vsub.f32 %v393, %v1263
        %1265 = vmatpush.msra.mxu0 %v1264
        %v1266 = vand.u32 %v880, 4294901760
        %v1267 = vsub.f32 %v880, %v1266
        %1268 = vmatmul.f32.gmra.mxu0 %v1267
        %v1269 = vpop.f32.mrf.mxu0
        %v1270 = vadd.f32 %v1156, %v1269
        %v1271 = vand.u32 %v881, 4294901760
        %v1272 = vsub.f32 %v881, %v1271
        %1273 = vmatmul.f32.gmra.mxu0 %v1272
        %v1274 = vpop.f32.mrf.mxu0
        %v1275 = vadd.f32 %v1160, %v1274
        %v1276 = vand.u32 %v882, 4294901760
        %v1277 = vsub.f32 %v882, %v1276
        %1278 = vmatmul.f32.gmra.mxu0 %v1277
        %v1279 = vpop.f32.mrf.mxu0
        %v1280 = vadd.f32 %v1164, %v1279
        %v1281 = vand.u32 %v883, 4294901760
        %v1282 = vsub.f32 %v883, %v1281
        %1283 = vmatmul.f32.gmra.mxu0 %v1282
        %v1284 = vpop.f32.mrf.mxu0
        %v1285 = vadd.f32 %v1168, %v1284
        %v1286 = vand.u32 %v884, 4294901760
        %v1287 = vsub.f32 %v884, %v1286
        %1288 = vmatmul.f32.gmra.mxu0 %v1287
        %v1289 = vpop.f32.mrf.mxu0
        %v1290 = vadd.f32 %v1172, %v1289
        %v1291 = vand.u32 %v885, 4294901760
        %v1292 = vsub.f32 %v885, %v1291
        %1293 = vmatmul.f32.gmra.mxu0 %v1292
        %v1294 = vpop.f32.mrf.mxu0
        %v1295 = vadd.f32 %v1176, %v1294
        %v1296 = vand.u32 %v886, 4294901760
        %v1297 = vsub.f32 %v886, %v1296
        %1298 = vmatmul.f32.gmra.mxu0 %v1297
        %v1299 = vpop.f32.mrf.mxu0
        %v1300 = vadd.f32 %v1180, %v1299
        %v1301 = vand.u32 %v887, 4294901760
        %v1302 = vsub.f32 %v887, %v1301
        %1303 = vmatmul.f32.gmra.mxu0 %v1302
        %v1304 = vpop.f32.mrf.mxu0
        %v1305 = vadd.f32 %v1184, %v1304
        %v1306 = vand.u32 %v888, 4294901760
        %v1307 = vsub.f32 %v888, %v1306
        %1308 = vmatmul.f32.gmra.mxu0 %v1307
        %v1309 = vpop.f32.mrf.mxu0
        %v1310 = vadd.f32 %v1188, %v1309
        %v1311 = vand.u32 %v889, 4294901760
        %v1312 = vsub.f32 %v889, %v1311
        %1313 = vmatmul.f32.gmra.mxu0 %v1312
        %v1314 = vpop.f32.mrf.mxu0
        %v1315 = vadd.f32 %v1192, %v1314
        %v1316 = vand.u32 %v890, 4294901760
        %v1317 = vsub.f32 %v890, %v1316
        %1318 = vmatmul.f32.gmra.mxu0 %v1317
        %v1319 = vpop.f32.mrf.mxu0
        %v1320 = vadd.f32 %v1196, %v1319
        %v1321 = vand.u32 %v891, 4294901760
        %v1322 = vsub.f32 %v891, %v1321
        %1323 = vmatmul.f32.gmra.mxu0 %v1322
        %v1324 = vpop.f32.mrf.mxu0
        %v1325 = vadd.f32 %v1200, %v1324
        %v1326 = vand.u32 %v892, 4294901760
        %v1327 = vsub.f32 %v892, %v1326
        %1328 = vmatmul.f32.gmra.mxu0 %v1327
        %v1329 = vpop.f32.mrf.mxu0
        %v1330 = vadd.f32 %v1204, %v1329
        %v1331 = vand.u32 %v893, 4294901760
        %v1332 = vsub.f32 %v893, %v1331
        %1333 = vmatmul.f32.gmra.mxu0 %v1332
        %v1334 = vpop.f32.mrf.mxu0
        %v1335 = vadd.f32 %v1208, %v1334
        %v1336 = vand.u32 %v894, 4294901760
        %v1337 = vsub.f32 %v894, %v1336
        %1338 = vmatmul.f32.gmra.mxu0 %v1337
        %v1339 = vpop.f32.mrf.mxu0
        %v1340 = vadd.f32 %v1212, %v1339
        %v1341 = vand.u32 %v895, 4294901760
        %v1342 = vsub.f32 %v895, %v1341
        %1343 = vmatmul.f32.gmra.mxu0 %v1342
        %v1344 = vpop.f32.mrf.mxu0
        %v1345 = vadd.f32 %v1216, %v1344
        %1346 = vdwg.mxu0
        %v1347 = vand.u32 %v408, 4294901760
        %1348 = vmatpush.msra.mxu0 %v1347
        %v1349 = vand.u32 %v407, 4294901760
        %1350 = vmatpush.msra.mxu0 %v1349
        %v1351 = vand.u32 %v406, 4294901760
        %1352 = vmatpush.msra.mxu0 %v1351
        %v1353 = vand.u32 %v405, 4294901760
        %1354 = vmatpush.msra.mxu0 %v1353
        %v1355 = vand.u32 %v404, 4294901760
        %1356 = vmatpush.msra.mxu0 %v1355
        %v1357 = vand.u32 %v403, 4294901760
        %1358 = vmatpush.msra.mxu0 %v1357
        %v1359 = vand.u32 %v402, 4294901760
        %1360 = vmatpush.msra.mxu0 %v1359
        %v1361 = vand.u32 %v401, 4294901760
        %1362 = vmatpush.msra.mxu0 %v1361
        %v1363 = vand.u32 %v400, 4294901760
        %1364 = vmatpush.msra.mxu0 %v1363
        %v1365 = vand.u32 %v399, 4294901760
        %1366 = vmatpush.msra.mxu0 %v1365
        %v1367 = vand.u32 %v398, 4294901760
        %1368 = vmatpush.msra.mxu0 %v1367
        %v1369 = vand.u32 %v397, 4294901760
        %1370 = vmatpush.msra.mxu0 %v1369
        %v1371 = vand.u32 %v396, 4294901760
        %1372 = vmatpush.msra.mxu0 %v1371
        %v1373 = vand.u32 %v395, 4294901760
        %1374 = vmatpush.msra.mxu0 %v1373
        %v1375 = vand.u32 %v394, 4294901760
        %1376 = vmatpush.msra.mxu0 %v1375
        %v1377 = vand.u32 %v393, 4294901760
        %1378 = vmatpush.msra.mxu0 %v1377
        %v1379 = vand.u32 %v880, 4294901760
        %v1380 = vsub.f32 %v880, %v1379
        %v1381 = vand.u32 %v1380, 4294901760
        %1382 = vmatmul.f32.gmra.mxu0 %v1381
        %v1383 = vpop.f32.mrf.mxu0
        %v1384 = vadd.f32 %v1270, %v1383
        %v1385 = vand.u32 %v881, 4294901760
        %v1386 = vsub.f32 %v881, %v1385
        %v1387 = vand.u32 %v1386, 4294901760
        %1388 = vmatmul.f32.gmra.mxu0 %v1387
        %v1389 = vpop.f32.mrf.mxu0
        %v1390 = vadd.f32 %v1275, %v1389
        %v1391 = vand.u32 %v882, 4294901760
        %v1392 = vsub.f32 %v882, %v1391
        %v1393 = vand.u32 %v1392, 4294901760
        %1394 = vmatmul.f32.gmra.mxu0 %v1393
        %v1395 = vpop.f32.mrf.mxu0
        %v1396 = vadd.f32 %v1280, %v1395
        %v1397 = vand.u32 %v883, 4294901760
        %v1398 = vsub.f32 %v883, %v1397
        %v1399 = vand.u32 %v1398, 4294901760
        %1400 = vmatmul.f32.gmra.mxu0 %v1399
        %v1401 = vpop.f32.mrf.mxu0
        %v1402 = vadd.f32 %v1285, %v1401
        %v1403 = vand.u32 %v884, 4294901760
        %v1404 = vsub.f32 %v884, %v1403
        %v1405 = vand.u32 %v1404, 4294901760
        %1406 = vmatmul.f32.gmra.mxu0 %v1405
        %v1407 = vpop.f32.mrf.mxu0
        %v1408 = vadd.f32 %v1290, %v1407
        %v1409 = vand.u32 %v885, 4294901760
        %v1410 = vsub.f32 %v885, %v1409
        %v1411 = vand.u32 %v1410, 4294901760
        %1412 = vmatmul.f32.gmra.mxu0 %v1411
        %v1413 = vpop.f32.mrf.mxu0
        %v1414 = vadd.f32 %v1295, %v1413
        %v1415 = vand.u32 %v886, 4294901760
        %v1416 = vsub.f32 %v886, %v1415
        %v1417 = vand.u32 %v1416, 4294901760
        %1418 = vmatmul.f32.gmra.mxu0 %v1417
        %v1419 = vpop.f32.mrf.mxu0
        %v1420 = vadd.f32 %v1300, %v1419
        %v1421 = vand.u32 %v887, 4294901760
        %v1422 = vsub.f32 %v887, %v1421
        %v1423 = vand.u32 %v1422, 4294901760
        %1424 = vmatmul.f32.gmra.mxu0 %v1423
        %v1425 = vpop.f32.mrf.mxu0
        %v1426 = vadd.f32 %v1305, %v1425
        %v1427 = vand.u32 %v888, 4294901760
        %v1428 = vsub.f32 %v888, %v1427
        %v1429 = vand.u32 %v1428, 4294901760
        %1430 = vmatmul.f32.gmra.mxu0 %v1429
        %v1431 = vpop.f32.mrf.mxu0
        %v1432 = vadd.f32 %v1310, %v1431
        %v1433 = vand.u32 %v889, 4294901760
        %v1434 = vsub.f32 %v889, %v1433
        %v1435 = vand.u32 %v1434, 4294901760
        %1436 = vmatmul.f32.gmra.mxu0 %v1435
        %v1437 = vpop.f32.mrf.mxu0
        %v1438 = vadd.f32 %v1315, %v1437
        %v1439 = vand.u32 %v890, 4294901760
        %v1440 = vsub.f32 %v890, %v1439
        %v1441 = vand.u32 %v1440, 4294901760
        %1442 = vmatmul.f32.gmra.mxu0 %v1441
        %v1443 = vpop.f32.mrf.mxu0
        %v1444 = vadd.f32 %v1320, %v1443
        %v1445 = vand.u32 %v891, 4294901760
        %v1446 = vsub.f32 %v891, %v1445
        %v1447 = vand.u32 %v1446, 4294901760
        %1448 = vmatmul.f32.gmra.mxu0 %v1447
        %v1449 = vpop.f32.mrf.mxu0
        %v1450 = vadd.f32 %v1325, %v1449
        %v1451 = vand.u32 %v892, 4294901760
        %v1452 = vsub.f32 %v892, %v1451
        %v1453 = vand.u32 %v1452, 4294901760
        %1454 = vmatmul.f32.gmra.mxu0 %v1453
        %v1455 = vpop.f32.mrf.mxu0
        %v1456 = vadd.f32 %v1330, %v1455
        %v1457 = vand.u32 %v893, 4294901760
        %v1458 = vsub.f32 %v893, %v1457
        %v1459 = vand.u32 %v1458, 4294901760
        %1460 = vmatmul.f32.gmra.mxu0 %v1459
        %v1461 = vpop.f32.mrf.mxu0
        %v1462 = vadd.f32 %v1335, %v1461
        %v1463 = vand.u32 %v894, 4294901760
        %v1464 = vsub.f32 %v894, %v1463
        %v1465 = vand.u32 %v1464, 4294901760
        %1466 = vmatmul.f32.gmra.mxu0 %v1465
        %v1467 = vpop.f32.mrf.mxu0
        %v1468 = vadd.f32 %v1340, %v1467
        %v1469 = vand.u32 %v895, 4294901760
        %v1470 = vsub.f32 %v895, %v1469
        %v1471 = vand.u32 %v1470, 4294901760
        %1472 = vmatmul.f32.gmra.mxu0 %v1471
        %v1473 = vpop.f32.mrf.mxu0
        %v1474 = vadd.f32 %v1345, %v1473
        %1475 = vdwg.mxu0
        %v1476 = vand.u32 %v408, 4294901760
        %v1477 = vsub.f32 %v408, %v1476
        %v1478 = vand.u32 %v1477, 4294901760
        %1479 = vmatpush.msra.mxu0 %v1478
        %v1480 = vand.u32 %v407, 4294901760
        %v1481 = vsub.f32 %v407, %v1480
        %v1482 = vand.u32 %v1481, 4294901760
        %1483 = vmatpush.msra.mxu0 %v1482
        %v1484 = vand.u32 %v406, 4294901760
        %v1485 = vsub.f32 %v406, %v1484
        %v1486 = vand.u32 %v1485, 4294901760
        %1487 = vmatpush.msra.mxu0 %v1486
        %v1488 = vand.u32 %v405, 4294901760
        %v1489 = vsub.f32 %v405, %v1488
        %v1490 = vand.u32 %v1489, 4294901760
        %1491 = vmatpush.msra.mxu0 %v1490
        %v1492 = vand.u32 %v404, 4294901760
        %v1493 = vsub.f32 %v404, %v1492
        %v1494 = vand.u32 %v1493, 4294901760
        %1495 = vmatpush.msra.mxu0 %v1494
        %v1496 = vand.u32 %v403, 4294901760
        %v1497 = vsub.f32 %v403, %v1496
        %v1498 = vand.u32 %v1497, 4294901760
        %1499 = vmatpush.msra.mxu0 %v1498
        %v1500 = vand.u32 %v402, 4294901760
        %v1501 = vsub.f32 %v402, %v1500
        %v1502 = vand.u32 %v1501, 4294901760
        %1503 = vmatpush.msra.mxu0 %v1502
        %v1504 = vand.u32 %v401, 4294901760
        %v1505 = vsub.f32 %v401, %v1504
        %v1506 = vand.u32 %v1505, 4294901760
        %1507 = vmatpush.msra.mxu0 %v1506
        %v1508 = vand.u32 %v400, 4294901760
        %v1509 = vsub.f32 %v400, %v1508
        %v1510 = vand.u32 %v1509, 4294901760
        %1511 = vmatpush.msra.mxu0 %v1510
        %v1512 = vand.u32 %v399, 4294901760
        %v1513 = vsub.f32 %v399, %v1512
        %v1514 = vand.u32 %v1513, 4294901760
        %1515 = vmatpush.msra.mxu0 %v1514
        %v1516 = vand.u32 %v398, 4294901760
        %v1517 = vsub.f32 %v398, %v1516
        %v1518 = vand.u32 %v1517, 4294901760
        %1519 = vmatpush.msra.mxu0 %v1518
        %v1520 = vand.u32 %v397, 4294901760
        %v1521 = vsub.f32 %v397, %v1520
        %v1522 = vand.u32 %v1521, 4294901760
        %1523 = vmatpush.msra.mxu0 %v1522
        %v1524 = vand.u32 %v396, 4294901760
        %v1525 = vsub.f32 %v396, %v1524
        %v1526 = vand.u32 %v1525, 4294901760
        %1527 = vmatpush.msra.mxu0 %v1526
        %v1528 = vand.u32 %v395, 4294901760
        %v1529 = vsub.f32 %v395, %v1528
        %v1530 = vand.u32 %v1529, 4294901760
        %1531 = vmatpush.msra.mxu0 %v1530
        %v1532 = vand.u32 %v394, 4294901760
        %v1533 = vsub.f32 %v394, %v1532
        %v1534 = vand.u32 %v1533, 4294901760
        %1535 = vmatpush.msra.mxu0 %v1534
        %v1536 = vand.u32 %v393, 4294901760
        %v1537 = vsub.f32 %v393, %v1536
        %v1538 = vand.u32 %v1537, 4294901760
        %1539 = vmatpush.msra.mxu0 %v1538
        %v1540 = vand.u32 %v880, 4294901760
        %1541 = vmatmul.f32.gmra.mxu0 %v1540
        %v1542 = vpop.f32.mrf.mxu0
        %v1543 = vadd.f32 %v1384, %v1542
        %v1544 = vand.u32 %v881, 4294901760
        %1545 = vmatmul.f32.gmra.mxu0 %v1544
        %v1546 = vpop.f32.mrf.mxu0
        %v1547 = vadd.f32 %v1390, %v1546
        %v1548 = vand.u32 %v882, 4294901760
        %1549 = vmatmul.f32.gmra.mxu0 %v1548
        %v1550 = vpop.f32.mrf.mxu0
        %v1551 = vadd.f32 %v1396, %v1550
        %v1552 = vand.u32 %v883, 4294901760
        %1553 = vmatmul.f32.gmra.mxu0 %v1552
        %v1554 = vpop.f32.mrf.mxu0
        %v1555 = vadd.f32 %v1402, %v1554
        %v1556 = vand.u32 %v884, 4294901760
        %1557 = vmatmul.f32.gmra.mxu0 %v1556
        %v1558 = vpop.f32.mrf.mxu0
        %v1559 = vadd.f32 %v1408, %v1558
        %v1560 = vand.u32 %v885, 4294901760
        %1561 = vmatmul.f32.gmra.mxu0 %v1560
        %v1562 = vpop.f32.mrf.mxu0
        %v1563 = vadd.f32 %v1414, %v1562
        %v1564 = vand.u32 %v886, 4294901760
        %1565 = vmatmul.f32.gmra.mxu0 %v1564
        %v1566 = vpop.f32.mrf.mxu0
        %v1567 = vadd.f32 %v1420, %v1566
        %v1568 = vand.u32 %v887, 4294901760
        %1569 = vmatmul.f32.gmra.mxu0 %v1568
        %v1570 = vpop.f32.mrf.mxu0
        %v1571 = vadd.f32 %v1426, %v1570
        %v1572 = vand.u32 %v888, 4294901760
        %1573 = vmatmul.f32.gmra.mxu0 %v1572
        %v1574 = vpop.f32.mrf.mxu0
        %v1575 = vadd.f32 %v1432, %v1574
        %v1576 = vand.u32 %v889, 4294901760
        %1577 = vmatmul.f32.gmra.mxu0 %v1576
        %v1578 = vpop.f32.mrf.mxu0
        %v1579 = vadd.f32 %v1438, %v1578
        %v1580 = vand.u32 %v890, 4294901760
        %1581 = vmatmul.f32.gmra.mxu0 %v1580
        %v1582 = vpop.f32.mrf.mxu0
        %v1583 = vadd.f32 %v1444, %v1582
        %v1584 = vand.u32 %v891, 4294901760
        %1585 = vmatmul.f32.gmra.mxu0 %v1584
        %v1586 = vpop.f32.mrf.mxu0
        %v1587 = vadd.f32 %v1450, %v1586
        %v1588 = vand.u32 %v892, 4294901760
        %1589 = vmatmul.f32.gmra.mxu0 %v1588
        %v1590 = vpop.f32.mrf.mxu0
        %v1591 = vadd.f32 %v1456, %v1590
        %v1592 = vand.u32 %v893, 4294901760
        %1593 = vmatmul.f32.gmra.mxu0 %v1592
        %v1594 = vpop.f32.mrf.mxu0
        %v1595 = vadd.f32 %v1462, %v1594
        %v1596 = vand.u32 %v894, 4294901760
        %1597 = vmatmul.f32.gmra.mxu0 %v1596
        %v1598 = vpop.f32.mrf.mxu0
        %v1599 = vadd.f32 %v1468, %v1598
        %v1600 = vand.u32 %v895, 4294901760
        %1601 = vmatmul.f32.gmra.mxu0 %v1600
        %v1602 = vpop.f32.mrf.mxu0
        %v1603 = vadd.f32 %v1474, %v1602
        %1604 = vdwg.mxu0
        %v1605 = vand.u32 %v408, 4294901760
        %1606 = vmatpush.msra.mxu0 %v1605
        %v1607 = vand.u32 %v407, 4294901760
        %1608 = vmatpush.msra.mxu0 %v1607
        %v1609 = vand.u32 %v406, 4294901760
        %1610 = vmatpush.msra.mxu0 %v1609
        %v1611 = vand.u32 %v405, 4294901760
        %1612 = vmatpush.msra.mxu0 %v1611
        %v1613 = vand.u32 %v404, 4294901760
        %1614 = vmatpush.msra.mxu0 %v1613
        %v1615 = vand.u32 %v403, 4294901760
        %1616 = vmatpush.msra.mxu0 %v1615
        %v1617 = vand.u32 %v402, 4294901760
        %1618 = vmatpush.msra.mxu0 %v1617
        %v1619 = vand.u32 %v401, 4294901760
        %1620 = vmatpush.msra.mxu0 %v1619
        %v1621 = vand.u32 %v400, 4294901760
        %1622 = vmatpush.msra.mxu0 %v1621
        %v1623 = vand.u32 %v399, 4294901760
        %1624 = vmatpush.msra.mxu0 %v1623
        %v1625 = vand.u32 %v398, 4294901760
        %1626 = vmatpush.msra.mxu0 %v1625
        %v1627 = vand.u32 %v397, 4294901760
        %1628 = vmatpush.msra.mxu0 %v1627
        %v1629 = vand.u32 %v396, 4294901760
        %1630 = vmatpush.msra.mxu0 %v1629
        %v1631 = vand.u32 %v395, 4294901760
        %1632 = vmatpush.msra.mxu0 %v1631
        %v1633 = vand.u32 %v394, 4294901760
        %1634 = vmatpush.msra.mxu0 %v1633
        %v1635 = vand.u32 %v393, 4294901760
        %1636 = vmatpush.msra.mxu0 %v1635
        %v1637 = vand.u32 %v880, 4294901760
        %1638 = vmatmul.f32.gmra.mxu0 %v1637
        %v1639 = vpop.f32.mrf.mxu0
        %v1640 = vadd.f32 %v1543, %v1639
        %v1641 = vand.u32 %v881, 4294901760
        %1642 = vmatmul.f32.gmra.mxu0 %v1641
        %v1643 = vpop.f32.mrf.mxu0
        %v1644 = vadd.f32 %v1547, %v1643
        %v1645 = vand.u32 %v882, 4294901760
        %1646 = vmatmul.f32.gmra.mxu0 %v1645
        %v1647 = vpop.f32.mrf.mxu0
        %v1648 = vadd.f32 %v1551, %v1647
        %v1649 = vand.u32 %v883, 4294901760
        %1650 = vmatmul.f32.gmra.mxu0 %v1649
        %v1651 = vpop.f32.mrf.mxu0
        %v1652 = vadd.f32 %v1555, %v1651
        %v1653 = vand.u32 %v884, 4294901760
        %1654 = vmatmul.f32.gmra.mxu0 %v1653
        %v1655 = vpop.f32.mrf.mxu0
        %v1656 = vadd.f32 %v1559, %v1655
        %v1657 = vand.u32 %v885, 4294901760
        %1658 = vmatmul.f32.gmra.mxu0 %v1657
        %v1659 = vpop.f32.mrf.mxu0
        %v1660 = vadd.f32 %v1563, %v1659
        %v1661 = vand.u32 %v886, 4294901760
        %1662 = vmatmul.f32.gmra.mxu0 %v1661
        %v1663 = vpop.f32.mrf.mxu0
        %v1664 = vadd.f32 %v1567, %v1663
        %v1665 = vand.u32 %v887, 4294901760
        %1666 = vmatmul.f32.gmra.mxu0 %v1665
        %v1667 = vpop.f32.mrf.mxu0
        %v1668 = vadd.f32 %v1571, %v1667
        %v1669 = vand.u32 %v888, 4294901760
        %1670 = vmatmul.f32.gmra.mxu0 %v1669
        %v1671 = vpop.f32.mrf.mxu0
        %v1672 = vadd.f32 %v1575, %v1671
        %v1673 = vand.u32 %v889, 4294901760
        %1674 = vmatmul.f32.gmra.mxu0 %v1673
        %v1675 = vpop.f32.mrf.mxu0
        %v1676 = vadd.f32 %v1579, %v1675
        %v1677 = vand.u32 %v890, 4294901760
        %1678 = vmatmul.f32.gmra.mxu0 %v1677
        %v1679 = vpop.f32.mrf.mxu0
        %v1680 = vadd.f32 %v1583, %v1679
        %v1681 = vand.u32 %v891, 4294901760
        %1682 = vmatmul.f32.gmra.mxu0 %v1681
        %v1683 = vpop.f32.mrf.mxu0
        %v1684 = vadd.f32 %v1587, %v1683
        %v1685 = vand.u32 %v892, 4294901760
        %1686 = vmatmul.f32.gmra.mxu0 %v1685
        %v1687 = vpop.f32.mrf.mxu0
        %v1688 = vadd.f32 %v1591, %v1687
        %v1689 = vand.u32 %v893, 4294901760
        %1690 = vmatmul.f32.gmra.mxu0 %v1689
        %v1691 = vpop.f32.mrf.mxu0
        %v1692 = vadd.f32 %v1595, %v1691
        %v1693 = vand.u32 %v894, 4294901760
        %1694 = vmatmul.f32.gmra.mxu0 %v1693
        %v1695 = vpop.f32.mrf.mxu0
        %v1696 = vadd.f32 %v1599, %v1695
        %v1697 = vand.u32 %v895, 4294901760
        %1698 = vmatmul.f32.gmra.mxu0 %v1697
        %v1699 = vpop.f32.mrf.mxu0
        %v1700 = vadd.f32 %v1603, %v1699
        %1701 = vdwg.mxu0
        %v1702 = vand.u32 %v1700, 4294901760
        %1703 = vmatpush.msra.mxu0 %v1702
        %v1704 = vand.u32 %v1696, 4294901760
        %1705 = vmatpush.msra.mxu0 %v1704
        %v1706 = vand.u32 %v1692, 4294901760
        %1707 = vmatpush.msra.mxu0 %v1706
        %v1708 = vand.u32 %v1688, 4294901760
        %1709 = vmatpush.msra.mxu0 %v1708
        %v1710 = vand.u32 %v1684, 4294901760
        %1711 = vmatpush.msra.mxu0 %v1710
        %v1712 = vand.u32 %v1680, 4294901760
        %1713 = vmatpush.msra.mxu0 %v1712
        %v1714 = vand.u32 %v1676, 4294901760
        %1715 = vmatpush.msra.mxu0 %v1714
        %v1716 = vand.u32 %v1672, 4294901760
        %1717 = vmatpush.msra.mxu0 %v1716
        %v1718 = vand.u32 %v1668, 4294901760
        %1719 = vmatpush.msra.mxu0 %v1718
        %v1720 = vand.u32 %v1664, 4294901760
        %1721 = vmatpush.msra.mxu0 %v1720
        %v1722 = vand.u32 %v1660, 4294901760
        %1723 = vmatpush.msra.mxu0 %v1722
        %v1724 = vand.u32 %v1656, 4294901760
        %1725 = vmatpush.msra.mxu0 %v1724
        %v1726 = vand.u32 %v1652, 4294901760
        %1727 = vmatpush.msra.mxu0 %v1726
        %v1728 = vand.u32 %v1648, 4294901760
        %1729 = vmatpush.msra.mxu0 %v1728
        %v1730 = vand.u32 %v1644, 4294901760
        %1731 = vmatpush.msra.mxu0 %v1730
        %v1732 = vand.u32 %v1640, 4294901760
        %1733 = vmatpush.msra.mxu0 %v1732
        %v1734 = vand.u32 %v385, 4294901760
        %v1735 = vsub.f32 %v385, %v1734
        %v1736 = vand.u32 %v1735, 4294901760
        %v1737 = vsub.f32 %v1735, %v1736
        %v1738 = vand.u32 %v1737, 4294901760
        %1739 = vmatmul.f32.gmra.mxu0 %v1738
        %v1740 = vpop.f32.mrf.mxu0
        %v1741 = vadd.f32 0.0, %v1740
        %v1742 = vand.u32 %v386, 4294901760
        %v1743 = vsub.f32 %v386, %v1742
        %v1744 = vand.u32 %v1743, 4294901760
        %v1745 = vsub.f32 %v1743, %v1744
        %v1746 = vand.u32 %v1745, 4294901760
        %1747 = vmatmul.f32.gmra.mxu0 %v1746
        %v1748 = vpop.f32.mrf.mxu0
        %v1749 = vadd.f32 0.0, %v1748
        %v1750 = vand.u32 %v387, 4294901760
        %v1751 = vsub.f32 %v387, %v1750
        %v1752 = vand.u32 %v1751, 4294901760
        %v1753 = vsub.f32 %v1751, %v1752
        %v1754 = vand.u32 %v1753, 4294901760
        %1755 = vmatmul.f32.gmra.mxu0 %v1754
        %v1756 = vpop.f32.mrf.mxu0
        %v1757 = vadd.f32 0.0, %v1756
        %v1758 = vand.u32 %v388, 4294901760
        %v1759 = vsub.f32 %v388, %v1758
        %v1760 = vand.u32 %v1759, 4294901760
        %v1761 = vsub.f32 %v1759, %v1760
        %v1762 = vand.u32 %v1761, 4294901760
        %1763 = vmatmul.f32.gmra.mxu0 %v1762
        %v1764 = vpop.f32.mrf.mxu0
        %v1765 = vadd.f32 0.0, %v1764
        %1766 = vdwg.mxu0
        %v1767 = vand.u32 %v1700, 4294901760
        %v1768 = vsub.f32 %v1700, %v1767
        %v1769 = vand.u32 %v1768, 4294901760
        %v1770 = vsub.f32 %v1768, %v1769
        %v1771 = vand.u32 %v1770, 4294901760
        %1772 = vmatpush.msra.mxu0 %v1771
        %v1773 = vand.u32 %v1696, 4294901760
        %v1774 = vsub.f32 %v1696, %v1773
        %v1775 = vand.u32 %v1774, 4294901760
        %v1776 = vsub.f32 %v1774, %v1775
        %v1777 = vand.u32 %v1776, 4294901760
        %1778 = vmatpush.msra.mxu0 %v1777
        %v1779 = vand.u32 %v1692, 4294901760
        %v1780 = vsub.f32 %v1692, %v1779
        %v1781 = vand.u32 %v1780, 4294901760
        %v1782 = vsub.f32 %v1780, %v1781
        %v1783 = vand.u32 %v1782, 4294901760
        %1784 = vmatpush.msra.mxu0 %v1783
        %v1785 = vand.u32 %v1688, 4294901760
        %v1786 = vsub.f32 %v1688, %v1785
        %v1787 = vand.u32 %v1786, 4294901760
        %v1788 = vsub.f32 %v1786, %v1787
        %v1789 = vand.u32 %v1788, 4294901760
        %1790 = vmatpush.msra.mxu0 %v1789
        %v1791 = vand.u32 %v1684, 4294901760
        %v1792 = vsub.f32 %v1684, %v1791
        %v1793 = vand.u32 %v1792, 4294901760
        %v1794 = vsub.f32 %v1792, %v1793
        %v1795 = vand.u32 %v1794, 4294901760
        %1796 = vmatpush.msra.mxu0 %v1795
        %v1797 = vand.u32 %v1680, 4294901760
        %v1798 = vsub.f32 %v1680, %v1797
        %v1799 = vand.u32 %v1798, 4294901760
        %v1800 = vsub.f32 %v1798, %v1799
        %v1801 = vand.u32 %v1800, 4294901760
        %1802 = vmatpush.msra.mxu0 %v1801
        %v1803 = vand.u32 %v1676, 4294901760
        %v1804 = vsub.f32 %v1676, %v1803
        %v1805 = vand.u32 %v1804, 4294901760
        %v1806 = vsub.f32 %v1804, %v1805
        %v1807 = vand.u32 %v1806, 4294901760
        %1808 = vmatpush.msra.mxu0 %v1807
        %v1809 = vand.u32 %v1672, 4294901760
        %v1810 = vsub.f32 %v1672, %v1809
        %v1811 = vand.u32 %v1810, 4294901760
        %v1812 = vsub.f32 %v1810, %v1811
        %v1813 = vand.u32 %v1812, 4294901760
        %1814 = vmatpush.msra.mxu0 %v1813
        %v1815 = vand.u32 %v1668, 4294901760
        %v1816 = vsub.f32 %v1668, %v1815
        %v1817 = vand.u32 %v1816, 4294901760
        %v1818 = vsub.f32 %v1816, %v1817
        %v1819 = vand.u32 %v1818, 4294901760
        %1820 = vmatpush.msra.mxu0 %v1819
        %v1821 = vand.u32 %v1664, 4294901760
        %v1822 = vsub.f32 %v1664, %v1821
        %v1823 = vand.u32 %v1822, 4294901760
        %v1824 = vsub.f32 %v1822, %v1823
        %v1825 = vand.u32 %v1824, 4294901760
        %1826 = vmatpush.msra.mxu0 %v1825
        %v1827 = vand.u32 %v1660, 4294901760
        %v1828 = vsub.f32 %v1660, %v1827
        %v1829 = vand.u32 %v1828, 4294901760
        %v1830 = vsub.f32 %v1828, %v1829
        %v1831 = vand.u32 %v1830, 4294901760
        %1832 = vmatpush.msra.mxu0 %v1831
        %v1833 = vand.u32 %v1656, 4294901760
        %v1834 = vsub.f32 %v1656, %v1833
        %v1835 = vand.u32 %v1834, 4294901760
        %v1836 = vsub.f32 %v1834, %v1835
        %v1837 = vand.u32 %v1836, 4294901760
        %1838 = vmatpush.msra.mxu0 %v1837
        %v1839 = vand.u32 %v1652, 4294901760
        %v1840 = vsub.f32 %v1652, %v1839
        %v1841 = vand.u32 %v1840, 4294901760
        %v1842 = vsub.f32 %v1840, %v1841
        %v1843 = vand.u32 %v1842, 4294901760
        %1844 = vmatpush.msra.mxu0 %v1843
        %v1845 = vand.u32 %v1648, 4294901760
        %v1846 = vsub.f32 %v1648, %v1845
        %v1847 = vand.u32 %v1846, 4294901760
        %v1848 = vsub.f32 %v1846, %v1847
        %v1849 = vand.u32 %v1848, 4294901760
        %1850 = vmatpush.msra.mxu0 %v1849
        %v1851 = vand.u32 %v1644, 4294901760
        %v1852 = vsub.f32 %v1644, %v1851
        %v1853 = vand.u32 %v1852, 4294901760
        %v1854 = vsub.f32 %v1852, %v1853
        %v1855 = vand.u32 %v1854, 4294901760
        %1856 = vmatpush.msra.mxu0 %v1855
        %v1857 = vand.u32 %v1640, 4294901760
        %v1858 = vsub.f32 %v1640, %v1857
        %v1859 = vand.u32 %v1858, 4294901760
        %v1860 = vsub.f32 %v1858, %v1859
        %v1861 = vand.u32 %v1860, 4294901760
        %1862 = vmatpush.msra.mxu0 %v1861
        %v1863 = vand.u32 %v385, 4294901760
        %1864 = vmatmul.f32.gmra.mxu0 %v1863
        %v1865 = vpop.f32.mrf.mxu0
        %v1866 = vadd.f32 %v1741, %v1865
        %v1867 = vand.u32 %v386, 4294901760
        %1868 = vmatmul.f32.gmra.mxu0 %v1867
        %v1869 = vpop.f32.mrf.mxu0
        %v1870 = vadd.f32 %v1749, %v1869
        %v1871 = vand.u32 %v387, 4294901760
        %1872 = vmatmul.f32.gmra.mxu0 %v1871
        %v1873 = vpop.f32.mrf.mxu0
        %v1874 = vadd.f32 %v1757, %v1873
        %v1875 = vand.u32 %v388, 4294901760
        %1876 = vmatmul.f32.gmra.mxu0 %v1875
        %v1877 = vpop.f32.mrf.mxu0
        %v1878 = vadd.f32 %v1765, %v1877
        %1879 = vdwg.mxu0
        %v1880 = vand.u32 %v1700, 4294901760
        %v1881 = vsub.f32 %v1700, %v1880
        %1882 = vmatpush.msra.mxu0 %v1881
        %v1883 = vand.u32 %v1696, 4294901760
        %v1884 = vsub.f32 %v1696, %v1883
        %1885 = vmatpush.msra.mxu0 %v1884
        %v1886 = vand.u32 %v1692, 4294901760
        %v1887 = vsub.f32 %v1692, %v1886
        %1888 = vmatpush.msra.mxu0 %v1887
        %v1889 = vand.u32 %v1688, 4294901760
        %v1890 = vsub.f32 %v1688, %v1889
        %1891 = vmatpush.msra.mxu0 %v1890
        %v1892 = vand.u32 %v1684, 4294901760
        %v1893 = vsub.f32 %v1684, %v1892
        %1894 = vmatpush.msra.mxu0 %v1893
        %v1895 = vand.u32 %v1680, 4294901760
        %v1896 = vsub.f32 %v1680, %v1895
        %1897 = vmatpush.msra.mxu0 %v1896
        %v1898 = vand.u32 %v1676, 4294901760
        %v1899 = vsub.f32 %v1676, %v1898
        %1900 = vmatpush.msra.mxu0 %v1899
        %v1901 = vand.u32 %v1672, 4294901760
        %v1902 = vsub.f32 %v1672, %v1901
        %1903 = vmatpush.msra.mxu0 %v1902
        %v1904 = vand.u32 %v1668, 4294901760
        %v1905 = vsub.f32 %v1668, %v1904
        %1906 = vmatpush.msra.mxu0 %v1905
        %v1907 = vand.u32 %v1664, 4294901760
        %v1908 = vsub.f32 %v1664, %v1907
        %1909 = vmatpush.msra.mxu0 %v1908
        %v1910 = vand.u32 %v1660, 4294901760
        %v1911 = vsub.f32 %v1660, %v1910
        %1912 = vmatpush.msra.mxu0 %v1911
        %v1913 = vand.u32 %v1656, 4294901760
        %v1914 = vsub.f32 %v1656, %v1913
        %1915 = vmatpush.msra.mxu0 %v1914
        %v1916 = vand.u32 %v1652, 4294901760
        %v1917 = vsub.f32 %v1652, %v1916
        %1918 = vmatpush.msra.mxu0 %v1917
        %v1919 = vand.u32 %v1648, 4294901760
        %v1920 = vsub.f32 %v1648, %v1919
        %1921 = vmatpush.msra.mxu0 %v1920
        %v1922 = vand.u32 %v1644, 4294901760
        %v1923 = vsub.f32 %v1644, %v1922
        %1924 = vmatpush.msra.mxu0 %v1923
        %v1925 = vand.u32 %v1640, 4294901760
        %v1926 = vsub.f32 %v1640, %v1925
        %1927 = vmatpush.msra.mxu0 %v1926
        %v1928 = vand.u32 %v385, 4294901760
        %v1929 = vsub.f32 %v385, %v1928
        %1930 = vmatmul.f32.gmra.mxu0 %v1929
        %v1931 = vpop.f32.mrf.mxu0
        %v1932 = vadd.f32 %v1866, %v1931
        %v1933 = vand.u32 %v386, 4294901760
        %v1934 = vsub.f32 %v386, %v1933
        %1935 = vmatmul.f32.gmra.mxu0 %v1934
        %v1936 = vpop.f32.mrf.mxu0
        %v1937 = vadd.f32 %v1870, %v1936
        %v1938 = vand.u32 %v387, 4294901760
        %v1939 = vsub.f32 %v387, %v1938
        %1940 = vmatmul.f32.gmra.mxu0 %v1939
        %v1941 = vpop.f32.mrf.mxu0
        %v1942 = vadd.f32 %v1874, %v1941
        %v1943 = vand.u32 %v388, 4294901760
        %v1944 = vsub.f32 %v388, %v1943
        %1945 = vmatmul.f32.gmra.mxu0 %v1944
        %v1946 = vpop.f32.mrf.mxu0
        %v1947 = vadd.f32 %v1878, %v1946
        %1948 = vdwg.mxu0
        %v1949 = vand.u32 %v1700, 4294901760
        %1950 = vmatpush.msra.mxu0 %v1949
        %v1951 = vand.u32 %v1696, 4294901760
        %1952 = vmatpush.msra.mxu0 %v1951
        %v1953 = vand.u32 %v1692, 4294901760
        %1954 = vmatpush.msra.mxu0 %v1953
        %v1955 = vand.u32 %v1688, 4294901760
        %1956 = vmatpush.msra.mxu0 %v1955
        %v1957 = vand.u32 %v1684, 4294901760
        %1958 = vmatpush.msra.mxu0 %v1957
        %v1959 = vand.u32 %v1680, 4294901760
        %1960 = vmatpush.msra.mxu0 %v1959
        %v1961 = vand.u32 %v1676, 4294901760
        %1962 = vmatpush.msra.mxu0 %v1961
        %v1963 = vand.u32 %v1672, 4294901760
        %1964 = vmatpush.msra.mxu0 %v1963
        %v1965 = vand.u32 %v1668, 4294901760
        %1966 = vmatpush.msra.mxu0 %v1965
        %v1967 = vand.u32 %v1664, 4294901760
        %1968 = vmatpush.msra.mxu0 %v1967
        %v1969 = vand.u32 %v1660, 4294901760
        %1970 = vmatpush.msra.mxu0 %v1969
        %v1971 = vand.u32 %v1656, 4294901760
        %1972 = vmatpush.msra.mxu0 %v1971
        %v1973 = vand.u32 %v1652, 4294901760
        %1974 = vmatpush.msra.mxu0 %v1973
        %v1975 = vand.u32 %v1648, 4294901760
        %1976 = vmatpush.msra.mxu0 %v1975
        %v1977 = vand.u32 %v1644, 4294901760
        %1978 = vmatpush.msra.mxu0 %v1977
        %v1979 = vand.u32 %v1640, 4294901760
        %1980 = vmatpush.msra.mxu0 %v1979
        %v1981 = vand.u32 %v385, 4294901760
        %v1982 = vsub.f32 %v385, %v1981
        %v1983 = vand.u32 %v1982, 4294901760
        %1984 = vmatmul.f32.gmra.mxu0 %v1983
        %v1985 = vpop.f32.mrf.mxu0
        %v1986 = vadd.f32 %v1932, %v1985
        %v1987 = vand.u32 %v386, 4294901760
        %v1988 = vsub.f32 %v386, %v1987
        %v1989 = vand.u32 %v1988, 4294901760
        %1990 = vmatmul.f32.gmra.mxu0 %v1989
        %v1991 = vpop.f32.mrf.mxu0
        %v1992 = vadd.f32 %v1937, %v1991
        %v1993 = vand.u32 %v387, 4294901760
        %v1994 = vsub.f32 %v387, %v1993
        %v1995 = vand.u32 %v1994, 4294901760
        %1996 = vmatmul.f32.gmra.mxu0 %v1995
        %v1997 = vpop.f32.mrf.mxu0
        %v1998 = vadd.f32 %v1942, %v1997
        %v1999 = vand.u32 %v388, 4294901760
        %v2000 = vsub.f32 %v388, %v1999
        %v2001 = vand.u32 %v2000, 4294901760
        %2002 = vmatmul.f32.gmra.mxu0 %v2001
        %v2003 = vpop.f32.mrf.mxu0
        %v2004 = vadd.f32 %v1947, %v2003
        %2005 = vdwg.mxu0
        %v2006 = vand.u32 %v1700, 4294901760
        %v2007 = vsub.f32 %v1700, %v2006
        %v2008 = vand.u32 %v2007, 4294901760
        %2009 = vmatpush.msra.mxu0 %v2008
        %v2010 = vand.u32 %v1696, 4294901760
        %v2011 = vsub.f32 %v1696, %v2010
        %v2012 = vand.u32 %v2011, 4294901760
        %2013 = vmatpush.msra.mxu0 %v2012
        %v2014 = vand.u32 %v1692, 4294901760
        %v2015 = vsub.f32 %v1692, %v2014
        %v2016 = vand.u32 %v2015, 4294901760
        %2017 = vmatpush.msra.mxu0 %v2016
        %v2018 = vand.u32 %v1688, 4294901760
        %v2019 = vsub.f32 %v1688, %v2018
        %v2020 = vand.u32 %v2019, 4294901760
        %2021 = vmatpush.msra.mxu0 %v2020
        %v2022 = vand.u32 %v1684, 4294901760
        %v2023 = vsub.f32 %v1684, %v2022
        %v2024 = vand.u32 %v2023, 4294901760
        %2025 = vmatpush.msra.mxu0 %v2024
        %v2026 = vand.u32 %v1680, 4294901760
        %v2027 = vsub.f32 %v1680, %v2026
        %v2028 = vand.u32 %v2027, 4294901760
        %2029 = vmatpush.msra.mxu0 %v2028
        %v2030 = vand.u32 %v1676, 4294901760
        %v2031 = vsub.f32 %v1676, %v2030
        %v2032 = vand.u32 %v2031, 4294901760
        %2033 = vmatpush.msra.mxu0 %v2032
        %v2034 = vand.u32 %v1672, 4294901760
        %v2035 = vsub.f32 %v1672, %v2034
        %v2036 = vand.u32 %v2035, 4294901760
        %2037 = vmatpush.msra.mxu0 %v2036
        %v2038 = vand.u32 %v1668, 4294901760
        %v2039 = vsub.f32 %v1668, %v2038
        %v2040 = vand.u32 %v2039, 4294901760
        %2041 = vmatpush.msra.mxu0 %v2040
        %v2042 = vand.u32 %v1664, 4294901760
        %v2043 = vsub.f32 %v1664, %v2042
        %v2044 = vand.u32 %v2043, 4294901760
        %2045 = vmatpush.msra.mxu0 %v2044
        %v2046 = vand.u32 %v1660, 4294901760
        %v2047 = vsub.f32 %v1660, %v2046
        %v2048 = vand.u32 %v2047, 4294901760
        %2049 = vmatpush.msra.mxu0 %v2048
        %v2050 = vand.u32 %v1656, 4294901760
        %v2051 = vsub.f32 %v1656, %v2050
        %v2052 = vand.u32 %v2051, 4294901760
        %2053 = vmatpush.msra.mxu0 %v2052
        %v2054 = vand.u32 %v1652, 4294901760
        %v2055 = vsub.f32 %v1652, %v2054
        %v2056 = vand.u32 %v2055, 4294901760
        %2057 = vmatpush.msra.mxu0 %v2056
        %v2058 = vand.u32 %v1648, 4294901760
        %v2059 = vsub.f32 %v1648, %v2058
        %v2060 = vand.u32 %v2059, 4294901760
        %2061 = vmatpush.msra.mxu0 %v2060
        %v2062 = vand.u32 %v1644, 4294901760
        %v2063 = vsub.f32 %v1644, %v2062
        %v2064 = vand.u32 %v2063, 4294901760
        %2065 = vmatpush.msra.mxu0 %v2064
        %v2066 = vand.u32 %v1640, 4294901760
        %v2067 = vsub.f32 %v1640, %v2066
        %v2068 = vand.u32 %v2067, 4294901760
        %2069 = vmatpush.msra.mxu0 %v2068
        %v2070 = vand.u32 %v385, 4294901760
        %2071 = vmatmul.f32.gmra.mxu0 %v2070
        %v2072 = vpop.f32.mrf.mxu0
        %v2073 = vadd.f32 %v1986, %v2072
        %v2074 = vand.u32 %v386, 4294901760
        %2075 = vmatmul.f32.gmra.mxu0 %v2074
        %v2076 = vpop.f32.mrf.mxu0
        %v2077 = vadd.f32 %v1992, %v2076
        %v2078 = vand.u32 %v387, 4294901760
        %2079 = vmatmul.f32.gmra.mxu0 %v2078
        %v2080 = vpop.f32.mrf.mxu0
        %v2081 = vadd.f32 %v1998, %v2080
        %v2082 = vand.u32 %v388, 4294901760
        %2083 = vmatmul.f32.gmra.mxu0 %v2082
        %v2084 = vpop.f32.mrf.mxu0
        %v2085 = vadd.f32 %v2004, %v2084
        %2086 = vdwg.mxu0
        %v2087 = vand.u32 %v1700, 4294901760
        %2088 = vmatpush.msra.mxu0 %v2087
        %v2089 = vand.u32 %v1696, 4294901760
        %2090 = vmatpush.msra.mxu0 %v2089
        %v2091 = vand.u32 %v1692, 4294901760
        %2092 = vmatpush.msra.mxu0 %v2091
        %v2093 = vand.u32 %v1688, 4294901760
        %2094 = vmatpush.msra.mxu0 %v2093
        %v2095 = vand.u32 %v1684, 4294901760
        %2096 = vmatpush.msra.mxu0 %v2095
        %v2097 = vand.u32 %v1680, 4294901760
        %2098 = vmatpush.msra.mxu0 %v2097
        %v2099 = vand.u32 %v1676, 4294901760
        %2100 = vmatpush.msra.mxu0 %v2099
        %v2101 = vand.u32 %v1672, 4294901760
        %2102 = vmatpush.msra.mxu0 %v2101
        %v2103 = vand.u32 %v1668, 4294901760
        %2104 = vmatpush.msra.mxu0 %v2103
        %v2105 = vand.u32 %v1664, 4294901760
        %2106 = vmatpush.msra.mxu0 %v2105
        %v2107 = vand.u32 %v1660, 4294901760
        %2108 = vmatpush.msra.mxu0 %v2107
        %v2109 = vand.u32 %v1656, 4294901760
        %2110 = vmatpush.msra.mxu0 %v2109
        %v2111 = vand.u32 %v1652, 4294901760
        %2112 = vmatpush.msra.mxu0 %v2111
        %v2113 = vand.u32 %v1648, 4294901760
        %2114 = vmatpush.msra.mxu0 %v2113
        %v2115 = vand.u32 %v1644, 4294901760
        %2116 = vmatpush.msra.mxu0 %v2115
        %v2117 = vand.u32 %v1640, 4294901760
        %2118 = vmatpush.msra.mxu0 %v2117
        %v2119 = vand.u32 %v385, 4294901760
        %2120 = vmatmul.f32.gmra.mxu0 %v2119
        %v2121 = vpop.f32.mrf.mxu0
        %v2122 = vadd.f32 %v2073, %v2121
        %v2123 = vand.u32 %v386, 4294901760
        %2124 = vmatmul.f32.gmra.mxu0 %v2123
        %v2125 = vpop.f32.mrf.mxu0
        %v2126 = vadd.f32 %v2077, %v2125
        %v2127 = vand.u32 %v387, 4294901760
        %2128 = vmatmul.f32.gmra.mxu0 %v2127
        %v2129 = vpop.f32.mrf.mxu0
        %v2130 = vadd.f32 %v2081, %v2129
        %v2131 = vand.u32 %v388, 4294901760
        %2132 = vmatmul.f32.gmra.mxu0 %v2131
        %v2133 = vpop.f32.mrf.mxu0
        %v2134 = vadd.f32 %v2085, %v2133
        %2135 = vdwg.mxu0
        %v2136 = vand.u32 %v1700, 4294901760
        %2137 = vmatpush.msra.mxu0 %v2136
        %v2138 = vand.u32 %v1696, 4294901760
        %2139 = vmatpush.msra.mxu0 %v2138
        %v2140 = vand.u32 %v1692, 4294901760
        %2141 = vmatpush.msra.mxu0 %v2140
        %v2142 = vand.u32 %v1688, 4294901760
        %2143 = vmatpush.msra.mxu0 %v2142
        %v2144 = vand.u32 %v1684, 4294901760
        %2145 = vmatpush.msra.mxu0 %v2144
        %v2146 = vand.u32 %v1680, 4294901760
        %2147 = vmatpush.msra.mxu0 %v2146
        %v2148 = vand.u32 %v1676, 4294901760
        %2149 = vmatpush.msra.mxu0 %v2148
        %v2150 = vand.u32 %v1672, 4294901760
        %2151 = vmatpush.msra.mxu0 %v2150
        %v2152 = vand.u32 %v1668, 4294901760
        %2153 = vmatpush.msra.mxu0 %v2152
        %v2154 = vand.u32 %v1664, 4294901760
        %2155 = vmatpush.msra.mxu0 %v2154
        %v2156 = vand.u32 %v1660, 4294901760
        %2157 = vmatpush.msra.mxu0 %v2156
        %v2158 = vand.u32 %v1656, 4294901760
        %2159 = vmatpush.msra.mxu0 %v2158
        %v2160 = vand.u32 %v1652, 4294901760
        %2161 = vmatpush.msra.mxu0 %v2160
        %v2162 = vand.u32 %v1648, 4294901760
        %2163 = vmatpush.msra.mxu0 %v2162
        %v2164 = vand.u32 %v1644, 4294901760
        %2165 = vmatpush.msra.mxu0 %v2164
        %v2166 = vand.u32 %v1640, 4294901760
        %2167 = vmatpush.msra.mxu0 %v2166
        %v2168 = vand.u32 %v389, 4294901760
        %v2169 = vsub.f32 %v389, %v2168
        %v2170 = vand.u32 %v2169, 4294901760
        %v2171 = vsub.f32 %v2169, %v2170
        %v2172 = vand.u32 %v2171, 4294901760
        %2173 = vmatmul.f32.gmra.mxu0 %v2172
        %v2174 = vpop.f32.mrf.mxu0
        %v2175 = vadd.f32 0.0, %v2174
        %v2176 = vand.u32 %v390, 4294901760
        %v2177 = vsub.f32 %v390, %v2176
        %v2178 = vand.u32 %v2177, 4294901760
        %v2179 = vsub.f32 %v2177, %v2178
        %v2180 = vand.u32 %v2179, 4294901760
        %2181 = vmatmul.f32.gmra.mxu0 %v2180
        %v2182 = vpop.f32.mrf.mxu0
        %v2183 = vadd.f32 0.0, %v2182
        %v2184 = vand.u32 %v391, 4294901760
        %v2185 = vsub.f32 %v391, %v2184
        %v2186 = vand.u32 %v2185, 4294901760
        %v2187 = vsub.f32 %v2185, %v2186
        %v2188 = vand.u32 %v2187, 4294901760
        %2189 = vmatmul.f32.gmra.mxu0 %v2188
        %v2190 = vpop.f32.mrf.mxu0
        %v2191 = vadd.f32 0.0, %v2190
        %v2192 = vand.u32 %v392, 4294901760
        %v2193 = vsub.f32 %v392, %v2192
        %v2194 = vand.u32 %v2193, 4294901760
        %v2195 = vsub.f32 %v2193, %v2194
        %v2196 = vand.u32 %v2195, 4294901760
        %2197 = vmatmul.f32.gmra.mxu0 %v2196
        %v2198 = vpop.f32.mrf.mxu0
        %v2199 = vadd.f32 0.0, %v2198
        %2200 = vdwg.mxu0
        %v2201 = vand.u32 %v1700, 4294901760
        %v2202 = vsub.f32 %v1700, %v2201
        %v2203 = vand.u32 %v2202, 4294901760
        %v2204 = vsub.f32 %v2202, %v2203
        %v2205 = vand.u32 %v2204, 4294901760
        %2206 = vmatpush.msra.mxu0 %v2205
        %v2207 = vand.u32 %v1696, 4294901760
        %v2208 = vsub.f32 %v1696, %v2207
        %v2209 = vand.u32 %v2208, 4294901760
        %v2210 = vsub.f32 %v2208, %v2209
        %v2211 = vand.u32 %v2210, 4294901760
        %2212 = vmatpush.msra.mxu0 %v2211
        %v2213 = vand.u32 %v1692, 4294901760
        %v2214 = vsub.f32 %v1692, %v2213
        %v2215 = vand.u32 %v2214, 4294901760
        %v2216 = vsub.f32 %v2214, %v2215
        %v2217 = vand.u32 %v2216, 4294901760
        %2218 = vmatpush.msra.mxu0 %v2217
        %v2219 = vand.u32 %v1688, 4294901760
        %v2220 = vsub.f32 %v1688, %v2219
        %v2221 = vand.u32 %v2220, 4294901760
        %v2222 = vsub.f32 %v2220, %v2221
        %v2223 = vand.u32 %v2222, 4294901760
        %2224 = vmatpush.msra.mxu0 %v2223
        %v2225 = vand.u32 %v1684, 4294901760
        %v2226 = vsub.f32 %v1684, %v2225
        %v2227 = vand.u32 %v2226, 4294901760
        %v2228 = vsub.f32 %v2226, %v2227
        %v2229 = vand.u32 %v2228, 4294901760
        %2230 = vmatpush.msra.mxu0 %v2229
        %v2231 = vand.u32 %v1680, 4294901760
        %v2232 = vsub.f32 %v1680, %v2231
        %v2233 = vand.u32 %v2232, 4294901760
        %v2234 = vsub.f32 %v2232, %v2233
        %v2235 = vand.u32 %v2234, 4294901760
        %2236 = vmatpush.msra.mxu0 %v2235
        %v2237 = vand.u32 %v1676, 4294901760
        %v2238 = vsub.f32 %v1676, %v2237
        %v2239 = vand.u32 %v2238, 4294901760
        %v2240 = vsub.f32 %v2238, %v2239
        %v2241 = vand.u32 %v2240, 4294901760
        %2242 = vmatpush.msra.mxu0 %v2241
        %v2243 = vand.u32 %v1672, 4294901760
        %v2244 = vsub.f32 %v1672, %v2243
        %v2245 = vand.u32 %v2244, 4294901760
        %v2246 = vsub.f32 %v2244, %v2245
        %v2247 = vand.u32 %v2246, 4294901760
        %2248 = vmatpush.msra.mxu0 %v2247
        %v2249 = vand.u32 %v1668, 4294901760
        %v2250 = vsub.f32 %v1668, %v2249
        %v2251 = vand.u32 %v2250, 4294901760
        %v2252 = vsub.f32 %v2250, %v2251
        %v2253 = vand.u32 %v2252, 4294901760
        %2254 = vmatpush.msra.mxu0 %v2253
        %v2255 = vand.u32 %v1664, 4294901760
        %v2256 = vsub.f32 %v1664, %v2255
        %v2257 = vand.u32 %v2256, 4294901760
        %v2258 = vsub.f32 %v2256, %v2257
        %v2259 = vand.u32 %v2258, 4294901760
        %2260 = vmatpush.msra.mxu0 %v2259
        %v2261 = vand.u32 %v1660, 4294901760
        %v2262 = vsub.f32 %v1660, %v2261
        %v2263 = vand.u32 %v2262, 4294901760
        %v2264 = vsub.f32 %v2262, %v2263
        %v2265 = vand.u32 %v2264, 4294901760
        %2266 = vmatpush.msra.mxu0 %v2265
        %v2267 = vand.u32 %v1656, 4294901760
        %v2268 = vsub.f32 %v1656, %v2267
        %v2269 = vand.u32 %v2268, 4294901760
        %v2270 = vsub.f32 %v2268, %v2269
        %v2271 = vand.u32 %v2270, 4294901760
        %2272 = vmatpush.msra.mxu0 %v2271
        %v2273 = vand.u32 %v1652, 4294901760
        %v2274 = vsub.f32 %v1652, %v2273
        %v2275 = vand.u32 %v2274, 4294901760
        %v2276 = vsub.f32 %v2274, %v2275
        %v2277 = vand.u32 %v2276, 4294901760
        %2278 = vmatpush.msra.mxu0 %v2277
        %v2279 = vand.u32 %v1648, 4294901760
        %v2280 = vsub.f32 %v1648, %v2279
        %v2281 = vand.u32 %v2280, 4294901760
        %v2282 = vsub.f32 %v2280, %v2281
        %v2283 = vand.u32 %v2282, 4294901760
        %2284 = vmatpush.msra.mxu0 %v2283
        %v2285 = vand.u32 %v1644, 4294901760
        %v2286 = vsub.f32 %v1644, %v2285
        %v2287 = vand.u32 %v2286, 4294901760
        %v2288 = vsub.f32 %v2286, %v2287
        %v2289 = vand.u32 %v2288, 4294901760
        %2290 = vmatpush.msra.mxu0 %v2289
        %v2291 = vand.u32 %v1640, 4294901760
        %v2292 = vsub.f32 %v1640, %v2291
        %v2293 = vand.u32 %v2292, 4294901760
        %v2294 = vsub.f32 %v2292, %v2293
        %v2295 = vand.u32 %v2294, 4294901760
        %2296 = vmatpush.msra.mxu0 %v2295
        %v2297 = vand.u32 %v389, 4294901760
        %2298 = vmatmul.f32.gmra.mxu0 %v2297
        %v2299 = vpop.f32.mrf.mxu0
        %v2300 = vadd.f32 %v2175, %v2299
        %v2301 = vand.u32 %v390, 4294901760
        %2302 = vmatmul.f32.gmra.mxu0 %v2301
        %v2303 = vpop.f32.mrf.mxu0
        %v2304 = vadd.f32 %v2183, %v2303
        %v2305 = vand.u32 %v391, 4294901760
        %2306 = vmatmul.f32.gmra.mxu0 %v2305
        %v2307 = vpop.f32.mrf.mxu0
        %v2308 = vadd.f32 %v2191, %v2307
        %v2309 = vand.u32 %v392, 4294901760
        %2310 = vmatmul.f32.gmra.mxu0 %v2309
        %v2311 = vpop.f32.mrf.mxu0
        %v2312 = vadd.f32 %v2199, %v2311
        %2313 = vdwg.mxu0
        %v2314 = vand.u32 %v1700, 4294901760
        %v2315 = vsub.f32 %v1700, %v2314
        %2316 = vmatpush.msra.mxu0 %v2315
        %v2317 = vand.u32 %v1696, 4294901760
        %v2318 = vsub.f32 %v1696, %v2317
        %2319 = vmatpush.msra.mxu0 %v2318
        %v2320 = vand.u32 %v1692, 4294901760
        %v2321 = vsub.f32 %v1692, %v2320
        %2322 = vmatpush.msra.mxu0 %v2321
        %v2323 = vand.u32 %v1688, 4294901760
        %v2324 = vsub.f32 %v1688, %v2323
        %2325 = vmatpush.msra.mxu0 %v2324
        %v2326 = vand.u32 %v1684, 4294901760
        %v2327 = vsub.f32 %v1684, %v2326
        %2328 = vmatpush.msra.mxu0 %v2327
        %v2329 = vand.u32 %v1680, 4294901760
        %v2330 = vsub.f32 %v1680, %v2329
        %2331 = vmatpush.msra.mxu0 %v2330
        %v2332 = vand.u32 %v1676, 4294901760
        %v2333 = vsub.f32 %v1676, %v2332
        %2334 = vmatpush.msra.mxu0 %v2333
        %v2335 = vand.u32 %v1672, 4294901760
        %v2336 = vsub.f32 %v1672, %v2335
        %2337 = vmatpush.msra.mxu0 %v2336
        %v2338 = vand.u32 %v1668, 4294901760
        %v2339 = vsub.f32 %v1668, %v2338
        %2340 = vmatpush.msra.mxu0 %v2339
        %v2341 = vand.u32 %v1664, 4294901760
        %v2342 = vsub.f32 %v1664, %v2341
        %2343 = vmatpush.msra.mxu0 %v2342
        %v2344 = vand.u32 %v1660, 4294901760
        %v2345 = vsub.f32 %v1660, %v2344
        %2346 = vmatpush.msra.mxu0 %v2345
        %v2347 = vand.u32 %v1656, 4294901760
        %v2348 = vsub.f32 %v1656, %v2347
        %2349 = vmatpush.msra.mxu0 %v2348
        %v2350 = vand.u32 %v1652, 4294901760
        %v2351 = vsub.f32 %v1652, %v2350
        %2352 = vmatpush.msra.mxu0 %v2351
        %v2353 = vand.u32 %v1648, 4294901760
        %v2354 = vsub.f32 %v1648, %v2353
        %2355 = vmatpush.msra.mxu0 %v2354
        %v2356 = vand.u32 %v1644, 4294901760
        %v2357 = vsub.f32 %v1644, %v2356
        %2358 = vmatpush.msra.mxu0 %v2357
        %v2359 = vand.u32 %v1640, 4294901760
        %v2360 = vsub.f32 %v1640, %v2359
        %2361 = vmatpush.msra.mxu0 %v2360
        %v2362 = vand.u32 %v389, 4294901760
        %v2363 = vsub.f32 %v389, %v2362
        %2364 = vmatmul.f32.gmra.mxu0 %v2363
        %v2365 = vpop.f32.mrf.mxu0
        %v2366 = vadd.f32 %v2300, %v2365
        %v2367 = vand.u32 %v390, 4294901760
        %v2368 = vsub.f32 %v390, %v2367
        %2369 = vmatmul.f32.gmra.mxu0 %v2368
        %v2370 = vpop.f32.mrf.mxu0
        %v2371 = vadd.f32 %v2304, %v2370
        %v2372 = vand.u32 %v391, 4294901760
        %v2373 = vsub.f32 %v391, %v2372
        %2374 = vmatmul.f32.gmra.mxu0 %v2373
        %v2375 = vpop.f32.mrf.mxu0
        %v2376 = vadd.f32 %v2308, %v2375
        %v2377 = vand.u32 %v392, 4294901760
        %v2378 = vsub.f32 %v392, %v2377
        %2379 = vmatmul.f32.gmra.mxu0 %v2378
        %v2380 = vpop.f32.mrf.mxu0
        %v2381 = vadd.f32 %v2312, %v2380
        %2382 = vdwg.mxu0
        %v2383 = vand.u32 %v1700, 4294901760
        %2384 = vmatpush.msra.mxu0 %v2383
        %v2385 = vand.u32 %v1696, 4294901760
        %2386 = vmatpush.msra.mxu0 %v2385
        %v2387 = vand.u32 %v1692, 4294901760
        %2388 = vmatpush.msra.mxu0 %v2387
        %v2389 = vand.u32 %v1688, 4294901760
        %2390 = vmatpush.msra.mxu0 %v2389
        %v2391 = vand.u32 %v1684, 4294901760
        %2392 = vmatpush.msra.mxu0 %v2391
        %v2393 = vand.u32 %v1680, 4294901760
        %2394 = vmatpush.msra.mxu0 %v2393
        %v2395 = vand.u32 %v1676, 4294901760
        %2396 = vmatpush.msra.mxu0 %v2395
        %v2397 = vand.u32 %v1672, 4294901760
        %2398 = vmatpush.msra.mxu0 %v2397
        %v2399 = vand.u32 %v1668, 4294901760
        %2400 = vmatpush.msra.mxu0 %v2399
        %v2401 = vand.u32 %v1664, 4294901760
        %2402 = vmatpush.msra.mxu0 %v2401
        %v2403 = vand.u32 %v1660, 4294901760
        %2404 = vmatpush.msra.mxu0 %v2403
        %v2405 = vand.u32 %v1656, 4294901760
        %2406 = vmatpush.msra.mxu0 %v2405
        %v2407 = vand.u32 %v1652, 4294901760
        %2408 = vmatpush.msra.mxu0 %v2407
        %v2409 = vand.u32 %v1648, 4294901760
        %2410 = vmatpush.msra.mxu0 %v2409
        %v2411 = vand.u32 %v1644, 4294901760
        %2412 = vmatpush.msra.mxu0 %v2411
        %v2413 = vand.u32 %v1640, 4294901760
        %2414 = vmatpush.msra.mxu0 %v2413
        %v2415 = vand.u32 %v389, 4294901760
        %v2416 = vsub.f32 %v389, %v2415
        %v2417 = vand.u32 %v2416, 4294901760
        %2418 = vmatmul.f32.gmra.mxu0 %v2417
        %v2419 = vpop.f32.mrf.mxu0
        %v2420 = vadd.f32 %v2366, %v2419
        %v2421 = vand.u32 %v390, 4294901760
        %v2422 = vsub.f32 %v390, %v2421
        %v2423 = vand.u32 %v2422, 4294901760
        %2424 = vmatmul.f32.gmra.mxu0 %v2423
        %v2425 = vpop.f32.mrf.mxu0
        %v2426 = vadd.f32 %v2371, %v2425
        %v2427 = vand.u32 %v391, 4294901760
        %v2428 = vsub.f32 %v391, %v2427
        %v2429 = vand.u32 %v2428, 4294901760
        %2430 = vmatmul.f32.gmra.mxu0 %v2429
        %v2431 = vpop.f32.mrf.mxu0
        %v2432 = vadd.f32 %v2376, %v2431
        %v2433 = vand.u32 %v392, 4294901760
        %v2434 = vsub.f32 %v392, %v2433
        %v2435 = vand.u32 %v2434, 4294901760
        %2436 = vmatmul.f32.gmra.mxu0 %v2435
        %v2437 = vpop.f32.mrf.mxu0
        %v2438 = vadd.f32 %v2381, %v2437
        %2439 = vdwg.mxu0
        %v2440 = vand.u32 %v1700, 4294901760
        %v2441 = vsub.f32 %v1700, %v2440
        %v2442 = vand.u32 %v2441, 4294901760
        %2443 = vmatpush.msra.mxu0 %v2442
        %v2444 = vand.u32 %v1696, 4294901760
        %v2445 = vsub.f32 %v1696, %v2444
        %v2446 = vand.u32 %v2445, 4294901760
        %2447 = vmatpush.msra.mxu0 %v2446
        %v2448 = vand.u32 %v1692, 4294901760
        %v2449 = vsub.f32 %v1692, %v2448
        %v2450 = vand.u32 %v2449, 4294901760
        %2451 = vmatpush.msra.mxu0 %v2450
        %v2452 = vand.u32 %v1688, 4294901760
        %v2453 = vsub.f32 %v1688, %v2452
        %v2454 = vand.u32 %v2453, 4294901760
        %2455 = vmatpush.msra.mxu0 %v2454
        %v2456 = vand.u32 %v1684, 4294901760
        %v2457 = vsub.f32 %v1684, %v2456
        %v2458 = vand.u32 %v2457, 4294901760
        %2459 = vmatpush.msra.mxu0 %v2458
        %v2460 = vand.u32 %v1680, 4294901760
        %v2461 = vsub.f32 %v1680, %v2460
        %v2462 = vand.u32 %v2461, 4294901760
        %2463 = vmatpush.msra.mxu0 %v2462
        %v2464 = vand.u32 %v1676, 4294901760
        %v2465 = vsub.f32 %v1676, %v2464
        %v2466 = vand.u32 %v2465, 4294901760
        %2467 = vmatpush.msra.mxu0 %v2466
        %v2468 = vand.u32 %v1672, 4294901760
        %v2469 = vsub.f32 %v1672, %v2468
        %v2470 = vand.u32 %v2469, 4294901760
        %2471 = vmatpush.msra.mxu0 %v2470
        %v2472 = vand.u32 %v1668, 4294901760
        %v2473 = vsub.f32 %v1668, %v2472
        %v2474 = vand.u32 %v2473, 4294901760
        %2475 = vmatpush.msra.mxu0 %v2474
        %v2476 = vand.u32 %v1664, 4294901760
        %v2477 = vsub.f32 %v1664, %v2476
        %v2478 = vand.u32 %v2477, 4294901760
        %2479 = vmatpush.msra.mxu0 %v2478
        %v2480 = vand.u32 %v1660, 4294901760
        %v2481 = vsub.f32 %v1660, %v2480
        %v2482 = vand.u32 %v2481, 4294901760
        %2483 = vmatpush.msra.mxu0 %v2482
        %v2484 = vand.u32 %v1656, 4294901760
        %v2485 = vsub.f32 %v1656, %v2484
        %v2486 = vand.u32 %v2485, 4294901760
        %2487 = vmatpush.msra.mxu0 %v2486
        %v2488 = vand.u32 %v1652, 4294901760
        %v2489 = vsub.f32 %v1652, %v2488
        %v2490 = vand.u32 %v2489, 4294901760
        %2491 = vmatpush.msra.mxu0 %v2490
        %v2492 = vand.u32 %v1648, 4294901760
        %v2493 = vsub.f32 %v1648, %v2492
        %v2494 = vand.u32 %v2493, 4294901760
        %2495 = vmatpush.msra.mxu0 %v2494
        %v2496 = vand.u32 %v1644, 4294901760
        %v2497 = vsub.f32 %v1644, %v2496
        %v2498 = vand.u32 %v2497, 4294901760
        %2499 = vmatpush.msra.mxu0 %v2498
        %v2500 = vand.u32 %v1640, 4294901760
        %v2501 = vsub.f32 %v1640, %v2500
        %v2502 = vand.u32 %v2501, 4294901760
        %2503 = vmatpush.msra.mxu0 %v2502
        %v2504 = vand.u32 %v389, 4294901760
        %2505 = vmatmul.f32.gmra.mxu0 %v2504
        %v2506 = vpop.f32.mrf.mxu0
        %v2507 = vadd.f32 %v2420, %v2506
        %v2508 = vand.u32 %v390, 4294901760
        %2509 = vmatmul.f32.gmra.mxu0 %v2508
        %v2510 = vpop.f32.mrf.mxu0
        %v2511 = vadd.f32 %v2426, %v2510
        %v2512 = vand.u32 %v391, 4294901760
        %2513 = vmatmul.f32.gmra.mxu0 %v2512
        %v2514 = vpop.f32.mrf.mxu0
        %v2515 = vadd.f32 %v2432, %v2514
        %v2516 = vand.u32 %v392, 4294901760
        %2517 = vmatmul.f32.gmra.mxu0 %v2516
        %v2518 = vpop.f32.mrf.mxu0
        %v2519 = vadd.f32 %v2438, %v2518
        %2520 = vdwg.mxu0
        %v2521 = vand.u32 %v1700, 4294901760
        %2522 = vmatpush.msra.mxu0 %v2521
        %v2523 = vand.u32 %v1696, 4294901760
        %2524 = vmatpush.msra.mxu0 %v2523
        %v2525 = vand.u32 %v1692, 4294901760
        %2526 = vmatpush.msra.mxu0 %v2525
        %v2527 = vand.u32 %v1688, 4294901760
        %2528 = vmatpush.msra.mxu0 %v2527
        %v2529 = vand.u32 %v1684, 4294901760
        %2530 = vmatpush.msra.mxu0 %v2529
        %v2531 = vand.u32 %v1680, 4294901760
        %2532 = vmatpush.msra.mxu0 %v2531
        %v2533 = vand.u32 %v1676, 4294901760
        %2534 = vmatpush.msra.mxu0 %v2533
        %v2535 = vand.u32 %v1672, 4294901760
        %2536 = vmatpush.msra.mxu0 %v2535
        %v2537 = vand.u32 %v1668, 4294901760
        %2538 = vmatpush.msra.mxu0 %v2537
        %v2539 = vand.u32 %v1664, 4294901760
        %2540 = vmatpush.msra.mxu0 %v2539
        %v2541 = vand.u32 %v1660, 4294901760
        %2542 = vmatpush.msra.mxu0 %v2541
        %v2543 = vand.u32 %v1656, 4294901760
        %2544 = vmatpush.msra.mxu0 %v2543
        %v2545 = vand.u32 %v1652, 4294901760
        %2546 = vmatpush.msra.mxu0 %v2545
        %v2547 = vand.u32 %v1648, 4294901760
        %2548 = vmatpush.msra.mxu0 %v2547
        %v2549 = vand.u32 %v1644, 4294901760
        %2550 = vmatpush.msra.mxu0 %v2549
        %v2551 = vand.u32 %v1640, 4294901760
        %2552 = vmatpush.msra.mxu0 %v2551
        %v2553 = vand.u32 %v389, 4294901760
        %2554 = vmatmul.f32.gmra.mxu0 %v2553
        %v2555 = vpop.f32.mrf.mxu0
        %v2556 = vadd.f32 %v2507, %v2555
        %v2557 = vand.u32 %v390, 4294901760
        %2558 = vmatmul.f32.gmra.mxu0 %v2557
        %v2559 = vpop.f32.mrf.mxu0
        %v2560 = vadd.f32 %v2511, %v2559
        %v2561 = vand.u32 %v391, 4294901760
        %2562 = vmatmul.f32.gmra.mxu0 %v2561
        %v2563 = vpop.f32.mrf.mxu0
        %v2564 = vadd.f32 %v2515, %v2563
        %v2565 = vand.u32 %v392, 4294901760
        %2566 = vmatmul.f32.gmra.mxu0 %v2565
        %v2567 = vpop.f32.mrf.mxu0
        %v2568 = vadd.f32 %v2519, %v2567
        %2569 = vdwg.mxu0
        %v2570 = vsel %vm346, %v2556, %v2122
        %v2571 = vsel %vm346, %v2560, %v2126
        %v2572 = vsel %vm346, %v2564, %v2130
        %v2573 = vsel %vm346, %v2568, %v2134
        %v2574 = vadd.f32 %v780, %v2570
        %v2575 = vadd.f32 %v781, %v2571
        %v2576 = vadd.f32 %v782, %v2572
        %v2577 = vadd.f32 %v783, %v2573
        %v2578 = vstv %s384
        %v2579 = vadd.f32 %v2574, %v2578
        %v2580 = vadd.f32 %v2575, %v2578
        %v2581 = vadd.f32 %v2576, %v2578
        %v2582 = vadd.f32 %v2577, %v2578
        %2583 = vst [vmem:[%s325] sm:$0xff] %v2579
        %2584 = vst [vmem:[%s325 + $0x8] sm:$0xff] %v2580
        %2585 = vst [vmem:[%s325 + $0x10] sm:$0xff] %v2581
        %2586 = vst [vmem:[%s325 + $0x18] sm:$0xff] %v2582
        %s2587 = scalar_lea.vmem %s311, 96
        %v2588 = vld [vmem:[%s2587] sm:$0xff]
        %v2589 = vld [vmem:[%s2587 + $0x8] sm:$0xff]
        %v2590 = vld [vmem:[%s2587 + $0x10] sm:$0xff]
        %v2591 = vld [vmem:[%s2587 + $0x18] sm:$0xff]
        %s2592 = scalar_lea.vmem %s311, 128
        %v2593 = vld [vmem:[%s2592] sm:$0xff]
        %v2594 = vld [vmem:[%s2592 + $0x8] sm:$0xff]
        %v2595 = vld [vmem:[%s2592 + $0x10] sm:$0xff]
        %v2596 = vld [vmem:[%s2592 + $0x18] sm:$0xff]
        %s2597 = scalar_lea.vmem %s311, 160
        %v2598 = vld [vmem:[%s2597] sm:$0xff]
        %v2599 = vld [vmem:[%s2597 + $0x8] sm:$0xff]
        %v2600 = vld [vmem:[%s2597 + $0x10] sm:$0xff]
        %v2601 = vld [vmem:[%s2597 + $0x18] sm:$0xff]
        %v2602 = vmul.f32 %v423, %v2588
        %v2603 = vmul.f32 %v423, %v2589
        %v2604 = vmul.f32 %v423, %v2590
        %v2605 = vmul.f32 %v423, %v2591
        %v2606 = vmul.f32 %v428, %v2593
        %v2607 = vmul.f32 %v428, %v2594
        %v2608 = vmul.f32 %v428, %v2595
        %v2609 = vmul.f32 %v428, %v2596
        %v2610 = vadd.f32 %v2602, %v2606
        %v2611 = vadd.f32 %v2603, %v2607
        %v2612 = vadd.f32 %v2604, %v2608
        %v2613 = vadd.f32 %v2605, %v2609
        %v2614 = vmul.f32 %v437, %v2598
        %v2615 = vmul.f32 %v437, %v2599
        %v2616 = vmul.f32 %v437, %v2600
        %v2617 = vmul.f32 %v437, %v2601
        %v2618 = vadd.f32 %v2610, %v2614
        %v2619 = vadd.f32 %v2611, %v2615
        %v2620 = vadd.f32 %v2612, %v2616
        %v2621 = vadd.f32 %v2613, %v2617
        %2622 = vrot.lane.b32.xlu0 %v2618, 1
        %v2623 = vpop.permute.xlu0 %2622
        %2624 = vrot.lane.b32.xlu0 %v2619, 1
        %v2625 = vpop.permute.xlu0 %2624
        %2626 = vrot.lane.b32.xlu0 %v2620, 1
        %v2627 = vpop.permute.xlu0 %2626
        %2628 = vrot.lane.b32.xlu0 %v2621, 1
        %v2629 = vpop.permute.xlu0 %2628
        %v2630 = vsel %vm347, %v2623, 0.0
        %v2631 = vsel %vm347, %v2625, 0.0
        %v2632 = vsel %vm347, %v2627, 0.0
        %v2633 = vsel %vm347, %v2629, 0.0
        %v2634 = vmul.f32 %v458, %v2588
        %v2635 = vmul.f32 %v458, %v2589
        %v2636 = vmul.f32 %v458, %v2590
        %v2637 = vmul.f32 %v458, %v2591
        %v2638 = vmul.f32 %v463, %v2593
        %v2639 = vmul.f32 %v463, %v2594
        %v2640 = vmul.f32 %v463, %v2595
        %v2641 = vmul.f32 %v463, %v2596
        %v2642 = vadd.f32 %v2634, %v2638
        %v2643 = vadd.f32 %v2635, %v2639
        %v2644 = vadd.f32 %v2636, %v2640
        %v2645 = vadd.f32 %v2637, %v2641
        %v2646 = vmul.f32 %v472, %v2598
        %v2647 = vmul.f32 %v472, %v2599
        %v2648 = vmul.f32 %v472, %v2600
        %v2649 = vmul.f32 %v472, %v2601
        %v2650 = vadd.f32 %v2642, %v2646
        %v2651 = vadd.f32 %v2643, %v2647
        %v2652 = vadd.f32 %v2644, %v2648
        %v2653 = vadd.f32 %v2645, %v2649
        %2654 = vrot.lane.b32.xlu0 %v2650, 127
        %v2655 = vpop.permute.xlu0 %2654
        %2656 = vrot.lane.b32.xlu0 %v2651, 127
        %v2657 = vpop.permute.xlu0 %2656
        %2658 = vrot.lane.b32.xlu0 %v2652, 127
        %v2659 = vpop.permute.xlu0 %2658
        %2660 = vrot.lane.b32.xlu0 %v2653, 127
        %v2661 = vpop.permute.xlu0 %2660
        %v2662 = vsel %vm348, %v2655, 0.0
        %v2663 = vsel %vm348, %v2657, 0.0
        %v2664 = vsel %vm348, %v2659, 0.0
        %v2665 = vsel %vm348, %v2661, 0.0
        %v2666 = vmul.f32 %v493, %v2588
        %v2667 = vmul.f32 %v493, %v2589
        %v2668 = vmul.f32 %v493, %v2590
        %v2669 = vmul.f32 %v493, %v2591
        %v2670 = vmul.f32 %v498, %v2593
        %v2671 = vmul.f32 %v498, %v2594
        %v2672 = vmul.f32 %v498, %v2595
        %v2673 = vmul.f32 %v498, %v2596
        %v2674 = vadd.f32 %v2666, %v2670
        %v2675 = vadd.f32 %v2667, %v2671
        %v2676 = vadd.f32 %v2668, %v2672
        %v2677 = vadd.f32 %v2669, %v2673
        %v2678 = vmul.f32 %v507, %v2598
        %v2679 = vmul.f32 %v507, %v2599
        %v2680 = vmul.f32 %v507, %v2600
        %v2681 = vmul.f32 %v507, %v2601
        %v2682 = vadd.f32 %v2674, %v2678
        %v2683 = vadd.f32 %v2675, %v2679
        %v2684 = vadd.f32 %v2676, %v2680
        %v2685 = vadd.f32 %v2677, %v2681
        %v2686 = vadd.f32 %v2682, %v2630
        %v2687 = vadd.f32 %v2683, %v2631
        %v2688 = vadd.f32 %v2684, %v2632
        %v2689 = vadd.f32 %v2685, %v2633
        %v2690 = vadd.f32 %v2686, %v2662
        %v2691 = vadd.f32 %v2687, %v2663
        %v2692 = vadd.f32 %v2688, %v2664
        %v2693 = vadd.f32 %v2689, %v2665
        %2694 = vrot.lane.b32.xlu0 %v2690, 64
        %v2695 = vpop.permute.xlu0 %2694
        %2696 = vrot.lane.b32.xlu0 %v2691, 64
        %v2697 = vpop.permute.xlu0 %2696
        %2698 = vrot.lane.b32.xlu0 %v2692, 64
        %v2699 = vpop.permute.xlu0 %2698
        %2700 = vrot.lane.b32.xlu0 %v2693, 64
        %v2701 = vpop.permute.xlu0 %2700
        %v2702 = vrot.slane %v2695, 7
        %v2703 = vrot.slane %v2697, 7
        %v2704 = vrot.slane %v2699, 7
        %v2705 = vrot.slane %v2701, 7
        %v2706 = vsel %vm536, %v2704, %v2705
        %v2707 = vsel %vm536, %v2703, %v2704
        %v2708 = vsel %vm536, %v2702, %v2703
        %v2709 = vsel %vm536, %v2705, %v2702
        %v2710 = vsel %vm349, %v2709, 0.0
        %v2711 = vsel %vm350, %v2708, 0.0
        %v2712 = vsel %vm351, %v2707, 0.0
        %v2713 = vsel %vm352, %v2706, 0.0
        %v2714 = vsel %vm346, %v2695, %v2710
        %v2715 = vsel %vm346, %v2697, %v2711
        %v2716 = vsel %vm346, %v2699, %v2712
        %v2717 = vsel %vm346, %v2701, %v2713
        %v2718 = vmul.f32 %v549, %v2588
        %v2719 = vmul.f32 %v549, %v2589
        %v2720 = vmul.f32 %v549, %v2590
        %v2721 = vmul.f32 %v549, %v2591
        %v2722 = vmul.f32 %v554, %v2593
        %v2723 = vmul.f32 %v554, %v2594
        %v2724 = vmul.f32 %v554, %v2595
        %v2725 = vmul.f32 %v554, %v2596
        %v2726 = vadd.f32 %v2718, %v2722
        %v2727 = vadd.f32 %v2719, %v2723
        %v2728 = vadd.f32 %v2720, %v2724
        %v2729 = vadd.f32 %v2721, %v2725
        %v2730 = vmul.f32 %v563, %v2598
        %v2731 = vmul.f32 %v563, %v2599
        %v2732 = vmul.f32 %v563, %v2600
        %v2733 = vmul.f32 %v563, %v2601
        %v2734 = vadd.f32 %v2726, %v2730
        %v2735 = vadd.f32 %v2727, %v2731
        %v2736 = vadd.f32 %v2728, %v2732
        %v2737 = vadd.f32 %v2729, %v2733
        %2738 = vrot.lane.b32.xlu0 %v2734, 1
        %v2739 = vpop.permute.xlu0 %2738
        %2740 = vrot.lane.b32.xlu0 %v2735, 1
        %v2741 = vpop.permute.xlu0 %2740
        %2742 = vrot.lane.b32.xlu0 %v2736, 1
        %v2743 = vpop.permute.xlu0 %2742
        %2744 = vrot.lane.b32.xlu0 %v2737, 1
        %v2745 = vpop.permute.xlu0 %2744
        %v2746 = vsel %vm347, %v2739, 0.0
        %v2747 = vsel %vm347, %v2741, 0.0
        %v2748 = vsel %vm347, %v2743, 0.0
        %v2749 = vsel %vm347, %v2745, 0.0
        %v2750 = vmul.f32 %v584, %v2588
        %v2751 = vmul.f32 %v584, %v2589
        %v2752 = vmul.f32 %v584, %v2590
        %v2753 = vmul.f32 %v584, %v2591
        %v2754 = vmul.f32 %v589, %v2593
        %v2755 = vmul.f32 %v589, %v2594
        %v2756 = vmul.f32 %v589, %v2595
        %v2757 = vmul.f32 %v589, %v2596
        %v2758 = vadd.f32 %v2750, %v2754
        %v2759 = vadd.f32 %v2751, %v2755
        %v2760 = vadd.f32 %v2752, %v2756
        %v2761 = vadd.f32 %v2753, %v2757
        %v2762 = vmul.f32 %v598, %v2598
        %v2763 = vmul.f32 %v598, %v2599
        %v2764 = vmul.f32 %v598, %v2600
        %v2765 = vmul.f32 %v598, %v2601
        %v2766 = vadd.f32 %v2758, %v2762
        %v2767 = vadd.f32 %v2759, %v2763
        %v2768 = vadd.f32 %v2760, %v2764
        %v2769 = vadd.f32 %v2761, %v2765
        %2770 = vrot.lane.b32.xlu0 %v2766, 127
        %v2771 = vpop.permute.xlu0 %2770
        %2772 = vrot.lane.b32.xlu0 %v2767, 127
        %v2773 = vpop.permute.xlu0 %2772
        %2774 = vrot.lane.b32.xlu0 %v2768, 127
        %v2775 = vpop.permute.xlu0 %2774
        %2776 = vrot.lane.b32.xlu0 %v2769, 127
        %v2777 = vpop.permute.xlu0 %2776
        %v2778 = vsel %vm348, %v2771, 0.0
        %v2779 = vsel %vm348, %v2773, 0.0
        %v2780 = vsel %vm348, %v2775, 0.0
        %v2781 = vsel %vm348, %v2777, 0.0
        %v2782 = vmul.f32 %v619, %v2588
        %v2783 = vmul.f32 %v619, %v2589
        %v2784 = vmul.f32 %v619, %v2590
        %v2785 = vmul.f32 %v619, %v2591
        %v2786 = vmul.f32 %v624, %v2593
        %v2787 = vmul.f32 %v624, %v2594
        %v2788 = vmul.f32 %v624, %v2595
        %v2789 = vmul.f32 %v624, %v2596
        %v2790 = vadd.f32 %v2782, %v2786
        %v2791 = vadd.f32 %v2783, %v2787
        %v2792 = vadd.f32 %v2784, %v2788
        %v2793 = vadd.f32 %v2785, %v2789
        %v2794 = vmul.f32 %v633, %v2598
        %v2795 = vmul.f32 %v633, %v2599
        %v2796 = vmul.f32 %v633, %v2600
        %v2797 = vmul.f32 %v633, %v2601
        %v2798 = vadd.f32 %v2790, %v2794
        %v2799 = vadd.f32 %v2791, %v2795
        %v2800 = vadd.f32 %v2792, %v2796
        %v2801 = vadd.f32 %v2793, %v2797
        %v2802 = vadd.f32 %v2798, %v2746
        %v2803 = vadd.f32 %v2799, %v2747
        %v2804 = vadd.f32 %v2800, %v2748
        %v2805 = vadd.f32 %v2801, %v2749
        %v2806 = vadd.f32 %v2802, %v2778
        %v2807 = vadd.f32 %v2803, %v2779
        %v2808 = vadd.f32 %v2804, %v2780
        %v2809 = vadd.f32 %v2805, %v2781
        %v2810 = vadd.f32 %v2714, %v2806
        %v2811 = vadd.f32 %v2715, %v2807
        %v2812 = vadd.f32 %v2716, %v2808
        %v2813 = vadd.f32 %v2717, %v2809
        %v2814 = vmul.f32 %v654, %v2588
        %v2815 = vmul.f32 %v654, %v2589
        %v2816 = vmul.f32 %v654, %v2590
        %v2817 = vmul.f32 %v654, %v2591
        %v2818 = vmul.f32 %v659, %v2593
        %v2819 = vmul.f32 %v659, %v2594
        %v2820 = vmul.f32 %v659, %v2595
        %v2821 = vmul.f32 %v659, %v2596
        %v2822 = vadd.f32 %v2814, %v2818
        %v2823 = vadd.f32 %v2815, %v2819
        %v2824 = vadd.f32 %v2816, %v2820
        %v2825 = vadd.f32 %v2817, %v2821
        %v2826 = vmul.f32 %v668, %v2598
        %v2827 = vmul.f32 %v668, %v2599
        %v2828 = vmul.f32 %v668, %v2600
        %v2829 = vmul.f32 %v668, %v2601
        %v2830 = vadd.f32 %v2822, %v2826
        %v2831 = vadd.f32 %v2823, %v2827
        %v2832 = vadd.f32 %v2824, %v2828
        %v2833 = vadd.f32 %v2825, %v2829
        %2834 = vrot.lane.b32.xlu0 %v2830, 1
        %v2835 = vpop.permute.xlu0 %2834
        %2836 = vrot.lane.b32.xlu0 %v2831, 1
        %v2837 = vpop.permute.xlu0 %2836
        %2838 = vrot.lane.b32.xlu0 %v2832, 1
        %v2839 = vpop.permute.xlu0 %2838
        %2840 = vrot.lane.b32.xlu0 %v2833, 1
        %v2841 = vpop.permute.xlu0 %2840
        %v2842 = vsel %vm347, %v2835, 0.0
        %v2843 = vsel %vm347, %v2837, 0.0
        %v2844 = vsel %vm347, %v2839, 0.0
        %v2845 = vsel %vm347, %v2841, 0.0
        %v2846 = vmul.f32 %v689, %v2588
        %v2847 = vmul.f32 %v689, %v2589
        %v2848 = vmul.f32 %v689, %v2590
        %v2849 = vmul.f32 %v689, %v2591
        %v2850 = vmul.f32 %v694, %v2593
        %v2851 = vmul.f32 %v694, %v2594
        %v2852 = vmul.f32 %v694, %v2595
        %v2853 = vmul.f32 %v694, %v2596
        %v2854 = vadd.f32 %v2846, %v2850
        %v2855 = vadd.f32 %v2847, %v2851
        %v2856 = vadd.f32 %v2848, %v2852
        %v2857 = vadd.f32 %v2849, %v2853
        %v2858 = vmul.f32 %v703, %v2598
        %v2859 = vmul.f32 %v703, %v2599
        %v2860 = vmul.f32 %v703, %v2600
        %v2861 = vmul.f32 %v703, %v2601
        %v2862 = vadd.f32 %v2854, %v2858
        %v2863 = vadd.f32 %v2855, %v2859
        %v2864 = vadd.f32 %v2856, %v2860
        %v2865 = vadd.f32 %v2857, %v2861
        %2866 = vrot.lane.b32.xlu0 %v2862, 127
        %v2867 = vpop.permute.xlu0 %2866
        %2868 = vrot.lane.b32.xlu0 %v2863, 127
        %v2869 = vpop.permute.xlu0 %2868
        %2870 = vrot.lane.b32.xlu0 %v2864, 127
        %v2871 = vpop.permute.xlu0 %2870
        %2872 = vrot.lane.b32.xlu0 %v2865, 127
        %v2873 = vpop.permute.xlu0 %2872
        %v2874 = vsel %vm348, %v2867, 0.0
        %v2875 = vsel %vm348, %v2869, 0.0
        %v2876 = vsel %vm348, %v2871, 0.0
        %v2877 = vsel %vm348, %v2873, 0.0
        %v2878 = vmul.f32 %v724, %v2588
        %v2879 = vmul.f32 %v724, %v2589
        %v2880 = vmul.f32 %v724, %v2590
        %v2881 = vmul.f32 %v724, %v2591
        %v2882 = vmul.f32 %v729, %v2593
        %v2883 = vmul.f32 %v729, %v2594
        %v2884 = vmul.f32 %v729, %v2595
        %v2885 = vmul.f32 %v729, %v2596
        %v2886 = vadd.f32 %v2878, %v2882
        %v2887 = vadd.f32 %v2879, %v2883
        %v2888 = vadd.f32 %v2880, %v2884
        %v2889 = vadd.f32 %v2881, %v2885
        %v2890 = vmul.f32 %v738, %v2598
        %v2891 = vmul.f32 %v738, %v2599
        %v2892 = vmul.f32 %v738, %v2600
        %v2893 = vmul.f32 %v738, %v2601
        %v2894 = vadd.f32 %v2886, %v2890
        %v2895 = vadd.f32 %v2887, %v2891
        %v2896 = vadd.f32 %v2888, %v2892
        %v2897 = vadd.f32 %v2889, %v2893
        %v2898 = vadd.f32 %v2894, %v2842
        %v2899 = vadd.f32 %v2895, %v2843
        %v2900 = vadd.f32 %v2896, %v2844
        %v2901 = vadd.f32 %v2897, %v2845
        %v2902 = vadd.f32 %v2898, %v2874
        %v2903 = vadd.f32 %v2899, %v2875
        %v2904 = vadd.f32 %v2900, %v2876
        %v2905 = vadd.f32 %v2901, %v2877
        %2906 = vrot.lane.b32.xlu0 %v2902, 64
        %v2907 = vpop.permute.xlu0 %2906
        %2908 = vrot.lane.b32.xlu0 %v2903, 64
        %v2909 = vpop.permute.xlu0 %2908
        %2910 = vrot.lane.b32.xlu0 %v2904, 64
        %v2911 = vpop.permute.xlu0 %2910
        %2912 = vrot.lane.b32.xlu0 %v2905, 64
        %v2913 = vpop.permute.xlu0 %2912
        %v2914 = vrot.slane %v2907, 1
        %v2915 = vrot.slane %v2909, 1
        %v2916 = vrot.slane %v2911, 1
        %v2917 = vrot.slane %v2913, 1
        %v2918 = vsel %vm767, %v2916, %v2917
        %v2919 = vsel %vm767, %v2915, %v2916
        %v2920 = vsel %vm767, %v2914, %v2915
        %v2921 = vsel %vm767, %v2917, %v2914
        %v2922 = vsel %vm353, %v2920, 0.0
        %v2923 = vsel %vm354, %v2919, 0.0
        %v2924 = vsel %vm355, %v2918, 0.0
        %v2925 = vsel %vm356, %v2921, 0.0
        %v2926 = vsel %vm346, %v2922, %v2907
        %v2927 = vsel %vm346, %v2923, %v2909
        %v2928 = vsel %vm346, %v2924, %v2911
        %v2929 = vsel %vm346, %v2925, %v2913
        %v2930 = vadd.f32 %v2810, %v2926
        %v2931 = vadd.f32 %v2811, %v2927
        %v2932 = vadd.f32 %v2812, %v2928
        %v2933 = vadd.f32 %v2813, %v2929
        %s2934 = scalar_lea.vmem %s318, 128
        %v2935 = vld [vmem:[%s2934] sm:$0xff]
        %v2936 = vld [vmem:[%s2934 + $0x8] sm:$0xff]
        %v2937 = vld [vmem:[%s2934 + $0x10] sm:$0xff]
        %v2938 = vld [vmem:[%s2934 + $0x18] sm:$0xff]
        %v2939 = vld [vmem:[%s2934 + $0x20] sm:$0xff]
        %v2940 = vld [vmem:[%s2934 + $0x28] sm:$0xff]
        %v2941 = vld [vmem:[%s2934 + $0x30] sm:$0xff]
        %v2942 = vld [vmem:[%s2934 + $0x38] sm:$0xff]
        %v2943 = vld [vmem:[%s2934 + $0x40] sm:$0xff]
        %v2944 = vld [vmem:[%s2934 + $0x48] sm:$0xff]
        %v2945 = vld [vmem:[%s2934 + $0x50] sm:$0xff]
        %v2946 = vld [vmem:[%s2934 + $0x58] sm:$0xff]
        %v2947 = vld [vmem:[%s2934 + $0x60] sm:$0xff]
        %v2948 = vld [vmem:[%s2934 + $0x68] sm:$0xff]
        %v2949 = vld [vmem:[%s2934 + $0x70] sm:$0xff]
        %v2950 = vld [vmem:[%s2934 + $0x78] sm:$0xff]
        %2951 = vrot.lane.b32.xlu0 %v2935, 127
        %v2952 = vpop.permute.xlu0 %2951
        %2953 = vrot.lane.b32.xlu0 %v2936, 127
        %v2954 = vpop.permute.xlu0 %2953
        %2955 = vrot.lane.b32.xlu0 %v2937, 127
        %v2956 = vpop.permute.xlu0 %2955
        %2957 = vrot.lane.b32.xlu0 %v2938, 127
        %v2958 = vpop.permute.xlu0 %2957
        %2959 = vrot.lane.b32.xlu0 %v2939, 127
        %v2960 = vpop.permute.xlu0 %2959
        %2961 = vrot.lane.b32.xlu0 %v2940, 127
        %v2962 = vpop.permute.xlu0 %2961
        %2963 = vrot.lane.b32.xlu0 %v2941, 127
        %v2964 = vpop.permute.xlu0 %2963
        %2965 = vrot.lane.b32.xlu0 %v2942, 127
        %v2966 = vpop.permute.xlu0 %2965
        %2967 = vrot.lane.b32.xlu0 %v2943, 127
        %v2968 = vpop.permute.xlu0 %2967
        %2969 = vrot.lane.b32.xlu0 %v2944, 127
        %v2970 = vpop.permute.xlu0 %2969
        %2971 = vrot.lane.b32.xlu0 %v2945, 127
        %v2972 = vpop.permute.xlu0 %2971
        %2973 = vrot.lane.b32.xlu0 %v2946, 127
        %v2974 = vpop.permute.xlu0 %2973
        %2975 = vrot.lane.b32.xlu0 %v2947, 127
        %v2976 = vpop.permute.xlu0 %2975
        %2977 = vrot.lane.b32.xlu0 %v2948, 127
        %v2978 = vpop.permute.xlu0 %2977
        %2979 = vrot.lane.b32.xlu0 %v2949, 127
        %v2980 = vpop.permute.xlu0 %2979
        %2981 = vrot.lane.b32.xlu0 %v2950, 127
        %v2982 = vpop.permute.xlu0 %2981
        %v2983 = vmax.f32 %v2935, %v2952
        %v2984 = vmax.f32 %v2936, %v2954
        %v2985 = vmax.f32 %v2937, %v2956
        %v2986 = vmax.f32 %v2938, %v2958
        %v2987 = vmax.f32 %v2939, %v2960
        %v2988 = vmax.f32 %v2940, %v2962
        %v2989 = vmax.f32 %v2941, %v2964
        %v2990 = vmax.f32 %v2942, %v2966
        %v2991 = vmax.f32 %v2943, %v2968
        %v2992 = vmax.f32 %v2944, %v2970
        %v2993 = vmax.f32 %v2945, %v2972
        %v2994 = vmax.f32 %v2946, %v2974
        %v2995 = vmax.f32 %v2947, %v2976
        %v2996 = vmax.f32 %v2948, %v2978
        %v2997 = vmax.f32 %v2949, %v2980
        %v2998 = vmax.f32 %v2950, %v2982
        %v2999 = vrot.slane %v2983, 1
        %v3000 = vrot.slane %v2984, 1
        %v3001 = vrot.slane %v2985, 1
        %v3002 = vrot.slane %v2986, 1
        %v3003 = vrot.slane %v2987, 1
        %v3004 = vrot.slane %v2988, 1
        %v3005 = vrot.slane %v2989, 1
        %v3006 = vrot.slane %v2990, 1
        %v3007 = vrot.slane %v2991, 1
        %v3008 = vrot.slane %v2992, 1
        %v3009 = vrot.slane %v2993, 1
        %v3010 = vrot.slane %v2994, 1
        %v3011 = vrot.slane %v2995, 1
        %v3012 = vrot.slane %v2996, 1
        %v3013 = vrot.slane %v2997, 1
        %v3014 = vrot.slane %v2998, 1
        %v3015 = vsel %vm767, %v3013, %v3014
        %v3016 = vsel %vm767, %v3012, %v3013
        %v3017 = vsel %vm767, %v3011, %v3012
        %v3018 = vsel %vm767, %v3010, %v3011
        %v3019 = vsel %vm767, %v3009, %v3010
        %v3020 = vsel %vm767, %v3008, %v3009
        %v3021 = vsel %vm767, %v3007, %v3008
        %v3022 = vsel %vm767, %v3006, %v3007
        %v3023 = vsel %vm767, %v3005, %v3006
        %v3024 = vsel %vm767, %v3004, %v3005
        %v3025 = vsel %vm767, %v3003, %v3004
        %v3026 = vsel %vm767, %v3002, %v3003
        %v3027 = vsel %vm767, %v3001, %v3002
        %v3028 = vsel %vm767, %v3000, %v3001
        %v3029 = vsel %vm767, %v2999, %v3000
        %v3030 = vsel %vm767, %v3014, %v2999
        %v3031 = vmax.f32 %v2983, %v3029
        %v3032 = vmax.f32 %v2984, %v3028
        %v3033 = vmax.f32 %v2985, %v3027
        %v3034 = vmax.f32 %v2986, %v3026
        %v3035 = vmax.f32 %v2987, %v3025
        %v3036 = vmax.f32 %v2988, %v3024
        %v3037 = vmax.f32 %v2989, %v3023
        %v3038 = vmax.f32 %v2990, %v3022
        %v3039 = vmax.f32 %v2991, %v3021
        %v3040 = vmax.f32 %v2992, %v3020
        %v3041 = vmax.f32 %v2993, %v3019
        %v3042 = vmax.f32 %v2994, %v3018
        %v3043 = vmax.f32 %v2995, %v3017
        %v3044 = vmax.f32 %v2996, %v3016
        %v3045 = vmax.f32 %v2997, %v3015
        %v3046 = vmax.f32 %v2998, %v3030
        %v3047 = vand.u32 %v408, 4294901760
        %3048 = vmatpush.msra.mxu0 %v3047
        %v3049 = vand.u32 %v407, 4294901760
        %3050 = vmatpush.msra.mxu0 %v3049
        %v3051 = vand.u32 %v406, 4294901760
        %3052 = vmatpush.msra.mxu0 %v3051
        %v3053 = vand.u32 %v405, 4294901760
        %3054 = vmatpush.msra.mxu0 %v3053
        %v3055 = vand.u32 %v404, 4294901760
        %3056 = vmatpush.msra.mxu0 %v3055
        %v3057 = vand.u32 %v403, 4294901760
        %3058 = vmatpush.msra.mxu0 %v3057
        %v3059 = vand.u32 %v402, 4294901760
        %3060 = vmatpush.msra.mxu0 %v3059
        %v3061 = vand.u32 %v401, 4294901760
        %3062 = vmatpush.msra.mxu0 %v3061
        %v3063 = vand.u32 %v400, 4294901760
        %3064 = vmatpush.msra.mxu0 %v3063
        %v3065 = vand.u32 %v399, 4294901760
        %3066 = vmatpush.msra.mxu0 %v3065
        %v3067 = vand.u32 %v398, 4294901760
        %3068 = vmatpush.msra.mxu0 %v3067
        %v3069 = vand.u32 %v397, 4294901760
        %3070 = vmatpush.msra.mxu0 %v3069
        %v3071 = vand.u32 %v396, 4294901760
        %3072 = vmatpush.msra.mxu0 %v3071
        %v3073 = vand.u32 %v395, 4294901760
        %3074 = vmatpush.msra.mxu0 %v3073
        %v3075 = vand.u32 %v394, 4294901760
        %3076 = vmatpush.msra.mxu0 %v3075
        %v3077 = vand.u32 %v393, 4294901760
        %3078 = vmatpush.msra.mxu0 %v3077
        %v3079 = vand.u32 %v3031, 4294901760
        %v3080 = vsub.f32 %v3031, %v3079
        %v3081 = vand.u32 %v3080, 4294901760
        %v3082 = vsub.f32 %v3080, %v3081
        %v3083 = vand.u32 %v3082, 4294901760
        %3084 = vmatmul.f32.gmra.mxu0 %v3083
        %v3085 = vpop.f32.mrf.mxu0
        %v3086 = vadd.f32 0.0, %v3085
        %v3087 = vand.u32 %v3032, 4294901760
        %v3088 = vsub.f32 %v3032, %v3087
        %v3089 = vand.u32 %v3088, 4294901760
        %v3090 = vsub.f32 %v3088, %v3089
        %v3091 = vand.u32 %v3090, 4294901760
        %3092 = vmatmul.f32.gmra.mxu0 %v3091
        %v3093 = vpop.f32.mrf.mxu0
        %v3094 = vadd.f32 0.0, %v3093
        %v3095 = vand.u32 %v3033, 4294901760
        %v3096 = vsub.f32 %v3033, %v3095
        %v3097 = vand.u32 %v3096, 4294901760
        %v3098 = vsub.f32 %v3096, %v3097
        %v3099 = vand.u32 %v3098, 4294901760
        %3100 = vmatmul.f32.gmra.mxu0 %v3099
        %v3101 = vpop.f32.mrf.mxu0
        %v3102 = vadd.f32 0.0, %v3101
        %v3103 = vand.u32 %v3034, 4294901760
        %v3104 = vsub.f32 %v3034, %v3103
        %v3105 = vand.u32 %v3104, 4294901760
        %v3106 = vsub.f32 %v3104, %v3105
        %v3107 = vand.u32 %v3106, 4294901760
        %3108 = vmatmul.f32.gmra.mxu0 %v3107
        %v3109 = vpop.f32.mrf.mxu0
        %v3110 = vadd.f32 0.0, %v3109
        %v3111 = vand.u32 %v3035, 4294901760
        %v3112 = vsub.f32 %v3035, %v3111
        %v3113 = vand.u32 %v3112, 4294901760
        %v3114 = vsub.f32 %v3112, %v3113
        %v3115 = vand.u32 %v3114, 4294901760
        %3116 = vmatmul.f32.gmra.mxu0 %v3115
        %v3117 = vpop.f32.mrf.mxu0
        %v3118 = vadd.f32 0.0, %v3117
        %v3119 = vand.u32 %v3036, 4294901760
        %v3120 = vsub.f32 %v3036, %v3119
        %v3121 = vand.u32 %v3120, 4294901760
        %v3122 = vsub.f32 %v3120, %v3121
        %v3123 = vand.u32 %v3122, 4294901760
        %3124 = vmatmul.f32.gmra.mxu0 %v3123
        %v3125 = vpop.f32.mrf.mxu0
        %v3126 = vadd.f32 0.0, %v3125
        %v3127 = vand.u32 %v3037, 4294901760
        %v3128 = vsub.f32 %v3037, %v3127
        %v3129 = vand.u32 %v3128, 4294901760
        %v3130 = vsub.f32 %v3128, %v3129
        %v3131 = vand.u32 %v3130, 4294901760
        %3132 = vmatmul.f32.gmra.mxu0 %v3131
        %v3133 = vpop.f32.mrf.mxu0
        %v3134 = vadd.f32 0.0, %v3133
        %v3135 = vand.u32 %v3038, 4294901760
        %v3136 = vsub.f32 %v3038, %v3135
        %v3137 = vand.u32 %v3136, 4294901760
        %v3138 = vsub.f32 %v3136, %v3137
        %v3139 = vand.u32 %v3138, 4294901760
        %3140 = vmatmul.f32.gmra.mxu0 %v3139
        %v3141 = vpop.f32.mrf.mxu0
        %v3142 = vadd.f32 0.0, %v3141
        %v3143 = vand.u32 %v3039, 4294901760
        %v3144 = vsub.f32 %v3039, %v3143
        %v3145 = vand.u32 %v3144, 4294901760
        %v3146 = vsub.f32 %v3144, %v3145
        %v3147 = vand.u32 %v3146, 4294901760
        %3148 = vmatmul.f32.gmra.mxu0 %v3147
        %v3149 = vpop.f32.mrf.mxu0
        %v3150 = vadd.f32 0.0, %v3149
        %v3151 = vand.u32 %v3040, 4294901760
        %v3152 = vsub.f32 %v3040, %v3151
        %v3153 = vand.u32 %v3152, 4294901760
        %v3154 = vsub.f32 %v3152, %v3153
        %v3155 = vand.u32 %v3154, 4294901760
        %3156 = vmatmul.f32.gmra.mxu0 %v3155
        %v3157 = vpop.f32.mrf.mxu0
        %v3158 = vadd.f32 0.0, %v3157
        %v3159 = vand.u32 %v3041, 4294901760
        %v3160 = vsub.f32 %v3041, %v3159
        %v3161 = vand.u32 %v3160, 4294901760
        %v3162 = vsub.f32 %v3160, %v3161
        %v3163 = vand.u32 %v3162, 4294901760
        %3164 = vmatmul.f32.gmra.mxu0 %v3163
        %v3165 = vpop.f32.mrf.mxu0
        %v3166 = vadd.f32 0.0, %v3165
        %v3167 = vand.u32 %v3042, 4294901760
        %v3168 = vsub.f32 %v3042, %v3167
        %v3169 = vand.u32 %v3168, 4294901760
        %v3170 = vsub.f32 %v3168, %v3169
        %v3171 = vand.u32 %v3170, 4294901760
        %3172 = vmatmul.f32.gmra.mxu0 %v3171
        %v3173 = vpop.f32.mrf.mxu0
        %v3174 = vadd.f32 0.0, %v3173
        %v3175 = vand.u32 %v3043, 4294901760
        %v3176 = vsub.f32 %v3043, %v3175
        %v3177 = vand.u32 %v3176, 4294901760
        %v3178 = vsub.f32 %v3176, %v3177
        %v3179 = vand.u32 %v3178, 4294901760
        %3180 = vmatmul.f32.gmra.mxu0 %v3179
        %v3181 = vpop.f32.mrf.mxu0
        %v3182 = vadd.f32 0.0, %v3181
        %v3183 = vand.u32 %v3044, 4294901760
        %v3184 = vsub.f32 %v3044, %v3183
        %v3185 = vand.u32 %v3184, 4294901760
        %v3186 = vsub.f32 %v3184, %v3185
        %v3187 = vand.u32 %v3186, 4294901760
        %3188 = vmatmul.f32.gmra.mxu0 %v3187
        %v3189 = vpop.f32.mrf.mxu0
        %v3190 = vadd.f32 0.0, %v3189
        %v3191 = vand.u32 %v3045, 4294901760
        %v3192 = vsub.f32 %v3045, %v3191
        %v3193 = vand.u32 %v3192, 4294901760
        %v3194 = vsub.f32 %v3192, %v3193
        %v3195 = vand.u32 %v3194, 4294901760
        %3196 = vmatmul.f32.gmra.mxu0 %v3195
        %v3197 = vpop.f32.mrf.mxu0
        %v3198 = vadd.f32 0.0, %v3197
        %v3199 = vand.u32 %v3046, 4294901760
        %v3200 = vsub.f32 %v3046, %v3199
        %v3201 = vand.u32 %v3200, 4294901760
        %v3202 = vsub.f32 %v3200, %v3201
        %v3203 = vand.u32 %v3202, 4294901760
        %3204 = vmatmul.f32.gmra.mxu0 %v3203
        %v3205 = vpop.f32.mrf.mxu0
        %v3206 = vadd.f32 0.0, %v3205
        %3207 = vdwg.mxu0
        %v3208 = vand.u32 %v408, 4294901760
        %v3209 = vsub.f32 %v408, %v3208
        %v3210 = vand.u32 %v3209, 4294901760
        %v3211 = vsub.f32 %v3209, %v3210
        %v3212 = vand.u32 %v3211, 4294901760
        %3213 = vmatpush.msra.mxu0 %v3212
        %v3214 = vand.u32 %v407, 4294901760
        %v3215 = vsub.f32 %v407, %v3214
        %v3216 = vand.u32 %v3215, 4294901760
        %v3217 = vsub.f32 %v3215, %v3216
        %v3218 = vand.u32 %v3217, 4294901760
        %3219 = vmatpush.msra.mxu0 %v3218
        %v3220 = vand.u32 %v406, 4294901760
        %v3221 = vsub.f32 %v406, %v3220
        %v3222 = vand.u32 %v3221, 4294901760
        %v3223 = vsub.f32 %v3221, %v3222
        %v3224 = vand.u32 %v3223, 4294901760
        %3225 = vmatpush.msra.mxu0 %v3224
        %v3226 = vand.u32 %v405, 4294901760
        %v3227 = vsub.f32 %v405, %v3226
        %v3228 = vand.u32 %v3227, 4294901760
        %v3229 = vsub.f32 %v3227, %v3228
        %v3230 = vand.u32 %v3229, 4294901760
        %3231 = vmatpush.msra.mxu0 %v3230
        %v3232 = vand.u32 %v404, 4294901760
        %v3233 = vsub.f32 %v404, %v3232
        %v3234 = vand.u32 %v3233, 4294901760
        %v3235 = vsub.f32 %v3233, %v3234
        %v3236 = vand.u32 %v3235, 4294901760
        %3237 = vmatpush.msra.mxu0 %v3236
        %v3238 = vand.u32 %v403, 4294901760
        %v3239 = vsub.f32 %v403, %v3238
        %v3240 = vand.u32 %v3239, 4294901760
        %v3241 = vsub.f32 %v3239, %v3240
        %v3242 = vand.u32 %v3241, 4294901760
        %3243 = vmatpush.msra.mxu0 %v3242
        %v3244 = vand.u32 %v402, 4294901760
        %v3245 = vsub.f32 %v402, %v3244
        %v3246 = vand.u32 %v3245, 4294901760
        %v3247 = vsub.f32 %v3245, %v3246
        %v3248 = vand.u32 %v3247, 4294901760
        %3249 = vmatpush.msra.mxu0 %v3248
        %v3250 = vand.u32 %v401, 4294901760
        %v3251 = vsub.f32 %v401, %v3250
        %v3252 = vand.u32 %v3251, 4294901760
        %v3253 = vsub.f32 %v3251, %v3252
        %v3254 = vand.u32 %v3253, 4294901760
        %3255 = vmatpush.msra.mxu0 %v3254
        %v3256 = vand.u32 %v400, 4294901760
        %v3257 = vsub.f32 %v400, %v3256
        %v3258 = vand.u32 %v3257, 4294901760
        %v3259 = vsub.f32 %v3257, %v3258
        %v3260 = vand.u32 %v3259, 4294901760
        %3261 = vmatpush.msra.mxu0 %v3260
        %v3262 = vand.u32 %v399, 4294901760
        %v3263 = vsub.f32 %v399, %v3262
        %v3264 = vand.u32 %v3263, 4294901760
        %v3265 = vsub.f32 %v3263, %v3264
        %v3266 = vand.u32 %v3265, 4294901760
        %3267 = vmatpush.msra.mxu0 %v3266
        %v3268 = vand.u32 %v398, 4294901760
        %v3269 = vsub.f32 %v398, %v3268
        %v3270 = vand.u32 %v3269, 4294901760
        %v3271 = vsub.f32 %v3269, %v3270
        %v3272 = vand.u32 %v3271, 4294901760
        %3273 = vmatpush.msra.mxu0 %v3272
        %v3274 = vand.u32 %v397, 4294901760
        %v3275 = vsub.f32 %v397, %v3274
        %v3276 = vand.u32 %v3275, 4294901760
        %v3277 = vsub.f32 %v3275, %v3276
        %v3278 = vand.u32 %v3277, 4294901760
        %3279 = vmatpush.msra.mxu0 %v3278
        %v3280 = vand.u32 %v396, 4294901760
        %v3281 = vsub.f32 %v396, %v3280
        %v3282 = vand.u32 %v3281, 4294901760
        %v3283 = vsub.f32 %v3281, %v3282
        %v3284 = vand.u32 %v3283, 4294901760
        %3285 = vmatpush.msra.mxu0 %v3284
        %v3286 = vand.u32 %v395, 4294901760
        %v3287 = vsub.f32 %v395, %v3286
        %v3288 = vand.u32 %v3287, 4294901760
        %v3289 = vsub.f32 %v3287, %v3288
        %v3290 = vand.u32 %v3289, 4294901760
        %3291 = vmatpush.msra.mxu0 %v3290
        %v3292 = vand.u32 %v394, 4294901760
        %v3293 = vsub.f32 %v394, %v3292
        %v3294 = vand.u32 %v3293, 4294901760
        %v3295 = vsub.f32 %v3293, %v3294
        %v3296 = vand.u32 %v3295, 4294901760
        %3297 = vmatpush.msra.mxu0 %v3296
        %v3298 = vand.u32 %v393, 4294901760
        %v3299 = vsub.f32 %v393, %v3298
        %v3300 = vand.u32 %v3299, 4294901760
        %v3301 = vsub.f32 %v3299, %v3300
        %v3302 = vand.u32 %v3301, 4294901760
        %3303 = vmatpush.msra.mxu0 %v3302
        %v3304 = vand.u32 %v3031, 4294901760
        %3305 = vmatmul.f32.gmra.mxu0 %v3304
        %v3306 = vpop.f32.mrf.mxu0
        %v3307 = vadd.f32 %v3086, %v3306
        %v3308 = vand.u32 %v3032, 4294901760
        %3309 = vmatmul.f32.gmra.mxu0 %v3308
        %v3310 = vpop.f32.mrf.mxu0
        %v3311 = vadd.f32 %v3094, %v3310
        %v3312 = vand.u32 %v3033, 4294901760
        %3313 = vmatmul.f32.gmra.mxu0 %v3312
        %v3314 = vpop.f32.mrf.mxu0
        %v3315 = vadd.f32 %v3102, %v3314
        %v3316 = vand.u32 %v3034, 4294901760
        %3317 = vmatmul.f32.gmra.mxu0 %v3316
        %v3318 = vpop.f32.mrf.mxu0
        %v3319 = vadd.f32 %v3110, %v3318
        %v3320 = vand.u32 %v3035, 4294901760
        %3321 = vmatmul.f32.gmra.mxu0 %v3320
        %v3322 = vpop.f32.mrf.mxu0
        %v3323 = vadd.f32 %v3118, %v3322
        %v3324 = vand.u32 %v3036, 4294901760
        %3325 = vmatmul.f32.gmra.mxu0 %v3324
        %v3326 = vpop.f32.mrf.mxu0
        %v3327 = vadd.f32 %v3126, %v3326
        %v3328 = vand.u32 %v3037, 4294901760
        %3329 = vmatmul.f32.gmra.mxu0 %v3328
        %v3330 = vpop.f32.mrf.mxu0
        %v3331 = vadd.f32 %v3134, %v3330
        %v3332 = vand.u32 %v3038, 4294901760
        %3333 = vmatmul.f32.gmra.mxu0 %v3332
        %v3334 = vpop.f32.mrf.mxu0
        %v3335 = vadd.f32 %v3142, %v3334
        %v3336 = vand.u32 %v3039, 4294901760
        %3337 = vmatmul.f32.gmra.mxu0 %v3336
        %v3338 = vpop.f32.mrf.mxu0
        %v3339 = vadd.f32 %v3150, %v3338
        %v3340 = vand.u32 %v3040, 4294901760
        %3341 = vmatmul.f32.gmra.mxu0 %v3340
        %v3342 = vpop.f32.mrf.mxu0
        %v3343 = vadd.f32 %v3158, %v3342
        %v3344 = vand.u32 %v3041, 4294901760
        %3345 = vmatmul.f32.gmra.mxu0 %v3344
        %v3346 = vpop.f32.mrf.mxu0
        %v3347 = vadd.f32 %v3166, %v3346
        %v3348 = vand.u32 %v3042, 4294901760
        %3349 = vmatmul.f32.gmra.mxu0 %v3348
        %v3350 = vpop.f32.mrf.mxu0
        %v3351 = vadd.f32 %v3174, %v3350
        %v3352 = vand.u32 %v3043, 4294901760
        %3353 = vmatmul.f32.gmra.mxu0 %v3352
        %v3354 = vpop.f32.mrf.mxu0
        %v3355 = vadd.f32 %v3182, %v3354
        %v3356 = vand.u32 %v3044, 4294901760
        %3357 = vmatmul.f32.gmra.mxu0 %v3356
        %v3358 = vpop.f32.mrf.mxu0
        %v3359 = vadd.f32 %v3190, %v3358
        %v3360 = vand.u32 %v3045, 4294901760
        %3361 = vmatmul.f32.gmra.mxu0 %v3360
        %v3362 = vpop.f32.mrf.mxu0
        %v3363 = vadd.f32 %v3198, %v3362
        %v3364 = vand.u32 %v3046, 4294901760
        %3365 = vmatmul.f32.gmra.mxu0 %v3364
        %v3366 = vpop.f32.mrf.mxu0
        %v3367 = vadd.f32 %v3206, %v3366
        %3368 = vdwg.mxu0
        %v3369 = vand.u32 %v408, 4294901760
        %v3370 = vsub.f32 %v408, %v3369
        %3371 = vmatpush.msra.mxu0 %v3370
        %v3372 = vand.u32 %v407, 4294901760
        %v3373 = vsub.f32 %v407, %v3372
        %3374 = vmatpush.msra.mxu0 %v3373
        %v3375 = vand.u32 %v406, 4294901760
        %v3376 = vsub.f32 %v406, %v3375
        %3377 = vmatpush.msra.mxu0 %v3376
        %v3378 = vand.u32 %v405, 4294901760
        %v3379 = vsub.f32 %v405, %v3378
        %3380 = vmatpush.msra.mxu0 %v3379
        %v3381 = vand.u32 %v404, 4294901760
        %v3382 = vsub.f32 %v404, %v3381
        %3383 = vmatpush.msra.mxu0 %v3382
        %v3384 = vand.u32 %v403, 4294901760
        %v3385 = vsub.f32 %v403, %v3384
        %3386 = vmatpush.msra.mxu0 %v3385
        %v3387 = vand.u32 %v402, 4294901760
        %v3388 = vsub.f32 %v402, %v3387
        %3389 = vmatpush.msra.mxu0 %v3388
        %v3390 = vand.u32 %v401, 4294901760
        %v3391 = vsub.f32 %v401, %v3390
        %3392 = vmatpush.msra.mxu0 %v3391
        %v3393 = vand.u32 %v400, 4294901760
        %v3394 = vsub.f32 %v400, %v3393
        %3395 = vmatpush.msra.mxu0 %v3394
        %v3396 = vand.u32 %v399, 4294901760
        %v3397 = vsub.f32 %v399, %v3396
        %3398 = vmatpush.msra.mxu0 %v3397
        %v3399 = vand.u32 %v398, 4294901760
        %v3400 = vsub.f32 %v398, %v3399
        %3401 = vmatpush.msra.mxu0 %v3400
        %v3402 = vand.u32 %v397, 4294901760
        %v3403 = vsub.f32 %v397, %v3402
        %3404 = vmatpush.msra.mxu0 %v3403
        %v3405 = vand.u32 %v396, 4294901760
        %v3406 = vsub.f32 %v396, %v3405
        %3407 = vmatpush.msra.mxu0 %v3406
        %v3408 = vand.u32 %v395, 4294901760
        %v3409 = vsub.f32 %v395, %v3408
        %3410 = vmatpush.msra.mxu0 %v3409
        %v3411 = vand.u32 %v394, 4294901760
        %v3412 = vsub.f32 %v394, %v3411
        %3413 = vmatpush.msra.mxu0 %v3412
        %v3414 = vand.u32 %v393, 4294901760
        %v3415 = vsub.f32 %v393, %v3414
        %3416 = vmatpush.msra.mxu0 %v3415
        %v3417 = vand.u32 %v3031, 4294901760
        %v3418 = vsub.f32 %v3031, %v3417
        %3419 = vmatmul.f32.gmra.mxu0 %v3418
        %v3420 = vpop.f32.mrf.mxu0
        %v3421 = vadd.f32 %v3307, %v3420
        %v3422 = vand.u32 %v3032, 4294901760
        %v3423 = vsub.f32 %v3032, %v3422
        %3424 = vmatmul.f32.gmra.mxu0 %v3423
        %v3425 = vpop.f32.mrf.mxu0
        %v3426 = vadd.f32 %v3311, %v3425
        %v3427 = vand.u32 %v3033, 4294901760
        %v3428 = vsub.f32 %v3033, %v3427
        %3429 = vmatmul.f32.gmra.mxu0 %v3428
        %v3430 = vpop.f32.mrf.mxu0
        %v3431 = vadd.f32 %v3315, %v3430
        %v3432 = vand.u32 %v3034, 4294901760
        %v3433 = vsub.f32 %v3034, %v3432
        %3434 = vmatmul.f32.gmra.mxu0 %v3433
        %v3435 = vpop.f32.mrf.mxu0
        %v3436 = vadd.f32 %v3319, %v3435
        %v3437 = vand.u32 %v3035, 4294901760
        %v3438 = vsub.f32 %v3035, %v3437
        %3439 = vmatmul.f32.gmra.mxu0 %v3438
        %v3440 = vpop.f32.mrf.mxu0
        %v3441 = vadd.f32 %v3323, %v3440
        %v3442 = vand.u32 %v3036, 4294901760
        %v3443 = vsub.f32 %v3036, %v3442
        %3444 = vmatmul.f32.gmra.mxu0 %v3443
        %v3445 = vpop.f32.mrf.mxu0
        %v3446 = vadd.f32 %v3327, %v3445
        %v3447 = vand.u32 %v3037, 4294901760
        %v3448 = vsub.f32 %v3037, %v3447
        %3449 = vmatmul.f32.gmra.mxu0 %v3448
        %v3450 = vpop.f32.mrf.mxu0
        %v3451 = vadd.f32 %v3331, %v3450
        %v3452 = vand.u32 %v3038, 4294901760
        %v3453 = vsub.f32 %v3038, %v3452
        %3454 = vmatmul.f32.gmra.mxu0 %v3453
        %v3455 = vpop.f32.mrf.mxu0
        %v3456 = vadd.f32 %v3335, %v3455
        %v3457 = vand.u32 %v3039, 4294901760
        %v3458 = vsub.f32 %v3039, %v3457
        %3459 = vmatmul.f32.gmra.mxu0 %v3458
        %v3460 = vpop.f32.mrf.mxu0
        %v3461 = vadd.f32 %v3339, %v3460
        %v3462 = vand.u32 %v3040, 4294901760
        %v3463 = vsub.f32 %v3040, %v3462
        %3464 = vmatmul.f32.gmra.mxu0 %v3463
        %v3465 = vpop.f32.mrf.mxu0
        %v3466 = vadd.f32 %v3343, %v3465
        %v3467 = vand.u32 %v3041, 4294901760
        %v3468 = vsub.f32 %v3041, %v3467
        %3469 = vmatmul.f32.gmra.mxu0 %v3468
        %v3470 = vpop.f32.mrf.mxu0
        %v3471 = vadd.f32 %v3347, %v3470
        %v3472 = vand.u32 %v3042, 4294901760
        %v3473 = vsub.f32 %v3042, %v3472
        %3474 = vmatmul.f32.gmra.mxu0 %v3473
        %v3475 = vpop.f32.mrf.mxu0
        %v3476 = vadd.f32 %v3351, %v3475
        %v3477 = vand.u32 %v3043, 4294901760
        %v3478 = vsub.f32 %v3043, %v3477
        %3479 = vmatmul.f32.gmra.mxu0 %v3478
        %v3480 = vpop.f32.mrf.mxu0
        %v3481 = vadd.f32 %v3355, %v3480
        %v3482 = vand.u32 %v3044, 4294901760
        %v3483 = vsub.f32 %v3044, %v3482
        %3484 = vmatmul.f32.gmra.mxu0 %v3483
        %v3485 = vpop.f32.mrf.mxu0
        %v3486 = vadd.f32 %v3359, %v3485
        %v3487 = vand.u32 %v3045, 4294901760
        %v3488 = vsub.f32 %v3045, %v3487
        %3489 = vmatmul.f32.gmra.mxu0 %v3488
        %v3490 = vpop.f32.mrf.mxu0
        %v3491 = vadd.f32 %v3363, %v3490
        %v3492 = vand.u32 %v3046, 4294901760
        %v3493 = vsub.f32 %v3046, %v3492
        %3494 = vmatmul.f32.gmra.mxu0 %v3493
        %v3495 = vpop.f32.mrf.mxu0
        %v3496 = vadd.f32 %v3367, %v3495
        %3497 = vdwg.mxu0
        %v3498 = vand.u32 %v408, 4294901760
        %3499 = vmatpush.msra.mxu0 %v3498
        %v3500 = vand.u32 %v407, 4294901760
        %3501 = vmatpush.msra.mxu0 %v3500
        %v3502 = vand.u32 %v406, 4294901760
        %3503 = vmatpush.msra.mxu0 %v3502
        %v3504 = vand.u32 %v405, 4294901760
        %3505 = vmatpush.msra.mxu0 %v3504
        %v3506 = vand.u32 %v404, 4294901760
        %3507 = vmatpush.msra.mxu0 %v3506
        %v3508 = vand.u32 %v403, 4294901760
        %3509 = vmatpush.msra.mxu0 %v3508
        %v3510 = vand.u32 %v402, 4294901760
        %3511 = vmatpush.msra.mxu0 %v3510
        %v3512 = vand.u32 %v401, 4294901760
        %3513 = vmatpush.msra.mxu0 %v3512
        %v3514 = vand.u32 %v400, 4294901760
        %3515 = vmatpush.msra.mxu0 %v3514
        %v3516 = vand.u32 %v399, 4294901760
        %3517 = vmatpush.msra.mxu0 %v3516
        %v3518 = vand.u32 %v398, 4294901760
        %3519 = vmatpush.msra.mxu0 %v3518
        %v3520 = vand.u32 %v397, 4294901760
        %3521 = vmatpush.msra.mxu0 %v3520
        %v3522 = vand.u32 %v396, 4294901760
        %3523 = vmatpush.msra.mxu0 %v3522
        %v3524 = vand.u32 %v395, 4294901760
        %3525 = vmatpush.msra.mxu0 %v3524
        %v3526 = vand.u32 %v394, 4294901760
        %3527 = vmatpush.msra.mxu0 %v3526
        %v3528 = vand.u32 %v393, 4294901760
        %3529 = vmatpush.msra.mxu0 %v3528
        %v3530 = vand.u32 %v3031, 4294901760
        %v3531 = vsub.f32 %v3031, %v3530
        %v3532 = vand.u32 %v3531, 4294901760
        %3533 = vmatmul.f32.gmra.mxu0 %v3532
        %v3534 = vpop.f32.mrf.mxu0
        %v3535 = vadd.f32 %v3421, %v3534
        %v3536 = vand.u32 %v3032, 4294901760
        %v3537 = vsub.f32 %v3032, %v3536
        %v3538 = vand.u32 %v3537, 4294901760
        %3539 = vmatmul.f32.gmra.mxu0 %v3538
        %v3540 = vpop.f32.mrf.mxu0
        %v3541 = vadd.f32 %v3426, %v3540
        %v3542 = vand.u32 %v3033, 4294901760
        %v3543 = vsub.f32 %v3033, %v3542
        %v3544 = vand.u32 %v3543, 4294901760
        %3545 = vmatmul.f32.gmra.mxu0 %v3544
        %v3546 = vpop.f32.mrf.mxu0
        %v3547 = vadd.f32 %v3431, %v3546
        %v3548 = vand.u32 %v3034, 4294901760
        %v3549 = vsub.f32 %v3034, %v3548
        %v3550 = vand.u32 %v3549, 4294901760
        %3551 = vmatmul.f32.gmra.mxu0 %v3550
        %v3552 = vpop.f32.mrf.mxu0
        %v3553 = vadd.f32 %v3436, %v3552
        %v3554 = vand.u32 %v3035, 4294901760
        %v3555 = vsub.f32 %v3035, %v3554
        %v3556 = vand.u32 %v3555, 4294901760
        %3557 = vmatmul.f32.gmra.mxu0 %v3556
        %v3558 = vpop.f32.mrf.mxu0
        %v3559 = vadd.f32 %v3441, %v3558
        %v3560 = vand.u32 %v3036, 4294901760
        %v3561 = vsub.f32 %v3036, %v3560
        %v3562 = vand.u32 %v3561, 4294901760
        %3563 = vmatmul.f32.gmra.mxu0 %v3562
        %v3564 = vpop.f32.mrf.mxu0
        %v3565 = vadd.f32 %v3446, %v3564
        %v3566 = vand.u32 %v3037, 4294901760
        %v3567 = vsub.f32 %v3037, %v3566
        %v3568 = vand.u32 %v3567, 4294901760
        %3569 = vmatmul.f32.gmra.mxu0 %v3568
        %v3570 = vpop.f32.mrf.mxu0
        %v3571 = vadd.f32 %v3451, %v3570
        %v3572 = vand.u32 %v3038, 4294901760
        %v3573 = vsub.f32 %v3038, %v3572
        %v3574 = vand.u32 %v3573, 4294901760
        %3575 = vmatmul.f32.gmra.mxu0 %v3574
        %v3576 = vpop.f32.mrf.mxu0
        %v3577 = vadd.f32 %v3456, %v3576
        %v3578 = vand.u32 %v3039, 4294901760
        %v3579 = vsub.f32 %v3039, %v3578
        %v3580 = vand.u32 %v3579, 4294901760
        %3581 = vmatmul.f32.gmra.mxu0 %v3580
        %v3582 = vpop.f32.mrf.mxu0
        %v3583 = vadd.f32 %v3461, %v3582
        %v3584 = vand.u32 %v3040, 4294901760
        %v3585 = vsub.f32 %v3040, %v3584
        %v3586 = vand.u32 %v3585, 4294901760
        %3587 = vmatmul.f32.gmra.mxu0 %v3586
        %v3588 = vpop.f32.mrf.mxu0
        %v3589 = vadd.f32 %v3466, %v3588
        %v3590 = vand.u32 %v3041, 4294901760
        %v3591 = vsub.f32 %v3041, %v3590
        %v3592 = vand.u32 %v3591, 4294901760
        %3593 = vmatmul.f32.gmra.mxu0 %v3592
        %v3594 = vpop.f32.mrf.mxu0
        %v3595 = vadd.f32 %v3471, %v3594
        %v3596 = vand.u32 %v3042, 4294901760
        %v3597 = vsub.f32 %v3042, %v3596
        %v3598 = vand.u32 %v3597, 4294901760
        %3599 = vmatmul.f32.gmra.mxu0 %v3598
        %v3600 = vpop.f32.mrf.mxu0
        %v3601 = vadd.f32 %v3476, %v3600
        %v3602 = vand.u32 %v3043, 4294901760
        %v3603 = vsub.f32 %v3043, %v3602
        %v3604 = vand.u32 %v3603, 4294901760
        %3605 = vmatmul.f32.gmra.mxu0 %v3604
        %v3606 = vpop.f32.mrf.mxu0
        %v3607 = vadd.f32 %v3481, %v3606
        %v3608 = vand.u32 %v3044, 4294901760
        %v3609 = vsub.f32 %v3044, %v3608
        %v3610 = vand.u32 %v3609, 4294901760
        %3611 = vmatmul.f32.gmra.mxu0 %v3610
        %v3612 = vpop.f32.mrf.mxu0
        %v3613 = vadd.f32 %v3486, %v3612
        %v3614 = vand.u32 %v3045, 4294901760
        %v3615 = vsub.f32 %v3045, %v3614
        %v3616 = vand.u32 %v3615, 4294901760
        %3617 = vmatmul.f32.gmra.mxu0 %v3616
        %v3618 = vpop.f32.mrf.mxu0
        %v3619 = vadd.f32 %v3491, %v3618
        %v3620 = vand.u32 %v3046, 4294901760
        %v3621 = vsub.f32 %v3046, %v3620
        %v3622 = vand.u32 %v3621, 4294901760
        %3623 = vmatmul.f32.gmra.mxu0 %v3622
        %v3624 = vpop.f32.mrf.mxu0
        %v3625 = vadd.f32 %v3496, %v3624
        %3626 = vdwg.mxu0
        %v3627 = vand.u32 %v408, 4294901760
        %v3628 = vsub.f32 %v408, %v3627
        %v3629 = vand.u32 %v3628, 4294901760
        %3630 = vmatpush.msra.mxu0 %v3629
        %v3631 = vand.u32 %v407, 4294901760
        %v3632 = vsub.f32 %v407, %v3631
        %v3633 = vand.u32 %v3632, 4294901760
        %3634 = vmatpush.msra.mxu0 %v3633
        %v3635 = vand.u32 %v406, 4294901760
        %v3636 = vsub.f32 %v406, %v3635
        %v3637 = vand.u32 %v3636, 4294901760
        %3638 = vmatpush.msra.mxu0 %v3637
        %v3639 = vand.u32 %v405, 4294901760
        %v3640 = vsub.f32 %v405, %v3639
        %v3641 = vand.u32 %v3640, 4294901760
        %3642 = vmatpush.msra.mxu0 %v3641
        %v3643 = vand.u32 %v404, 4294901760
        %v3644 = vsub.f32 %v404, %v3643
        %v3645 = vand.u32 %v3644, 4294901760
        %3646 = vmatpush.msra.mxu0 %v3645
        %v3647 = vand.u32 %v403, 4294901760
        %v3648 = vsub.f32 %v403, %v3647
        %v3649 = vand.u32 %v3648, 4294901760
        %3650 = vmatpush.msra.mxu0 %v3649
        %v3651 = vand.u32 %v402, 4294901760
        %v3652 = vsub.f32 %v402, %v3651
        %v3653 = vand.u32 %v3652, 4294901760
        %3654 = vmatpush.msra.mxu0 %v3653
        %v3655 = vand.u32 %v401, 4294901760
        %v3656 = vsub.f32 %v401, %v3655
        %v3657 = vand.u32 %v3656, 4294901760
        %3658 = vmatpush.msra.mxu0 %v3657
        %v3659 = vand.u32 %v400, 4294901760
        %v3660 = vsub.f32 %v400, %v3659
        %v3661 = vand.u32 %v3660, 4294901760
        %3662 = vmatpush.msra.mxu0 %v3661
        %v3663 = vand.u32 %v399, 4294901760
        %v3664 = vsub.f32 %v399, %v3663
        %v3665 = vand.u32 %v3664, 4294901760
        %3666 = vmatpush.msra.mxu0 %v3665
        %v3667 = vand.u32 %v398, 4294901760
        %v3668 = vsub.f32 %v398, %v3667
        %v3669 = vand.u32 %v3668, 4294901760
        %3670 = vmatpush.msra.mxu0 %v3669
        %v3671 = vand.u32 %v397, 4294901760
        %v3672 = vsub.f32 %v397, %v3671
        %v3673 = vand.u32 %v3672, 4294901760
        %3674 = vmatpush.msra.mxu0 %v3673
        %v3675 = vand.u32 %v396, 4294901760
        %v3676 = vsub.f32 %v396, %v3675
        %v3677 = vand.u32 %v3676, 4294901760
        %3678 = vmatpush.msra.mxu0 %v3677
        %v3679 = vand.u32 %v395, 4294901760
        %v3680 = vsub.f32 %v395, %v3679
        %v3681 = vand.u32 %v3680, 4294901760
        %3682 = vmatpush.msra.mxu0 %v3681
        %v3683 = vand.u32 %v394, 4294901760
        %v3684 = vsub.f32 %v394, %v3683
        %v3685 = vand.u32 %v3684, 4294901760
        %3686 = vmatpush.msra.mxu0 %v3685
        %v3687 = vand.u32 %v393, 4294901760
        %v3688 = vsub.f32 %v393, %v3687
        %v3689 = vand.u32 %v3688, 4294901760
        %3690 = vmatpush.msra.mxu0 %v3689
        %v3691 = vand.u32 %v3031, 4294901760
        %3692 = vmatmul.f32.gmra.mxu0 %v3691
        %v3693 = vpop.f32.mrf.mxu0
        %v3694 = vadd.f32 %v3535, %v3693
        %v3695 = vand.u32 %v3032, 4294901760
        %3696 = vmatmul.f32.gmra.mxu0 %v3695
        %v3697 = vpop.f32.mrf.mxu0
        %v3698 = vadd.f32 %v3541, %v3697
        %v3699 = vand.u32 %v3033, 4294901760
        %3700 = vmatmul.f32.gmra.mxu0 %v3699
        %v3701 = vpop.f32.mrf.mxu0
        %v3702 = vadd.f32 %v3547, %v3701
        %v3703 = vand.u32 %v3034, 4294901760
        %3704 = vmatmul.f32.gmra.mxu0 %v3703
        %v3705 = vpop.f32.mrf.mxu0
        %v3706 = vadd.f32 %v3553, %v3705
        %v3707 = vand.u32 %v3035, 4294901760
        %3708 = vmatmul.f32.gmra.mxu0 %v3707
        %v3709 = vpop.f32.mrf.mxu0
        %v3710 = vadd.f32 %v3559, %v3709
        %v3711 = vand.u32 %v3036, 4294901760
        %3712 = vmatmul.f32.gmra.mxu0 %v3711
        %v3713 = vpop.f32.mrf.mxu0
        %v3714 = vadd.f32 %v3565, %v3713
        %v3715 = vand.u32 %v3037, 4294901760
        %3716 = vmatmul.f32.gmra.mxu0 %v3715
        %v3717 = vpop.f32.mrf.mxu0
        %v3718 = vadd.f32 %v3571, %v3717
        %v3719 = vand.u32 %v3038, 4294901760
        %3720 = vmatmul.f32.gmra.mxu0 %v3719
        %v3721 = vpop.f32.mrf.mxu0
        %v3722 = vadd.f32 %v3577, %v3721
        %v3723 = vand.u32 %v3039, 4294901760
        %3724 = vmatmul.f32.gmra.mxu0 %v3723
        %v3725 = vpop.f32.mrf.mxu0
        %v3726 = vadd.f32 %v3583, %v3725
        %v3727 = vand.u32 %v3040, 4294901760
        %3728 = vmatmul.f32.gmra.mxu0 %v3727
        %v3729 = vpop.f32.mrf.mxu0
        %v3730 = vadd.f32 %v3589, %v3729
        %v3731 = vand.u32 %v3041, 4294901760
        %3732 = vmatmul.f32.gmra.mxu0 %v3731
        %v3733 = vpop.f32.mrf.mxu0
        %v3734 = vadd.f32 %v3595, %v3733
        %v3735 = vand.u32 %v3042, 4294901760
        %3736 = vmatmul.f32.gmra.mxu0 %v3735
        %v3737 = vpop.f32.mrf.mxu0
        %v3738 = vadd.f32 %v3601, %v3737
        %v3739 = vand.u32 %v3043, 4294901760
        %3740 = vmatmul.f32.gmra.mxu0 %v3739
        %v3741 = vpop.f32.mrf.mxu0
        %v3742 = vadd.f32 %v3607, %v3741
        %v3743 = vand.u32 %v3044, 4294901760
        %3744 = vmatmul.f32.gmra.mxu0 %v3743
        %v3745 = vpop.f32.mrf.mxu0
        %v3746 = vadd.f32 %v3613, %v3745
        %v3747 = vand.u32 %v3045, 4294901760
        %3748 = vmatmul.f32.gmra.mxu0 %v3747
        %v3749 = vpop.f32.mrf.mxu0
        %v3750 = vadd.f32 %v3619, %v3749
        %v3751 = vand.u32 %v3046, 4294901760
        %3752 = vmatmul.f32.gmra.mxu0 %v3751
        %v3753 = vpop.f32.mrf.mxu0
        %v3754 = vadd.f32 %v3625, %v3753
        %3755 = vdwg.mxu0
        %v3756 = vand.u32 %v408, 4294901760
        %3757 = vmatpush.msra.mxu0 %v3756
        %v3758 = vand.u32 %v407, 4294901760
        %3759 = vmatpush.msra.mxu0 %v3758
        %v3760 = vand.u32 %v406, 4294901760
        %3761 = vmatpush.msra.mxu0 %v3760
        %v3762 = vand.u32 %v405, 4294901760
        %3763 = vmatpush.msra.mxu0 %v3762
        %v3764 = vand.u32 %v404, 4294901760
        %3765 = vmatpush.msra.mxu0 %v3764
        %v3766 = vand.u32 %v403, 4294901760
        %3767 = vmatpush.msra.mxu0 %v3766
        %v3768 = vand.u32 %v402, 4294901760
        %3769 = vmatpush.msra.mxu0 %v3768
        %v3770 = vand.u32 %v401, 4294901760
        %3771 = vmatpush.msra.mxu0 %v3770
        %v3772 = vand.u32 %v400, 4294901760
        %3773 = vmatpush.msra.mxu0 %v3772
        %v3774 = vand.u32 %v399, 4294901760
        %3775 = vmatpush.msra.mxu0 %v3774
        %v3776 = vand.u32 %v398, 4294901760
        %3777 = vmatpush.msra.mxu0 %v3776
        %v3778 = vand.u32 %v397, 4294901760
        %3779 = vmatpush.msra.mxu0 %v3778
        %v3780 = vand.u32 %v396, 4294901760
        %3781 = vmatpush.msra.mxu0 %v3780
        %v3782 = vand.u32 %v395, 4294901760
        %3783 = vmatpush.msra.mxu0 %v3782
        %v3784 = vand.u32 %v394, 4294901760
        %3785 = vmatpush.msra.mxu0 %v3784
        %v3786 = vand.u32 %v393, 4294901760
        %3787 = vmatpush.msra.mxu0 %v3786
        %v3788 = vand.u32 %v3031, 4294901760
        %3789 = vmatmul.f32.gmra.mxu0 %v3788
        %v3790 = vpop.f32.mrf.mxu0
        %v3791 = vadd.f32 %v3694, %v3790
        %v3792 = vand.u32 %v3032, 4294901760
        %3793 = vmatmul.f32.gmra.mxu0 %v3792
        %v3794 = vpop.f32.mrf.mxu0
        %v3795 = vadd.f32 %v3698, %v3794
        %v3796 = vand.u32 %v3033, 4294901760
        %3797 = vmatmul.f32.gmra.mxu0 %v3796
        %v3798 = vpop.f32.mrf.mxu0
        %v3799 = vadd.f32 %v3702, %v3798
        %v3800 = vand.u32 %v3034, 4294901760
        %3801 = vmatmul.f32.gmra.mxu0 %v3800
        %v3802 = vpop.f32.mrf.mxu0
        %v3803 = vadd.f32 %v3706, %v3802
        %v3804 = vand.u32 %v3035, 4294901760
        %3805 = vmatmul.f32.gmra.mxu0 %v3804
        %v3806 = vpop.f32.mrf.mxu0
        %v3807 = vadd.f32 %v3710, %v3806
        %v3808 = vand.u32 %v3036, 4294901760
        %3809 = vmatmul.f32.gmra.mxu0 %v3808
        %v3810 = vpop.f32.mrf.mxu0
        %v3811 = vadd.f32 %v3714, %v3810
        %v3812 = vand.u32 %v3037, 4294901760
        %3813 = vmatmul.f32.gmra.mxu0 %v3812
        %v3814 = vpop.f32.mrf.mxu0
        %v3815 = vadd.f32 %v3718, %v3814
        %v3816 = vand.u32 %v3038, 4294901760
        %3817 = vmatmul.f32.gmra.mxu0 %v3816
        %v3818 = vpop.f32.mrf.mxu0
        %v3819 = vadd.f32 %v3722, %v3818
        %v3820 = vand.u32 %v3039, 4294901760
        %3821 = vmatmul.f32.gmra.mxu0 %v3820
        %v3822 = vpop.f32.mrf.mxu0
        %v3823 = vadd.f32 %v3726, %v3822
        %v3824 = vand.u32 %v3040, 4294901760
        %3825 = vmatmul.f32.gmra.mxu0 %v3824
        %v3826 = vpop.f32.mrf.mxu0
        %v3827 = vadd.f32 %v3730, %v3826
        %v3828 = vand.u32 %v3041, 4294901760
        %3829 = vmatmul.f32.gmra.mxu0 %v3828
        %v3830 = vpop.f32.mrf.mxu0
        %v3831 = vadd.f32 %v3734, %v3830
        %v3832 = vand.u32 %v3042, 4294901760
        %3833 = vmatmul.f32.gmra.mxu0 %v3832
        %v3834 = vpop.f32.mrf.mxu0
        %v3835 = vadd.f32 %v3738, %v3834
        %v3836 = vand.u32 %v3043, 4294901760
        %3837 = vmatmul.f32.gmra.mxu0 %v3836
        %v3838 = vpop.f32.mrf.mxu0
        %v3839 = vadd.f32 %v3742, %v3838
        %v3840 = vand.u32 %v3044, 4294901760
        %3841 = vmatmul.f32.gmra.mxu0 %v3840
        %v3842 = vpop.f32.mrf.mxu0
        %v3843 = vadd.f32 %v3746, %v3842
        %v3844 = vand.u32 %v3045, 4294901760
        %3845 = vmatmul.f32.gmra.mxu0 %v3844
        %v3846 = vpop.f32.mrf.mxu0
        %v3847 = vadd.f32 %v3750, %v3846
        %v3848 = vand.u32 %v3046, 4294901760
        %3849 = vmatmul.f32.gmra.mxu0 %v3848
        %v3850 = vpop.f32.mrf.mxu0
        %v3851 = vadd.f32 %v3754, %v3850
        %3852 = vdwg.mxu0
        %v3853 = vand.u32 %v3851, 4294901760
        %3854 = vmatpush.msra.mxu0 %v3853
        %v3855 = vand.u32 %v3847, 4294901760
        %3856 = vmatpush.msra.mxu0 %v3855
        %v3857 = vand.u32 %v3843, 4294901760
        %3858 = vmatpush.msra.mxu0 %v3857
        %v3859 = vand.u32 %v3839, 4294901760
        %3860 = vmatpush.msra.mxu0 %v3859
        %v3861 = vand.u32 %v3835, 4294901760
        %3862 = vmatpush.msra.mxu0 %v3861
        %v3863 = vand.u32 %v3831, 4294901760
        %3864 = vmatpush.msra.mxu0 %v3863
        %v3865 = vand.u32 %v3827, 4294901760
        %3866 = vmatpush.msra.mxu0 %v3865
        %v3867 = vand.u32 %v3823, 4294901760
        %3868 = vmatpush.msra.mxu0 %v3867
        %v3869 = vand.u32 %v3819, 4294901760
        %3870 = vmatpush.msra.mxu0 %v3869
        %v3871 = vand.u32 %v3815, 4294901760
        %3872 = vmatpush.msra.mxu0 %v3871
        %v3873 = vand.u32 %v3811, 4294901760
        %3874 = vmatpush.msra.mxu0 %v3873
        %v3875 = vand.u32 %v3807, 4294901760
        %3876 = vmatpush.msra.mxu0 %v3875
        %v3877 = vand.u32 %v3803, 4294901760
        %3878 = vmatpush.msra.mxu0 %v3877
        %v3879 = vand.u32 %v3799, 4294901760
        %3880 = vmatpush.msra.mxu0 %v3879
        %v3881 = vand.u32 %v3795, 4294901760
        %3882 = vmatpush.msra.mxu0 %v3881
        %v3883 = vand.u32 %v3791, 4294901760
        %3884 = vmatpush.msra.mxu0 %v3883
        %v3885 = vand.u32 %v385, 4294901760
        %v3886 = vsub.f32 %v385, %v3885
        %v3887 = vand.u32 %v3886, 4294901760
        %v3888 = vsub.f32 %v3886, %v3887
        %v3889 = vand.u32 %v3888, 4294901760
        %3890 = vmatmul.f32.gmra.mxu0 %v3889
        %v3891 = vpop.f32.mrf.mxu0
        %v3892 = vadd.f32 0.0, %v3891
        %v3893 = vand.u32 %v386, 4294901760
        %v3894 = vsub.f32 %v386, %v3893
        %v3895 = vand.u32 %v3894, 4294901760
        %v3896 = vsub.f32 %v3894, %v3895
        %v3897 = vand.u32 %v3896, 4294901760
        %3898 = vmatmul.f32.gmra.mxu0 %v3897
        %v3899 = vpop.f32.mrf.mxu0
        %v3900 = vadd.f32 0.0, %v3899
        %v3901 = vand.u32 %v387, 4294901760
        %v3902 = vsub.f32 %v387, %v3901
        %v3903 = vand.u32 %v3902, 4294901760
        %v3904 = vsub.f32 %v3902, %v3903
        %v3905 = vand.u32 %v3904, 4294901760
        %3906 = vmatmul.f32.gmra.mxu0 %v3905
        %v3907 = vpop.f32.mrf.mxu0
        %v3908 = vadd.f32 0.0, %v3907
        %v3909 = vand.u32 %v388, 4294901760
        %v3910 = vsub.f32 %v388, %v3909
        %v3911 = vand.u32 %v3910, 4294901760
        %v3912 = vsub.f32 %v3910, %v3911
        %v3913 = vand.u32 %v3912, 4294901760
        %3914 = vmatmul.f32.gmra.mxu0 %v3913
        %v3915 = vpop.f32.mrf.mxu0
        %v3916 = vadd.f32 0.0, %v3915
        %3917 = vdwg.mxu0
        %v3918 = vand.u32 %v3851, 4294901760
        %v3919 = vsub.f32 %v3851, %v3918
        %v3920 = vand.u32 %v3919, 4294901760
        %v3921 = vsub.f32 %v3919, %v3920
        %v3922 = vand.u32 %v3921, 4294901760
        %3923 = vmatpush.msra.mxu0 %v3922
        %v3924 = vand.u32 %v3847, 4294901760
        %v3925 = vsub.f32 %v3847, %v3924
        %v3926 = vand.u32 %v3925, 4294901760
        %v3927 = vsub.f32 %v3925, %v3926
        %v3928 = vand.u32 %v3927, 4294901760
        %3929 = vmatpush.msra.mxu0 %v3928
        %v3930 = vand.u32 %v3843, 4294901760
        %v3931 = vsub.f32 %v3843, %v3930
        %v3932 = vand.u32 %v3931, 4294901760
        %v3933 = vsub.f32 %v3931, %v3932
        %v3934 = vand.u32 %v3933, 4294901760
        %3935 = vmatpush.msra.mxu0 %v3934
        %v3936 = vand.u32 %v3839, 4294901760
        %v3937 = vsub.f32 %v3839, %v3936
        %v3938 = vand.u32 %v3937, 4294901760
        %v3939 = vsub.f32 %v3937, %v3938
        %v3940 = vand.u32 %v3939, 4294901760
        %3941 = vmatpush.msra.mxu0 %v3940
        %v3942 = vand.u32 %v3835, 4294901760
        %v3943 = vsub.f32 %v3835, %v3942
        %v3944 = vand.u32 %v3943, 4294901760
        %v3945 = vsub.f32 %v3943, %v3944
        %v3946 = vand.u32 %v3945, 4294901760
        %3947 = vmatpush.msra.mxu0 %v3946
        %v3948 = vand.u32 %v3831, 4294901760
        %v3949 = vsub.f32 %v3831, %v3948
        %v3950 = vand.u32 %v3949, 4294901760
        %v3951 = vsub.f32 %v3949, %v3950
        %v3952 = vand.u32 %v3951, 4294901760
        %3953 = vmatpush.msra.mxu0 %v3952
        %v3954 = vand.u32 %v3827, 4294901760
        %v3955 = vsub.f32 %v3827, %v3954
        %v3956 = vand.u32 %v3955, 4294901760
        %v3957 = vsub.f32 %v3955, %v3956
        %v3958 = vand.u32 %v3957, 4294901760
        %3959 = vmatpush.msra.mxu0 %v3958
        %v3960 = vand.u32 %v3823, 4294901760
        %v3961 = vsub.f32 %v3823, %v3960
        %v3962 = vand.u32 %v3961, 4294901760
        %v3963 = vsub.f32 %v3961, %v3962
        %v3964 = vand.u32 %v3963, 4294901760
        %3965 = vmatpush.msra.mxu0 %v3964
        %v3966 = vand.u32 %v3819, 4294901760
        %v3967 = vsub.f32 %v3819, %v3966
        %v3968 = vand.u32 %v3967, 4294901760
        %v3969 = vsub.f32 %v3967, %v3968
        %v3970 = vand.u32 %v3969, 4294901760
        %3971 = vmatpush.msra.mxu0 %v3970
        %v3972 = vand.u32 %v3815, 4294901760
        %v3973 = vsub.f32 %v3815, %v3972
        %v3974 = vand.u32 %v3973, 4294901760
        %v3975 = vsub.f32 %v3973, %v3974
        %v3976 = vand.u32 %v3975, 4294901760
        %3977 = vmatpush.msra.mxu0 %v3976
        %v3978 = vand.u32 %v3811, 4294901760
        %v3979 = vsub.f32 %v3811, %v3978
        %v3980 = vand.u32 %v3979, 4294901760
        %v3981 = vsub.f32 %v3979, %v3980
        %v3982 = vand.u32 %v3981, 4294901760
        %3983 = vmatpush.msra.mxu0 %v3982
        %v3984 = vand.u32 %v3807, 4294901760
        %v3985 = vsub.f32 %v3807, %v3984
        %v3986 = vand.u32 %v3985, 4294901760
        %v3987 = vsub.f32 %v3985, %v3986
        %v3988 = vand.u32 %v3987, 4294901760
        %3989 = vmatpush.msra.mxu0 %v3988
        %v3990 = vand.u32 %v3803, 4294901760
        %v3991 = vsub.f32 %v3803, %v3990
        %v3992 = vand.u32 %v3991, 4294901760
        %v3993 = vsub.f32 %v3991, %v3992
        %v3994 = vand.u32 %v3993, 4294901760
        %3995 = vmatpush.msra.mxu0 %v3994
        %v3996 = vand.u32 %v3799, 4294901760
        %v3997 = vsub.f32 %v3799, %v3996
        %v3998 = vand.u32 %v3997, 4294901760
        %v3999 = vsub.f32 %v3997, %v3998
        %v4000 = vand.u32 %v3999, 4294901760
        %4001 = vmatpush.msra.mxu0 %v4000
        %v4002 = vand.u32 %v3795, 4294901760
        %v4003 = vsub.f32 %v3795, %v4002
        %v4004 = vand.u32 %v4003, 4294901760
        %v4005 = vsub.f32 %v4003, %v4004
        %v4006 = vand.u32 %v4005, 4294901760
        %4007 = vmatpush.msra.mxu0 %v4006
        %v4008 = vand.u32 %v3791, 4294901760
        %v4009 = vsub.f32 %v3791, %v4008
        %v4010 = vand.u32 %v4009, 4294901760
        %v4011 = vsub.f32 %v4009, %v4010
        %v4012 = vand.u32 %v4011, 4294901760
        %4013 = vmatpush.msra.mxu0 %v4012
        %v4014 = vand.u32 %v385, 4294901760
        %4015 = vmatmul.f32.gmra.mxu0 %v4014
        %v4016 = vpop.f32.mrf.mxu0
        %v4017 = vadd.f32 %v3892, %v4016
        %v4018 = vand.u32 %v386, 4294901760
        %4019 = vmatmul.f32.gmra.mxu0 %v4018
        %v4020 = vpop.f32.mrf.mxu0
        %v4021 = vadd.f32 %v3900, %v4020
        %v4022 = vand.u32 %v387, 4294901760
        %4023 = vmatmul.f32.gmra.mxu0 %v4022
        %v4024 = vpop.f32.mrf.mxu0
        %v4025 = vadd.f32 %v3908, %v4024
        %v4026 = vand.u32 %v388, 4294901760
        %4027 = vmatmul.f32.gmra.mxu0 %v4026
        %v4028 = vpop.f32.mrf.mxu0
        %v4029 = vadd.f32 %v3916, %v4028
        %4030 = vdwg.mxu0
        %v4031 = vand.u32 %v3851, 4294901760
        %v4032 = vsub.f32 %v3851, %v4031
        %4033 = vmatpush.msra.mxu0 %v4032
        %v4034 = vand.u32 %v3847, 4294901760
        %v4035 = vsub.f32 %v3847, %v4034
        %4036 = vmatpush.msra.mxu0 %v4035
        %v4037 = vand.u32 %v3843, 4294901760
        %v4038 = vsub.f32 %v3843, %v4037
        %4039 = vmatpush.msra.mxu0 %v4038
        %v4040 = vand.u32 %v3839, 4294901760
        %v4041 = vsub.f32 %v3839, %v4040
        %4042 = vmatpush.msra.mxu0 %v4041
        %v4043 = vand.u32 %v3835, 4294901760
        %v4044 = vsub.f32 %v3835, %v4043
        %4045 = vmatpush.msra.mxu0 %v4044
        %v4046 = vand.u32 %v3831, 4294901760
        %v4047 = vsub.f32 %v3831, %v4046
        %4048 = vmatpush.msra.mxu0 %v4047
        %v4049 = vand.u32 %v3827, 4294901760
        %v4050 = vsub.f32 %v3827, %v4049
        %4051 = vmatpush.msra.mxu0 %v4050
        %v4052 = vand.u32 %v3823, 4294901760
        %v4053 = vsub.f32 %v3823, %v4052
        %4054 = vmatpush.msra.mxu0 %v4053
        %v4055 = vand.u32 %v3819, 4294901760
        %v4056 = vsub.f32 %v3819, %v4055
        %4057 = vmatpush.msra.mxu0 %v4056
        %v4058 = vand.u32 %v3815, 4294901760
        %v4059 = vsub.f32 %v3815, %v4058
        %4060 = vmatpush.msra.mxu0 %v4059
        %v4061 = vand.u32 %v3811, 4294901760
        %v4062 = vsub.f32 %v3811, %v4061
        %4063 = vmatpush.msra.mxu0 %v4062
        %v4064 = vand.u32 %v3807, 4294901760
        %v4065 = vsub.f32 %v3807, %v4064
        %4066 = vmatpush.msra.mxu0 %v4065
        %v4067 = vand.u32 %v3803, 4294901760
        %v4068 = vsub.f32 %v3803, %v4067
        %4069 = vmatpush.msra.mxu0 %v4068
        %v4070 = vand.u32 %v3799, 4294901760
        %v4071 = vsub.f32 %v3799, %v4070
        %4072 = vmatpush.msra.mxu0 %v4071
        %v4073 = vand.u32 %v3795, 4294901760
        %v4074 = vsub.f32 %v3795, %v4073
        %4075 = vmatpush.msra.mxu0 %v4074
        %v4076 = vand.u32 %v3791, 4294901760
        %v4077 = vsub.f32 %v3791, %v4076
        %4078 = vmatpush.msra.mxu0 %v4077
        %v4079 = vand.u32 %v385, 4294901760
        %v4080 = vsub.f32 %v385, %v4079
        %4081 = vmatmul.f32.gmra.mxu0 %v4080
        %v4082 = vpop.f32.mrf.mxu0
        %v4083 = vadd.f32 %v4017, %v4082
        %v4084 = vand.u32 %v386, 4294901760
        %v4085 = vsub.f32 %v386, %v4084
        %4086 = vmatmul.f32.gmra.mxu0 %v4085
        %v4087 = vpop.f32.mrf.mxu0
        %v4088 = vadd.f32 %v4021, %v4087
        %v4089 = vand.u32 %v387, 4294901760
        %v4090 = vsub.f32 %v387, %v4089
        %4091 = vmatmul.f32.gmra.mxu0 %v4090
        %v4092 = vpop.f32.mrf.mxu0
        %v4093 = vadd.f32 %v4025, %v4092
        %v4094 = vand.u32 %v388, 4294901760
        %v4095 = vsub.f32 %v388, %v4094
        %4096 = vmatmul.f32.gmra.mxu0 %v4095
        %v4097 = vpop.f32.mrf.mxu0
        %v4098 = vadd.f32 %v4029, %v4097
        %4099 = vdwg.mxu0
        %v4100 = vand.u32 %v3851, 4294901760
        %4101 = vmatpush.msra.mxu0 %v4100
        %v4102 = vand.u32 %v3847, 4294901760
        %4103 = vmatpush.msra.mxu0 %v4102
        %v4104 = vand.u32 %v3843, 4294901760
        %4105 = vmatpush.msra.mxu0 %v4104
        %v4106 = vand.u32 %v3839, 4294901760
        %4107 = vmatpush.msra.mxu0 %v4106
        %v4108 = vand.u32 %v3835, 4294901760
        %4109 = vmatpush.msra.mxu0 %v4108
        %v4110 = vand.u32 %v3831, 4294901760
        %4111 = vmatpush.msra.mxu0 %v4110
        %v4112 = vand.u32 %v3827, 4294901760
        %4113 = vmatpush.msra.mxu0 %v4112
        %v4114 = vand.u32 %v3823, 4294901760
        %4115 = vmatpush.msra.mxu0 %v4114
        %v4116 = vand.u32 %v3819, 4294901760
        %4117 = vmatpush.msra.mxu0 %v4116
        %v4118 = vand.u32 %v3815, 4294901760
        %4119 = vmatpush.msra.mxu0 %v4118
        %v4120 = vand.u32 %v3811, 4294901760
        %4121 = vmatpush.msra.mxu0 %v4120
        %v4122 = vand.u32 %v3807, 4294901760
        %4123 = vmatpush.msra.mxu0 %v4122
        %v4124 = vand.u32 %v3803, 4294901760
        %4125 = vmatpush.msra.mxu0 %v4124
        %v4126 = vand.u32 %v3799, 4294901760
        %4127 = vmatpush.msra.mxu0 %v4126
        %v4128 = vand.u32 %v3795, 4294901760
        %4129 = vmatpush.msra.mxu0 %v4128
        %v4130 = vand.u32 %v3791, 4294901760
        %4131 = vmatpush.msra.mxu0 %v4130
        %v4132 = vand.u32 %v385, 4294901760
        %v4133 = vsub.f32 %v385, %v4132
        %v4134 = vand.u32 %v4133, 4294901760
        %4135 = vmatmul.f32.gmra.mxu0 %v4134
        %v4136 = vpop.f32.mrf.mxu0
        %v4137 = vadd.f32 %v4083, %v4136
        %v4138 = vand.u32 %v386, 4294901760
        %v4139 = vsub.f32 %v386, %v4138
        %v4140 = vand.u32 %v4139, 4294901760
        %4141 = vmatmul.f32.gmra.mxu0 %v4140
        %v4142 = vpop.f32.mrf.mxu0
        %v4143 = vadd.f32 %v4088, %v4142
        %v4144 = vand.u32 %v387, 4294901760
        %v4145 = vsub.f32 %v387, %v4144
        %v4146 = vand.u32 %v4145, 4294901760
        %4147 = vmatmul.f32.gmra.mxu0 %v4146
        %v4148 = vpop.f32.mrf.mxu0
        %v4149 = vadd.f32 %v4093, %v4148
        %v4150 = vand.u32 %v388, 4294901760
        %v4151 = vsub.f32 %v388, %v4150
        %v4152 = vand.u32 %v4151, 4294901760
        %4153 = vmatmul.f32.gmra.mxu0 %v4152
        %v4154 = vpop.f32.mrf.mxu0
        %v4155 = vadd.f32 %v4098, %v4154
        %4156 = vdwg.mxu0
        %v4157 = vand.u32 %v3851, 4294901760
        %v4158 = vsub.f32 %v3851, %v4157
        %v4159 = vand.u32 %v4158, 4294901760
        %4160 = vmatpush.msra.mxu0 %v4159
        %v4161 = vand.u32 %v3847, 4294901760
        %v4162 = vsub.f32 %v3847, %v4161
        %v4163 = vand.u32 %v4162, 4294901760
        %4164 = vmatpush.msra.mxu0 %v4163
        %v4165 = vand.u32 %v3843, 4294901760
        %v4166 = vsub.f32 %v3843, %v4165
        %v4167 = vand.u32 %v4166, 4294901760
        %4168 = vmatpush.msra.mxu0 %v4167
        %v4169 = vand.u32 %v3839, 4294901760
        %v4170 = vsub.f32 %v3839, %v4169
        %v4171 = vand.u32 %v4170, 4294901760
        %4172 = vmatpush.msra.mxu0 %v4171
        %v4173 = vand.u32 %v3835, 4294901760
        %v4174 = vsub.f32 %v3835, %v4173
        %v4175 = vand.u32 %v4174, 4294901760
        %4176 = vmatpush.msra.mxu0 %v4175
        %v4177 = vand.u32 %v3831, 4294901760
        %v4178 = vsub.f32 %v3831, %v4177
        %v4179 = vand.u32 %v4178, 4294901760
        %4180 = vmatpush.msra.mxu0 %v4179
        %v4181 = vand.u32 %v3827, 4294901760
        %v4182 = vsub.f32 %v3827, %v4181
        %v4183 = vand.u32 %v4182, 4294901760
        %4184 = vmatpush.msra.mxu0 %v4183
        %v4185 = vand.u32 %v3823, 4294901760
        %v4186 = vsub.f32 %v3823, %v4185
        %v4187 = vand.u32 %v4186, 4294901760
        %4188 = vmatpush.msra.mxu0 %v4187
        %v4189 = vand.u32 %v3819, 4294901760
        %v4190 = vsub.f32 %v3819, %v4189
        %v4191 = vand.u32 %v4190, 4294901760
        %4192 = vmatpush.msra.mxu0 %v4191
        %v4193 = vand.u32 %v3815, 4294901760
        %v4194 = vsub.f32 %v3815, %v4193
        %v4195 = vand.u32 %v4194, 4294901760
        %4196 = vmatpush.msra.mxu0 %v4195
        %v4197 = vand.u32 %v3811, 4294901760
        %v4198 = vsub.f32 %v3811, %v4197
        %v4199 = vand.u32 %v4198, 4294901760
        %4200 = vmatpush.msra.mxu0 %v4199
        %v4201 = vand.u32 %v3807, 4294901760
        %v4202 = vsub.f32 %v3807, %v4201
        %v4203 = vand.u32 %v4202, 4294901760
        %4204 = vmatpush.msra.mxu0 %v4203
        %v4205 = vand.u32 %v3803, 4294901760
        %v4206 = vsub.f32 %v3803, %v4205
        %v4207 = vand.u32 %v4206, 4294901760
        %4208 = vmatpush.msra.mxu0 %v4207
        %v4209 = vand.u32 %v3799, 4294901760
        %v4210 = vsub.f32 %v3799, %v4209
        %v4211 = vand.u32 %v4210, 4294901760
        %4212 = vmatpush.msra.mxu0 %v4211
        %v4213 = vand.u32 %v3795, 4294901760
        %v4214 = vsub.f32 %v3795, %v4213
        %v4215 = vand.u32 %v4214, 4294901760
        %4216 = vmatpush.msra.mxu0 %v4215
        %v4217 = vand.u32 %v3791, 4294901760
        %v4218 = vsub.f32 %v3791, %v4217
        %v4219 = vand.u32 %v4218, 4294901760
        %4220 = vmatpush.msra.mxu0 %v4219
        %v4221 = vand.u32 %v385, 4294901760
        %4222 = vmatmul.f32.gmra.mxu0 %v4221
        %v4223 = vpop.f32.mrf.mxu0
        %v4224 = vadd.f32 %v4137, %v4223
        %v4225 = vand.u32 %v386, 4294901760
        %4226 = vmatmul.f32.gmra.mxu0 %v4225
        %v4227 = vpop.f32.mrf.mxu0
        %v4228 = vadd.f32 %v4143, %v4227
        %v4229 = vand.u32 %v387, 4294901760
        %4230 = vmatmul.f32.gmra.mxu0 %v4229
        %v4231 = vpop.f32.mrf.mxu0
        %v4232 = vadd.f32 %v4149, %v4231
        %v4233 = vand.u32 %v388, 4294901760
        %4234 = vmatmul.f32.gmra.mxu0 %v4233
        %v4235 = vpop.f32.mrf.mxu0
        %v4236 = vadd.f32 %v4155, %v4235
        %4237 = vdwg.mxu0
        %v4238 = vand.u32 %v3851, 4294901760
        %4239 = vmatpush.msra.mxu0 %v4238
        %v4240 = vand.u32 %v3847, 4294901760
        %4241 = vmatpush.msra.mxu0 %v4240
        %v4242 = vand.u32 %v3843, 4294901760
        %4243 = vmatpush.msra.mxu0 %v4242
        %v4244 = vand.u32 %v3839, 4294901760
        %4245 = vmatpush.msra.mxu0 %v4244
        %v4246 = vand.u32 %v3835, 4294901760
        %4247 = vmatpush.msra.mxu0 %v4246
        %v4248 = vand.u32 %v3831, 4294901760
        %4249 = vmatpush.msra.mxu0 %v4248
        %v4250 = vand.u32 %v3827, 4294901760
        %4251 = vmatpush.msra.mxu0 %v4250
        %v4252 = vand.u32 %v3823, 4294901760
        %4253 = vmatpush.msra.mxu0 %v4252
        %v4254 = vand.u32 %v3819, 4294901760
        %4255 = vmatpush.msra.mxu0 %v4254
        %v4256 = vand.u32 %v3815, 4294901760
        %4257 = vmatpush.msra.mxu0 %v4256
        %v4258 = vand.u32 %v3811, 4294901760
        %4259 = vmatpush.msra.mxu0 %v4258
        %v4260 = vand.u32 %v3807, 4294901760
        %4261 = vmatpush.msra.mxu0 %v4260
        %v4262 = vand.u32 %v3803, 4294901760
        %4263 = vmatpush.msra.mxu0 %v4262
        %v4264 = vand.u32 %v3799, 4294901760
        %4265 = vmatpush.msra.mxu0 %v4264
        %v4266 = vand.u32 %v3795, 4294901760
        %4267 = vmatpush.msra.mxu0 %v4266
        %v4268 = vand.u32 %v3791, 4294901760
        %4269 = vmatpush.msra.mxu0 %v4268
        %v4270 = vand.u32 %v385, 4294901760
        %4271 = vmatmul.f32.gmra.mxu0 %v4270
        %v4272 = vpop.f32.mrf.mxu0
        %v4273 = vadd.f32 %v4224, %v4272
        %v4274 = vand.u32 %v386, 4294901760
        %4275 = vmatmul.f32.gmra.mxu0 %v4274
        %v4276 = vpop.f32.mrf.mxu0
        %v4277 = vadd.f32 %v4228, %v4276
        %v4278 = vand.u32 %v387, 4294901760
        %4279 = vmatmul.f32.gmra.mxu0 %v4278
        %v4280 = vpop.f32.mrf.mxu0
        %v4281 = vadd.f32 %v4232, %v4280
        %v4282 = vand.u32 %v388, 4294901760
        %4283 = vmatmul.f32.gmra.mxu0 %v4282
        %v4284 = vpop.f32.mrf.mxu0
        %v4285 = vadd.f32 %v4236, %v4284
        %4286 = vdwg.mxu0
        %v4287 = vand.u32 %v3851, 4294901760
        %4288 = vmatpush.msra.mxu0 %v4287
        %v4289 = vand.u32 %v3847, 4294901760
        %4290 = vmatpush.msra.mxu0 %v4289
        %v4291 = vand.u32 %v3843, 4294901760
        %4292 = vmatpush.msra.mxu0 %v4291
        %v4293 = vand.u32 %v3839, 4294901760
        %4294 = vmatpush.msra.mxu0 %v4293
        %v4295 = vand.u32 %v3835, 4294901760
        %4296 = vmatpush.msra.mxu0 %v4295
        %v4297 = vand.u32 %v3831, 4294901760
        %4298 = vmatpush.msra.mxu0 %v4297
        %v4299 = vand.u32 %v3827, 4294901760
        %4300 = vmatpush.msra.mxu0 %v4299
        %v4301 = vand.u32 %v3823, 4294901760
        %4302 = vmatpush.msra.mxu0 %v4301
        %v4303 = vand.u32 %v3819, 4294901760
        %4304 = vmatpush.msra.mxu0 %v4303
        %v4305 = vand.u32 %v3815, 4294901760
        %4306 = vmatpush.msra.mxu0 %v4305
        %v4307 = vand.u32 %v3811, 4294901760
        %4308 = vmatpush.msra.mxu0 %v4307
        %v4309 = vand.u32 %v3807, 4294901760
        %4310 = vmatpush.msra.mxu0 %v4309
        %v4311 = vand.u32 %v3803, 4294901760
        %4312 = vmatpush.msra.mxu0 %v4311
        %v4313 = vand.u32 %v3799, 4294901760
        %4314 = vmatpush.msra.mxu0 %v4313
        %v4315 = vand.u32 %v3795, 4294901760
        %4316 = vmatpush.msra.mxu0 %v4315
        %v4317 = vand.u32 %v3791, 4294901760
        %4318 = vmatpush.msra.mxu0 %v4317
        %v4319 = vand.u32 %v389, 4294901760
        %v4320 = vsub.f32 %v389, %v4319
        %v4321 = vand.u32 %v4320, 4294901760
        %v4322 = vsub.f32 %v4320, %v4321
        %v4323 = vand.u32 %v4322, 4294901760
        %4324 = vmatmul.f32.gmra.mxu0 %v4323
        %v4325 = vpop.f32.mrf.mxu0
        %v4326 = vadd.f32 0.0, %v4325
        %v4327 = vand.u32 %v390, 4294901760
        %v4328 = vsub.f32 %v390, %v4327
        %v4329 = vand.u32 %v4328, 4294901760
        %v4330 = vsub.f32 %v4328, %v4329
        %v4331 = vand.u32 %v4330, 4294901760
        %4332 = vmatmul.f32.gmra.mxu0 %v4331
        %v4333 = vpop.f32.mrf.mxu0
        %v4334 = vadd.f32 0.0, %v4333
        %v4335 = vand.u32 %v391, 4294901760
        %v4336 = vsub.f32 %v391, %v4335
        %v4337 = vand.u32 %v4336, 4294901760
        %v4338 = vsub.f32 %v4336, %v4337
        %v4339 = vand.u32 %v4338, 4294901760
        %4340 = vmatmul.f32.gmra.mxu0 %v4339
        %v4341 = vpop.f32.mrf.mxu0
        %v4342 = vadd.f32 0.0, %v4341
        %v4343 = vand.u32 %v392, 4294901760
        %v4344 = vsub.f32 %v392, %v4343
        %v4345 = vand.u32 %v4344, 4294901760
        %v4346 = vsub.f32 %v4344, %v4345
        %v4347 = vand.u32 %v4346, 4294901760
        %4348 = vmatmul.f32.gmra.mxu0 %v4347
        %v4349 = vpop.f32.mrf.mxu0
        %v4350 = vadd.f32 0.0, %v4349
        %4351 = vdwg.mxu0
        %v4352 = vand.u32 %v3851, 4294901760
        %v4353 = vsub.f32 %v3851, %v4352
        %v4354 = vand.u32 %v4353, 4294901760
        %v4355 = vsub.f32 %v4353, %v4354
        %v4356 = vand.u32 %v4355, 4294901760
        %4357 = vmatpush.msra.mxu0 %v4356
        %v4358 = vand.u32 %v3847, 4294901760
        %v4359 = vsub.f32 %v3847, %v4358
        %v4360 = vand.u32 %v4359, 4294901760
        %v4361 = vsub.f32 %v4359, %v4360
        %v4362 = vand.u32 %v4361, 4294901760
        %4363 = vmatpush.msra.mxu0 %v4362
        %v4364 = vand.u32 %v3843, 4294901760
        %v4365 = vsub.f32 %v3843, %v4364
        %v4366 = vand.u32 %v4365, 4294901760
        %v4367 = vsub.f32 %v4365, %v4366
        %v4368 = vand.u32 %v4367, 4294901760
        %4369 = vmatpush.msra.mxu0 %v4368
        %v4370 = vand.u32 %v3839, 4294901760
        %v4371 = vsub.f32 %v3839, %v4370
        %v4372 = vand.u32 %v4371, 4294901760
        %v4373 = vsub.f32 %v4371, %v4372
        %v4374 = vand.u32 %v4373, 4294901760
        %4375 = vmatpush.msra.mxu0 %v4374
        %v4376 = vand.u32 %v3835, 4294901760
        %v4377 = vsub.f32 %v3835, %v4376
        %v4378 = vand.u32 %v4377, 4294901760
        %v4379 = vsub.f32 %v4377, %v4378
        %v4380 = vand.u32 %v4379, 4294901760
        %4381 = vmatpush.msra.mxu0 %v4380
        %v4382 = vand.u32 %v3831, 4294901760
        %v4383 = vsub.f32 %v3831, %v4382
        %v4384 = vand.u32 %v4383, 4294901760
        %v4385 = vsub.f32 %v4383, %v4384
        %v4386 = vand.u32 %v4385, 4294901760
        %4387 = vmatpush.msra.mxu0 %v4386
        %v4388 = vand.u32 %v3827, 4294901760
        %v4389 = vsub.f32 %v3827, %v4388
        %v4390 = vand.u32 %v4389, 4294901760
        %v4391 = vsub.f32 %v4389, %v4390
        %v4392 = vand.u32 %v4391, 4294901760
        %4393 = vmatpush.msra.mxu0 %v4392
        %v4394 = vand.u32 %v3823, 4294901760
        %v4395 = vsub.f32 %v3823, %v4394
        %v4396 = vand.u32 %v4395, 4294901760
        %v4397 = vsub.f32 %v4395, %v4396
        %v4398 = vand.u32 %v4397, 4294901760
        %4399 = vmatpush.msra.mxu0 %v4398
        %v4400 = vand.u32 %v3819, 4294901760
        %v4401 = vsub.f32 %v3819, %v4400
        %v4402 = vand.u32 %v4401, 4294901760
        %v4403 = vsub.f32 %v4401, %v4402
        %v4404 = vand.u32 %v4403, 4294901760
        %4405 = vmatpush.msra.mxu0 %v4404
        %v4406 = vand.u32 %v3815, 4294901760
        %v4407 = vsub.f32 %v3815, %v4406
        %v4408 = vand.u32 %v4407, 4294901760
        %v4409 = vsub.f32 %v4407, %v4408
        %v4410 = vand.u32 %v4409, 4294901760
        %4411 = vmatpush.msra.mxu0 %v4410
        %v4412 = vand.u32 %v3811, 4294901760
        %v4413 = vsub.f32 %v3811, %v4412
        %v4414 = vand.u32 %v4413, 4294901760
        %v4415 = vsub.f32 %v4413, %v4414
        %v4416 = vand.u32 %v4415, 4294901760
        %4417 = vmatpush.msra.mxu0 %v4416
        %v4418 = vand.u32 %v3807, 4294901760
        %v4419 = vsub.f32 %v3807, %v4418
        %v4420 = vand.u32 %v4419, 4294901760
        %v4421 = vsub.f32 %v4419, %v4420
        %v4422 = vand.u32 %v4421, 4294901760
        %4423 = vmatpush.msra.mxu0 %v4422
        %v4424 = vand.u32 %v3803, 4294901760
        %v4425 = vsub.f32 %v3803, %v4424
        %v4426 = vand.u32 %v4425, 4294901760
        %v4427 = vsub.f32 %v4425, %v4426
        %v4428 = vand.u32 %v4427, 4294901760
        %4429 = vmatpush.msra.mxu0 %v4428
        %v4430 = vand.u32 %v3799, 4294901760
        %v4431 = vsub.f32 %v3799, %v4430
        %v4432 = vand.u32 %v4431, 4294901760
        %v4433 = vsub.f32 %v4431, %v4432
        %v4434 = vand.u32 %v4433, 4294901760
        %4435 = vmatpush.msra.mxu0 %v4434
        %v4436 = vand.u32 %v3795, 4294901760
        %v4437 = vsub.f32 %v3795, %v4436
        %v4438 = vand.u32 %v4437, 4294901760
        %v4439 = vsub.f32 %v4437, %v4438
        %v4440 = vand.u32 %v4439, 4294901760
        %4441 = vmatpush.msra.mxu0 %v4440
        %v4442 = vand.u32 %v3791, 4294901760
        %v4443 = vsub.f32 %v3791, %v4442
        %v4444 = vand.u32 %v4443, 4294901760
        %v4445 = vsub.f32 %v4443, %v4444
        %v4446 = vand.u32 %v4445, 4294901760
        %4447 = vmatpush.msra.mxu0 %v4446
        %v4448 = vand.u32 %v389, 4294901760
        %4449 = vmatmul.f32.gmra.mxu0 %v4448
        %v4450 = vpop.f32.mrf.mxu0
        %v4451 = vadd.f32 %v4326, %v4450
        %v4452 = vand.u32 %v390, 4294901760
        %4453 = vmatmul.f32.gmra.mxu0 %v4452
        %v4454 = vpop.f32.mrf.mxu0
        %v4455 = vadd.f32 %v4334, %v4454
        %v4456 = vand.u32 %v391, 4294901760
        %4457 = vmatmul.f32.gmra.mxu0 %v4456
        %v4458 = vpop.f32.mrf.mxu0
        %v4459 = vadd.f32 %v4342, %v4458
        %v4460 = vand.u32 %v392, 4294901760
        %4461 = vmatmul.f32.gmra.mxu0 %v4460
        %v4462 = vpop.f32.mrf.mxu0
        %v4463 = vadd.f32 %v4350, %v4462
        %4464 = vdwg.mxu0
        %v4465 = vand.u32 %v3851, 4294901760
        %v4466 = vsub.f32 %v3851, %v4465
        %4467 = vmatpush.msra.mxu0 %v4466
        %v4468 = vand.u32 %v3847, 4294901760
        %v4469 = vsub.f32 %v3847, %v4468
        %4470 = vmatpush.msra.mxu0 %v4469
        %v4471 = vand.u32 %v3843, 4294901760
        %v4472 = vsub.f32 %v3843, %v4471
        %4473 = vmatpush.msra.mxu0 %v4472
        %v4474 = vand.u32 %v3839, 4294901760
        %v4475 = vsub.f32 %v3839, %v4474
        %4476 = vmatpush.msra.mxu0 %v4475
        %v4477 = vand.u32 %v3835, 4294901760
        %v4478 = vsub.f32 %v3835, %v4477
        %4479 = vmatpush.msra.mxu0 %v4478
        %v4480 = vand.u32 %v3831, 4294901760
        %v4481 = vsub.f32 %v3831, %v4480
        %4482 = vmatpush.msra.mxu0 %v4481
        %v4483 = vand.u32 %v3827, 4294901760
        %v4484 = vsub.f32 %v3827, %v4483
        %4485 = vmatpush.msra.mxu0 %v4484
        %v4486 = vand.u32 %v3823, 4294901760
        %v4487 = vsub.f32 %v3823, %v4486
        %4488 = vmatpush.msra.mxu0 %v4487
        %v4489 = vand.u32 %v3819, 4294901760
        %v4490 = vsub.f32 %v3819, %v4489
        %4491 = vmatpush.msra.mxu0 %v4490
        %v4492 = vand.u32 %v3815, 4294901760
        %v4493 = vsub.f32 %v3815, %v4492
        %4494 = vmatpush.msra.mxu0 %v4493
        %v4495 = vand.u32 %v3811, 4294901760
        %v4496 = vsub.f32 %v3811, %v4495
        %4497 = vmatpush.msra.mxu0 %v4496
        %v4498 = vand.u32 %v3807, 4294901760
        %v4499 = vsub.f32 %v3807, %v4498
        %4500 = vmatpush.msra.mxu0 %v4499
        %v4501 = vand.u32 %v3803, 4294901760
        %v4502 = vsub.f32 %v3803, %v4501
        %4503 = vmatpush.msra.mxu0 %v4502
        %v4504 = vand.u32 %v3799, 4294901760
        %v4505 = vsub.f32 %v3799, %v4504
        %4506 = vmatpush.msra.mxu0 %v4505
        %v4507 = vand.u32 %v3795, 4294901760
        %v4508 = vsub.f32 %v3795, %v4507
        %4509 = vmatpush.msra.mxu0 %v4508
        %v4510 = vand.u32 %v3791, 4294901760
        %v4511 = vsub.f32 %v3791, %v4510
        %4512 = vmatpush.msra.mxu0 %v4511
        %v4513 = vand.u32 %v389, 4294901760
        %v4514 = vsub.f32 %v389, %v4513
        %4515 = vmatmul.f32.gmra.mxu0 %v4514
        %v4516 = vpop.f32.mrf.mxu0
        %v4517 = vadd.f32 %v4451, %v4516
        %v4518 = vand.u32 %v390, 4294901760
        %v4519 = vsub.f32 %v390, %v4518
        %4520 = vmatmul.f32.gmra.mxu0 %v4519
        %v4521 = vpop.f32.mrf.mxu0
        %v4522 = vadd.f32 %v4455, %v4521
        %v4523 = vand.u32 %v391, 4294901760
        %v4524 = vsub.f32 %v391, %v4523
        %4525 = vmatmul.f32.gmra.mxu0 %v4524
        %v4526 = vpop.f32.mrf.mxu0
        %v4527 = vadd.f32 %v4459, %v4526
        %v4528 = vand.u32 %v392, 4294901760
        %v4529 = vsub.f32 %v392, %v4528
        %4530 = vmatmul.f32.gmra.mxu0 %v4529
        %v4531 = vpop.f32.mrf.mxu0
        %v4532 = vadd.f32 %v4463, %v4531
        %4533 = vdwg.mxu0
        %v4534 = vand.u32 %v3851, 4294901760
        %4535 = vmatpush.msra.mxu0 %v4534
        %v4536 = vand.u32 %v3847, 4294901760
        %4537 = vmatpush.msra.mxu0 %v4536
        %v4538 = vand.u32 %v3843, 4294901760
        %4539 = vmatpush.msra.mxu0 %v4538
        %v4540 = vand.u32 %v3839, 4294901760
        %4541 = vmatpush.msra.mxu0 %v4540
        %v4542 = vand.u32 %v3835, 4294901760
        %4543 = vmatpush.msra.mxu0 %v4542
        %v4544 = vand.u32 %v3831, 4294901760
        %4545 = vmatpush.msra.mxu0 %v4544
        %v4546 = vand.u32 %v3827, 4294901760
        %4547 = vmatpush.msra.mxu0 %v4546
        %v4548 = vand.u32 %v3823, 4294901760
        %4549 = vmatpush.msra.mxu0 %v4548
        %v4550 = vand.u32 %v3819, 4294901760
        %4551 = vmatpush.msra.mxu0 %v4550
        %v4552 = vand.u32 %v3815, 4294901760
        %4553 = vmatpush.msra.mxu0 %v4552
        %v4554 = vand.u32 %v3811, 4294901760
        %4555 = vmatpush.msra.mxu0 %v4554
        %v4556 = vand.u32 %v3807, 4294901760
        %4557 = vmatpush.msra.mxu0 %v4556
        %v4558 = vand.u32 %v3803, 4294901760
        %4559 = vmatpush.msra.mxu0 %v4558
        %v4560 = vand.u32 %v3799, 4294901760
        %4561 = vmatpush.msra.mxu0 %v4560
        %v4562 = vand.u32 %v3795, 4294901760
        %4563 = vmatpush.msra.mxu0 %v4562
        %v4564 = vand.u32 %v3791, 4294901760
        %4565 = vmatpush.msra.mxu0 %v4564
        %v4566 = vand.u32 %v389, 4294901760
        %v4567 = vsub.f32 %v389, %v4566
        %v4568 = vand.u32 %v4567, 4294901760
        %4569 = vmatmul.f32.gmra.mxu0 %v4568
        %v4570 = vpop.f32.mrf.mxu0
        %v4571 = vadd.f32 %v4517, %v4570
        %v4572 = vand.u32 %v390, 4294901760
        %v4573 = vsub.f32 %v390, %v4572
        %v4574 = vand.u32 %v4573, 4294901760
        %4575 = vmatmul.f32.gmra.mxu0 %v4574
        %v4576 = vpop.f32.mrf.mxu0
        %v4577 = vadd.f32 %v4522, %v4576
        %v4578 = vand.u32 %v391, 4294901760
        %v4579 = vsub.f32 %v391, %v4578
        %v4580 = vand.u32 %v4579, 4294901760
        %4581 = vmatmul.f32.gmra.mxu0 %v4580
        %v4582 = vpop.f32.mrf.mxu0
        %v4583 = vadd.f32 %v4527, %v4582
        %v4584 = vand.u32 %v392, 4294901760
        %v4585 = vsub.f32 %v392, %v4584
        %v4586 = vand.u32 %v4585, 4294901760
        %4587 = vmatmul.f32.gmra.mxu0 %v4586
        %v4588 = vpop.f32.mrf.mxu0
        %v4589 = vadd.f32 %v4532, %v4588
        %4590 = vdwg.mxu0
        %v4591 = vand.u32 %v3851, 4294901760
        %v4592 = vsub.f32 %v3851, %v4591
        %v4593 = vand.u32 %v4592, 4294901760
        %4594 = vmatpush.msra.mxu0 %v4593
        %v4595 = vand.u32 %v3847, 4294901760
        %v4596 = vsub.f32 %v3847, %v4595
        %v4597 = vand.u32 %v4596, 4294901760
        %4598 = vmatpush.msra.mxu0 %v4597
        %v4599 = vand.u32 %v3843, 4294901760
        %v4600 = vsub.f32 %v3843, %v4599
        %v4601 = vand.u32 %v4600, 4294901760
        %4602 = vmatpush.msra.mxu0 %v4601
        %v4603 = vand.u32 %v3839, 4294901760
        %v4604 = vsub.f32 %v3839, %v4603
        %v4605 = vand.u32 %v4604, 4294901760
        %4606 = vmatpush.msra.mxu0 %v4605
        %v4607 = vand.u32 %v3835, 4294901760
        %v4608 = vsub.f32 %v3835, %v4607
        %v4609 = vand.u32 %v4608, 4294901760
        %4610 = vmatpush.msra.mxu0 %v4609
        %v4611 = vand.u32 %v3831, 4294901760
        %v4612 = vsub.f32 %v3831, %v4611
        %v4613 = vand.u32 %v4612, 4294901760
        %4614 = vmatpush.msra.mxu0 %v4613
        %v4615 = vand.u32 %v3827, 4294901760
        %v4616 = vsub.f32 %v3827, %v4615
        %v4617 = vand.u32 %v4616, 4294901760
        %4618 = vmatpush.msra.mxu0 %v4617
        %v4619 = vand.u32 %v3823, 4294901760
        %v4620 = vsub.f32 %v3823, %v4619
        %v4621 = vand.u32 %v4620, 4294901760
        %4622 = vmatpush.msra.mxu0 %v4621
        %v4623 = vand.u32 %v3819, 4294901760
        %v4624 = vsub.f32 %v3819, %v4623
        %v4625 = vand.u32 %v4624, 4294901760
        %4626 = vmatpush.msra.mxu0 %v4625
        %v4627 = vand.u32 %v3815, 4294901760
        %v4628 = vsub.f32 %v3815, %v4627
        %v4629 = vand.u32 %v4628, 4294901760
        %4630 = vmatpush.msra.mxu0 %v4629
        %v4631 = vand.u32 %v3811, 4294901760
        %v4632 = vsub.f32 %v3811, %v4631
        %v4633 = vand.u32 %v4632, 4294901760
        %4634 = vmatpush.msra.mxu0 %v4633
        %v4635 = vand.u32 %v3807, 4294901760
        %v4636 = vsub.f32 %v3807, %v4635
        %v4637 = vand.u32 %v4636, 4294901760
        %4638 = vmatpush.msra.mxu0 %v4637
        %v4639 = vand.u32 %v3803, 4294901760
        %v4640 = vsub.f32 %v3803, %v4639
        %v4641 = vand.u32 %v4640, 4294901760
        %4642 = vmatpush.msra.mxu0 %v4641
        %v4643 = vand.u32 %v3799, 4294901760
        %v4644 = vsub.f32 %v3799, %v4643
        %v4645 = vand.u32 %v4644, 4294901760
        %4646 = vmatpush.msra.mxu0 %v4645
        %v4647 = vand.u32 %v3795, 4294901760
        %v4648 = vsub.f32 %v3795, %v4647
        %v4649 = vand.u32 %v4648, 4294901760
        %4650 = vmatpush.msra.mxu0 %v4649
        %v4651 = vand.u32 %v3791, 4294901760
        %v4652 = vsub.f32 %v3791, %v4651
        %v4653 = vand.u32 %v4652, 4294901760
        %4654 = vmatpush.msra.mxu0 %v4653
        %v4655 = vand.u32 %v389, 4294901760
        %4656 = vmatmul.f32.gmra.mxu0 %v4655
        %v4657 = vpop.f32.mrf.mxu0
        %v4658 = vadd.f32 %v4571, %v4657
        %v4659 = vand.u32 %v390, 4294901760
        %4660 = vmatmul.f32.gmra.mxu0 %v4659
        %v4661 = vpop.f32.mrf.mxu0
        %v4662 = vadd.f32 %v4577, %v4661
        %v4663 = vand.u32 %v391, 4294901760
        %4664 = vmatmul.f32.gmra.mxu0 %v4663
        %v4665 = vpop.f32.mrf.mxu0
        %v4666 = vadd.f32 %v4583, %v4665
        %v4667 = vand.u32 %v392, 4294901760
        %4668 = vmatmul.f32.gmra.mxu0 %v4667
        %v4669 = vpop.f32.mrf.mxu0
        %v4670 = vadd.f32 %v4589, %v4669
        %4671 = vdwg.mxu0
        %v4672 = vand.u32 %v3851, 4294901760
        %4673 = vmatpush.msra.mxu0 %v4672
        %v4674 = vand.u32 %v3847, 4294901760
        %4675 = vmatpush.msra.mxu0 %v4674
        %v4676 = vand.u32 %v3843, 4294901760
        %4677 = vmatpush.msra.mxu0 %v4676
        %v4678 = vand.u32 %v3839, 4294901760
        %4679 = vmatpush.msra.mxu0 %v4678
        %v4680 = vand.u32 %v3835, 4294901760
        %4681 = vmatpush.msra.mxu0 %v4680
        %v4682 = vand.u32 %v3831, 4294901760
        %4683 = vmatpush.msra.mxu0 %v4682
        %v4684 = vand.u32 %v3827, 4294901760
        %4685 = vmatpush.msra.mxu0 %v4684
        %v4686 = vand.u32 %v3823, 4294901760
        %4687 = vmatpush.msra.mxu0 %v4686
        %v4688 = vand.u32 %v3819, 4294901760
        %4689 = vmatpush.msra.mxu0 %v4688
        %v4690 = vand.u32 %v3815, 4294901760
        %4691 = vmatpush.msra.mxu0 %v4690
        %v4692 = vand.u32 %v3811, 4294901760
        %4693 = vmatpush.msra.mxu0 %v4692
        %v4694 = vand.u32 %v3807, 4294901760
        %4695 = vmatpush.msra.mxu0 %v4694
        %v4696 = vand.u32 %v3803, 4294901760
        %4697 = vmatpush.msra.mxu0 %v4696
        %v4698 = vand.u32 %v3799, 4294901760
        %4699 = vmatpush.msra.mxu0 %v4698
        %v4700 = vand.u32 %v3795, 4294901760
        %4701 = vmatpush.msra.mxu0 %v4700
        %v4702 = vand.u32 %v3791, 4294901760
        %4703 = vmatpush.msra.mxu0 %v4702
        %v4704 = vand.u32 %v389, 4294901760
        %4705 = vmatmul.f32.gmra.mxu0 %v4704
        %v4706 = vpop.f32.mrf.mxu0
        %v4707 = vadd.f32 %v4658, %v4706
        %v4708 = vand.u32 %v390, 4294901760
        %4709 = vmatmul.f32.gmra.mxu0 %v4708
        %v4710 = vpop.f32.mrf.mxu0
        %v4711 = vadd.f32 %v4662, %v4710
        %v4712 = vand.u32 %v391, 4294901760
        %4713 = vmatmul.f32.gmra.mxu0 %v4712
        %v4714 = vpop.f32.mrf.mxu0
        %v4715 = vadd.f32 %v4666, %v4714
        %v4716 = vand.u32 %v392, 4294901760
        %4717 = vmatmul.f32.gmra.mxu0 %v4716
        %v4718 = vpop.f32.mrf.mxu0
        %v4719 = vadd.f32 %v4670, %v4718
        %4720 = vdwg.mxu0
        %v4721 = vsel %vm346, %v4707, %v4273
        %v4722 = vsel %vm346, %v4711, %v4277
        %v4723 = vsel %vm346, %v4715, %v4281
        %v4724 = vsel %vm346, %v4719, %v4285
        %v4725 = vadd.f32 %v2930, %v4721
        %v4726 = vadd.f32 %v2931, %v4722
        %v4727 = vadd.f32 %v2932, %v4723
        %v4728 = vadd.f32 %v2933, %v4724
        %v4729 = vadd.f32 %v4725, %v2578
        %v4730 = vadd.f32 %v4726, %v2578
        %v4731 = vadd.f32 %v4727, %v2578
        %v4732 = vadd.f32 %v4728, %v2578
        %s4733 = scalar_lea.vmem %s325, 32
        %4734 = vst [vmem:[%s4733] sm:$0xff] %v4729
        %4735 = vst [vmem:[%s4733 + $0x8] sm:$0xff] %v4730
        %4736 = vst [vmem:[%s4733 + $0x10] sm:$0xff] %v4731
        %4737 = vst [vmem:[%s4733 + $0x18] sm:$0xff] %v4732
        %s4738 = scalar_lea.vmem %s311, 192
        %v4739 = vld [vmem:[%s4738] sm:$0xff]
        %v4740 = vld [vmem:[%s4738 + $0x8] sm:$0xff]
        %v4741 = vld [vmem:[%s4738 + $0x10] sm:$0xff]
        %v4742 = vld [vmem:[%s4738 + $0x18] sm:$0xff]
        %s4743 = scalar_lea.vmem %s311, 224
        %v4744 = vld [vmem:[%s4743] sm:$0xff]
        %v4745 = vld [vmem:[%s4743 + $0x8] sm:$0xff]
        %v4746 = vld [vmem:[%s4743 + $0x10] sm:$0xff]
        %v4747 = vld [vmem:[%s4743 + $0x18] sm:$0xff]
        %s4748 = scalar_lea.vmem %s311, 256
        %v4749 = vld [vmem:[%s4748] sm:$0xff]
        %v4750 = vld [vmem:[%s4748 + $0x8] sm:$0xff]
        %v4751 = vld [vmem:[%s4748 + $0x10] sm:$0xff]
        %v4752 = vld [vmem:[%s4748 + $0x18] sm:$0xff]
        %v4753 = vmul.f32 %v423, %v4739
        %v4754 = vmul.f32 %v423, %v4740
        %v4755 = vmul.f32 %v423, %v4741
        %v4756 = vmul.f32 %v423, %v4742
        %v4757 = vmul.f32 %v428, %v4744
        %v4758 = vmul.f32 %v428, %v4745
        %v4759 = vmul.f32 %v428, %v4746
        %v4760 = vmul.f32 %v428, %v4747
        %v4761 = vadd.f32 %v4753, %v4757
        %v4762 = vadd.f32 %v4754, %v4758
        %v4763 = vadd.f32 %v4755, %v4759
        %v4764 = vadd.f32 %v4756, %v4760
        %v4765 = vmul.f32 %v437, %v4749
        %v4766 = vmul.f32 %v437, %v4750
        %v4767 = vmul.f32 %v437, %v4751
        %v4768 = vmul.f32 %v437, %v4752
        %v4769 = vadd.f32 %v4761, %v4765
        %v4770 = vadd.f32 %v4762, %v4766
        %v4771 = vadd.f32 %v4763, %v4767
        %v4772 = vadd.f32 %v4764, %v4768
        %4773 = vrot.lane.b32.xlu0 %v4769, 1
        %v4774 = vpop.permute.xlu0 %4773
        %4775 = vrot.lane.b32.xlu0 %v4770, 1
        %v4776 = vpop.permute.xlu0 %4775
        %4777 = vrot.lane.b32.xlu0 %v4771, 1
        %v4778 = vpop.permute.xlu0 %4777
        %4779 = vrot.lane.b32.xlu0 %v4772, 1
        %v4780 = vpop.permute.xlu0 %4779
        %v4781 = vsel %vm347, %v4774, 0.0
        %v4782 = vsel %vm347, %v4776, 0.0
        %v4783 = vsel %vm347, %v4778, 0.0
        %v4784 = vsel %vm347, %v4780, 0.0
        %v4785 = vmul.f32 %v458, %v4739
        %v4786 = vmul.f32 %v458, %v4740
        %v4787 = vmul.f32 %v458, %v4741
        %v4788 = vmul.f32 %v458, %v4742
        %v4789 = vmul.f32 %v463, %v4744
        %v4790 = vmul.f32 %v463, %v4745
        %v4791 = vmul.f32 %v463, %v4746
        %v4792 = vmul.f32 %v463, %v4747
        %v4793 = vadd.f32 %v4785, %v4789
        %v4794 = vadd.f32 %v4786, %v4790
        %v4795 = vadd.f32 %v4787, %v4791
        %v4796 = vadd.f32 %v4788, %v4792
        %v4797 = vmul.f32 %v472, %v4749
        %v4798 = vmul.f32 %v472, %v4750
        %v4799 = vmul.f32 %v472, %v4751
        %v4800 = vmul.f32 %v472, %v4752
        %v4801 = vadd.f32 %v4793, %v4797
        %v4802 = vadd.f32 %v4794, %v4798
        %v4803 = vadd.f32 %v4795, %v4799
        %v4804 = vadd.f32 %v4796, %v4800
        %4805 = vrot.lane.b32.xlu0 %v4801, 127
        %v4806 = vpop.permute.xlu0 %4805
        %4807 = vrot.lane.b32.xlu0 %v4802, 127
        %v4808 = vpop.permute.xlu0 %4807
        %4809 = vrot.lane.b32.xlu0 %v4803, 127
        %v4810 = vpop.permute.xlu0 %4809
        %4811 = vrot.lane.b32.xlu0 %v4804, 127
        %v4812 = vpop.permute.xlu0 %4811
        %v4813 = vsel %vm348, %v4806, 0.0
        %v4814 = vsel %vm348, %v4808, 0.0
        %v4815 = vsel %vm348, %v4810, 0.0
        %v4816 = vsel %vm348, %v4812, 0.0
        %v4817 = vmul.f32 %v493, %v4739
        %v4818 = vmul.f32 %v493, %v4740
        %v4819 = vmul.f32 %v493, %v4741
        %v4820 = vmul.f32 %v493, %v4742
        %v4821 = vmul.f32 %v498, %v4744
        %v4822 = vmul.f32 %v498, %v4745
        %v4823 = vmul.f32 %v498, %v4746
        %v4824 = vmul.f32 %v498, %v4747
        %v4825 = vadd.f32 %v4817, %v4821
        %v4826 = vadd.f32 %v4818, %v4822
        %v4827 = vadd.f32 %v4819, %v4823
        %v4828 = vadd.f32 %v4820, %v4824
        %v4829 = vmul.f32 %v507, %v4749
        %v4830 = vmul.f32 %v507, %v4750
        %v4831 = vmul.f32 %v507, %v4751
        %v4832 = vmul.f32 %v507, %v4752
        %v4833 = vadd.f32 %v4825, %v4829
        %v4834 = vadd.f32 %v4826, %v4830
        %v4835 = vadd.f32 %v4827, %v4831
        %v4836 = vadd.f32 %v4828, %v4832
        %v4837 = vadd.f32 %v4833, %v4781
        %v4838 = vadd.f32 %v4834, %v4782
        %v4839 = vadd.f32 %v4835, %v4783
        %v4840 = vadd.f32 %v4836, %v4784
        %v4841 = vadd.f32 %v4837, %v4813
        %v4842 = vadd.f32 %v4838, %v4814
        %v4843 = vadd.f32 %v4839, %v4815
        %v4844 = vadd.f32 %v4840, %v4816
        %4845 = vrot.lane.b32.xlu0 %v4841, 64
        %v4846 = vpop.permute.xlu0 %4845
        %4847 = vrot.lane.b32.xlu0 %v4842, 64
        %v4848 = vpop.permute.xlu0 %4847
        %4849 = vrot.lane.b32.xlu0 %v4843, 64
        %v4850 = vpop.permute.xlu0 %4849
        %4851 = vrot.lane.b32.xlu0 %v4844, 64
        %v4852 = vpop.permute.xlu0 %4851
        %v4853 = vrot.slane %v4846, 7
        %v4854 = vrot.slane %v4848, 7
        %v4855 = vrot.slane %v4850, 7
        %v4856 = vrot.slane %v4852, 7
        %v4857 = vsel %vm536, %v4855, %v4856
        %v4858 = vsel %vm536, %v4854, %v4855
        %v4859 = vsel %vm536, %v4853, %v4854
        %v4860 = vsel %vm536, %v4856, %v4853
        %v4861 = vsel %vm349, %v4860, 0.0
        %v4862 = vsel %vm350, %v4859, 0.0
        %v4863 = vsel %vm351, %v4858, 0.0
        %v4864 = vsel %vm352, %v4857, 0.0
        %v4865 = vsel %vm346, %v4846, %v4861
        %v4866 = vsel %vm346, %v4848, %v4862
        %v4867 = vsel %vm346, %v4850, %v4863
        %v4868 = vsel %vm346, %v4852, %v4864
        %v4869 = vmul.f32 %v549, %v4739
        %v4870 = vmul.f32 %v549, %v4740
        %v4871 = vmul.f32 %v549, %v4741
        %v4872 = vmul.f32 %v549, %v4742
        %v4873 = vmul.f32 %v554, %v4744
        %v4874 = vmul.f32 %v554, %v4745
        %v4875 = vmul.f32 %v554, %v4746
        %v4876 = vmul.f32 %v554, %v4747
        %v4877 = vadd.f32 %v4869, %v4873
        %v4878 = vadd.f32 %v4870, %v4874
        %v4879 = vadd.f32 %v4871, %v4875
        %v4880 = vadd.f32 %v4872, %v4876
        %v4881 = vmul.f32 %v563, %v4749
        %v4882 = vmul.f32 %v563, %v4750
        %v4883 = vmul.f32 %v563, %v4751
        %v4884 = vmul.f32 %v563, %v4752
        %v4885 = vadd.f32 %v4877, %v4881
        %v4886 = vadd.f32 %v4878, %v4882
        %v4887 = vadd.f32 %v4879, %v4883
        %v4888 = vadd.f32 %v4880, %v4884
        %4889 = vrot.lane.b32.xlu0 %v4885, 1
        %v4890 = vpop.permute.xlu0 %4889
        %4891 = vrot.lane.b32.xlu0 %v4886, 1
        %v4892 = vpop.permute.xlu0 %4891
        %4893 = vrot.lane.b32.xlu0 %v4887, 1
        %v4894 = vpop.permute.xlu0 %4893
        %4895 = vrot.lane.b32.xlu0 %v4888, 1
        %v4896 = vpop.permute.xlu0 %4895
        %v4897 = vsel %vm347, %v4890, 0.0
        %v4898 = vsel %vm347, %v4892, 0.0
        %v4899 = vsel %vm347, %v4894, 0.0
        %v4900 = vsel %vm347, %v4896, 0.0
        %v4901 = vmul.f32 %v584, %v4739
        %v4902 = vmul.f32 %v584, %v4740
        %v4903 = vmul.f32 %v584, %v4741
        %v4904 = vmul.f32 %v584, %v4742
        %v4905 = vmul.f32 %v589, %v4744
        %v4906 = vmul.f32 %v589, %v4745
        %v4907 = vmul.f32 %v589, %v4746
        %v4908 = vmul.f32 %v589, %v4747
        %v4909 = vadd.f32 %v4901, %v4905
        %v4910 = vadd.f32 %v4902, %v4906
        %v4911 = vadd.f32 %v4903, %v4907
        %v4912 = vadd.f32 %v4904, %v4908
        %v4913 = vmul.f32 %v598, %v4749
        %v4914 = vmul.f32 %v598, %v4750
        %v4915 = vmul.f32 %v598, %v4751
        %v4916 = vmul.f32 %v598, %v4752
        %v4917 = vadd.f32 %v4909, %v4913
        %v4918 = vadd.f32 %v4910, %v4914
        %v4919 = vadd.f32 %v4911, %v4915
        %v4920 = vadd.f32 %v4912, %v4916
        %4921 = vrot.lane.b32.xlu0 %v4917, 127
        %v4922 = vpop.permute.xlu0 %4921
        %4923 = vrot.lane.b32.xlu0 %v4918, 127
        %v4924 = vpop.permute.xlu0 %4923
        %4925 = vrot.lane.b32.xlu0 %v4919, 127
        %v4926 = vpop.permute.xlu0 %4925
        %4927 = vrot.lane.b32.xlu0 %v4920, 127
        %v4928 = vpop.permute.xlu0 %4927
        %v4929 = vsel %vm348, %v4922, 0.0
        %v4930 = vsel %vm348, %v4924, 0.0
        %v4931 = vsel %vm348, %v4926, 0.0
        %v4932 = vsel %vm348, %v4928, 0.0
        %v4933 = vmul.f32 %v619, %v4739
        %v4934 = vmul.f32 %v619, %v4740
        %v4935 = vmul.f32 %v619, %v4741
        %v4936 = vmul.f32 %v619, %v4742
        %v4937 = vmul.f32 %v624, %v4744
        %v4938 = vmul.f32 %v624, %v4745
        %v4939 = vmul.f32 %v624, %v4746
        %v4940 = vmul.f32 %v624, %v4747
        %v4941 = vadd.f32 %v4933, %v4937
        %v4942 = vadd.f32 %v4934, %v4938
        %v4943 = vadd.f32 %v4935, %v4939
        %v4944 = vadd.f32 %v4936, %v4940
        %v4945 = vmul.f32 %v633, %v4749
        %v4946 = vmul.f32 %v633, %v4750
        %v4947 = vmul.f32 %v633, %v4751
        %v4948 = vmul.f32 %v633, %v4752
        %v4949 = vadd.f32 %v4941, %v4945
        %v4950 = vadd.f32 %v4942, %v4946
        %v4951 = vadd.f32 %v4943, %v4947
        %v4952 = vadd.f32 %v4944, %v4948
        %v4953 = vadd.f32 %v4949, %v4897
        %v4954 = vadd.f32 %v4950, %v4898
        %v4955 = vadd.f32 %v4951, %v4899
        %v4956 = vadd.f32 %v4952, %v4900
        %v4957 = vadd.f32 %v4953, %v4929
        %v4958 = vadd.f32 %v4954, %v4930
        %v4959 = vadd.f32 %v4955, %v4931
        %v4960 = vadd.f32 %v4956, %v4932
        %v4961 = vadd.f32 %v4865, %v4957
        %v4962 = vadd.f32 %v4866, %v4958
        %v4963 = vadd.f32 %v4867, %v4959
        %v4964 = vadd.f32 %v4868, %v4960
        %v4965 = vmul.f32 %v654, %v4739
        %v4966 = vmul.f32 %v654, %v4740
        %v4967 = vmul.f32 %v654, %v4741
        %v4968 = vmul.f32 %v654, %v4742
        %v4969 = vmul.f32 %v659, %v4744
        %v4970 = vmul.f32 %v659, %v4745
        %v4971 = vmul.f32 %v659, %v4746
        %v4972 = vmul.f32 %v659, %v4747
        %v4973 = vadd.f32 %v4965, %v4969
        %v4974 = vadd.f32 %v4966, %v4970
        %v4975 = vadd.f32 %v4967, %v4971
        %v4976 = vadd.f32 %v4968, %v4972
        %v4977 = vmul.f32 %v668, %v4749
        %v4978 = vmul.f32 %v668, %v4750
        %v4979 = vmul.f32 %v668, %v4751
        %v4980 = vmul.f32 %v668, %v4752
        %v4981 = vadd.f32 %v4973, %v4977
        %v4982 = vadd.f32 %v4974, %v4978
        %v4983 = vadd.f32 %v4975, %v4979
        %v4984 = vadd.f32 %v4976, %v4980
        %4985 = vrot.lane.b32.xlu0 %v4981, 1
        %v4986 = vpop.permute.xlu0 %4985
        %4987 = vrot.lane.b32.xlu0 %v4982, 1
        %v4988 = vpop.permute.xlu0 %4987
        %4989 = vrot.lane.b32.xlu0 %v4983, 1
        %v4990 = vpop.permute.xlu0 %4989
        %4991 = vrot.lane.b32.xlu0 %v4984, 1
        %v4992 = vpop.permute.xlu0 %4991
        %v4993 = vsel %vm347, %v4986, 0.0
        %v4994 = vsel %vm347, %v4988, 0.0
        %v4995 = vsel %vm347, %v4990, 0.0
        %v4996 = vsel %vm347, %v4992, 0.0
        %v4997 = vmul.f32 %v689, %v4739
        %v4998 = vmul.f32 %v689, %v4740
        %v4999 = vmul.f32 %v689, %v4741
        %v5000 = vmul.f32 %v689, %v4742
        %v5001 = vmul.f32 %v694, %v4744
        %v5002 = vmul.f32 %v694, %v4745
        %v5003 = vmul.f32 %v694, %v4746
        %v5004 = vmul.f32 %v694, %v4747
        %v5005 = vadd.f32 %v4997, %v5001
        %v5006 = vadd.f32 %v4998, %v5002
        %v5007 = vadd.f32 %v4999, %v5003
        %v5008 = vadd.f32 %v5000, %v5004
        %v5009 = vmul.f32 %v703, %v4749
        %v5010 = vmul.f32 %v703, %v4750
        %v5011 = vmul.f32 %v703, %v4751
        %v5012 = vmul.f32 %v703, %v4752
        %v5013 = vadd.f32 %v5005, %v5009
        %v5014 = vadd.f32 %v5006, %v5010
        %v5015 = vadd.f32 %v5007, %v5011
        %v5016 = vadd.f32 %v5008, %v5012
        %5017 = vrot.lane.b32.xlu0 %v5013, 127
        %v5018 = vpop.permute.xlu0 %5017
        %5019 = vrot.lane.b32.xlu0 %v5014, 127
        %v5020 = vpop.permute.xlu0 %5019
        %5021 = vrot.lane.b32.xlu0 %v5015, 127
        %v5022 = vpop.permute.xlu0 %5021
        %5023 = vrot.lane.b32.xlu0 %v5016, 127
        %v5024 = vpop.permute.xlu0 %5023
        %v5025 = vsel %vm348, %v5018, 0.0
        %v5026 = vsel %vm348, %v5020, 0.0
        %v5027 = vsel %vm348, %v5022, 0.0
        %v5028 = vsel %vm348, %v5024, 0.0
        %v5029 = vmul.f32 %v724, %v4739
        %v5030 = vmul.f32 %v724, %v4740
        %v5031 = vmul.f32 %v724, %v4741
        %v5032 = vmul.f32 %v724, %v4742
        %v5033 = vmul.f32 %v729, %v4744
        %v5034 = vmul.f32 %v729, %v4745
        %v5035 = vmul.f32 %v729, %v4746
        %v5036 = vmul.f32 %v729, %v4747
        %v5037 = vadd.f32 %v5029, %v5033
        %v5038 = vadd.f32 %v5030, %v5034
        %v5039 = vadd.f32 %v5031, %v5035
        %v5040 = vadd.f32 %v5032, %v5036
        %v5041 = vmul.f32 %v738, %v4749
        %v5042 = vmul.f32 %v738, %v4750
        %v5043 = vmul.f32 %v738, %v4751
        %v5044 = vmul.f32 %v738, %v4752
        %v5045 = vadd.f32 %v5037, %v5041
        %v5046 = vadd.f32 %v5038, %v5042
        %v5047 = vadd.f32 %v5039, %v5043
        %v5048 = vadd.f32 %v5040, %v5044
        %v5049 = vadd.f32 %v5045, %v4993
        %v5050 = vadd.f32 %v5046, %v4994
        %v5051 = vadd.f32 %v5047, %v4995
        %v5052 = vadd.f32 %v5048, %v4996
        %v5053 = vadd.f32 %v5049, %v5025
        %v5054 = vadd.f32 %v5050, %v5026
        %v5055 = vadd.f32 %v5051, %v5027
        %v5056 = vadd.f32 %v5052, %v5028
        %5057 = vrot.lane.b32.xlu0 %v5053, 64
        %v5058 = vpop.permute.xlu0 %5057
        %5059 = vrot.lane.b32.xlu0 %v5054, 64
        %v5060 = vpop.permute.xlu0 %5059
        %5061 = vrot.lane.b32.xlu0 %v5055, 64
        %v5062 = vpop.permute.xlu0 %5061
        %5063 = vrot.lane.b32.xlu0 %v5056, 64
        %v5064 = vpop.permute.xlu0 %5063
        %v5065 = vrot.slane %v5058, 1
        %v5066 = vrot.slane %v5060, 1
        %v5067 = vrot.slane %v5062, 1
        %v5068 = vrot.slane %v5064, 1
        %v5069 = vsel %vm767, %v5067, %v5068
        %v5070 = vsel %vm767, %v5066, %v5067
        %v5071 = vsel %vm767, %v5065, %v5066
        %v5072 = vsel %vm767, %v5068, %v5065
        %v5073 = vsel %vm353, %v5071, 0.0
        %v5074 = vsel %vm354, %v5070, 0.0
        %v5075 = vsel %vm355, %v5069, 0.0
        %v5076 = vsel %vm356, %v5072, 0.0
        %v5077 = vsel %vm346, %v5073, %v5058
        %v5078 = vsel %vm346, %v5074, %v5060
        %v5079 = vsel %vm346, %v5075, %v5062
        %v5080 = vsel %vm346, %v5076, %v5064
        %v5081 = vadd.f32 %v4961, %v5077
        %v5082 = vadd.f32 %v4962, %v5078
        %v5083 = vadd.f32 %v4963, %v5079
        %v5084 = vadd.f32 %v4964, %v5080
        %s5085 = scalar_lea.vmem %s318, 256
        %v5086 = vld [vmem:[%s5085] sm:$0xff]
        %v5087 = vld [vmem:[%s5085 + $0x8] sm:$0xff]
        %v5088 = vld [vmem:[%s5085 + $0x10] sm:$0xff]
        %v5089 = vld [vmem:[%s5085 + $0x18] sm:$0xff]
        %v5090 = vld [vmem:[%s5085 + $0x20] sm:$0xff]
        %v5091 = vld [vmem:[%s5085 + $0x28] sm:$0xff]
        %v5092 = vld [vmem:[%s5085 + $0x30] sm:$0xff]
        %v5093 = vld [vmem:[%s5085 + $0x38] sm:$0xff]
        %v5094 = vld [vmem:[%s5085 + $0x40] sm:$0xff]
        %v5095 = vld [vmem:[%s5085 + $0x48] sm:$0xff]
        %v5096 = vld [vmem:[%s5085 + $0x50] sm:$0xff]
        %v5097 = vld [vmem:[%s5085 + $0x58] sm:$0xff]
        %v5098 = vld [vmem:[%s5085 + $0x60] sm:$0xff]
        %v5099 = vld [vmem:[%s5085 + $0x68] sm:$0xff]
        %v5100 = vld [vmem:[%s5085 + $0x70] sm:$0xff]
        %v5101 = vld [vmem:[%s5085 + $0x78] sm:$0xff]
        %5102 = vrot.lane.b32.xlu0 %v5086, 127
        %v5103 = vpop.permute.xlu0 %5102
        %5104 = vrot.lane.b32.xlu0 %v5087, 127
        %v5105 = vpop.permute.xlu0 %5104
        %5106 = vrot.lane.b32.xlu0 %v5088, 127
        %v5107 = vpop.permute.xlu0 %5106
        %5108 = vrot.lane.b32.xlu0 %v5089, 127
        %v5109 = vpop.permute.xlu0 %5108
        %5110 = vrot.lane.b32.xlu0 %v5090, 127
        %v5111 = vpop.permute.xlu0 %5110
        %5112 = vrot.lane.b32.xlu0 %v5091, 127
        %v5113 = vpop.permute.xlu0 %5112
        %5114 = vrot.lane.b32.xlu0 %v5092, 127
        %v5115 = vpop.permute.xlu0 %5114
        %5116 = vrot.lane.b32.xlu0 %v5093, 127
        %v5117 = vpop.permute.xlu0 %5116
        %5118 = vrot.lane.b32.xlu0 %v5094, 127
        %v5119 = vpop.permute.xlu0 %5118
        %5120 = vrot.lane.b32.xlu0 %v5095, 127
        %v5121 = vpop.permute.xlu0 %5120
        %5122 = vrot.lane.b32.xlu0 %v5096, 127
        %v5123 = vpop.permute.xlu0 %5122
        %5124 = vrot.lane.b32.xlu0 %v5097, 127
        %v5125 = vpop.permute.xlu0 %5124
        %5126 = vrot.lane.b32.xlu0 %v5098, 127
        %v5127 = vpop.permute.xlu0 %5126
        %5128 = vrot.lane.b32.xlu0 %v5099, 127
        %v5129 = vpop.permute.xlu0 %5128
        %5130 = vrot.lane.b32.xlu0 %v5100, 127
        %v5131 = vpop.permute.xlu0 %5130
        %5132 = vrot.lane.b32.xlu0 %v5101, 127
        %v5133 = vpop.permute.xlu0 %5132
        %v5134 = vmax.f32 %v5086, %v5103
        %v5135 = vmax.f32 %v5087, %v5105
        %v5136 = vmax.f32 %v5088, %v5107
        %v5137 = vmax.f32 %v5089, %v5109
        %v5138 = vmax.f32 %v5090, %v5111
        %v5139 = vmax.f32 %v5091, %v5113
        %v5140 = vmax.f32 %v5092, %v5115
        %v5141 = vmax.f32 %v5093, %v5117
        %v5142 = vmax.f32 %v5094, %v5119
        %v5143 = vmax.f32 %v5095, %v5121
        %v5144 = vmax.f32 %v5096, %v5123
        %v5145 = vmax.f32 %v5097, %v5125
        %v5146 = vmax.f32 %v5098, %v5127
        %v5147 = vmax.f32 %v5099, %v5129
        %v5148 = vmax.f32 %v5100, %v5131
        %v5149 = vmax.f32 %v5101, %v5133
        %v5150 = vrot.slane %v5134, 1
        %v5151 = vrot.slane %v5135, 1
        %v5152 = vrot.slane %v5136, 1
        %v5153 = vrot.slane %v5137, 1
        %v5154 = vrot.slane %v5138, 1
        %v5155 = vrot.slane %v5139, 1
        %v5156 = vrot.slane %v5140, 1
        %v5157 = vrot.slane %v5141, 1
        %v5158 = vrot.slane %v5142, 1
        %v5159 = vrot.slane %v5143, 1
        %v5160 = vrot.slane %v5144, 1
        %v5161 = vrot.slane %v5145, 1
        %v5162 = vrot.slane %v5146, 1
        %v5163 = vrot.slane %v5147, 1
        %v5164 = vrot.slane %v5148, 1
        %v5165 = vrot.slane %v5149, 1
        %v5166 = vsel %vm767, %v5164, %v5165
        %v5167 = vsel %vm767, %v5163, %v5164
        %v5168 = vsel %vm767, %v5162, %v5163
        %v5169 = vsel %vm767, %v5161, %v5162
        %v5170 = vsel %vm767, %v5160, %v5161
        %v5171 = vsel %vm767, %v5159, %v5160
        %v5172 = vsel %vm767, %v5158, %v5159
        %v5173 = vsel %vm767, %v5157, %v5158
        %v5174 = vsel %vm767, %v5156, %v5157
        %v5175 = vsel %vm767, %v5155, %v5156
        %v5176 = vsel %vm767, %v5154, %v5155
        %v5177 = vsel %vm767, %v5153, %v5154
        %v5178 = vsel %vm767, %v5152, %v5153
        %v5179 = vsel %vm767, %v5151, %v5152
        %v5180 = vsel %vm767, %v5150, %v5151
        %v5181 = vsel %vm767, %v5165, %v5150
        %v5182 = vmax.f32 %v5134, %v5180
        %v5183 = vmax.f32 %v5135, %v5179
        %v5184 = vmax.f32 %v5136, %v5178
        %v5185 = vmax.f32 %v5137, %v5177
        %v5186 = vmax.f32 %v5138, %v5176
        %v5187 = vmax.f32 %v5139, %v5175
        %v5188 = vmax.f32 %v5140, %v5174
        %v5189 = vmax.f32 %v5141, %v5173
        %v5190 = vmax.f32 %v5142, %v5172
        %v5191 = vmax.f32 %v5143, %v5171
        %v5192 = vmax.f32 %v5144, %v5170
        %v5193 = vmax.f32 %v5145, %v5169
        %v5194 = vmax.f32 %v5146, %v5168
        %v5195 = vmax.f32 %v5147, %v5167
        %v5196 = vmax.f32 %v5148, %v5166
        %v5197 = vmax.f32 %v5149, %v5181
        %v5198 = vand.u32 %v408, 4294901760
        %5199 = vmatpush.msra.mxu0 %v5198
        %v5200 = vand.u32 %v407, 4294901760
        %5201 = vmatpush.msra.mxu0 %v5200
        %v5202 = vand.u32 %v406, 4294901760
        %5203 = vmatpush.msra.mxu0 %v5202
        %v5204 = vand.u32 %v405, 4294901760
        %5205 = vmatpush.msra.mxu0 %v5204
        %v5206 = vand.u32 %v404, 4294901760
        %5207 = vmatpush.msra.mxu0 %v5206
        %v5208 = vand.u32 %v403, 4294901760
        %5209 = vmatpush.msra.mxu0 %v5208
        %v5210 = vand.u32 %v402, 4294901760
        %5211 = vmatpush.msra.mxu0 %v5210
        %v5212 = vand.u32 %v401, 4294901760
        %5213 = vmatpush.msra.mxu0 %v5212
        %v5214 = vand.u32 %v400, 4294901760
        %5215 = vmatpush.msra.mxu0 %v5214
        %v5216 = vand.u32 %v399, 4294901760
        %5217 = vmatpush.msra.mxu0 %v5216
        %v5218 = vand.u32 %v398, 4294901760
        %5219 = vmatpush.msra.mxu0 %v5218
        %v5220 = vand.u32 %v397, 4294901760
        %5221 = vmatpush.msra.mxu0 %v5220
        %v5222 = vand.u32 %v396, 4294901760
        %5223 = vmatpush.msra.mxu0 %v5222
        %v5224 = vand.u32 %v395, 4294901760
        %5225 = vmatpush.msra.mxu0 %v5224
        %v5226 = vand.u32 %v394, 4294901760
        %5227 = vmatpush.msra.mxu0 %v5226
        %v5228 = vand.u32 %v393, 4294901760
        %5229 = vmatpush.msra.mxu0 %v5228
        %v5230 = vand.u32 %v5182, 4294901760
        %v5231 = vsub.f32 %v5182, %v5230
        %v5232 = vand.u32 %v5231, 4294901760
        %v5233 = vsub.f32 %v5231, %v5232
        %v5234 = vand.u32 %v5233, 4294901760
        %5235 = vmatmul.f32.gmra.mxu0 %v5234
        %v5236 = vpop.f32.mrf.mxu0
        %v5237 = vadd.f32 0.0, %v5236
        %v5238 = vand.u32 %v5183, 4294901760
        %v5239 = vsub.f32 %v5183, %v5238
        %v5240 = vand.u32 %v5239, 4294901760
        %v5241 = vsub.f32 %v5239, %v5240
        %v5242 = vand.u32 %v5241, 4294901760
        %5243 = vmatmul.f32.gmra.mxu0 %v5242
        %v5244 = vpop.f32.mrf.mxu0
        %v5245 = vadd.f32 0.0, %v5244
        %v5246 = vand.u32 %v5184, 4294901760
        %v5247 = vsub.f32 %v5184, %v5246
        %v5248 = vand.u32 %v5247, 4294901760
        %v5249 = vsub.f32 %v5247, %v5248
        %v5250 = vand.u32 %v5249, 4294901760
        %5251 = vmatmul.f32.gmra.mxu0 %v5250
        %v5252 = vpop.f32.mrf.mxu0
        %v5253 = vadd.f32 0.0, %v5252
        %v5254 = vand.u32 %v5185, 4294901760
        %v5255 = vsub.f32 %v5185, %v5254
        %v5256 = vand.u32 %v5255, 4294901760
        %v5257 = vsub.f32 %v5255, %v5256
        %v5258 = vand.u32 %v5257, 4294901760
        %5259 = vmatmul.f32.gmra.mxu0 %v5258
        %v5260 = vpop.f32.mrf.mxu0
        %v5261 = vadd.f32 0.0, %v5260
        %v5262 = vand.u32 %v5186, 4294901760
        %v5263 = vsub.f32 %v5186, %v5262
        %v5264 = vand.u32 %v5263, 4294901760
        %v5265 = vsub.f32 %v5263, %v5264
        %v5266 = vand.u32 %v5265, 4294901760
        %5267 = vmatmul.f32.gmra.mxu0 %v5266
        %v5268 = vpop.f32.mrf.mxu0
        %v5269 = vadd.f32 0.0, %v5268
        %v5270 = vand.u32 %v5187, 4294901760
        %v5271 = vsub.f32 %v5187, %v5270
        %v5272 = vand.u32 %v5271, 4294901760
        %v5273 = vsub.f32 %v5271, %v5272
        %v5274 = vand.u32 %v5273, 4294901760
        %5275 = vmatmul.f32.gmra.mxu0 %v5274
        %v5276 = vpop.f32.mrf.mxu0
        %v5277 = vadd.f32 0.0, %v5276
        %v5278 = vand.u32 %v5188, 4294901760
        %v5279 = vsub.f32 %v5188, %v5278
        %v5280 = vand.u32 %v5279, 4294901760
        %v5281 = vsub.f32 %v5279, %v5280
        %v5282 = vand.u32 %v5281, 4294901760
        %5283 = vmatmul.f32.gmra.mxu0 %v5282
        %v5284 = vpop.f32.mrf.mxu0
        %v5285 = vadd.f32 0.0, %v5284
        %v5286 = vand.u32 %v5189, 4294901760
        %v5287 = vsub.f32 %v5189, %v5286
        %v5288 = vand.u32 %v5287, 4294901760
        %v5289 = vsub.f32 %v5287, %v5288
        %v5290 = vand.u32 %v5289, 4294901760
        %5291 = vmatmul.f32.gmra.mxu0 %v5290
        %v5292 = vpop.f32.mrf.mxu0
        %v5293 = vadd.f32 0.0, %v5292
        %v5294 = vand.u32 %v5190, 4294901760
        %v5295 = vsub.f32 %v5190, %v5294
        %v5296 = vand.u32 %v5295, 4294901760
        %v5297 = vsub.f32 %v5295, %v5296
        %v5298 = vand.u32 %v5297, 4294901760
        %5299 = vmatmul.f32.gmra.mxu0 %v5298
        %v5300 = vpop.f32.mrf.mxu0
        %v5301 = vadd.f32 0.0, %v5300
        %v5302 = vand.u32 %v5191, 4294901760
        %v5303 = vsub.f32 %v5191, %v5302
        %v5304 = vand.u32 %v5303, 4294901760
        %v5305 = vsub.f32 %v5303, %v5304
        %v5306 = vand.u32 %v5305, 4294901760
        %5307 = vmatmul.f32.gmra.mxu0 %v5306
        %v5308 = vpop.f32.mrf.mxu0
        %v5309 = vadd.f32 0.0, %v5308
        %v5310 = vand.u32 %v5192, 4294901760
        %v5311 = vsub.f32 %v5192, %v5310
        %v5312 = vand.u32 %v5311, 4294901760
        %v5313 = vsub.f32 %v5311, %v5312
        %v5314 = vand.u32 %v5313, 4294901760
        %5315 = vmatmul.f32.gmra.mxu0 %v5314
        %v5316 = vpop.f32.mrf.mxu0
        %v5317 = vadd.f32 0.0, %v5316
        %v5318 = vand.u32 %v5193, 4294901760
        %v5319 = vsub.f32 %v5193, %v5318
        %v5320 = vand.u32 %v5319, 4294901760
        %v5321 = vsub.f32 %v5319, %v5320
        %v5322 = vand.u32 %v5321, 4294901760
        %5323 = vmatmul.f32.gmra.mxu0 %v5322
        %v5324 = vpop.f32.mrf.mxu0
        %v5325 = vadd.f32 0.0, %v5324
        %v5326 = vand.u32 %v5194, 4294901760
        %v5327 = vsub.f32 %v5194, %v5326
        %v5328 = vand.u32 %v5327, 4294901760
        %v5329 = vsub.f32 %v5327, %v5328
        %v5330 = vand.u32 %v5329, 4294901760
        %5331 = vmatmul.f32.gmra.mxu0 %v5330
        %v5332 = vpop.f32.mrf.mxu0
        %v5333 = vadd.f32 0.0, %v5332
        %v5334 = vand.u32 %v5195, 4294901760
        %v5335 = vsub.f32 %v5195, %v5334
        %v5336 = vand.u32 %v5335, 4294901760
        %v5337 = vsub.f32 %v5335, %v5336
        %v5338 = vand.u32 %v5337, 4294901760
        %5339 = vmatmul.f32.gmra.mxu0 %v5338
        %v5340 = vpop.f32.mrf.mxu0
        %v5341 = vadd.f32 0.0, %v5340
        %v5342 = vand.u32 %v5196, 4294901760
        %v5343 = vsub.f32 %v5196, %v5342
        %v5344 = vand.u32 %v5343, 4294901760
        %v5345 = vsub.f32 %v5343, %v5344
        %v5346 = vand.u32 %v5345, 4294901760
        %5347 = vmatmul.f32.gmra.mxu0 %v5346
        %v5348 = vpop.f32.mrf.mxu0
        %v5349 = vadd.f32 0.0, %v5348
        %v5350 = vand.u32 %v5197, 4294901760
        %v5351 = vsub.f32 %v5197, %v5350
        %v5352 = vand.u32 %v5351, 4294901760
        %v5353 = vsub.f32 %v5351, %v5352
        %v5354 = vand.u32 %v5353, 4294901760
        %5355 = vmatmul.f32.gmra.mxu0 %v5354
        %v5356 = vpop.f32.mrf.mxu0
        %v5357 = vadd.f32 0.0, %v5356
        %5358 = vdwg.mxu0
        %v5359 = vand.u32 %v408, 4294901760
        %v5360 = vsub.f32 %v408, %v5359
        %v5361 = vand.u32 %v5360, 4294901760
        %v5362 = vsub.f32 %v5360, %v5361
        %v5363 = vand.u32 %v5362, 4294901760
        %5364 = vmatpush.msra.mxu0 %v5363
        %v5365 = vand.u32 %v407, 4294901760
        %v5366 = vsub.f32 %v407, %v5365
        %v5367 = vand.u32 %v5366, 4294901760
        %v5368 = vsub.f32 %v5366, %v5367
        %v5369 = vand.u32 %v5368, 4294901760
        %5370 = vmatpush.msra.mxu0 %v5369
        %v5371 = vand.u32 %v406, 4294901760
        %v5372 = vsub.f32 %v406, %v5371
        %v5373 = vand.u32 %v5372, 4294901760
        %v5374 = vsub.f32 %v5372, %v5373
        %v5375 = vand.u32 %v5374, 4294901760
        %5376 = vmatpush.msra.mxu0 %v5375
        %v5377 = vand.u32 %v405, 4294901760
        %v5378 = vsub.f32 %v405, %v5377
        %v5379 = vand.u32 %v5378, 4294901760
        %v5380 = vsub.f32 %v5378, %v5379
        %v5381 = vand.u32 %v5380, 4294901760
        %5382 = vmatpush.msra.mxu0 %v5381
        %v5383 = vand.u32 %v404, 4294901760
        %v5384 = vsub.f32 %v404, %v5383
        %v5385 = vand.u32 %v5384, 4294901760
        %v5386 = vsub.f32 %v5384, %v5385
        %v5387 = vand.u32 %v5386, 4294901760
        %5388 = vmatpush.msra.mxu0 %v5387
        %v5389 = vand.u32 %v403, 4294901760
        %v5390 = vsub.f32 %v403, %v5389
        %v5391 = vand.u32 %v5390, 4294901760
        %v5392 = vsub.f32 %v5390, %v5391
        %v5393 = vand.u32 %v5392, 4294901760
        %5394 = vmatpush.msra.mxu0 %v5393
        %v5395 = vand.u32 %v402, 4294901760
        %v5396 = vsub.f32 %v402, %v5395
        %v5397 = vand.u32 %v5396, 4294901760
        %v5398 = vsub.f32 %v5396, %v5397
        %v5399 = vand.u32 %v5398, 4294901760
        %5400 = vmatpush.msra.mxu0 %v5399
        %v5401 = vand.u32 %v401, 4294901760
        %v5402 = vsub.f32 %v401, %v5401
        %v5403 = vand.u32 %v5402, 4294901760
        %v5404 = vsub.f32 %v5402, %v5403
        %v5405 = vand.u32 %v5404, 4294901760
        %5406 = vmatpush.msra.mxu0 %v5405
        %v5407 = vand.u32 %v400, 4294901760
        %v5408 = vsub.f32 %v400, %v5407
        %v5409 = vand.u32 %v5408, 4294901760
        %v5410 = vsub.f32 %v5408, %v5409
        %v5411 = vand.u32 %v5410, 4294901760
        %5412 = vmatpush.msra.mxu0 %v5411
        %v5413 = vand.u32 %v399, 4294901760
        %v5414 = vsub.f32 %v399, %v5413
        %v5415 = vand.u32 %v5414, 4294901760
        %v5416 = vsub.f32 %v5414, %v5415
        %v5417 = vand.u32 %v5416, 4294901760
        %5418 = vmatpush.msra.mxu0 %v5417
        %v5419 = vand.u32 %v398, 4294901760
        %v5420 = vsub.f32 %v398, %v5419
        %v5421 = vand.u32 %v5420, 4294901760
        %v5422 = vsub.f32 %v5420, %v5421
        %v5423 = vand.u32 %v5422, 4294901760
        %5424 = vmatpush.msra.mxu0 %v5423
        %v5425 = vand.u32 %v397, 4294901760
        %v5426 = vsub.f32 %v397, %v5425
        %v5427 = vand.u32 %v5426, 4294901760
        %v5428 = vsub.f32 %v5426, %v5427
        %v5429 = vand.u32 %v5428, 4294901760
        %5430 = vmatpush.msra.mxu0 %v5429
        %v5431 = vand.u32 %v396, 4294901760
        %v5432 = vsub.f32 %v396, %v5431
        %v5433 = vand.u32 %v5432, 4294901760
        %v5434 = vsub.f32 %v5432, %v5433
        %v5435 = vand.u32 %v5434, 4294901760
        %5436 = vmatpush.msra.mxu0 %v5435
        %v5437 = vand.u32 %v395, 4294901760
        %v5438 = vsub.f32 %v395, %v5437
        %v5439 = vand.u32 %v5438, 4294901760
        %v5440 = vsub.f32 %v5438, %v5439
        %v5441 = vand.u32 %v5440, 4294901760
        %5442 = vmatpush.msra.mxu0 %v5441
        %v5443 = vand.u32 %v394, 4294901760
        %v5444 = vsub.f32 %v394, %v5443
        %v5445 = vand.u32 %v5444, 4294901760
        %v5446 = vsub.f32 %v5444, %v5445
        %v5447 = vand.u32 %v5446, 4294901760
        %5448 = vmatpush.msra.mxu0 %v5447
        %v5449 = vand.u32 %v393, 4294901760
        %v5450 = vsub.f32 %v393, %v5449
        %v5451 = vand.u32 %v5450, 4294901760
        %v5452 = vsub.f32 %v5450, %v5451
        %v5453 = vand.u32 %v5452, 4294901760
        %5454 = vmatpush.msra.mxu0 %v5453
        %v5455 = vand.u32 %v5182, 4294901760
        %5456 = vmatmul.f32.gmra.mxu0 %v5455
        %v5457 = vpop.f32.mrf.mxu0
        %v5458 = vadd.f32 %v5237, %v5457
        %v5459 = vand.u32 %v5183, 4294901760
        %5460 = vmatmul.f32.gmra.mxu0 %v5459
        %v5461 = vpop.f32.mrf.mxu0
        %v5462 = vadd.f32 %v5245, %v5461
        %v5463 = vand.u32 %v5184, 4294901760
        %5464 = vmatmul.f32.gmra.mxu0 %v5463
        %v5465 = vpop.f32.mrf.mxu0
        %v5466 = vadd.f32 %v5253, %v5465
        %v5467 = vand.u32 %v5185, 4294901760
        %5468 = vmatmul.f32.gmra.mxu0 %v5467
        %v5469 = vpop.f32.mrf.mxu0
        %v5470 = vadd.f32 %v5261, %v5469
        %v5471 = vand.u32 %v5186, 4294901760
        %5472 = vmatmul.f32.gmra.mxu0 %v5471
        %v5473 = vpop.f32.mrf.mxu0
        %v5474 = vadd.f32 %v5269, %v5473
        %v5475 = vand.u32 %v5187, 4294901760
        %5476 = vmatmul.f32.gmra.mxu0 %v5475
        %v5477 = vpop.f32.mrf.mxu0
        %v5478 = vadd.f32 %v5277, %v5477
        %v5479 = vand.u32 %v5188, 4294901760
        %5480 = vmatmul.f32.gmra.mxu0 %v5479
        %v5481 = vpop.f32.mrf.mxu0
        %v5482 = vadd.f32 %v5285, %v5481
        %v5483 = vand.u32 %v5189, 4294901760
        %5484 = vmatmul.f32.gmra.mxu0 %v5483
        %v5485 = vpop.f32.mrf.mxu0
        %v5486 = vadd.f32 %v5293, %v5485
        %v5487 = vand.u32 %v5190, 4294901760
        %5488 = vmatmul.f32.gmra.mxu0 %v5487
        %v5489 = vpop.f32.mrf.mxu0
        %v5490 = vadd.f32 %v5301, %v5489
        %v5491 = vand.u32 %v5191, 4294901760
        %5492 = vmatmul.f32.gmra.mxu0 %v5491
        %v5493 = vpop.f32.mrf.mxu0
        %v5494 = vadd.f32 %v5309, %v5493
        %v5495 = vand.u32 %v5192, 4294901760
        %5496 = vmatmul.f32.gmra.mxu0 %v5495
        %v5497 = vpop.f32.mrf.mxu0
        %v5498 = vadd.f32 %v5317, %v5497
        %v5499 = vand.u32 %v5193, 4294901760
        %5500 = vmatmul.f32.gmra.mxu0 %v5499
        %v5501 = vpop.f32.mrf.mxu0
        %v5502 = vadd.f32 %v5325, %v5501
        %v5503 = vand.u32 %v5194, 4294901760
        %5504 = vmatmul.f32.gmra.mxu0 %v5503
        %v5505 = vpop.f32.mrf.mxu0
        %v5506 = vadd.f32 %v5333, %v5505
        %v5507 = vand.u32 %v5195, 4294901760
        %5508 = vmatmul.f32.gmra.mxu0 %v5507
        %v5509 = vpop.f32.mrf.mxu0
        %v5510 = vadd.f32 %v5341, %v5509
        %v5511 = vand.u32 %v5196, 4294901760
        %5512 = vmatmul.f32.gmra.mxu0 %v5511
        %v5513 = vpop.f32.mrf.mxu0
        %v5514 = vadd.f32 %v5349, %v5513
        %v5515 = vand.u32 %v5197, 4294901760
        %5516 = vmatmul.f32.gmra.mxu0 %v5515
        %v5517 = vpop.f32.mrf.mxu0
        %v5518 = vadd.f32 %v5357, %v5517
        %5519 = vdwg.mxu0
        %v5520 = vand.u32 %v408, 4294901760
        %v5521 = vsub.f32 %v408, %v5520
        %5522 = vmatpush.msra.mxu0 %v5521
        %v5523 = vand.u32 %v407, 4294901760
        %v5524 = vsub.f32 %v407, %v5523
        %5525 = vmatpush.msra.mxu0 %v5524
        %v5526 = vand.u32 %v406, 4294901760
        %v5527 = vsub.f32 %v406, %v5526
        %5528 = vmatpush.msra.mxu0 %v5527
        %v5529 = vand.u32 %v405, 4294901760
        %v5530 = vsub.f32 %v405, %v5529
        %5531 = vmatpush.msra.mxu0 %v5530
        %v5532 = vand.u32 %v404, 4294901760
        %v5533 = vsub.f32 %v404, %v5532
        %5534 = vmatpush.msra.mxu0 %v5533
        %v5535 = vand.u32 %v403, 4294901760
        %v5536 = vsub.f32 %v403, %v5535
        %5537 = vmatpush.msra.mxu0 %v5536
        %v5538 = vand.u32 %v402, 4294901760
        %v5539 = vsub.f32 %v402, %v5538
        %5540 = vmatpush.msra.mxu0 %v5539
        %v5541 = vand.u32 %v401, 4294901760
        %v5542 = vsub.f32 %v401, %v5541
        %5543 = vmatpush.msra.mxu0 %v5542
        %v5544 = vand.u32 %v400, 4294901760
        %v5545 = vsub.f32 %v400, %v5544
        %5546 = vmatpush.msra.mxu0 %v5545
        %v5547 = vand.u32 %v399, 4294901760
        %v5548 = vsub.f32 %v399, %v5547
        %5549 = vmatpush.msra.mxu0 %v5548
        %v5550 = vand.u32 %v398, 4294901760
        %v5551 = vsub.f32 %v398, %v5550
        %5552 = vmatpush.msra.mxu0 %v5551
        %v5553 = vand.u32 %v397, 4294901760
        %v5554 = vsub.f32 %v397, %v5553
        %5555 = vmatpush.msra.mxu0 %v5554
        %v5556 = vand.u32 %v396, 4294901760
        %v5557 = vsub.f32 %v396, %v5556
        %5558 = vmatpush.msra.mxu0 %v5557
        %v5559 = vand.u32 %v395, 4294901760
        %v5560 = vsub.f32 %v395, %v5559
        %5561 = vmatpush.msra.mxu0 %v5560
        %v5562 = vand.u32 %v394, 4294901760
        %v5563 = vsub.f32 %v394, %v5562
        %5564 = vmatpush.msra.mxu0 %v5563
        %v5565 = vand.u32 %v393, 4294901760
        %v5566 = vsub.f32 %v393, %v5565
        %5567 = vmatpush.msra.mxu0 %v5566
        %v5568 = vand.u32 %v5182, 4294901760
        %v5569 = vsub.f32 %v5182, %v5568
        %5570 = vmatmul.f32.gmra.mxu0 %v5569
        %v5571 = vpop.f32.mrf.mxu0
        %v5572 = vadd.f32 %v5458, %v5571
        %v5573 = vand.u32 %v5183, 4294901760
        %v5574 = vsub.f32 %v5183, %v5573
        %5575 = vmatmul.f32.gmra.mxu0 %v5574
        %v5576 = vpop.f32.mrf.mxu0
        %v5577 = vadd.f32 %v5462, %v5576
        %v5578 = vand.u32 %v5184, 4294901760
        %v5579 = vsub.f32 %v5184, %v5578
        %5580 = vmatmul.f32.gmra.mxu0 %v5579
        %v5581 = vpop.f32.mrf.mxu0
        %v5582 = vadd.f32 %v5466, %v5581
        %v5583 = vand.u32 %v5185, 4294901760
        %v5584 = vsub.f32 %v5185, %v5583
        %5585 = vmatmul.f32.gmra.mxu0 %v5584
        %v5586 = vpop.f32.mrf.mxu0
        %v5587 = vadd.f32 %v5470, %v5586
        %v5588 = vand.u32 %v5186, 4294901760
        %v5589 = vsub.f32 %v5186, %v5588
        %5590 = vmatmul.f32.gmra.mxu0 %v5589
        %v5591 = vpop.f32.mrf.mxu0
        %v5592 = vadd.f32 %v5474, %v5591
        %v5593 = vand.u32 %v5187, 4294901760
        %v5594 = vsub.f32 %v5187, %v5593
        %5595 = vmatmul.f32.gmra.mxu0 %v5594
        %v5596 = vpop.f32.mrf.mxu0
        %v5597 = vadd.f32 %v5478, %v5596
        %v5598 = vand.u32 %v5188, 4294901760
        %v5599 = vsub.f32 %v5188, %v5598
        %5600 = vmatmul.f32.gmra.mxu0 %v5599
        %v5601 = vpop.f32.mrf.mxu0
        %v5602 = vadd.f32 %v5482, %v5601
        %v5603 = vand.u32 %v5189, 4294901760
        %v5604 = vsub.f32 %v5189, %v5603
        %5605 = vmatmul.f32.gmra.mxu0 %v5604
        %v5606 = vpop.f32.mrf.mxu0
        %v5607 = vadd.f32 %v5486, %v5606
        %v5608 = vand.u32 %v5190, 4294901760
        %v5609 = vsub.f32 %v5190, %v5608
        %5610 = vmatmul.f32.gmra.mxu0 %v5609
        %v5611 = vpop.f32.mrf.mxu0
        %v5612 = vadd.f32 %v5490, %v5611
        %v5613 = vand.u32 %v5191, 4294901760
        %v5614 = vsub.f32 %v5191, %v5613
        %5615 = vmatmul.f32.gmra.mxu0 %v5614
        %v5616 = vpop.f32.mrf.mxu0
        %v5617 = vadd.f32 %v5494, %v5616
        %v5618 = vand.u32 %v5192, 4294901760
        %v5619 = vsub.f32 %v5192, %v5618
        %5620 = vmatmul.f32.gmra.mxu0 %v5619
        %v5621 = vpop.f32.mrf.mxu0
        %v5622 = vadd.f32 %v5498, %v5621
        %v5623 = vand.u32 %v5193, 4294901760
        %v5624 = vsub.f32 %v5193, %v5623
        %5625 = vmatmul.f32.gmra.mxu0 %v5624
        %v5626 = vpop.f32.mrf.mxu0
        %v5627 = vadd.f32 %v5502, %v5626
        %v5628 = vand.u32 %v5194, 4294901760
        %v5629 = vsub.f32 %v5194, %v5628
        %5630 = vmatmul.f32.gmra.mxu0 %v5629
        %v5631 = vpop.f32.mrf.mxu0
        %v5632 = vadd.f32 %v5506, %v5631
        %v5633 = vand.u32 %v5195, 4294901760
        %v5634 = vsub.f32 %v5195, %v5633
        %5635 = vmatmul.f32.gmra.mxu0 %v5634
        %v5636 = vpop.f32.mrf.mxu0
        %v5637 = vadd.f32 %v5510, %v5636
        %v5638 = vand.u32 %v5196, 4294901760
        %v5639 = vsub.f32 %v5196, %v5638
        %5640 = vmatmul.f32.gmra.mxu0 %v5639
        %v5641 = vpop.f32.mrf.mxu0
        %v5642 = vadd.f32 %v5514, %v5641
        %v5643 = vand.u32 %v5197, 4294901760
        %v5644 = vsub.f32 %v5197, %v5643
        %5645 = vmatmul.f32.gmra.mxu0 %v5644
        %v5646 = vpop.f32.mrf.mxu0
        %v5647 = vadd.f32 %v5518, %v5646
        %5648 = vdwg.mxu0
        %v5649 = vand.u32 %v408, 4294901760
        %5650 = vmatpush.msra.mxu0 %v5649
        %v5651 = vand.u32 %v407, 4294901760
        %5652 = vmatpush.msra.mxu0 %v5651
        %v5653 = vand.u32 %v406, 4294901760
        %5654 = vmatpush.msra.mxu0 %v5653
        %v5655 = vand.u32 %v405, 4294901760
        %5656 = vmatpush.msra.mxu0 %v5655
        %v5657 = vand.u32 %v404, 4294901760
        %5658 = vmatpush.msra.mxu0 %v5657
        %v5659 = vand.u32 %v403, 4294901760
        %5660 = vmatpush.msra.mxu0 %v5659
        %v5661 = vand.u32 %v402, 4294901760
        %5662 = vmatpush.msra.mxu0 %v5661
        %v5663 = vand.u32 %v401, 4294901760
        %5664 = vmatpush.msra.mxu0 %v5663
        %v5665 = vand.u32 %v400, 4294901760
        %5666 = vmatpush.msra.mxu0 %v5665
        %v5667 = vand.u32 %v399, 4294901760
        %5668 = vmatpush.msra.mxu0 %v5667
        %v5669 = vand.u32 %v398, 4294901760
        %5670 = vmatpush.msra.mxu0 %v5669
        %v5671 = vand.u32 %v397, 4294901760
        %5672 = vmatpush.msra.mxu0 %v5671
        %v5673 = vand.u32 %v396, 4294901760
        %5674 = vmatpush.msra.mxu0 %v5673
        %v5675 = vand.u32 %v395, 4294901760
        %5676 = vmatpush.msra.mxu0 %v5675
        %v5677 = vand.u32 %v394, 4294901760
        %5678 = vmatpush.msra.mxu0 %v5677
        %v5679 = vand.u32 %v393, 4294901760
        %5680 = vmatpush.msra.mxu0 %v5679
        %v5681 = vand.u32 %v5182, 4294901760
        %v5682 = vsub.f32 %v5182, %v5681
        %v5683 = vand.u32 %v5682, 4294901760
        %5684 = vmatmul.f32.gmra.mxu0 %v5683
        %v5685 = vpop.f32.mrf.mxu0
        %v5686 = vadd.f32 %v5572, %v5685
        %v5687 = vand.u32 %v5183, 4294901760
        %v5688 = vsub.f32 %v5183, %v5687
        %v5689 = vand.u32 %v5688, 4294901760
        %5690 = vmatmul.f32.gmra.mxu0 %v5689
        %v5691 = vpop.f32.mrf.mxu0
        %v5692 = vadd.f32 %v5577, %v5691
        %v5693 = vand.u32 %v5184, 4294901760
        %v5694 = vsub.f32 %v5184, %v5693
        %v5695 = vand.u32 %v5694, 4294901760
        %5696 = vmatmul.f32.gmra.mxu0 %v5695
        %v5697 = vpop.f32.mrf.mxu0
        %v5698 = vadd.f32 %v5582, %v5697
        %v5699 = vand.u32 %v5185, 4294901760
        %v5700 = vsub.f32 %v5185, %v5699
        %v5701 = vand.u32 %v5700, 4294901760
        %5702 = vmatmul.f32.gmra.mxu0 %v5701
        %v5703 = vpop.f32.mrf.mxu0
        %v5704 = vadd.f32 %v5587, %v5703
        %v5705 = vand.u32 %v5186, 4294901760
        %v5706 = vsub.f32 %v5186, %v5705
        %v5707 = vand.u32 %v5706, 4294901760
        %5708 = vmatmul.f32.gmra.mxu0 %v5707
        %v5709 = vpop.f32.mrf.mxu0
        %v5710 = vadd.f32 %v5592, %v5709
        %v5711 = vand.u32 %v5187, 4294901760
        %v5712 = vsub.f32 %v5187, %v5711
        %v5713 = vand.u32 %v5712, 4294901760
        %5714 = vmatmul.f32.gmra.mxu0 %v5713
        %v5715 = vpop.f32.mrf.mxu0
        %v5716 = vadd.f32 %v5597, %v5715
        %v5717 = vand.u32 %v5188, 4294901760
        %v5718 = vsub.f32 %v5188, %v5717
        %v5719 = vand.u32 %v5718, 4294901760
        %5720 = vmatmul.f32.gmra.mxu0 %v5719
        %v5721 = vpop.f32.mrf.mxu0
        %v5722 = vadd.f32 %v5602, %v5721
        %v5723 = vand.u32 %v5189, 4294901760
        %v5724 = vsub.f32 %v5189, %v5723
        %v5725 = vand.u32 %v5724, 4294901760
        %5726 = vmatmul.f32.gmra.mxu0 %v5725
        %v5727 = vpop.f32.mrf.mxu0
        %v5728 = vadd.f32 %v5607, %v5727
        %v5729 = vand.u32 %v5190, 4294901760
        %v5730 = vsub.f32 %v5190, %v5729
        %v5731 = vand.u32 %v5730, 4294901760
        %5732 = vmatmul.f32.gmra.mxu0 %v5731
        %v5733 = vpop.f32.mrf.mxu0
        %v5734 = vadd.f32 %v5612, %v5733
        %v5735 = vand.u32 %v5191, 4294901760
        %v5736 = vsub.f32 %v5191, %v5735
        %v5737 = vand.u32 %v5736, 4294901760
        %5738 = vmatmul.f32.gmra.mxu0 %v5737
        %v5739 = vpop.f32.mrf.mxu0
        %v5740 = vadd.f32 %v5617, %v5739
        %v5741 = vand.u32 %v5192, 4294901760
        %v5742 = vsub.f32 %v5192, %v5741
        %v5743 = vand.u32 %v5742, 4294901760
        %5744 = vmatmul.f32.gmra.mxu0 %v5743
        %v5745 = vpop.f32.mrf.mxu0
        %v5746 = vadd.f32 %v5622, %v5745
        %v5747 = vand.u32 %v5193, 4294901760
        %v5748 = vsub.f32 %v5193, %v5747
        %v5749 = vand.u32 %v5748, 4294901760
        %5750 = vmatmul.f32.gmra.mxu0 %v5749
        %v5751 = vpop.f32.mrf.mxu0
        %v5752 = vadd.f32 %v5627, %v5751
        %v5753 = vand.u32 %v5194, 4294901760
        %v5754 = vsub.f32 %v5194, %v5753
        %v5755 = vand.u32 %v5754, 4294901760
        %5756 = vmatmul.f32.gmra.mxu0 %v5755
        %v5757 = vpop.f32.mrf.mxu0
        %v5758 = vadd.f32 %v5632, %v5757
        %v5759 = vand.u32 %v5195, 4294901760
        %v5760 = vsub.f32 %v5195, %v5759
        %v5761 = vand.u32 %v5760, 4294901760
        %5762 = vmatmul.f32.gmra.mxu0 %v5761
        %v5763 = vpop.f32.mrf.mxu0
        %v5764 = vadd.f32 %v5637, %v5763
        %v5765 = vand.u32 %v5196, 4294901760
        %v5766 = vsub.f32 %v5196, %v5765
        %v5767 = vand.u32 %v5766, 4294901760
        %5768 = vmatmul.f32.gmra.mxu0 %v5767
        %v5769 = vpop.f32.mrf.mxu0
        %v5770 = vadd.f32 %v5642, %v5769
        %v5771 = vand.u32 %v5197, 4294901760
        %v5772 = vsub.f32 %v5197, %v5771
        %v5773 = vand.u32 %v5772, 4294901760
        %5774 = vmatmul.f32.gmra.mxu0 %v5773
        %v5775 = vpop.f32.mrf.mxu0
        %v5776 = vadd.f32 %v5647, %v5775
        %5777 = vdwg.mxu0
        %v5778 = vand.u32 %v408, 4294901760
        %v5779 = vsub.f32 %v408, %v5778
        %v5780 = vand.u32 %v5779, 4294901760
        %5781 = vmatpush.msra.mxu0 %v5780
        %v5782 = vand.u32 %v407, 4294901760
        %v5783 = vsub.f32 %v407, %v5782
        %v5784 = vand.u32 %v5783, 4294901760
        %5785 = vmatpush.msra.mxu0 %v5784
        %v5786 = vand.u32 %v406, 4294901760
        %v5787 = vsub.f32 %v406, %v5786
        %v5788 = vand.u32 %v5787, 4294901760
        %5789 = vmatpush.msra.mxu0 %v5788
        %v5790 = vand.u32 %v405, 4294901760
        %v5791 = vsub.f32 %v405, %v5790
        %v5792 = vand.u32 %v5791, 4294901760
        %5793 = vmatpush.msra.mxu0 %v5792
        %v5794 = vand.u32 %v404, 4294901760
        %v5795 = vsub.f32 %v404, %v5794
        %v5796 = vand.u32 %v5795, 4294901760
        %5797 = vmatpush.msra.mxu0 %v5796
        %v5798 = vand.u32 %v403, 4294901760
        %v5799 = vsub.f32 %v403, %v5798
        %v5800 = vand.u32 %v5799, 4294901760
        %5801 = vmatpush.msra.mxu0 %v5800
        %v5802 = vand.u32 %v402, 4294901760
        %v5803 = vsub.f32 %v402, %v5802
        %v5804 = vand.u32 %v5803, 4294901760
        %5805 = vmatpush.msra.mxu0 %v5804
        %v5806 = vand.u32 %v401, 4294901760
        %v5807 = vsub.f32 %v401, %v5806
        %v5808 = vand.u32 %v5807, 4294901760
        %5809 = vmatpush.msra.mxu0 %v5808
        %v5810 = vand.u32 %v400, 4294901760
        %v5811 = vsub.f32 %v400, %v5810
        %v5812 = vand.u32 %v5811, 4294901760
        %5813 = vmatpush.msra.mxu0 %v5812
        %v5814 = vand.u32 %v399, 4294901760
        %v5815 = vsub.f32 %v399, %v5814
        %v5816 = vand.u32 %v5815, 4294901760
        %5817 = vmatpush.msra.mxu0 %v5816
        %v5818 = vand.u32 %v398, 4294901760
        %v5819 = vsub.f32 %v398, %v5818
        %v5820 = vand.u32 %v5819, 4294901760
        %5821 = vmatpush.msra.mxu0 %v5820
        %v5822 = vand.u32 %v397, 4294901760
        %v5823 = vsub.f32 %v397, %v5822
        %v5824 = vand.u32 %v5823, 4294901760
        %5825 = vmatpush.msra.mxu0 %v5824
        %v5826 = vand.u32 %v396, 4294901760
        %v5827 = vsub.f32 %v396, %v5826
        %v5828 = vand.u32 %v5827, 4294901760
        %5829 = vmatpush.msra.mxu0 %v5828
        %v5830 = vand.u32 %v395, 4294901760
        %v5831 = vsub.f32 %v395, %v5830
        %v5832 = vand.u32 %v5831, 4294901760
        %5833 = vmatpush.msra.mxu0 %v5832
        %v5834 = vand.u32 %v394, 4294901760
        %v5835 = vsub.f32 %v394, %v5834
        %v5836 = vand.u32 %v5835, 4294901760
        %5837 = vmatpush.msra.mxu0 %v5836
        %v5838 = vand.u32 %v393, 4294901760
        %v5839 = vsub.f32 %v393, %v5838
        %v5840 = vand.u32 %v5839, 4294901760
        %5841 = vmatpush.msra.mxu0 %v5840
        %v5842 = vand.u32 %v5182, 4294901760
        %5843 = vmatmul.f32.gmra.mxu0 %v5842
        %v5844 = vpop.f32.mrf.mxu0
        %v5845 = vadd.f32 %v5686, %v5844
        %v5846 = vand.u32 %v5183, 4294901760
        %5847 = vmatmul.f32.gmra.mxu0 %v5846
        %v5848 = vpop.f32.mrf.mxu0
        %v5849 = vadd.f32 %v5692, %v5848
        %v5850 = vand.u32 %v5184, 4294901760
        %5851 = vmatmul.f32.gmra.mxu0 %v5850
        %v5852 = vpop.f32.mrf.mxu0
        %v5853 = vadd.f32 %v5698, %v5852
        %v5854 = vand.u32 %v5185, 4294901760
        %5855 = vmatmul.f32.gmra.mxu0 %v5854
        %v5856 = vpop.f32.mrf.mxu0
        %v5857 = vadd.f32 %v5704, %v5856
        %v5858 = vand.u32 %v5186, 4294901760
        %5859 = vmatmul.f32.gmra.mxu0 %v5858
        %v5860 = vpop.f32.mrf.mxu0
        %v5861 = vadd.f32 %v5710, %v5860
        %v5862 = vand.u32 %v5187, 4294901760
        %5863 = vmatmul.f32.gmra.mxu0 %v5862
        %v5864 = vpop.f32.mrf.mxu0
        %v5865 = vadd.f32 %v5716, %v5864
        %v5866 = vand.u32 %v5188, 4294901760
        %5867 = vmatmul.f32.gmra.mxu0 %v5866
        %v5868 = vpop.f32.mrf.mxu0
        %v5869 = vadd.f32 %v5722, %v5868
        %v5870 = vand.u32 %v5189, 4294901760
        %5871 = vmatmul.f32.gmra.mxu0 %v5870
        %v5872 = vpop.f32.mrf.mxu0
        %v5873 = vadd.f32 %v5728, %v5872
        %v5874 = vand.u32 %v5190, 4294901760
        %5875 = vmatmul.f32.gmra.mxu0 %v5874
        %v5876 = vpop.f32.mrf.mxu0
        %v5877 = vadd.f32 %v5734, %v5876
        %v5878 = vand.u32 %v5191, 4294901760
        %5879 = vmatmul.f32.gmra.mxu0 %v5878
        %v5880 = vpop.f32.mrf.mxu0
        %v5881 = vadd.f32 %v5740, %v5880
        %v5882 = vand.u32 %v5192, 4294901760
        %5883 = vmatmul.f32.gmra.mxu0 %v5882
        %v5884 = vpop.f32.mrf.mxu0
        %v5885 = vadd.f32 %v5746, %v5884
        %v5886 = vand.u32 %v5193, 4294901760
        %5887 = vmatmul.f32.gmra.mxu0 %v5886
        %v5888 = vpop.f32.mrf.mxu0
        %v5889 = vadd.f32 %v5752, %v5888
        %v5890 = vand.u32 %v5194, 4294901760
        %5891 = vmatmul.f32.gmra.mxu0 %v5890
        %v5892 = vpop.f32.mrf.mxu0
        %v5893 = vadd.f32 %v5758, %v5892
        %v5894 = vand.u32 %v5195, 4294901760
        %5895 = vmatmul.f32.gmra.mxu0 %v5894
        %v5896 = vpop.f32.mrf.mxu0
        %v5897 = vadd.f32 %v5764, %v5896
        %v5898 = vand.u32 %v5196, 4294901760
        %5899 = vmatmul.f32.gmra.mxu0 %v5898
        %v5900 = vpop.f32.mrf.mxu0
        %v5901 = vadd.f32 %v5770, %v5900
        %v5902 = vand.u32 %v5197, 4294901760
        %5903 = vmatmul.f32.gmra.mxu0 %v5902
        %v5904 = vpop.f32.mrf.mxu0
        %v5905 = vadd.f32 %v5776, %v5904
        %5906 = vdwg.mxu0
        %v5907 = vand.u32 %v408, 4294901760
        %5908 = vmatpush.msra.mxu0 %v5907
        %v5909 = vand.u32 %v407, 4294901760
        %5910 = vmatpush.msra.mxu0 %v5909
        %v5911 = vand.u32 %v406, 4294901760
        %5912 = vmatpush.msra.mxu0 %v5911
        %v5913 = vand.u32 %v405, 4294901760
        %5914 = vmatpush.msra.mxu0 %v5913
        %v5915 = vand.u32 %v404, 4294901760
        %5916 = vmatpush.msra.mxu0 %v5915
        %v5917 = vand.u32 %v403, 4294901760
        %5918 = vmatpush.msra.mxu0 %v5917
        %v5919 = vand.u32 %v402, 4294901760
        %5920 = vmatpush.msra.mxu0 %v5919
        %v5921 = vand.u32 %v401, 4294901760
        %5922 = vmatpush.msra.mxu0 %v5921
        %v5923 = vand.u32 %v400, 4294901760
        %5924 = vmatpush.msra.mxu0 %v5923
        %v5925 = vand.u32 %v399, 4294901760
        %5926 = vmatpush.msra.mxu0 %v5925
        %v5927 = vand.u32 %v398, 4294901760
        %5928 = vmatpush.msra.mxu0 %v5927
        %v5929 = vand.u32 %v397, 4294901760
        %5930 = vmatpush.msra.mxu0 %v5929
        %v5931 = vand.u32 %v396, 4294901760
        %5932 = vmatpush.msra.mxu0 %v5931
        %v5933 = vand.u32 %v395, 4294901760
        %5934 = vmatpush.msra.mxu0 %v5933
        %v5935 = vand.u32 %v394, 4294901760
        %5936 = vmatpush.msra.mxu0 %v5935
        %v5937 = vand.u32 %v393, 4294901760
        %5938 = vmatpush.msra.mxu0 %v5937
        %v5939 = vand.u32 %v5182, 4294901760
        %5940 = vmatmul.f32.gmra.mxu0 %v5939
        %v5941 = vpop.f32.mrf.mxu0
        %v5942 = vadd.f32 %v5845, %v5941
        %v5943 = vand.u32 %v5183, 4294901760
        %5944 = vmatmul.f32.gmra.mxu0 %v5943
        %v5945 = vpop.f32.mrf.mxu0
        %v5946 = vadd.f32 %v5849, %v5945
        %v5947 = vand.u32 %v5184, 4294901760
        %5948 = vmatmul.f32.gmra.mxu0 %v5947
        %v5949 = vpop.f32.mrf.mxu0
        %v5950 = vadd.f32 %v5853, %v5949
        %v5951 = vand.u32 %v5185, 4294901760
        %5952 = vmatmul.f32.gmra.mxu0 %v5951
        %v5953 = vpop.f32.mrf.mxu0
        %v5954 = vadd.f32 %v5857, %v5953
        %v5955 = vand.u32 %v5186, 4294901760
        %5956 = vmatmul.f32.gmra.mxu0 %v5955
        %v5957 = vpop.f32.mrf.mxu0
        %v5958 = vadd.f32 %v5861, %v5957
        %v5959 = vand.u32 %v5187, 4294901760
        %5960 = vmatmul.f32.gmra.mxu0 %v5959
        %v5961 = vpop.f32.mrf.mxu0
        %v5962 = vadd.f32 %v5865, %v5961
        %v5963 = vand.u32 %v5188, 4294901760
        %5964 = vmatmul.f32.gmra.mxu0 %v5963
        %v5965 = vpop.f32.mrf.mxu0
        %v5966 = vadd.f32 %v5869, %v5965
        %v5967 = vand.u32 %v5189, 4294901760
        %5968 = vmatmul.f32.gmra.mxu0 %v5967
        %v5969 = vpop.f32.mrf.mxu0
        %v5970 = vadd.f32 %v5873, %v5969
        %v5971 = vand.u32 %v5190, 4294901760
        %5972 = vmatmul.f32.gmra.mxu0 %v5971
        %v5973 = vpop.f32.mrf.mxu0
        %v5974 = vadd.f32 %v5877, %v5973
        %v5975 = vand.u32 %v5191, 4294901760
        %5976 = vmatmul.f32.gmra.mxu0 %v5975
        %v5977 = vpop.f32.mrf.mxu0
        %v5978 = vadd.f32 %v5881, %v5977
        %v5979 = vand.u32 %v5192, 4294901760
        %5980 = vmatmul.f32.gmra.mxu0 %v5979
        %v5981 = vpop.f32.mrf.mxu0
        %v5982 = vadd.f32 %v5885, %v5981
        %v5983 = vand.u32 %v5193, 4294901760
        %5984 = vmatmul.f32.gmra.mxu0 %v5983
        %v5985 = vpop.f32.mrf.mxu0
        %v5986 = vadd.f32 %v5889, %v5985
        %v5987 = vand.u32 %v5194, 4294901760
        %5988 = vmatmul.f32.gmra.mxu0 %v5987
        %v5989 = vpop.f32.mrf.mxu0
        %v5990 = vadd.f32 %v5893, %v5989
        %v5991 = vand.u32 %v5195, 4294901760
        %5992 = vmatmul.f32.gmra.mxu0 %v5991
        %v5993 = vpop.f32.mrf.mxu0
        %v5994 = vadd.f32 %v5897, %v5993
        %v5995 = vand.u32 %v5196, 4294901760
        %5996 = vmatmul.f32.gmra.mxu0 %v5995
        %v5997 = vpop.f32.mrf.mxu0
        %v5998 = vadd.f32 %v5901, %v5997
        %v5999 = vand.u32 %v5197, 4294901760
        %6000 = vmatmul.f32.gmra.mxu0 %v5999
        %v6001 = vpop.f32.mrf.mxu0
        %v6002 = vadd.f32 %v5905, %v6001
        %6003 = vdwg.mxu0
        %v6004 = vand.u32 %v6002, 4294901760
        %6005 = vmatpush.msra.mxu0 %v6004
        %v6006 = vand.u32 %v5998, 4294901760
        %6007 = vmatpush.msra.mxu0 %v6006
        %v6008 = vand.u32 %v5994, 4294901760
        %6009 = vmatpush.msra.mxu0 %v6008
        %v6010 = vand.u32 %v5990, 4294901760
        %6011 = vmatpush.msra.mxu0 %v6010
        %v6012 = vand.u32 %v5986, 4294901760
        %6013 = vmatpush.msra.mxu0 %v6012
        %v6014 = vand.u32 %v5982, 4294901760
        %6015 = vmatpush.msra.mxu0 %v6014
        %v6016 = vand.u32 %v5978, 4294901760
        %6017 = vmatpush.msra.mxu0 %v6016
        %v6018 = vand.u32 %v5974, 4294901760
        %6019 = vmatpush.msra.mxu0 %v6018
        %v6020 = vand.u32 %v5970, 4294901760
        %6021 = vmatpush.msra.mxu0 %v6020
        %v6022 = vand.u32 %v5966, 4294901760
        %6023 = vmatpush.msra.mxu0 %v6022
        %v6024 = vand.u32 %v5962, 4294901760
        %6025 = vmatpush.msra.mxu0 %v6024
        %v6026 = vand.u32 %v5958, 4294901760
        %6027 = vmatpush.msra.mxu0 %v6026
        %v6028 = vand.u32 %v5954, 4294901760
        %6029 = vmatpush.msra.mxu0 %v6028
        %v6030 = vand.u32 %v5950, 4294901760
        %6031 = vmatpush.msra.mxu0 %v6030
        %v6032 = vand.u32 %v5946, 4294901760
        %6033 = vmatpush.msra.mxu0 %v6032
        %v6034 = vand.u32 %v5942, 4294901760
        %6035 = vmatpush.msra.mxu0 %v6034
        %v6036 = vand.u32 %v385, 4294901760
        %v6037 = vsub.f32 %v385, %v6036
        %v6038 = vand.u32 %v6037, 4294901760
        %v6039 = vsub.f32 %v6037, %v6038
        %v6040 = vand.u32 %v6039, 4294901760
        %6041 = vmatmul.f32.gmra.mxu0 %v6040
        %v6042 = vpop.f32.mrf.mxu0
        %v6043 = vadd.f32 0.0, %v6042
        %v6044 = vand.u32 %v386, 4294901760
        %v6045 = vsub.f32 %v386, %v6044
        %v6046 = vand.u32 %v6045, 4294901760
        %v6047 = vsub.f32 %v6045, %v6046
        %v6048 = vand.u32 %v6047, 4294901760
        %6049 = vmatmul.f32.gmra.mxu0 %v6048
        %v6050 = vpop.f32.mrf.mxu0
        %v6051 = vadd.f32 0.0, %v6050
        %v6052 = vand.u32 %v387, 4294901760
        %v6053 = vsub.f32 %v387, %v6052
        %v6054 = vand.u32 %v6053, 4294901760
        %v6055 = vsub.f32 %v6053, %v6054
        %v6056 = vand.u32 %v6055, 4294901760
        %6057 = vmatmul.f32.gmra.mxu0 %v6056
        %v6058 = vpop.f32.mrf.mxu0
        %v6059 = vadd.f32 0.0, %v6058
        %v6060 = vand.u32 %v388, 4294901760
        %v6061 = vsub.f32 %v388, %v6060
        %v6062 = vand.u32 %v6061, 4294901760
        %v6063 = vsub.f32 %v6061, %v6062
        %v6064 = vand.u32 %v6063, 4294901760
        %6065 = vmatmul.f32.gmra.mxu0 %v6064
        %v6066 = vpop.f32.mrf.mxu0
        %v6067 = vadd.f32 0.0, %v6066
        %6068 = vdwg.mxu0
        %v6069 = vand.u32 %v6002, 4294901760
        %v6070 = vsub.f32 %v6002, %v6069
        %v6071 = vand.u32 %v6070, 4294901760
        %v6072 = vsub.f32 %v6070, %v6071
        %v6073 = vand.u32 %v6072, 4294901760
        %6074 = vmatpush.msra.mxu0 %v6073
        %v6075 = vand.u32 %v5998, 4294901760
        %v6076 = vsub.f32 %v5998, %v6075
        %v6077 = vand.u32 %v6076, 4294901760
        %v6078 = vsub.f32 %v6076, %v6077
        %v6079 = vand.u32 %v6078, 4294901760
        %6080 = vmatpush.msra.mxu0 %v6079
        %v6081 = vand.u32 %v5994, 4294901760
        %v6082 = vsub.f32 %v5994, %v6081
        %v6083 = vand.u32 %v6082, 4294901760
        %v6084 = vsub.f32 %v6082, %v6083
        %v6085 = vand.u32 %v6084, 4294901760
        %6086 = vmatpush.msra.mxu0 %v6085
        %v6087 = vand.u32 %v5990, 4294901760
        %v6088 = vsub.f32 %v5990, %v6087
        %v6089 = vand.u32 %v6088, 4294901760
        %v6090 = vsub.f32 %v6088, %v6089
        %v6091 = vand.u32 %v6090, 4294901760
        %6092 = vmatpush.msra.mxu0 %v6091
        %v6093 = vand.u32 %v5986, 4294901760
        %v6094 = vsub.f32 %v5986, %v6093
        %v6095 = vand.u32 %v6094, 4294901760
        %v6096 = vsub.f32 %v6094, %v6095
        %v6097 = vand.u32 %v6096, 4294901760
        %6098 = vmatpush.msra.mxu0 %v6097
        %v6099 = vand.u32 %v5982, 4294901760
        %v6100 = vsub.f32 %v5982, %v6099
        %v6101 = vand.u32 %v6100, 4294901760
        %v6102 = vsub.f32 %v6100, %v6101
        %v6103 = vand.u32 %v6102, 4294901760
        %6104 = vmatpush.msra.mxu0 %v6103
        %v6105 = vand.u32 %v5978, 4294901760
        %v6106 = vsub.f32 %v5978, %v6105
        %v6107 = vand.u32 %v6106, 4294901760
        %v6108 = vsub.f32 %v6106, %v6107
        %v6109 = vand.u32 %v6108, 4294901760
        %6110 = vmatpush.msra.mxu0 %v6109
        %v6111 = vand.u32 %v5974, 4294901760
        %v6112 = vsub.f32 %v5974, %v6111
        %v6113 = vand.u32 %v6112, 4294901760
        %v6114 = vsub.f32 %v6112, %v6113
        %v6115 = vand.u32 %v6114, 4294901760
        %6116 = vmatpush.msra.mxu0 %v6115
        %v6117 = vand.u32 %v5970, 4294901760
        %v6118 = vsub.f32 %v5970, %v6117
        %v6119 = vand.u32 %v6118, 4294901760
        %v6120 = vsub.f32 %v6118, %v6119
        %v6121 = vand.u32 %v6120, 4294901760
        %6122 = vmatpush.msra.mxu0 %v6121
        %v6123 = vand.u32 %v5966, 4294901760
        %v6124 = vsub.f32 %v5966, %v6123
        %v6125 = vand.u32 %v6124, 4294901760
        %v6126 = vsub.f32 %v6124, %v6125
        %v6127 = vand.u32 %v6126, 4294901760
        %6128 = vmatpush.msra.mxu0 %v6127
        %v6129 = vand.u32 %v5962, 4294901760
        %v6130 = vsub.f32 %v5962, %v6129
        %v6131 = vand.u32 %v6130, 4294901760
        %v6132 = vsub.f32 %v6130, %v6131
        %v6133 = vand.u32 %v6132, 4294901760
        %6134 = vmatpush.msra.mxu0 %v6133
        %v6135 = vand.u32 %v5958, 4294901760
        %v6136 = vsub.f32 %v5958, %v6135
        %v6137 = vand.u32 %v6136, 4294901760
        %v6138 = vsub.f32 %v6136, %v6137
        %v6139 = vand.u32 %v6138, 4294901760
        %6140 = vmatpush.msra.mxu0 %v6139
        %v6141 = vand.u32 %v5954, 4294901760
        %v6142 = vsub.f32 %v5954, %v6141
        %v6143 = vand.u32 %v6142, 4294901760
        %v6144 = vsub.f32 %v6142, %v6143
        %v6145 = vand.u32 %v6144, 4294901760
        %6146 = vmatpush.msra.mxu0 %v6145
        %v6147 = vand.u32 %v5950, 4294901760
        %v6148 = vsub.f32 %v5950, %v6147
        %v6149 = vand.u32 %v6148, 4294901760
        %v6150 = vsub.f32 %v6148, %v6149
        %v6151 = vand.u32 %v6150, 4294901760
        %6152 = vmatpush.msra.mxu0 %v6151
        %v6153 = vand.u32 %v5946, 4294901760
        %v6154 = vsub.f32 %v5946, %v6153
        %v6155 = vand.u32 %v6154, 4294901760
        %v6156 = vsub.f32 %v6154, %v6155
        %v6157 = vand.u32 %v6156, 4294901760
        %6158 = vmatpush.msra.mxu0 %v6157
        %v6159 = vand.u32 %v5942, 4294901760
        %v6160 = vsub.f32 %v5942, %v6159
        %v6161 = vand.u32 %v6160, 4294901760
        %v6162 = vsub.f32 %v6160, %v6161
        %v6163 = vand.u32 %v6162, 4294901760
        %6164 = vmatpush.msra.mxu0 %v6163
        %v6165 = vand.u32 %v385, 4294901760
        %6166 = vmatmul.f32.gmra.mxu0 %v6165
        %v6167 = vpop.f32.mrf.mxu0
        %v6168 = vadd.f32 %v6043, %v6167
        %v6169 = vand.u32 %v386, 4294901760
        %6170 = vmatmul.f32.gmra.mxu0 %v6169
        %v6171 = vpop.f32.mrf.mxu0
        %v6172 = vadd.f32 %v6051, %v6171
        %v6173 = vand.u32 %v387, 4294901760
        %6174 = vmatmul.f32.gmra.mxu0 %v6173
        %v6175 = vpop.f32.mrf.mxu0
        %v6176 = vadd.f32 %v6059, %v6175
        %v6177 = vand.u32 %v388, 4294901760
        %6178 = vmatmul.f32.gmra.mxu0 %v6177
        %v6179 = vpop.f32.mrf.mxu0
        %v6180 = vadd.f32 %v6067, %v6179
        %6181 = vdwg.mxu0
        %v6182 = vand.u32 %v6002, 4294901760
        %v6183 = vsub.f32 %v6002, %v6182
        %6184 = vmatpush.msra.mxu0 %v6183
        %v6185 = vand.u32 %v5998, 4294901760
        %v6186 = vsub.f32 %v5998, %v6185
        %6187 = vmatpush.msra.mxu0 %v6186
        %v6188 = vand.u32 %v5994, 4294901760
        %v6189 = vsub.f32 %v5994, %v6188
        %6190 = vmatpush.msra.mxu0 %v6189
        %v6191 = vand.u32 %v5990, 4294901760
        %v6192 = vsub.f32 %v5990, %v6191
        %6193 = vmatpush.msra.mxu0 %v6192
        %v6194 = vand.u32 %v5986, 4294901760
        %v6195 = vsub.f32 %v5986, %v6194
        %6196 = vmatpush.msra.mxu0 %v6195
        %v6197 = vand.u32 %v5982, 4294901760
        %v6198 = vsub.f32 %v5982, %v6197
        %6199 = vmatpush.msra.mxu0 %v6198
        %v6200 = vand.u32 %v5978, 4294901760
        %v6201 = vsub.f32 %v5978, %v6200
        %6202 = vmatpush.msra.mxu0 %v6201
        %v6203 = vand.u32 %v5974, 4294901760
        %v6204 = vsub.f32 %v5974, %v6203
        %6205 = vmatpush.msra.mxu0 %v6204
        %v6206 = vand.u32 %v5970, 4294901760
        %v6207 = vsub.f32 %v5970, %v6206
        %6208 = vmatpush.msra.mxu0 %v6207
        %v6209 = vand.u32 %v5966, 4294901760
        %v6210 = vsub.f32 %v5966, %v6209
        %6211 = vmatpush.msra.mxu0 %v6210
        %v6212 = vand.u32 %v5962, 4294901760
        %v6213 = vsub.f32 %v5962, %v6212
        %6214 = vmatpush.msra.mxu0 %v6213
        %v6215 = vand.u32 %v5958, 4294901760
        %v6216 = vsub.f32 %v5958, %v6215
        %6217 = vmatpush.msra.mxu0 %v6216
        %v6218 = vand.u32 %v5954, 4294901760
        %v6219 = vsub.f32 %v5954, %v6218
        %6220 = vmatpush.msra.mxu0 %v6219
        %v6221 = vand.u32 %v5950, 4294901760
        %v6222 = vsub.f32 %v5950, %v6221
        %6223 = vmatpush.msra.mxu0 %v6222
        %v6224 = vand.u32 %v5946, 4294901760
        %v6225 = vsub.f32 %v5946, %v6224
        %6226 = vmatpush.msra.mxu0 %v6225
        %v6227 = vand.u32 %v5942, 4294901760
        %v6228 = vsub.f32 %v5942, %v6227
        %6229 = vmatpush.msra.mxu0 %v6228
        %v6230 = vand.u32 %v385, 4294901760
        %v6231 = vsub.f32 %v385, %v6230
        %6232 = vmatmul.f32.gmra.mxu0 %v6231
        %v6233 = vpop.f32.mrf.mxu0
        %v6234 = vadd.f32 %v6168, %v6233
        %v6235 = vand.u32 %v386, 4294901760
        %v6236 = vsub.f32 %v386, %v6235
        %6237 = vmatmul.f32.gmra.mxu0 %v6236
        %v6238 = vpop.f32.mrf.mxu0
        %v6239 = vadd.f32 %v6172, %v6238
        %v6240 = vand.u32 %v387, 4294901760
        %v6241 = vsub.f32 %v387, %v6240
        %6242 = vmatmul.f32.gmra.mxu0 %v6241
        %v6243 = vpop.f32.mrf.mxu0
        %v6244 = vadd.f32 %v6176, %v6243
        %v6245 = vand.u32 %v388, 4294901760
        %v6246 = vsub.f32 %v388, %v6245
        %6247 = vmatmul.f32.gmra.mxu0 %v6246
        %v6248 = vpop.f32.mrf.mxu0
        %v6249 = vadd.f32 %v6180, %v6248
        %6250 = vdwg.mxu0
        %v6251 = vand.u32 %v6002, 4294901760
        %6252 = vmatpush.msra.mxu0 %v6251
        %v6253 = vand.u32 %v5998, 4294901760
        %6254 = vmatpush.msra.mxu0 %v6253
        %v6255 = vand.u32 %v5994, 4294901760
        %6256 = vmatpush.msra.mxu0 %v6255
        %v6257 = vand.u32 %v5990, 4294901760
        %6258 = vmatpush.msra.mxu0 %v6257
        %v6259 = vand.u32 %v5986, 4294901760
        %6260 = vmatpush.msra.mxu0 %v6259
        %v6261 = vand.u32 %v5982, 4294901760
        %6262 = vmatpush.msra.mxu0 %v6261
        %v6263 = vand.u32 %v5978, 4294901760
        %6264 = vmatpush.msra.mxu0 %v6263
        %v6265 = vand.u32 %v5974, 4294901760
        %6266 = vmatpush.msra.mxu0 %v6265
        %v6267 = vand.u32 %v5970, 4294901760
        %6268 = vmatpush.msra.mxu0 %v6267
        %v6269 = vand.u32 %v5966, 4294901760
        %6270 = vmatpush.msra.mxu0 %v6269
        %v6271 = vand.u32 %v5962, 4294901760
        %6272 = vmatpush.msra.mxu0 %v6271
        %v6273 = vand.u32 %v5958, 4294901760
        %6274 = vmatpush.msra.mxu0 %v6273
        %v6275 = vand.u32 %v5954, 4294901760
        %6276 = vmatpush.msra.mxu0 %v6275
        %v6277 = vand.u32 %v5950, 4294901760
        %6278 = vmatpush.msra.mxu0 %v6277
        %v6279 = vand.u32 %v5946, 4294901760
        %6280 = vmatpush.msra.mxu0 %v6279
        %v6281 = vand.u32 %v5942, 4294901760
        %6282 = vmatpush.msra.mxu0 %v6281
        %v6283 = vand.u32 %v385, 4294901760
        %v6284 = vsub.f32 %v385, %v6283
        %v6285 = vand.u32 %v6284, 4294901760
        %6286 = vmatmul.f32.gmra.mxu0 %v6285
        %v6287 = vpop.f32.mrf.mxu0
        %v6288 = vadd.f32 %v6234, %v6287
        %v6289 = vand.u32 %v386, 4294901760
        %v6290 = vsub.f32 %v386, %v6289
        %v6291 = vand.u32 %v6290, 4294901760
        %6292 = vmatmul.f32.gmra.mxu0 %v6291
        %v6293 = vpop.f32.mrf.mxu0
        %v6294 = vadd.f32 %v6239, %v6293
        %v6295 = vand.u32 %v387, 4294901760
        %v6296 = vsub.f32 %v387, %v6295
        %v6297 = vand.u32 %v6296, 4294901760
        %6298 = vmatmul.f32.gmra.mxu0 %v6297
        %v6299 = vpop.f32.mrf.mxu0
        %v6300 = vadd.f32 %v6244, %v6299
        %v6301 = vand.u32 %v388, 4294901760
        %v6302 = vsub.f32 %v388, %v6301
        %v6303 = vand.u32 %v6302, 4294901760
        %6304 = vmatmul.f32.gmra.mxu0 %v6303
        %v6305 = vpop.f32.mrf.mxu0
        %v6306 = vadd.f32 %v6249, %v6305
        %6307 = vdwg.mxu0
        %v6308 = vand.u32 %v6002, 4294901760
        %v6309 = vsub.f32 %v6002, %v6308
        %v6310 = vand.u32 %v6309, 4294901760
        %6311 = vmatpush.msra.mxu0 %v6310
        %v6312 = vand.u32 %v5998, 4294901760
        %v6313 = vsub.f32 %v5998, %v6312
        %v6314 = vand.u32 %v6313, 4294901760
        %6315 = vmatpush.msra.mxu0 %v6314
        %v6316 = vand.u32 %v5994, 4294901760
        %v6317 = vsub.f32 %v5994, %v6316
        %v6318 = vand.u32 %v6317, 4294901760
        %6319 = vmatpush.msra.mxu0 %v6318
        %v6320 = vand.u32 %v5990, 4294901760
        %v6321 = vsub.f32 %v5990, %v6320
        %v6322 = vand.u32 %v6321, 4294901760
        %6323 = vmatpush.msra.mxu0 %v6322
        %v6324 = vand.u32 %v5986, 4294901760
        %v6325 = vsub.f32 %v5986, %v6324
        %v6326 = vand.u32 %v6325, 4294901760
        %6327 = vmatpush.msra.mxu0 %v6326
        %v6328 = vand.u32 %v5982, 4294901760
        %v6329 = vsub.f32 %v5982, %v6328
        %v6330 = vand.u32 %v6329, 4294901760
        %6331 = vmatpush.msra.mxu0 %v6330
        %v6332 = vand.u32 %v5978, 4294901760
        %v6333 = vsub.f32 %v5978, %v6332
        %v6334 = vand.u32 %v6333, 4294901760
        %6335 = vmatpush.msra.mxu0 %v6334
        %v6336 = vand.u32 %v5974, 4294901760
        %v6337 = vsub.f32 %v5974, %v6336
        %v6338 = vand.u32 %v6337, 4294901760
        %6339 = vmatpush.msra.mxu0 %v6338
        %v6340 = vand.u32 %v5970, 4294901760
        %v6341 = vsub.f32 %v5970, %v6340
        %v6342 = vand.u32 %v6341, 4294901760
        %6343 = vmatpush.msra.mxu0 %v6342
        %v6344 = vand.u32 %v5966, 4294901760
        %v6345 = vsub.f32 %v5966, %v6344
        %v6346 = vand.u32 %v6345, 4294901760
        %6347 = vmatpush.msra.mxu0 %v6346
        %v6348 = vand.u32 %v5962, 4294901760
        %v6349 = vsub.f32 %v5962, %v6348
        %v6350 = vand.u32 %v6349, 4294901760
        %6351 = vmatpush.msra.mxu0 %v6350
        %v6352 = vand.u32 %v5958, 4294901760
        %v6353 = vsub.f32 %v5958, %v6352
        %v6354 = vand.u32 %v6353, 4294901760
        %6355 = vmatpush.msra.mxu0 %v6354
        %v6356 = vand.u32 %v5954, 4294901760
        %v6357 = vsub.f32 %v5954, %v6356
        %v6358 = vand.u32 %v6357, 4294901760
        %6359 = vmatpush.msra.mxu0 %v6358
        %v6360 = vand.u32 %v5950, 4294901760
        %v6361 = vsub.f32 %v5950, %v6360
        %v6362 = vand.u32 %v6361, 4294901760
        %6363 = vmatpush.msra.mxu0 %v6362
        %v6364 = vand.u32 %v5946, 4294901760
        %v6365 = vsub.f32 %v5946, %v6364
        %v6366 = vand.u32 %v6365, 4294901760
        %6367 = vmatpush.msra.mxu0 %v6366
        %v6368 = vand.u32 %v5942, 4294901760
        %v6369 = vsub.f32 %v5942, %v6368
        %v6370 = vand.u32 %v6369, 4294901760
        %6371 = vmatpush.msra.mxu0 %v6370
        %v6372 = vand.u32 %v385, 4294901760
        %6373 = vmatmul.f32.gmra.mxu0 %v6372
        %v6374 = vpop.f32.mrf.mxu0
        %v6375 = vadd.f32 %v6288, %v6374
        %v6376 = vand.u32 %v386, 4294901760
        %6377 = vmatmul.f32.gmra.mxu0 %v6376
        %v6378 = vpop.f32.mrf.mxu0
        %v6379 = vadd.f32 %v6294, %v6378
        %v6380 = vand.u32 %v387, 4294901760
        %6381 = vmatmul.f32.gmra.mxu0 %v6380
        %v6382 = vpop.f32.mrf.mxu0
        %v6383 = vadd.f32 %v6300, %v6382
        %v6384 = vand.u32 %v388, 4294901760
        %6385 = vmatmul.f32.gmra.mxu0 %v6384
        %v6386 = vpop.f32.mrf.mxu0
        %v6387 = vadd.f32 %v6306, %v6386
        %6388 = vdwg.mxu0
        %v6389 = vand.u32 %v6002, 4294901760
        %6390 = vmatpush.msra.mxu0 %v6389
        %v6391 = vand.u32 %v5998, 4294901760
        %6392 = vmatpush.msra.mxu0 %v6391
        %v6393 = vand.u32 %v5994, 4294901760
        %6394 = vmatpush.msra.mxu0 %v6393
        %v6395 = vand.u32 %v5990, 4294901760
        %6396 = vmatpush.msra.mxu0 %v6395
        %v6397 = vand.u32 %v5986, 4294901760
        %6398 = vmatpush.msra.mxu0 %v6397
        %v6399 = vand.u32 %v5982, 4294901760
        %6400 = vmatpush.msra.mxu0 %v6399
        %v6401 = vand.u32 %v5978, 4294901760
        %6402 = vmatpush.msra.mxu0 %v6401
        %v6403 = vand.u32 %v5974, 4294901760
        %6404 = vmatpush.msra.mxu0 %v6403
        %v6405 = vand.u32 %v5970, 4294901760
        %6406 = vmatpush.msra.mxu0 %v6405
        %v6407 = vand.u32 %v5966, 4294901760
        %6408 = vmatpush.msra.mxu0 %v6407
        %v6409 = vand.u32 %v5962, 4294901760
        %6410 = vmatpush.msra.mxu0 %v6409
        %v6411 = vand.u32 %v5958, 4294901760
        %6412 = vmatpush.msra.mxu0 %v6411
        %v6413 = vand.u32 %v5954, 4294901760
        %6414 = vmatpush.msra.mxu0 %v6413
        %v6415 = vand.u32 %v5950, 4294901760
        %6416 = vmatpush.msra.mxu0 %v6415
        %v6417 = vand.u32 %v5946, 4294901760
        %6418 = vmatpush.msra.mxu0 %v6417
        %v6419 = vand.u32 %v5942, 4294901760
        %6420 = vmatpush.msra.mxu0 %v6419
        %v6421 = vand.u32 %v385, 4294901760
        %6422 = vmatmul.f32.gmra.mxu0 %v6421
        %v6423 = vpop.f32.mrf.mxu0
        %v6424 = vadd.f32 %v6375, %v6423
        %v6425 = vand.u32 %v386, 4294901760
        %6426 = vmatmul.f32.gmra.mxu0 %v6425
        %v6427 = vpop.f32.mrf.mxu0
        %v6428 = vadd.f32 %v6379, %v6427
        %v6429 = vand.u32 %v387, 4294901760
        %6430 = vmatmul.f32.gmra.mxu0 %v6429
        %v6431 = vpop.f32.mrf.mxu0
        %v6432 = vadd.f32 %v6383, %v6431
        %v6433 = vand.u32 %v388, 4294901760
        %6434 = vmatmul.f32.gmra.mxu0 %v6433
        %v6435 = vpop.f32.mrf.mxu0
        %v6436 = vadd.f32 %v6387, %v6435
        %6437 = vdwg.mxu0
        %v6438 = vand.u32 %v6002, 4294901760
        %6439 = vmatpush.msra.mxu0 %v6438
        %v6440 = vand.u32 %v5998, 4294901760
        %6441 = vmatpush.msra.mxu0 %v6440
        %v6442 = vand.u32 %v5994, 4294901760
        %6443 = vmatpush.msra.mxu0 %v6442
        %v6444 = vand.u32 %v5990, 4294901760
        %6445 = vmatpush.msra.mxu0 %v6444
        %v6446 = vand.u32 %v5986, 4294901760
        %6447 = vmatpush.msra.mxu0 %v6446
        %v6448 = vand.u32 %v5982, 4294901760
        %6449 = vmatpush.msra.mxu0 %v6448
        %v6450 = vand.u32 %v5978, 4294901760
        %6451 = vmatpush.msra.mxu0 %v6450
        %v6452 = vand.u32 %v5974, 4294901760
        %6453 = vmatpush.msra.mxu0 %v6452
        %v6454 = vand.u32 %v5970, 4294901760
        %6455 = vmatpush.msra.mxu0 %v6454
        %v6456 = vand.u32 %v5966, 4294901760
        %6457 = vmatpush.msra.mxu0 %v6456
        %v6458 = vand.u32 %v5962, 4294901760
        %6459 = vmatpush.msra.mxu0 %v6458
        %v6460 = vand.u32 %v5958, 4294901760
        %6461 = vmatpush.msra.mxu0 %v6460
        %v6462 = vand.u32 %v5954, 4294901760
        %6463 = vmatpush.msra.mxu0 %v6462
        %v6464 = vand.u32 %v5950, 4294901760
        %6465 = vmatpush.msra.mxu0 %v6464
        %v6466 = vand.u32 %v5946, 4294901760
        %6467 = vmatpush.msra.mxu0 %v6466
        %v6468 = vand.u32 %v5942, 4294901760
        %6469 = vmatpush.msra.mxu0 %v6468
        %v6470 = vand.u32 %v389, 4294901760
        %v6471 = vsub.f32 %v389, %v6470
        %v6472 = vand.u32 %v6471, 4294901760
        %v6473 = vsub.f32 %v6471, %v6472
        %v6474 = vand.u32 %v6473, 4294901760
        %6475 = vmatmul.f32.gmra.mxu0 %v6474
        %v6476 = vpop.f32.mrf.mxu0
        %v6477 = vadd.f32 0.0, %v6476
        %v6478 = vand.u32 %v390, 4294901760
        %v6479 = vsub.f32 %v390, %v6478
        %v6480 = vand.u32 %v6479, 4294901760
        %v6481 = vsub.f32 %v6479, %v6480
        %v6482 = vand.u32 %v6481, 4294901760
        %6483 = vmatmul.f32.gmra.mxu0 %v6482
        %v6484 = vpop.f32.mrf.mxu0
        %v6485 = vadd.f32 0.0, %v6484
        %v6486 = vand.u32 %v391, 4294901760
        %v6487 = vsub.f32 %v391, %v6486
        %v6488 = vand.u32 %v6487, 4294901760
        %v6489 = vsub.f32 %v6487, %v6488
        %v6490 = vand.u32 %v6489, 4294901760
        %6491 = vmatmul.f32.gmra.mxu0 %v6490
        %v6492 = vpop.f32.mrf.mxu0
        %v6493 = vadd.f32 0.0, %v6492
        %v6494 = vand.u32 %v392, 4294901760
        %v6495 = vsub.f32 %v392, %v6494
        %v6496 = vand.u32 %v6495, 4294901760
        %v6497 = vsub.f32 %v6495, %v6496
        %v6498 = vand.u32 %v6497, 4294901760
        %6499 = vmatmul.f32.gmra.mxu0 %v6498
        %v6500 = vpop.f32.mrf.mxu0
        %v6501 = vadd.f32 0.0, %v6500
        %6502 = vdwg.mxu0
        %v6503 = vand.u32 %v6002, 4294901760
        %v6504 = vsub.f32 %v6002, %v6503
        %v6505 = vand.u32 %v6504, 4294901760
        %v6506 = vsub.f32 %v6504, %v6505
        %v6507 = vand.u32 %v6506, 4294901760
        %6508 = vmatpush.msra.mxu0 %v6507
        %v6509 = vand.u32 %v5998, 4294901760
        %v6510 = vsub.f32 %v5998, %v6509
        %v6511 = vand.u32 %v6510, 4294901760
        %v6512 = vsub.f32 %v6510, %v6511
        %v6513 = vand.u32 %v6512, 4294901760
        %6514 = vmatpush.msra.mxu0 %v6513
        %v6515 = vand.u32 %v5994, 4294901760
        %v6516 = vsub.f32 %v5994, %v6515
        %v6517 = vand.u32 %v6516, 4294901760
        %v6518 = vsub.f32 %v6516, %v6517
        %v6519 = vand.u32 %v6518, 4294901760
        %6520 = vmatpush.msra.mxu0 %v6519
        %v6521 = vand.u32 %v5990, 4294901760
        %v6522 = vsub.f32 %v5990, %v6521
        %v6523 = vand.u32 %v6522, 4294901760
        %v6524 = vsub.f32 %v6522, %v6523
        %v6525 = vand.u32 %v6524, 4294901760
        %6526 = vmatpush.msra.mxu0 %v6525
        %v6527 = vand.u32 %v5986, 4294901760
        %v6528 = vsub.f32 %v5986, %v6527
        %v6529 = vand.u32 %v6528, 4294901760
        %v6530 = vsub.f32 %v6528, %v6529
        %v6531 = vand.u32 %v6530, 4294901760
        %6532 = vmatpush.msra.mxu0 %v6531
        %v6533 = vand.u32 %v5982, 4294901760
        %v6534 = vsub.f32 %v5982, %v6533
        %v6535 = vand.u32 %v6534, 4294901760
        %v6536 = vsub.f32 %v6534, %v6535
        %v6537 = vand.u32 %v6536, 4294901760
        %6538 = vmatpush.msra.mxu0 %v6537
        %v6539 = vand.u32 %v5978, 4294901760
        %v6540 = vsub.f32 %v5978, %v6539
        %v6541 = vand.u32 %v6540, 4294901760
        %v6542 = vsub.f32 %v6540, %v6541
        %v6543 = vand.u32 %v6542, 4294901760
        %6544 = vmatpush.msra.mxu0 %v6543
        %v6545 = vand.u32 %v5974, 4294901760
        %v6546 = vsub.f32 %v5974, %v6545
        %v6547 = vand.u32 %v6546, 4294901760
        %v6548 = vsub.f32 %v6546, %v6547
        %v6549 = vand.u32 %v6548, 4294901760
        %6550 = vmatpush.msra.mxu0 %v6549
        %v6551 = vand.u32 %v5970, 4294901760
        %v6552 = vsub.f32 %v5970, %v6551
        %v6553 = vand.u32 %v6552, 4294901760
        %v6554 = vsub.f32 %v6552, %v6553
        %v6555 = vand.u32 %v6554, 4294901760
        %6556 = vmatpush.msra.mxu0 %v6555
        %v6557 = vand.u32 %v5966, 4294901760
        %v6558 = vsub.f32 %v5966, %v6557
        %v6559 = vand.u32 %v6558, 4294901760
        %v6560 = vsub.f32 %v6558, %v6559
        %v6561 = vand.u32 %v6560, 4294901760
        %6562 = vmatpush.msra.mxu0 %v6561
        %v6563 = vand.u32 %v5962, 4294901760
        %v6564 = vsub.f32 %v5962, %v6563
        %v6565 = vand.u32 %v6564, 4294901760
        %v6566 = vsub.f32 %v6564, %v6565
        %v6567 = vand.u32 %v6566, 4294901760
        %6568 = vmatpush.msra.mxu0 %v6567
        %v6569 = vand.u32 %v5958, 4294901760
        %v6570 = vsub.f32 %v5958, %v6569
        %v6571 = vand.u32 %v6570, 4294901760
        %v6572 = vsub.f32 %v6570, %v6571
        %v6573 = vand.u32 %v6572, 4294901760
        %6574 = vmatpush.msra.mxu0 %v6573
        %v6575 = vand.u32 %v5954, 4294901760
        %v6576 = vsub.f32 %v5954, %v6575
        %v6577 = vand.u32 %v6576, 4294901760
        %v6578 = vsub.f32 %v6576, %v6577
        %v6579 = vand.u32 %v6578, 4294901760
        %6580 = vmatpush.msra.mxu0 %v6579
        %v6581 = vand.u32 %v5950, 4294901760
        %v6582 = vsub.f32 %v5950, %v6581
        %v6583 = vand.u32 %v6582, 4294901760
        %v6584 = vsub.f32 %v6582, %v6583
        %v6585 = vand.u32 %v6584, 4294901760
        %6586 = vmatpush.msra.mxu0 %v6585
        %v6587 = vand.u32 %v5946, 4294901760
        %v6588 = vsub.f32 %v5946, %v6587
        %v6589 = vand.u32 %v6588, 4294901760
        %v6590 = vsub.f32 %v6588, %v6589
        %v6591 = vand.u32 %v6590, 4294901760
        %6592 = vmatpush.msra.mxu0 %v6591
        %v6593 = vand.u32 %v5942, 4294901760
        %v6594 = vsub.f32 %v5942, %v6593
        %v6595 = vand.u32 %v6594, 4294901760
        %v6596 = vsub.f32 %v6594, %v6595
        %v6597 = vand.u32 %v6596, 4294901760
        %6598 = vmatpush.msra.mxu0 %v6597
        %v6599 = vand.u32 %v389, 4294901760
        %6600 = vmatmul.f32.gmra.mxu0 %v6599
        %v6601 = vpop.f32.mrf.mxu0
        %v6602 = vadd.f32 %v6477, %v6601
        %v6603 = vand.u32 %v390, 4294901760
        %6604 = vmatmul.f32.gmra.mxu0 %v6603
        %v6605 = vpop.f32.mrf.mxu0
        %v6606 = vadd.f32 %v6485, %v6605
        %v6607 = vand.u32 %v391, 4294901760
        %6608 = vmatmul.f32.gmra.mxu0 %v6607
        %v6609 = vpop.f32.mrf.mxu0
        %v6610 = vadd.f32 %v6493, %v6609
        %v6611 = vand.u32 %v392, 4294901760
        %6612 = vmatmul.f32.gmra.mxu0 %v6611
        %v6613 = vpop.f32.mrf.mxu0
        %v6614 = vadd.f32 %v6501, %v6613
        %6615 = vdwg.mxu0
        %v6616 = vand.u32 %v6002, 4294901760
        %v6617 = vsub.f32 %v6002, %v6616
        %6618 = vmatpush.msra.mxu0 %v6617
        %v6619 = vand.u32 %v5998, 4294901760
        %v6620 = vsub.f32 %v5998, %v6619
        %6621 = vmatpush.msra.mxu0 %v6620
        %v6622 = vand.u32 %v5994, 4294901760
        %v6623 = vsub.f32 %v5994, %v6622
        %6624 = vmatpush.msra.mxu0 %v6623
        %v6625 = vand.u32 %v5990, 4294901760
        %v6626 = vsub.f32 %v5990, %v6625
        %6627 = vmatpush.msra.mxu0 %v6626
        %v6628 = vand.u32 %v5986, 4294901760
        %v6629 = vsub.f32 %v5986, %v6628
        %6630 = vmatpush.msra.mxu0 %v6629
        %v6631 = vand.u32 %v5982, 4294901760
        %v6632 = vsub.f32 %v5982, %v6631
        %6633 = vmatpush.msra.mxu0 %v6632
        %v6634 = vand.u32 %v5978, 4294901760
        %v6635 = vsub.f32 %v5978, %v6634
        %6636 = vmatpush.msra.mxu0 %v6635
        %v6637 = vand.u32 %v5974, 4294901760
        %v6638 = vsub.f32 %v5974, %v6637
        %6639 = vmatpush.msra.mxu0 %v6638
        %v6640 = vand.u32 %v5970, 4294901760
        %v6641 = vsub.f32 %v5970, %v6640
        %6642 = vmatpush.msra.mxu0 %v6641
        %v6643 = vand.u32 %v5966, 4294901760
        %v6644 = vsub.f32 %v5966, %v6643
        %6645 = vmatpush.msra.mxu0 %v6644
        %v6646 = vand.u32 %v5962, 4294901760
        %v6647 = vsub.f32 %v5962, %v6646
        %6648 = vmatpush.msra.mxu0 %v6647
        %v6649 = vand.u32 %v5958, 4294901760
        %v6650 = vsub.f32 %v5958, %v6649
        %6651 = vmatpush.msra.mxu0 %v6650
        %v6652 = vand.u32 %v5954, 4294901760
        %v6653 = vsub.f32 %v5954, %v6652
        %6654 = vmatpush.msra.mxu0 %v6653
        %v6655 = vand.u32 %v5950, 4294901760
        %v6656 = vsub.f32 %v5950, %v6655
        %6657 = vmatpush.msra.mxu0 %v6656
        %v6658 = vand.u32 %v5946, 4294901760
        %v6659 = vsub.f32 %v5946, %v6658
        %6660 = vmatpush.msra.mxu0 %v6659
        %v6661 = vand.u32 %v5942, 4294901760
        %v6662 = vsub.f32 %v5942, %v6661
        %6663 = vmatpush.msra.mxu0 %v6662
        %v6664 = vand.u32 %v389, 4294901760
        %v6665 = vsub.f32 %v389, %v6664
        %6666 = vmatmul.f32.gmra.mxu0 %v6665
        %v6667 = vpop.f32.mrf.mxu0
        %v6668 = vadd.f32 %v6602, %v6667
        %v6669 = vand.u32 %v390, 4294901760
        %v6670 = vsub.f32 %v390, %v6669
        %6671 = vmatmul.f32.gmra.mxu0 %v6670
        %v6672 = vpop.f32.mrf.mxu0
        %v6673 = vadd.f32 %v6606, %v6672
        %v6674 = vand.u32 %v391, 4294901760
        %v6675 = vsub.f32 %v391, %v6674
        %6676 = vmatmul.f32.gmra.mxu0 %v6675
        %v6677 = vpop.f32.mrf.mxu0
        %v6678 = vadd.f32 %v6610, %v6677
        %v6679 = vand.u32 %v392, 4294901760
        %v6680 = vsub.f32 %v392, %v6679
        %6681 = vmatmul.f32.gmra.mxu0 %v6680
        %v6682 = vpop.f32.mrf.mxu0
        %v6683 = vadd.f32 %v6614, %v6682
        %6684 = vdwg.mxu0
        %v6685 = vand.u32 %v6002, 4294901760
        %6686 = vmatpush.msra.mxu0 %v6685
        %v6687 = vand.u32 %v5998, 4294901760
        %6688 = vmatpush.msra.mxu0 %v6687
        %v6689 = vand.u32 %v5994, 4294901760
        %6690 = vmatpush.msra.mxu0 %v6689
        %v6691 = vand.u32 %v5990, 4294901760
        %6692 = vmatpush.msra.mxu0 %v6691
        %v6693 = vand.u32 %v5986, 4294901760
        %6694 = vmatpush.msra.mxu0 %v6693
        %v6695 = vand.u32 %v5982, 4294901760
        %6696 = vmatpush.msra.mxu0 %v6695
        %v6697 = vand.u32 %v5978, 4294901760
        %6698 = vmatpush.msra.mxu0 %v6697
        %v6699 = vand.u32 %v5974, 4294901760
        %6700 = vmatpush.msra.mxu0 %v6699
        %v6701 = vand.u32 %v5970, 4294901760
        %6702 = vmatpush.msra.mxu0 %v6701
        %v6703 = vand.u32 %v5966, 4294901760
        %6704 = vmatpush.msra.mxu0 %v6703
        %v6705 = vand.u32 %v5962, 4294901760
        %6706 = vmatpush.msra.mxu0 %v6705
        %v6707 = vand.u32 %v5958, 4294901760
        %6708 = vmatpush.msra.mxu0 %v6707
        %v6709 = vand.u32 %v5954, 4294901760
        %6710 = vmatpush.msra.mxu0 %v6709
        %v6711 = vand.u32 %v5950, 4294901760
        %6712 = vmatpush.msra.mxu0 %v6711
        %v6713 = vand.u32 %v5946, 4294901760
        %6714 = vmatpush.msra.mxu0 %v6713
        %v6715 = vand.u32 %v5942, 4294901760
        %6716 = vmatpush.msra.mxu0 %v6715
        %v6717 = vand.u32 %v389, 4294901760
        %v6718 = vsub.f32 %v389, %v6717
        %v6719 = vand.u32 %v6718, 4294901760
        %6720 = vmatmul.f32.gmra.mxu0 %v6719
        %v6721 = vpop.f32.mrf.mxu0
        %v6722 = vadd.f32 %v6668, %v6721
        %v6723 = vand.u32 %v390, 4294901760
        %v6724 = vsub.f32 %v390, %v6723
        %v6725 = vand.u32 %v6724, 4294901760
        %6726 = vmatmul.f32.gmra.mxu0 %v6725
        %v6727 = vpop.f32.mrf.mxu0
        %v6728 = vadd.f32 %v6673, %v6727
        %v6729 = vand.u32 %v391, 4294901760
        %v6730 = vsub.f32 %v391, %v6729
        %v6731 = vand.u32 %v6730, 4294901760
        %6732 = vmatmul.f32.gmra.mxu0 %v6731
        %v6733 = vpop.f32.mrf.mxu0
        %v6734 = vadd.f32 %v6678, %v6733
        %v6735 = vand.u32 %v392, 4294901760
        %v6736 = vsub.f32 %v392, %v6735
        %v6737 = vand.u32 %v6736, 4294901760
        %6738 = vmatmul.f32.gmra.mxu0 %v6737
        %v6739 = vpop.f32.mrf.mxu0
        %v6740 = vadd.f32 %v6683, %v6739
        %6741 = vdwg.mxu0
        %v6742 = vand.u32 %v6002, 4294901760
        %v6743 = vsub.f32 %v6002, %v6742
        %v6744 = vand.u32 %v6743, 4294901760
        %6745 = vmatpush.msra.mxu0 %v6744
        %v6746 = vand.u32 %v5998, 4294901760
        %v6747 = vsub.f32 %v5998, %v6746
        %v6748 = vand.u32 %v6747, 4294901760
        %6749 = vmatpush.msra.mxu0 %v6748
        %v6750 = vand.u32 %v5994, 4294901760
        %v6751 = vsub.f32 %v5994, %v6750
        %v6752 = vand.u32 %v6751, 4294901760
        %6753 = vmatpush.msra.mxu0 %v6752
        %v6754 = vand.u32 %v5990, 4294901760
        %v6755 = vsub.f32 %v5990, %v6754
        %v6756 = vand.u32 %v6755, 4294901760
        %6757 = vmatpush.msra.mxu0 %v6756
        %v6758 = vand.u32 %v5986, 4294901760
        %v6759 = vsub.f32 %v5986, %v6758
        %v6760 = vand.u32 %v6759, 4294901760
        %6761 = vmatpush.msra.mxu0 %v6760
        %v6762 = vand.u32 %v5982, 4294901760
        %v6763 = vsub.f32 %v5982, %v6762
        %v6764 = vand.u32 %v6763, 4294901760
        %6765 = vmatpush.msra.mxu0 %v6764
        %v6766 = vand.u32 %v5978, 4294901760
        %v6767 = vsub.f32 %v5978, %v6766
        %v6768 = vand.u32 %v6767, 4294901760
        %6769 = vmatpush.msra.mxu0 %v6768
        %v6770 = vand.u32 %v5974, 4294901760
        %v6771 = vsub.f32 %v5974, %v6770
        %v6772 = vand.u32 %v6771, 4294901760
        %6773 = vmatpush.msra.mxu0 %v6772
        %v6774 = vand.u32 %v5970, 4294901760
        %v6775 = vsub.f32 %v5970, %v6774
        %v6776 = vand.u32 %v6775, 4294901760
        %6777 = vmatpush.msra.mxu0 %v6776
        %v6778 = vand.u32 %v5966, 4294901760
        %v6779 = vsub.f32 %v5966, %v6778
        %v6780 = vand.u32 %v6779, 4294901760
        %6781 = vmatpush.msra.mxu0 %v6780
        %v6782 = vand.u32 %v5962, 4294901760
        %v6783 = vsub.f32 %v5962, %v6782
        %v6784 = vand.u32 %v6783, 4294901760
        %6785 = vmatpush.msra.mxu0 %v6784
        %v6786 = vand.u32 %v5958, 4294901760
        %v6787 = vsub.f32 %v5958, %v6786
        %v6788 = vand.u32 %v6787, 4294901760
        %6789 = vmatpush.msra.mxu0 %v6788
        %v6790 = vand.u32 %v5954, 4294901760
        %v6791 = vsub.f32 %v5954, %v6790
        %v6792 = vand.u32 %v6791, 4294901760
        %6793 = vmatpush.msra.mxu0 %v6792
        %v6794 = vand.u32 %v5950, 4294901760
        %v6795 = vsub.f32 %v5950, %v6794
        %v6796 = vand.u32 %v6795, 4294901760
        %6797 = vmatpush.msra.mxu0 %v6796
        %v6798 = vand.u32 %v5946, 4294901760
        %v6799 = vsub.f32 %v5946, %v6798
        %v6800 = vand.u32 %v6799, 4294901760
        %6801 = vmatpush.msra.mxu0 %v6800
        %v6802 = vand.u32 %v5942, 4294901760
        %v6803 = vsub.f32 %v5942, %v6802
        %v6804 = vand.u32 %v6803, 4294901760
        %6805 = vmatpush.msra.mxu0 %v6804
        %v6806 = vand.u32 %v389, 4294901760
        %6807 = vmatmul.f32.gmra.mxu0 %v6806
        %v6808 = vpop.f32.mrf.mxu0
        %v6809 = vadd.f32 %v6722, %v6808
        %v6810 = vand.u32 %v390, 4294901760
        %6811 = vmatmul.f32.gmra.mxu0 %v6810
        %v6812 = vpop.f32.mrf.mxu0
        %v6813 = vadd.f32 %v6728, %v6812
        %v6814 = vand.u32 %v391, 4294901760
        %6815 = vmatmul.f32.gmra.mxu0 %v6814
        %v6816 = vpop.f32.mrf.mxu0
        %v6817 = vadd.f32 %v6734, %v6816
        %v6818 = vand.u32 %v392, 4294901760
        %6819 = vmatmul.f32.gmra.mxu0 %v6818
        %v6820 = vpop.f32.mrf.mxu0
        %v6821 = vadd.f32 %v6740, %v6820
        %6822 = vdwg.mxu0
        %v6823 = vand.u32 %v6002, 4294901760
        %6824 = vmatpush.msra.mxu0 %v6823
        %v6825 = vand.u32 %v5998, 4294901760
        %6826 = vmatpush.msra.mxu0 %v6825
        %v6827 = vand.u32 %v5994, 4294901760
        %6828 = vmatpush.msra.mxu0 %v6827
        %v6829 = vand.u32 %v5990, 4294901760
        %6830 = vmatpush.msra.mxu0 %v6829
        %v6831 = vand.u32 %v5986, 4294901760
        %6832 = vmatpush.msra.mxu0 %v6831
        %v6833 = vand.u32 %v5982, 4294901760
        %6834 = vmatpush.msra.mxu0 %v6833
        %v6835 = vand.u32 %v5978, 4294901760
        %6836 = vmatpush.msra.mxu0 %v6835
        %v6837 = vand.u32 %v5974, 4294901760
        %6838 = vmatpush.msra.mxu0 %v6837
        %v6839 = vand.u32 %v5970, 4294901760
        %6840 = vmatpush.msra.mxu0 %v6839
        %v6841 = vand.u32 %v5966, 4294901760
        %6842 = vmatpush.msra.mxu0 %v6841
        %v6843 = vand.u32 %v5962, 4294901760
        %6844 = vmatpush.msra.mxu0 %v6843
        %v6845 = vand.u32 %v5958, 4294901760
        %6846 = vmatpush.msra.mxu0 %v6845
        %v6847 = vand.u32 %v5954, 4294901760
        %6848 = vmatpush.msra.mxu0 %v6847
        %v6849 = vand.u32 %v5950, 4294901760
        %6850 = vmatpush.msra.mxu0 %v6849
        %v6851 = vand.u32 %v5946, 4294901760
        %6852 = vmatpush.msra.mxu0 %v6851
        %v6853 = vand.u32 %v5942, 4294901760
        %6854 = vmatpush.msra.mxu0 %v6853
        %v6855 = vand.u32 %v389, 4294901760
        %6856 = vmatmul.f32.gmra.mxu0 %v6855
        %v6857 = vpop.f32.mrf.mxu0
        %v6858 = vadd.f32 %v6809, %v6857
        %v6859 = vand.u32 %v390, 4294901760
        %6860 = vmatmul.f32.gmra.mxu0 %v6859
        %v6861 = vpop.f32.mrf.mxu0
        %v6862 = vadd.f32 %v6813, %v6861
        %v6863 = vand.u32 %v391, 4294901760
        %6864 = vmatmul.f32.gmra.mxu0 %v6863
        %v6865 = vpop.f32.mrf.mxu0
        %v6866 = vadd.f32 %v6817, %v6865
        %v6867 = vand.u32 %v392, 4294901760
        %6868 = vmatmul.f32.gmra.mxu0 %v6867
        %v6869 = vpop.f32.mrf.mxu0
        %v6870 = vadd.f32 %v6821, %v6869
        %6871 = vdwg.mxu0
        %v6872 = vsel %vm346, %v6858, %v6424
        %v6873 = vsel %vm346, %v6862, %v6428
        %v6874 = vsel %vm346, %v6866, %v6432
        %v6875 = vsel %vm346, %v6870, %v6436
        %v6876 = vadd.f32 %v5081, %v6872
        %v6877 = vadd.f32 %v5082, %v6873
        %v6878 = vadd.f32 %v5083, %v6874
        %v6879 = vadd.f32 %v5084, %v6875
        %v6880 = vadd.f32 %v6876, %v2578
        %v6881 = vadd.f32 %v6877, %v2578
        %v6882 = vadd.f32 %v6878, %v2578
        %v6883 = vadd.f32 %v6879, %v2578
        %s6884 = scalar_lea.vmem %s325, 64
        %6885 = vst [vmem:[%s6884] sm:$0xff] %v6880
        %6886 = vst [vmem:[%s6884 + $0x8] sm:$0xff] %v6881
        %6887 = vst [vmem:[%s6884 + $0x10] sm:$0xff] %v6882
        %6888 = vst [vmem:[%s6884 + $0x18] sm:$0xff] %v6883
        %s6889 = scalar_lea.vmem %s311, 288
        %v6890 = vld [vmem:[%s6889] sm:$0xff]
        %v6891 = vld [vmem:[%s6889 + $0x8] sm:$0xff]
        %v6892 = vld [vmem:[%s6889 + $0x10] sm:$0xff]
        %v6893 = vld [vmem:[%s6889 + $0x18] sm:$0xff]
        %s6894 = scalar_lea.vmem %s311, 320
        %v6895 = vld [vmem:[%s6894] sm:$0xff]
        %v6896 = vld [vmem:[%s6894 + $0x8] sm:$0xff]
        %v6897 = vld [vmem:[%s6894 + $0x10] sm:$0xff]
        %v6898 = vld [vmem:[%s6894 + $0x18] sm:$0xff]
        %s6899 = scalar_lea.vmem %s311, 352
        %v6900 = vld [vmem:[%s6899] sm:$0xff]
        %v6901 = vld [vmem:[%s6899 + $0x8] sm:$0xff]
        %v6902 = vld [vmem:[%s6899 + $0x10] sm:$0xff]
        %v6903 = vld [vmem:[%s6899 + $0x18] sm:$0xff]
        %v6904 = vmul.f32 %v423, %v6890
        %v6905 = vmul.f32 %v423, %v6891
        %v6906 = vmul.f32 %v423, %v6892
        %v6907 = vmul.f32 %v423, %v6893
        %v6908 = vmul.f32 %v428, %v6895
        %v6909 = vmul.f32 %v428, %v6896
        %v6910 = vmul.f32 %v428, %v6897
        %v6911 = vmul.f32 %v428, %v6898
        %v6912 = vadd.f32 %v6904, %v6908
        %v6913 = vadd.f32 %v6905, %v6909
        %v6914 = vadd.f32 %v6906, %v6910
        %v6915 = vadd.f32 %v6907, %v6911
        %v6916 = vmul.f32 %v437, %v6900
        %v6917 = vmul.f32 %v437, %v6901
        %v6918 = vmul.f32 %v437, %v6902
        %v6919 = vmul.f32 %v437, %v6903
        %v6920 = vadd.f32 %v6912, %v6916
        %v6921 = vadd.f32 %v6913, %v6917
        %v6922 = vadd.f32 %v6914, %v6918
        %v6923 = vadd.f32 %v6915, %v6919
        %6924 = vrot.lane.b32.xlu0 %v6920, 1
        %v6925 = vpop.permute.xlu0 %6924
        %6926 = vrot.lane.b32.xlu0 %v6921, 1
        %v6927 = vpop.permute.xlu0 %6926
        %6928 = vrot.lane.b32.xlu0 %v6922, 1
        %v6929 = vpop.permute.xlu0 %6928
        %6930 = vrot.lane.b32.xlu0 %v6923, 1
        %v6931 = vpop.permute.xlu0 %6930
        %v6932 = vsel %vm347, %v6925, 0.0
        %v6933 = vsel %vm347, %v6927, 0.0
        %v6934 = vsel %vm347, %v6929, 0.0
        %v6935 = vsel %vm347, %v6931, 0.0
        %v6936 = vmul.f32 %v458, %v6890
        %v6937 = vmul.f32 %v458, %v6891
        %v6938 = vmul.f32 %v458, %v6892
        %v6939 = vmul.f32 %v458, %v6893
        %v6940 = vmul.f32 %v463, %v6895
        %v6941 = vmul.f32 %v463, %v6896
        %v6942 = vmul.f32 %v463, %v6897
        %v6943 = vmul.f32 %v463, %v6898
        %v6944 = vadd.f32 %v6936, %v6940
        %v6945 = vadd.f32 %v6937, %v6941
        %v6946 = vadd.f32 %v6938, %v6942
        %v6947 = vadd.f32 %v6939, %v6943
        %v6948 = vmul.f32 %v472, %v6900
        %v6949 = vmul.f32 %v472, %v6901
        %v6950 = vmul.f32 %v472, %v6902
        %v6951 = vmul.f32 %v472, %v6903
        %v6952 = vadd.f32 %v6944, %v6948
        %v6953 = vadd.f32 %v6945, %v6949
        %v6954 = vadd.f32 %v6946, %v6950
        %v6955 = vadd.f32 %v6947, %v6951
        %6956 = vrot.lane.b32.xlu0 %v6952, 127
        %v6957 = vpop.permute.xlu0 %6956
        %6958 = vrot.lane.b32.xlu0 %v6953, 127
        %v6959 = vpop.permute.xlu0 %6958
        %6960 = vrot.lane.b32.xlu0 %v6954, 127
        %v6961 = vpop.permute.xlu0 %6960
        %6962 = vrot.lane.b32.xlu0 %v6955, 127
        %v6963 = vpop.permute.xlu0 %6962
        %v6964 = vsel %vm348, %v6957, 0.0
        %v6965 = vsel %vm348, %v6959, 0.0
        %v6966 = vsel %vm348, %v6961, 0.0
        %v6967 = vsel %vm348, %v6963, 0.0
        %v6968 = vmul.f32 %v493, %v6890
        %v6969 = vmul.f32 %v493, %v6891
        %v6970 = vmul.f32 %v493, %v6892
        %v6971 = vmul.f32 %v493, %v6893
        %v6972 = vmul.f32 %v498, %v6895
        %v6973 = vmul.f32 %v498, %v6896
        %v6974 = vmul.f32 %v498, %v6897
        %v6975 = vmul.f32 %v498, %v6898
        %v6976 = vadd.f32 %v6968, %v6972
        %v6977 = vadd.f32 %v6969, %v6973
        %v6978 = vadd.f32 %v6970, %v6974
        %v6979 = vadd.f32 %v6971, %v6975
        %v6980 = vmul.f32 %v507, %v6900
        %v6981 = vmul.f32 %v507, %v6901
        %v6982 = vmul.f32 %v507, %v6902
        %v6983 = vmul.f32 %v507, %v6903
        %v6984 = vadd.f32 %v6976, %v6980
        %v6985 = vadd.f32 %v6977, %v6981
        %v6986 = vadd.f32 %v6978, %v6982
        %v6987 = vadd.f32 %v6979, %v6983
        %v6988 = vadd.f32 %v6984, %v6932
        %v6989 = vadd.f32 %v6985, %v6933
        %v6990 = vadd.f32 %v6986, %v6934
        %v6991 = vadd.f32 %v6987, %v6935
        %v6992 = vadd.f32 %v6988, %v6964
        %v6993 = vadd.f32 %v6989, %v6965
        %v6994 = vadd.f32 %v6990, %v6966
        %v6995 = vadd.f32 %v6991, %v6967
        %6996 = vrot.lane.b32.xlu0 %v6992, 64
        %v6997 = vpop.permute.xlu0 %6996
        %6998 = vrot.lane.b32.xlu0 %v6993, 64
        %v6999 = vpop.permute.xlu0 %6998
        %7000 = vrot.lane.b32.xlu0 %v6994, 64
        %v7001 = vpop.permute.xlu0 %7000
        %7002 = vrot.lane.b32.xlu0 %v6995, 64
        %v7003 = vpop.permute.xlu0 %7002
        %v7004 = vrot.slane %v6997, 7
        %v7005 = vrot.slane %v6999, 7
        %v7006 = vrot.slane %v7001, 7
        %v7007 = vrot.slane %v7003, 7
        %v7008 = vsel %vm536, %v7006, %v7007
        %v7009 = vsel %vm536, %v7005, %v7006
        %v7010 = vsel %vm536, %v7004, %v7005
        %v7011 = vsel %vm536, %v7007, %v7004
        %v7012 = vsel %vm349, %v7011, 0.0
        %v7013 = vsel %vm350, %v7010, 0.0
        %v7014 = vsel %vm351, %v7009, 0.0
        %v7015 = vsel %vm352, %v7008, 0.0
        %v7016 = vsel %vm346, %v6997, %v7012
        %v7017 = vsel %vm346, %v6999, %v7013
        %v7018 = vsel %vm346, %v7001, %v7014
        %v7019 = vsel %vm346, %v7003, %v7015
        %v7020 = vmul.f32 %v549, %v6890
        %v7021 = vmul.f32 %v549, %v6891
        %v7022 = vmul.f32 %v549, %v6892
        %v7023 = vmul.f32 %v549, %v6893
        %v7024 = vmul.f32 %v554, %v6895
        %v7025 = vmul.f32 %v554, %v6896
        %v7026 = vmul.f32 %v554, %v6897
        %v7027 = vmul.f32 %v554, %v6898
        %v7028 = vadd.f32 %v7020, %v7024
        %v7029 = vadd.f32 %v7021, %v7025
        %v7030 = vadd.f32 %v7022, %v7026
        %v7031 = vadd.f32 %v7023, %v7027
        %v7032 = vmul.f32 %v563, %v6900
        %v7033 = vmul.f32 %v563, %v6901
        %v7034 = vmul.f32 %v563, %v6902
        %v7035 = vmul.f32 %v563, %v6903
        %v7036 = vadd.f32 %v7028, %v7032
        %v7037 = vadd.f32 %v7029, %v7033
        %v7038 = vadd.f32 %v7030, %v7034
        %v7039 = vadd.f32 %v7031, %v7035
        %7040 = vrot.lane.b32.xlu0 %v7036, 1
        %v7041 = vpop.permute.xlu0 %7040
        %7042 = vrot.lane.b32.xlu0 %v7037, 1
        %v7043 = vpop.permute.xlu0 %7042
        %7044 = vrot.lane.b32.xlu0 %v7038, 1
        %v7045 = vpop.permute.xlu0 %7044
        %7046 = vrot.lane.b32.xlu0 %v7039, 1
        %v7047 = vpop.permute.xlu0 %7046
        %v7048 = vsel %vm347, %v7041, 0.0
        %v7049 = vsel %vm347, %v7043, 0.0
        %v7050 = vsel %vm347, %v7045, 0.0
        %v7051 = vsel %vm347, %v7047, 0.0
        %v7052 = vmul.f32 %v584, %v6890
        %v7053 = vmul.f32 %v584, %v6891
        %v7054 = vmul.f32 %v584, %v6892
        %v7055 = vmul.f32 %v584, %v6893
        %v7056 = vmul.f32 %v589, %v6895
        %v7057 = vmul.f32 %v589, %v6896
        %v7058 = vmul.f32 %v589, %v6897
        %v7059 = vmul.f32 %v589, %v6898
        %v7060 = vadd.f32 %v7052, %v7056
        %v7061 = vadd.f32 %v7053, %v7057
        %v7062 = vadd.f32 %v7054, %v7058
        %v7063 = vadd.f32 %v7055, %v7059
        %v7064 = vmul.f32 %v598, %v6900
        %v7065 = vmul.f32 %v598, %v6901
        %v7066 = vmul.f32 %v598, %v6902
        %v7067 = vmul.f32 %v598, %v6903
        %v7068 = vadd.f32 %v7060, %v7064
        %v7069 = vadd.f32 %v7061, %v7065
        %v7070 = vadd.f32 %v7062, %v7066
        %v7071 = vadd.f32 %v7063, %v7067
        %7072 = vrot.lane.b32.xlu0 %v7068, 127
        %v7073 = vpop.permute.xlu0 %7072
        %7074 = vrot.lane.b32.xlu0 %v7069, 127
        %v7075 = vpop.permute.xlu0 %7074
        %7076 = vrot.lane.b32.xlu0 %v7070, 127
        %v7077 = vpop.permute.xlu0 %7076
        %7078 = vrot.lane.b32.xlu0 %v7071, 127
        %v7079 = vpop.permute.xlu0 %7078
        %v7080 = vsel %vm348, %v7073, 0.0
        %v7081 = vsel %vm348, %v7075, 0.0
        %v7082 = vsel %vm348, %v7077, 0.0
        %v7083 = vsel %vm348, %v7079, 0.0
        %v7084 = vmul.f32 %v619, %v6890
        %v7085 = vmul.f32 %v619, %v6891
        %v7086 = vmul.f32 %v619, %v6892
        %v7087 = vmul.f32 %v619, %v6893
        %v7088 = vmul.f32 %v624, %v6895
        %v7089 = vmul.f32 %v624, %v6896
        %v7090 = vmul.f32 %v624, %v6897
        %v7091 = vmul.f32 %v624, %v6898
        %v7092 = vadd.f32 %v7084, %v7088
        %v7093 = vadd.f32 %v7085, %v7089
        %v7094 = vadd.f32 %v7086, %v7090
        %v7095 = vadd.f32 %v7087, %v7091
        %v7096 = vmul.f32 %v633, %v6900
        %v7097 = vmul.f32 %v633, %v6901
        %v7098 = vmul.f32 %v633, %v6902
        %v7099 = vmul.f32 %v633, %v6903
        %v7100 = vadd.f32 %v7092, %v7096
        %v7101 = vadd.f32 %v7093, %v7097
        %v7102 = vadd.f32 %v7094, %v7098
        %v7103 = vadd.f32 %v7095, %v7099
        %v7104 = vadd.f32 %v7100, %v7048
        %v7105 = vadd.f32 %v7101, %v7049
        %v7106 = vadd.f32 %v7102, %v7050
        %v7107 = vadd.f32 %v7103, %v7051
        %v7108 = vadd.f32 %v7104, %v7080
        %v7109 = vadd.f32 %v7105, %v7081
        %v7110 = vadd.f32 %v7106, %v7082
        %v7111 = vadd.f32 %v7107, %v7083
        %v7112 = vadd.f32 %v7016, %v7108
        %v7113 = vadd.f32 %v7017, %v7109
        %v7114 = vadd.f32 %v7018, %v7110
        %v7115 = vadd.f32 %v7019, %v7111
        %v7116 = vmul.f32 %v654, %v6890
        %v7117 = vmul.f32 %v654, %v6891
        %v7118 = vmul.f32 %v654, %v6892
        %v7119 = vmul.f32 %v654, %v6893
        %v7120 = vmul.f32 %v659, %v6895
        %v7121 = vmul.f32 %v659, %v6896
        %v7122 = vmul.f32 %v659, %v6897
        %v7123 = vmul.f32 %v659, %v6898
        %v7124 = vadd.f32 %v7116, %v7120
        %v7125 = vadd.f32 %v7117, %v7121
        %v7126 = vadd.f32 %v7118, %v7122
        %v7127 = vadd.f32 %v7119, %v7123
        %v7128 = vmul.f32 %v668, %v6900
        %v7129 = vmul.f32 %v668, %v6901
        %v7130 = vmul.f32 %v668, %v6902
        %v7131 = vmul.f32 %v668, %v6903
        %v7132 = vadd.f32 %v7124, %v7128
        %v7133 = vadd.f32 %v7125, %v7129
        %v7134 = vadd.f32 %v7126, %v7130
        %v7135 = vadd.f32 %v7127, %v7131
        %7136 = vrot.lane.b32.xlu0 %v7132, 1
        %v7137 = vpop.permute.xlu0 %7136
        %7138 = vrot.lane.b32.xlu0 %v7133, 1
        %v7139 = vpop.permute.xlu0 %7138
        %7140 = vrot.lane.b32.xlu0 %v7134, 1
        %v7141 = vpop.permute.xlu0 %7140
        %7142 = vrot.lane.b32.xlu0 %v7135, 1
        %v7143 = vpop.permute.xlu0 %7142
        %v7144 = vsel %vm347, %v7137, 0.0
        %v7145 = vsel %vm347, %v7139, 0.0
        %v7146 = vsel %vm347, %v7141, 0.0
        %v7147 = vsel %vm347, %v7143, 0.0
        %v7148 = vmul.f32 %v689, %v6890
        %v7149 = vmul.f32 %v689, %v6891
        %v7150 = vmul.f32 %v689, %v6892
        %v7151 = vmul.f32 %v689, %v6893
        %v7152 = vmul.f32 %v694, %v6895
        %v7153 = vmul.f32 %v694, %v6896
        %v7154 = vmul.f32 %v694, %v6897
        %v7155 = vmul.f32 %v694, %v6898
        %v7156 = vadd.f32 %v7148, %v7152
        %v7157 = vadd.f32 %v7149, %v7153
        %v7158 = vadd.f32 %v7150, %v7154
        %v7159 = vadd.f32 %v7151, %v7155
        %v7160 = vmul.f32 %v703, %v6900
        %v7161 = vmul.f32 %v703, %v6901
        %v7162 = vmul.f32 %v703, %v6902
        %v7163 = vmul.f32 %v703, %v6903
        %v7164 = vadd.f32 %v7156, %v7160
        %v7165 = vadd.f32 %v7157, %v7161
        %v7166 = vadd.f32 %v7158, %v7162
        %v7167 = vadd.f32 %v7159, %v7163
        %7168 = vrot.lane.b32.xlu0 %v7164, 127
        %v7169 = vpop.permute.xlu0 %7168
        %7170 = vrot.lane.b32.xlu0 %v7165, 127
        %v7171 = vpop.permute.xlu0 %7170
        %7172 = vrot.lane.b32.xlu0 %v7166, 127
        %v7173 = vpop.permute.xlu0 %7172
        %7174 = vrot.lane.b32.xlu0 %v7167, 127
        %v7175 = vpop.permute.xlu0 %7174
        %v7176 = vsel %vm348, %v7169, 0.0
        %v7177 = vsel %vm348, %v7171, 0.0
        %v7178 = vsel %vm348, %v7173, 0.0
        %v7179 = vsel %vm348, %v7175, 0.0
        %v7180 = vmul.f32 %v724, %v6890
        %v7181 = vmul.f32 %v724, %v6891
        %v7182 = vmul.f32 %v724, %v6892
        %v7183 = vmul.f32 %v724, %v6893
        %v7184 = vmul.f32 %v729, %v6895
        %v7185 = vmul.f32 %v729, %v6896
        %v7186 = vmul.f32 %v729, %v6897
        %v7187 = vmul.f32 %v729, %v6898
        %v7188 = vadd.f32 %v7180, %v7184
        %v7189 = vadd.f32 %v7181, %v7185
        %v7190 = vadd.f32 %v7182, %v7186
        %v7191 = vadd.f32 %v7183, %v7187
        %v7192 = vmul.f32 %v738, %v6900
        %v7193 = vmul.f32 %v738, %v6901
        %v7194 = vmul.f32 %v738, %v6902
        %v7195 = vmul.f32 %v738, %v6903
        %v7196 = vadd.f32 %v7188, %v7192
        %v7197 = vadd.f32 %v7189, %v7193
        %v7198 = vadd.f32 %v7190, %v7194
        %v7199 = vadd.f32 %v7191, %v7195
        %v7200 = vadd.f32 %v7196, %v7144
        %v7201 = vadd.f32 %v7197, %v7145
        %v7202 = vadd.f32 %v7198, %v7146
        %v7203 = vadd.f32 %v7199, %v7147
        %v7204 = vadd.f32 %v7200, %v7176
        %v7205 = vadd.f32 %v7201, %v7177
        %v7206 = vadd.f32 %v7202, %v7178
        %v7207 = vadd.f32 %v7203, %v7179
        %7208 = vrot.lane.b32.xlu0 %v7204, 64
        %v7209 = vpop.permute.xlu0 %7208
        %7210 = vrot.lane.b32.xlu0 %v7205, 64
        %v7211 = vpop.permute.xlu0 %7210
        %7212 = vrot.lane.b32.xlu0 %v7206, 64
        %v7213 = vpop.permute.xlu0 %7212
        %7214 = vrot.lane.b32.xlu0 %v7207, 64
        %v7215 = vpop.permute.xlu0 %7214
        %v7216 = vrot.slane %v7209, 1
        %v7217 = vrot.slane %v7211, 1
        %v7218 = vrot.slane %v7213, 1
        %v7219 = vrot.slane %v7215, 1
        %v7220 = vsel %vm767, %v7218, %v7219
        %v7221 = vsel %vm767, %v7217, %v7218
        %v7222 = vsel %vm767, %v7216, %v7217
        %v7223 = vsel %vm767, %v7219, %v7216
        %v7224 = vsel %vm353, %v7222, 0.0
        %v7225 = vsel %vm354, %v7221, 0.0
        %v7226 = vsel %vm355, %v7220, 0.0
        %v7227 = vsel %vm356, %v7223, 0.0
        %v7228 = vsel %vm346, %v7224, %v7209
        %v7229 = vsel %vm346, %v7225, %v7211
        %v7230 = vsel %vm346, %v7226, %v7213
        %v7231 = vsel %vm346, %v7227, %v7215
        %v7232 = vadd.f32 %v7112, %v7228
        %v7233 = vadd.f32 %v7113, %v7229
        %v7234 = vadd.f32 %v7114, %v7230
        %v7235 = vadd.f32 %v7115, %v7231
        %s7236 = scalar_lea.vmem %s318, 384
        %v7237 = vld [vmem:[%s7236] sm:$0xff]
        %v7238 = vld [vmem:[%s7236 + $0x8] sm:$0xff]
        %v7239 = vld [vmem:[%s7236 + $0x10] sm:$0xff]
        %v7240 = vld [vmem:[%s7236 + $0x18] sm:$0xff]
        %v7241 = vld [vmem:[%s7236 + $0x20] sm:$0xff]
        %v7242 = vld [vmem:[%s7236 + $0x28] sm:$0xff]
        %v7243 = vld [vmem:[%s7236 + $0x30] sm:$0xff]
        %v7244 = vld [vmem:[%s7236 + $0x38] sm:$0xff]
        %v7245 = vld [vmem:[%s7236 + $0x40] sm:$0xff]
        %v7246 = vld [vmem:[%s7236 + $0x48] sm:$0xff]
        %v7247 = vld [vmem:[%s7236 + $0x50] sm:$0xff]
        %v7248 = vld [vmem:[%s7236 + $0x58] sm:$0xff]
        %v7249 = vld [vmem:[%s7236 + $0x60] sm:$0xff]
        %v7250 = vld [vmem:[%s7236 + $0x68] sm:$0xff]
        %v7251 = vld [vmem:[%s7236 + $0x70] sm:$0xff]
        %v7252 = vld [vmem:[%s7236 + $0x78] sm:$0xff]
        %7253 = vrot.lane.b32.xlu0 %v7237, 127
        %v7254 = vpop.permute.xlu0 %7253
        %7255 = vrot.lane.b32.xlu0 %v7238, 127
        %v7256 = vpop.permute.xlu0 %7255
        %7257 = vrot.lane.b32.xlu0 %v7239, 127
        %v7258 = vpop.permute.xlu0 %7257
        %7259 = vrot.lane.b32.xlu0 %v7240, 127
        %v7260 = vpop.permute.xlu0 %7259
        %7261 = vrot.lane.b32.xlu0 %v7241, 127
        %v7262 = vpop.permute.xlu0 %7261
        %7263 = vrot.lane.b32.xlu0 %v7242, 127
        %v7264 = vpop.permute.xlu0 %7263
        %7265 = vrot.lane.b32.xlu0 %v7243, 127
        %v7266 = vpop.permute.xlu0 %7265
        %7267 = vrot.lane.b32.xlu0 %v7244, 127
        %v7268 = vpop.permute.xlu0 %7267
        %7269 = vrot.lane.b32.xlu0 %v7245, 127
        %v7270 = vpop.permute.xlu0 %7269
        %7271 = vrot.lane.b32.xlu0 %v7246, 127
        %v7272 = vpop.permute.xlu0 %7271
        %7273 = vrot.lane.b32.xlu0 %v7247, 127
        %v7274 = vpop.permute.xlu0 %7273
        %7275 = vrot.lane.b32.xlu0 %v7248, 127
        %v7276 = vpop.permute.xlu0 %7275
        %7277 = vrot.lane.b32.xlu0 %v7249, 127
        %v7278 = vpop.permute.xlu0 %7277
        %7279 = vrot.lane.b32.xlu0 %v7250, 127
        %v7280 = vpop.permute.xlu0 %7279
        %7281 = vrot.lane.b32.xlu0 %v7251, 127
        %v7282 = vpop.permute.xlu0 %7281
        %7283 = vrot.lane.b32.xlu0 %v7252, 127
        %v7284 = vpop.permute.xlu0 %7283
        %v7285 = vmax.f32 %v7237, %v7254
        %v7286 = vmax.f32 %v7238, %v7256
        %v7287 = vmax.f32 %v7239, %v7258
        %v7288 = vmax.f32 %v7240, %v7260
        %v7289 = vmax.f32 %v7241, %v7262
        %v7290 = vmax.f32 %v7242, %v7264
        %v7291 = vmax.f32 %v7243, %v7266
        %v7292 = vmax.f32 %v7244, %v7268
        %v7293 = vmax.f32 %v7245, %v7270
        %v7294 = vmax.f32 %v7246, %v7272
        %v7295 = vmax.f32 %v7247, %v7274
        %v7296 = vmax.f32 %v7248, %v7276
        %v7297 = vmax.f32 %v7249, %v7278
        %v7298 = vmax.f32 %v7250, %v7280
        %v7299 = vmax.f32 %v7251, %v7282
        %v7300 = vmax.f32 %v7252, %v7284
        %v7301 = vrot.slane %v7285, 1
        %v7302 = vrot.slane %v7286, 1
        %v7303 = vrot.slane %v7287, 1
        %v7304 = vrot.slane %v7288, 1
        %v7305 = vrot.slane %v7289, 1
        %v7306 = vrot.slane %v7290, 1
        %v7307 = vrot.slane %v7291, 1
        %v7308 = vrot.slane %v7292, 1
        %v7309 = vrot.slane %v7293, 1
        %v7310 = vrot.slane %v7294, 1
        %v7311 = vrot.slane %v7295, 1
        %v7312 = vrot.slane %v7296, 1
        %v7313 = vrot.slane %v7297, 1
        %v7314 = vrot.slane %v7298, 1
        %v7315 = vrot.slane %v7299, 1
        %v7316 = vrot.slane %v7300, 1
        %v7317 = vsel %vm767, %v7315, %v7316
        %v7318 = vsel %vm767, %v7314, %v7315
        %v7319 = vsel %vm767, %v7313, %v7314
        %v7320 = vsel %vm767, %v7312, %v7313
        %v7321 = vsel %vm767, %v7311, %v7312
        %v7322 = vsel %vm767, %v7310, %v7311
        %v7323 = vsel %vm767, %v7309, %v7310
        %v7324 = vsel %vm767, %v7308, %v7309
        %v7325 = vsel %vm767, %v7307, %v7308
        %v7326 = vsel %vm767, %v7306, %v7307
        %v7327 = vsel %vm767, %v7305, %v7306
        %v7328 = vsel %vm767, %v7304, %v7305
        %v7329 = vsel %vm767, %v7303, %v7304
        %v7330 = vsel %vm767, %v7302, %v7303
        %v7331 = vsel %vm767, %v7301, %v7302
        %v7332 = vsel %vm767, %v7316, %v7301
        %v7333 = vmax.f32 %v7285, %v7331
        %v7334 = vmax.f32 %v7286, %v7330
        %v7335 = vmax.f32 %v7287, %v7329
        %v7336 = vmax.f32 %v7288, %v7328
        %v7337 = vmax.f32 %v7289, %v7327
        %v7338 = vmax.f32 %v7290, %v7326
        %v7339 = vmax.f32 %v7291, %v7325
        %v7340 = vmax.f32 %v7292, %v7324
        %v7341 = vmax.f32 %v7293, %v7323
        %v7342 = vmax.f32 %v7294, %v7322
        %v7343 = vmax.f32 %v7295, %v7321
        %v7344 = vmax.f32 %v7296, %v7320
        %v7345 = vmax.f32 %v7297, %v7319
        %v7346 = vmax.f32 %v7298, %v7318
        %v7347 = vmax.f32 %v7299, %v7317
        %v7348 = vmax.f32 %v7300, %v7332
        %v7349 = vand.u32 %v408, 4294901760
        %7350 = vmatpush.msra.mxu0 %v7349
        %v7351 = vand.u32 %v407, 4294901760
        %7352 = vmatpush.msra.mxu0 %v7351
        %v7353 = vand.u32 %v406, 4294901760
        %7354 = vmatpush.msra.mxu0 %v7353
        %v7355 = vand.u32 %v405, 4294901760
        %7356 = vmatpush.msra.mxu0 %v7355
        %v7357 = vand.u32 %v404, 4294901760
        %7358 = vmatpush.msra.mxu0 %v7357
        %v7359 = vand.u32 %v403, 4294901760
        %7360 = vmatpush.msra.mxu0 %v7359
        %v7361 = vand.u32 %v402, 4294901760
        %7362 = vmatpush.msra.mxu0 %v7361
        %v7363 = vand.u32 %v401, 4294901760
        %7364 = vmatpush.msra.mxu0 %v7363
        %v7365 = vand.u32 %v400, 4294901760
        %7366 = vmatpush.msra.mxu0 %v7365
        %v7367 = vand.u32 %v399, 4294901760
        %7368 = vmatpush.msra.mxu0 %v7367
        %v7369 = vand.u32 %v398, 4294901760
        %7370 = vmatpush.msra.mxu0 %v7369
        %v7371 = vand.u32 %v397, 4294901760
        %7372 = vmatpush.msra.mxu0 %v7371
        %v7373 = vand.u32 %v396, 4294901760
        %7374 = vmatpush.msra.mxu0 %v7373
        %v7375 = vand.u32 %v395, 4294901760
        %7376 = vmatpush.msra.mxu0 %v7375
        %v7377 = vand.u32 %v394, 4294901760
        %7378 = vmatpush.msra.mxu0 %v7377
        %v7379 = vand.u32 %v393, 4294901760
        %7380 = vmatpush.msra.mxu0 %v7379
        %v7381 = vand.u32 %v7333, 4294901760
        %v7382 = vsub.f32 %v7333, %v7381
        %v7383 = vand.u32 %v7382, 4294901760
        %v7384 = vsub.f32 %v7382, %v7383
        %v7385 = vand.u32 %v7384, 4294901760
        %7386 = vmatmul.f32.gmra.mxu0 %v7385
        %v7387 = vpop.f32.mrf.mxu0
        %v7388 = vadd.f32 0.0, %v7387
        %v7389 = vand.u32 %v7334, 4294901760
        %v7390 = vsub.f32 %v7334, %v7389
        %v7391 = vand.u32 %v7390, 4294901760
        %v7392 = vsub.f32 %v7390, %v7391
        %v7393 = vand.u32 %v7392, 4294901760
        %7394 = vmatmul.f32.gmra.mxu0 %v7393
        %v7395 = vpop.f32.mrf.mxu0
        %v7396 = vadd.f32 0.0, %v7395
        %v7397 = vand.u32 %v7335, 4294901760
        %v7398 = vsub.f32 %v7335, %v7397
        %v7399 = vand.u32 %v7398, 4294901760
        %v7400 = vsub.f32 %v7398, %v7399
        %v7401 = vand.u32 %v7400, 4294901760
        %7402 = vmatmul.f32.gmra.mxu0 %v7401
        %v7403 = vpop.f32.mrf.mxu0
        %v7404 = vadd.f32 0.0, %v7403
        %v7405 = vand.u32 %v7336, 4294901760
        %v7406 = vsub.f32 %v7336, %v7405
        %v7407 = vand.u32 %v7406, 4294901760
        %v7408 = vsub.f32 %v7406, %v7407
        %v7409 = vand.u32 %v7408, 4294901760
        %7410 = vmatmul.f32.gmra.mxu0 %v7409
        %v7411 = vpop.f32.mrf.mxu0
        %v7412 = vadd.f32 0.0, %v7411
        %v7413 = vand.u32 %v7337, 4294901760
        %v7414 = vsub.f32 %v7337, %v7413
        %v7415 = vand.u32 %v7414, 4294901760
        %v7416 = vsub.f32 %v7414, %v7415
        %v7417 = vand.u32 %v7416, 4294901760
        %7418 = vmatmul.f32.gmra.mxu0 %v7417
        %v7419 = vpop.f32.mrf.mxu0
        %v7420 = vadd.f32 0.0, %v7419
        %v7421 = vand.u32 %v7338, 4294901760
        %v7422 = vsub.f32 %v7338, %v7421
        %v7423 = vand.u32 %v7422, 4294901760
        %v7424 = vsub.f32 %v7422, %v7423
        %v7425 = vand.u32 %v7424, 4294901760
        %7426 = vmatmul.f32.gmra.mxu0 %v7425
        %v7427 = vpop.f32.mrf.mxu0
        %v7428 = vadd.f32 0.0, %v7427
        %v7429 = vand.u32 %v7339, 4294901760
        %v7430 = vsub.f32 %v7339, %v7429
        %v7431 = vand.u32 %v7430, 4294901760
        %v7432 = vsub.f32 %v7430, %v7431
        %v7433 = vand.u32 %v7432, 4294901760
        %7434 = vmatmul.f32.gmra.mxu0 %v7433
        %v7435 = vpop.f32.mrf.mxu0
        %v7436 = vadd.f32 0.0, %v7435
        %v7437 = vand.u32 %v7340, 4294901760
        %v7438 = vsub.f32 %v7340, %v7437
        %v7439 = vand.u32 %v7438, 4294901760
        %v7440 = vsub.f32 %v7438, %v7439
        %v7441 = vand.u32 %v7440, 4294901760
        %7442 = vmatmul.f32.gmra.mxu0 %v7441
        %v7443 = vpop.f32.mrf.mxu0
        %v7444 = vadd.f32 0.0, %v7443
        %v7445 = vand.u32 %v7341, 4294901760
        %v7446 = vsub.f32 %v7341, %v7445
        %v7447 = vand.u32 %v7446, 4294901760
        %v7448 = vsub.f32 %v7446, %v7447
        %v7449 = vand.u32 %v7448, 4294901760
        %7450 = vmatmul.f32.gmra.mxu0 %v7449
        %v7451 = vpop.f32.mrf.mxu0
        %v7452 = vadd.f32 0.0, %v7451
        %v7453 = vand.u32 %v7342, 4294901760
        %v7454 = vsub.f32 %v7342, %v7453
        %v7455 = vand.u32 %v7454, 4294901760
        %v7456 = vsub.f32 %v7454, %v7455
        %v7457 = vand.u32 %v7456, 4294901760
        %7458 = vmatmul.f32.gmra.mxu0 %v7457
        %v7459 = vpop.f32.mrf.mxu0
        %v7460 = vadd.f32 0.0, %v7459
        %v7461 = vand.u32 %v7343, 4294901760
        %v7462 = vsub.f32 %v7343, %v7461
        %v7463 = vand.u32 %v7462, 4294901760
        %v7464 = vsub.f32 %v7462, %v7463
        %v7465 = vand.u32 %v7464, 4294901760
        %7466 = vmatmul.f32.gmra.mxu0 %v7465
        %v7467 = vpop.f32.mrf.mxu0
        %v7468 = vadd.f32 0.0, %v7467
        %v7469 = vand.u32 %v7344, 4294901760
        %v7470 = vsub.f32 %v7344, %v7469
        %v7471 = vand.u32 %v7470, 4294901760
        %v7472 = vsub.f32 %v7470, %v7471
        %v7473 = vand.u32 %v7472, 4294901760
        %7474 = vmatmul.f32.gmra.mxu0 %v7473
        %v7475 = vpop.f32.mrf.mxu0
        %v7476 = vadd.f32 0.0, %v7475
        %v7477 = vand.u32 %v7345, 4294901760
        %v7478 = vsub.f32 %v7345, %v7477
        %v7479 = vand.u32 %v7478, 4294901760
        %v7480 = vsub.f32 %v7478, %v7479
        %v7481 = vand.u32 %v7480, 4294901760
        %7482 = vmatmul.f32.gmra.mxu0 %v7481
        %v7483 = vpop.f32.mrf.mxu0
        %v7484 = vadd.f32 0.0, %v7483
        %v7485 = vand.u32 %v7346, 4294901760
        %v7486 = vsub.f32 %v7346, %v7485
        %v7487 = vand.u32 %v7486, 4294901760
        %v7488 = vsub.f32 %v7486, %v7487
        %v7489 = vand.u32 %v7488, 4294901760
        %7490 = vmatmul.f32.gmra.mxu0 %v7489
        %v7491 = vpop.f32.mrf.mxu0
        %v7492 = vadd.f32 0.0, %v7491
        %v7493 = vand.u32 %v7347, 4294901760
        %v7494 = vsub.f32 %v7347, %v7493
        %v7495 = vand.u32 %v7494, 4294901760
        %v7496 = vsub.f32 %v7494, %v7495
        %v7497 = vand.u32 %v7496, 4294901760
        %7498 = vmatmul.f32.gmra.mxu0 %v7497
        %v7499 = vpop.f32.mrf.mxu0
        %v7500 = vadd.f32 0.0, %v7499
        %v7501 = vand.u32 %v7348, 4294901760
        %v7502 = vsub.f32 %v7348, %v7501
        %v7503 = vand.u32 %v7502, 4294901760
        %v7504 = vsub.f32 %v7502, %v7503
        %v7505 = vand.u32 %v7504, 4294901760
        %7506 = vmatmul.f32.gmra.mxu0 %v7505
        %v7507 = vpop.f32.mrf.mxu0
        %v7508 = vadd.f32 0.0, %v7507
        %7509 = vdwg.mxu0
        %v7510 = vand.u32 %v408, 4294901760
        %v7511 = vsub.f32 %v408, %v7510
        %v7512 = vand.u32 %v7511, 4294901760
        %v7513 = vsub.f32 %v7511, %v7512
        %v7514 = vand.u32 %v7513, 4294901760
        %7515 = vmatpush.msra.mxu0 %v7514
        %v7516 = vand.u32 %v407, 4294901760
        %v7517 = vsub.f32 %v407, %v7516
        %v7518 = vand.u32 %v7517, 4294901760
        %v7519 = vsub.f32 %v7517, %v7518
        %v7520 = vand.u32 %v7519, 4294901760
        %7521 = vmatpush.msra.mxu0 %v7520
        %v7522 = vand.u32 %v406, 4294901760
        %v7523 = vsub.f32 %v406, %v7522
        %v7524 = vand.u32 %v7523, 4294901760
        %v7525 = vsub.f32 %v7523, %v7524
        %v7526 = vand.u32 %v7525, 4294901760
        %7527 = vmatpush.msra.mxu0 %v7526
        %v7528 = vand.u32 %v405, 4294901760
        %v7529 = vsub.f32 %v405, %v7528
        %v7530 = vand.u32 %v7529, 4294901760
        %v7531 = vsub.f32 %v7529, %v7530
        %v7532 = vand.u32 %v7531, 4294901760
        %7533 = vmatpush.msra.mxu0 %v7532
        %v7534 = vand.u32 %v404, 4294901760
        %v7535 = vsub.f32 %v404, %v7534
        %v7536 = vand.u32 %v7535, 4294901760
        %v7537 = vsub.f32 %v7535, %v7536
        %v7538 = vand.u32 %v7537, 4294901760
        %7539 = vmatpush.msra.mxu0 %v7538
        %v7540 = vand.u32 %v403, 4294901760
        %v7541 = vsub.f32 %v403, %v7540
        %v7542 = vand.u32 %v7541, 4294901760
        %v7543 = vsub.f32 %v7541, %v7542
        %v7544 = vand.u32 %v7543, 4294901760
        %7545 = vmatpush.msra.mxu0 %v7544
        %v7546 = vand.u32 %v402, 4294901760
        %v7547 = vsub.f32 %v402, %v7546
        %v7548 = vand.u32 %v7547, 4294901760
        %v7549 = vsub.f32 %v7547, %v7548
        %v7550 = vand.u32 %v7549, 4294901760
        %7551 = vmatpush.msra.mxu0 %v7550
        %v7552 = vand.u32 %v401, 4294901760
        %v7553 = vsub.f32 %v401, %v7552
        %v7554 = vand.u32 %v7553, 4294901760
        %v7555 = vsub.f32 %v7553, %v7554
        %v7556 = vand.u32 %v7555, 4294901760
        %7557 = vmatpush.msra.mxu0 %v7556
        %v7558 = vand.u32 %v400, 4294901760
        %v7559 = vsub.f32 %v400, %v7558
        %v7560 = vand.u32 %v7559, 4294901760
        %v7561 = vsub.f32 %v7559, %v7560
        %v7562 = vand.u32 %v7561, 4294901760
        %7563 = vmatpush.msra.mxu0 %v7562
        %v7564 = vand.u32 %v399, 4294901760
        %v7565 = vsub.f32 %v399, %v7564
        %v7566 = vand.u32 %v7565, 4294901760
        %v7567 = vsub.f32 %v7565, %v7566
        %v7568 = vand.u32 %v7567, 4294901760
        %7569 = vmatpush.msra.mxu0 %v7568
        %v7570 = vand.u32 %v398, 4294901760
        %v7571 = vsub.f32 %v398, %v7570
        %v7572 = vand.u32 %v7571, 4294901760
        %v7573 = vsub.f32 %v7571, %v7572
        %v7574 = vand.u32 %v7573, 4294901760
        %7575 = vmatpush.msra.mxu0 %v7574
        %v7576 = vand.u32 %v397, 4294901760
        %v7577 = vsub.f32 %v397, %v7576
        %v7578 = vand.u32 %v7577, 4294901760
        %v7579 = vsub.f32 %v7577, %v7578
        %v7580 = vand.u32 %v7579, 4294901760
        %7581 = vmatpush.msra.mxu0 %v7580
        %v7582 = vand.u32 %v396, 4294901760
        %v7583 = vsub.f32 %v396, %v7582
        %v7584 = vand.u32 %v7583, 4294901760
        %v7585 = vsub.f32 %v7583, %v7584
        %v7586 = vand.u32 %v7585, 4294901760
        %7587 = vmatpush.msra.mxu0 %v7586
        %v7588 = vand.u32 %v395, 4294901760
        %v7589 = vsub.f32 %v395, %v7588
        %v7590 = vand.u32 %v7589, 4294901760
        %v7591 = vsub.f32 %v7589, %v7590
        %v7592 = vand.u32 %v7591, 4294901760
        %7593 = vmatpush.msra.mxu0 %v7592
        %v7594 = vand.u32 %v394, 4294901760
        %v7595 = vsub.f32 %v394, %v7594
        %v7596 = vand.u32 %v7595, 4294901760
        %v7597 = vsub.f32 %v7595, %v7596
        %v7598 = vand.u32 %v7597, 4294901760
        %7599 = vmatpush.msra.mxu0 %v7598
        %v7600 = vand.u32 %v393, 4294901760
        %v7601 = vsub.f32 %v393, %v7600
        %v7602 = vand.u32 %v7601, 4294901760
        %v7603 = vsub.f32 %v7601, %v7602
        %v7604 = vand.u32 %v7603, 4294901760
        %7605 = vmatpush.msra.mxu0 %v7604
        %v7606 = vand.u32 %v7333, 4294901760
        %7607 = vmatmul.f32.gmra.mxu0 %v7606
        %v7608 = vpop.f32.mrf.mxu0
        %v7609 = vadd.f32 %v7388, %v7608
        %v7610 = vand.u32 %v7334, 4294901760
        %7611 = vmatmul.f32.gmra.mxu0 %v7610
        %v7612 = vpop.f32.mrf.mxu0
        %v7613 = vadd.f32 %v7396, %v7612
        %v7614 = vand.u32 %v7335, 4294901760
        %7615 = vmatmul.f32.gmra.mxu0 %v7614
        %v7616 = vpop.f32.mrf.mxu0
        %v7617 = vadd.f32 %v7404, %v7616
        %v7618 = vand.u32 %v7336, 4294901760
        %7619 = vmatmul.f32.gmra.mxu0 %v7618
        %v7620 = vpop.f32.mrf.mxu0
        %v7621 = vadd.f32 %v7412, %v7620
        %v7622 = vand.u32 %v7337, 4294901760
        %7623 = vmatmul.f32.gmra.mxu0 %v7622
        %v7624 = vpop.f32.mrf.mxu0
        %v7625 = vadd.f32 %v7420, %v7624
        %v7626 = vand.u32 %v7338, 4294901760
        %7627 = vmatmul.f32.gmra.mxu0 %v7626
        %v7628 = vpop.f32.mrf.mxu0
        %v7629 = vadd.f32 %v7428, %v7628
        %v7630 = vand.u32 %v7339, 4294901760
        %7631 = vmatmul.f32.gmra.mxu0 %v7630
        %v7632 = vpop.f32.mrf.mxu0
        %v7633 = vadd.f32 %v7436, %v7632
        %v7634 = vand.u32 %v7340, 4294901760
        %7635 = vmatmul.f32.gmra.mxu0 %v7634
        %v7636 = vpop.f32.mrf.mxu0
        %v7637 = vadd.f32 %v7444, %v7636
        %v7638 = vand.u32 %v7341, 4294901760
        %7639 = vmatmul.f32.gmra.mxu0 %v7638
        %v7640 = vpop.f32.mrf.mxu0
        %v7641 = vadd.f32 %v7452, %v7640
        %v7642 = vand.u32 %v7342, 4294901760
        %7643 = vmatmul.f32.gmra.mxu0 %v7642
        %v7644 = vpop.f32.mrf.mxu0
        %v7645 = vadd.f32 %v7460, %v7644
        %v7646 = vand.u32 %v7343, 4294901760
        %7647 = vmatmul.f32.gmra.mxu0 %v7646
        %v7648 = vpop.f32.mrf.mxu0
        %v7649 = vadd.f32 %v7468, %v7648
        %v7650 = vand.u32 %v7344, 4294901760
        %7651 = vmatmul.f32.gmra.mxu0 %v7650
        %v7652 = vpop.f32.mrf.mxu0
        %v7653 = vadd.f32 %v7476, %v7652
        %v7654 = vand.u32 %v7345, 4294901760
        %7655 = vmatmul.f32.gmra.mxu0 %v7654
        %v7656 = vpop.f32.mrf.mxu0
        %v7657 = vadd.f32 %v7484, %v7656
        %v7658 = vand.u32 %v7346, 4294901760
        %7659 = vmatmul.f32.gmra.mxu0 %v7658
        %v7660 = vpop.f32.mrf.mxu0
        %v7661 = vadd.f32 %v7492, %v7660
        %v7662 = vand.u32 %v7347, 4294901760
        %7663 = vmatmul.f32.gmra.mxu0 %v7662
        %v7664 = vpop.f32.mrf.mxu0
        %v7665 = vadd.f32 %v7500, %v7664
        %v7666 = vand.u32 %v7348, 4294901760
        %7667 = vmatmul.f32.gmra.mxu0 %v7666
        %v7668 = vpop.f32.mrf.mxu0
        %v7669 = vadd.f32 %v7508, %v7668
        %7670 = vdwg.mxu0
        %v7671 = vand.u32 %v408, 4294901760
        %v7672 = vsub.f32 %v408, %v7671
        %7673 = vmatpush.msra.mxu0 %v7672
        %v7674 = vand.u32 %v407, 4294901760
        %v7675 = vsub.f32 %v407, %v7674
        %7676 = vmatpush.msra.mxu0 %v7675
        %v7677 = vand.u32 %v406, 4294901760
        %v7678 = vsub.f32 %v406, %v7677
        %7679 = vmatpush.msra.mxu0 %v7678
        %v7680 = vand.u32 %v405, 4294901760
        %v7681 = vsub.f32 %v405, %v7680
        %7682 = vmatpush.msra.mxu0 %v7681
        %v7683 = vand.u32 %v404, 4294901760
        %v7684 = vsub.f32 %v404, %v7683
        %7685 = vmatpush.msra.mxu0 %v7684
        %v7686 = vand.u32 %v403, 4294901760
        %v7687 = vsub.f32 %v403, %v7686
        %7688 = vmatpush.msra.mxu0 %v7687
        %v7689 = vand.u32 %v402, 4294901760
        %v7690 = vsub.f32 %v402, %v7689
        %7691 = vmatpush.msra.mxu0 %v7690
        %v7692 = vand.u32 %v401, 4294901760
        %v7693 = vsub.f32 %v401, %v7692
        %7694 = vmatpush.msra.mxu0 %v7693
        %v7695 = vand.u32 %v400, 4294901760
        %v7696 = vsub.f32 %v400, %v7695
        %7697 = vmatpush.msra.mxu0 %v7696
        %v7698 = vand.u32 %v399, 4294901760
        %v7699 = vsub.f32 %v399, %v7698
        %7700 = vmatpush.msra.mxu0 %v7699
        %v7701 = vand.u32 %v398, 4294901760
        %v7702 = vsub.f32 %v398, %v7701
        %7703 = vmatpush.msra.mxu0 %v7702
        %v7704 = vand.u32 %v397, 4294901760
        %v7705 = vsub.f32 %v397, %v7704
        %7706 = vmatpush.msra.mxu0 %v7705
        %v7707 = vand.u32 %v396, 4294901760
        %v7708 = vsub.f32 %v396, %v7707
        %7709 = vmatpush.msra.mxu0 %v7708
        %v7710 = vand.u32 %v395, 4294901760
        %v7711 = vsub.f32 %v395, %v7710
        %7712 = vmatpush.msra.mxu0 %v7711
        %v7713 = vand.u32 %v394, 4294901760
        %v7714 = vsub.f32 %v394, %v7713
        %7715 = vmatpush.msra.mxu0 %v7714
        %v7716 = vand.u32 %v393, 4294901760
        %v7717 = vsub.f32 %v393, %v7716
        %7718 = vmatpush.msra.mxu0 %v7717
        %v7719 = vand.u32 %v7333, 4294901760
        %v7720 = vsub.f32 %v7333, %v7719
        %7721 = vmatmul.f32.gmra.mxu0 %v7720
        %v7722 = vpop.f32.mrf.mxu0
        %v7723 = vadd.f32 %v7609, %v7722
        %v7724 = vand.u32 %v7334, 4294901760
        %v7725 = vsub.f32 %v7334, %v7724
        %7726 = vmatmul.f32.gmra.mxu0 %v7725
        %v7727 = vpop.f32.mrf.mxu0
        %v7728 = vadd.f32 %v7613, %v7727
        %v7729 = vand.u32 %v7335, 4294901760
        %v7730 = vsub.f32 %v7335, %v7729
        %7731 = vmatmul.f32.gmra.mxu0 %v7730
        %v7732 = vpop.f32.mrf.mxu0
        %v7733 = vadd.f32 %v7617, %v7732
        %v7734 = vand.u32 %v7336, 4294901760
        %v7735 = vsub.f32 %v7336, %v7734
        %7736 = vmatmul.f32.gmra.mxu0 %v7735
        %v7737 = vpop.f32.mrf.mxu0
        %v7738 = vadd.f32 %v7621, %v7737
        %v7739 = vand.u32 %v7337, 4294901760
        %v7740 = vsub.f32 %v7337, %v7739
        %7741 = vmatmul.f32.gmra.mxu0 %v7740
        %v7742 = vpop.f32.mrf.mxu0
        %v7743 = vadd.f32 %v7625, %v7742
        %v7744 = vand.u32 %v7338, 4294901760
        %v7745 = vsub.f32 %v7338, %v7744
        %7746 = vmatmul.f32.gmra.mxu0 %v7745
        %v7747 = vpop.f32.mrf.mxu0
        %v7748 = vadd.f32 %v7629, %v7747
        %v7749 = vand.u32 %v7339, 4294901760
        %v7750 = vsub.f32 %v7339, %v7749
        %7751 = vmatmul.f32.gmra.mxu0 %v7750
        %v7752 = vpop.f32.mrf.mxu0
        %v7753 = vadd.f32 %v7633, %v7752
        %v7754 = vand.u32 %v7340, 4294901760
        %v7755 = vsub.f32 %v7340, %v7754
        %7756 = vmatmul.f32.gmra.mxu0 %v7755
        %v7757 = vpop.f32.mrf.mxu0
        %v7758 = vadd.f32 %v7637, %v7757
        %v7759 = vand.u32 %v7341, 4294901760
        %v7760 = vsub.f32 %v7341, %v7759
        %7761 = vmatmul.f32.gmra.mxu0 %v7760
        %v7762 = vpop.f32.mrf.mxu0
        %v7763 = vadd.f32 %v7641, %v7762
        %v7764 = vand.u32 %v7342, 4294901760
        %v7765 = vsub.f32 %v7342, %v7764
        %7766 = vmatmul.f32.gmra.mxu0 %v7765
        %v7767 = vpop.f32.mrf.mxu0
        %v7768 = vadd.f32 %v7645, %v7767
        %v7769 = vand.u32 %v7343, 4294901760
        %v7770 = vsub.f32 %v7343, %v7769
        %7771 = vmatmul.f32.gmra.mxu0 %v7770
        %v7772 = vpop.f32.mrf.mxu0
        %v7773 = vadd.f32 %v7649, %v7772
        %v7774 = vand.u32 %v7344, 4294901760
        %v7775 = vsub.f32 %v7344, %v7774
        %7776 = vmatmul.f32.gmra.mxu0 %v7775
        %v7777 = vpop.f32.mrf.mxu0
        %v7778 = vadd.f32 %v7653, %v7777
        %v7779 = vand.u32 %v7345, 4294901760
        %v7780 = vsub.f32 %v7345, %v7779
        %7781 = vmatmul.f32.gmra.mxu0 %v7780
        %v7782 = vpop.f32.mrf.mxu0
        %v7783 = vadd.f32 %v7657, %v7782
        %v7784 = vand.u32 %v7346, 4294901760
        %v7785 = vsub.f32 %v7346, %v7784
        %7786 = vmatmul.f32.gmra.mxu0 %v7785
        %v7787 = vpop.f32.mrf.mxu0
        %v7788 = vadd.f32 %v7661, %v7787
        %v7789 = vand.u32 %v7347, 4294901760
        %v7790 = vsub.f32 %v7347, %v7789
        %7791 = vmatmul.f32.gmra.mxu0 %v7790
        %v7792 = vpop.f32.mrf.mxu0
        %v7793 = vadd.f32 %v7665, %v7792
        %v7794 = vand.u32 %v7348, 4294901760
        %v7795 = vsub.f32 %v7348, %v7794
        %7796 = vmatmul.f32.gmra.mxu0 %v7795
        %v7797 = vpop.f32.mrf.mxu0
        %v7798 = vadd.f32 %v7669, %v7797
        %7799 = vdwg.mxu0
        %v7800 = vand.u32 %v408, 4294901760
        %7801 = vmatpush.msra.mxu0 %v7800
        %v7802 = vand.u32 %v407, 4294901760
        %7803 = vmatpush.msra.mxu0 %v7802
        %v7804 = vand.u32 %v406, 4294901760
        %7805 = vmatpush.msra.mxu0 %v7804
        %v7806 = vand.u32 %v405, 4294901760
        %7807 = vmatpush.msra.mxu0 %v7806
        %v7808 = vand.u32 %v404, 4294901760
        %7809 = vmatpush.msra.mxu0 %v7808
        %v7810 = vand.u32 %v403, 4294901760
        %7811 = vmatpush.msra.mxu0 %v7810
        %v7812 = vand.u32 %v402, 4294901760
        %7813 = vmatpush.msra.mxu0 %v7812
        %v7814 = vand.u32 %v401, 4294901760
        %7815 = vmatpush.msra.mxu0 %v7814
        %v7816 = vand.u32 %v400, 4294901760
        %7817 = vmatpush.msra.mxu0 %v7816
        %v7818 = vand.u32 %v399, 4294901760
        %7819 = vmatpush.msra.mxu0 %v7818
        %v7820 = vand.u32 %v398, 4294901760
        %7821 = vmatpush.msra.mxu0 %v7820
        %v7822 = vand.u32 %v397, 4294901760
        %7823 = vmatpush.msra.mxu0 %v7822
        %v7824 = vand.u32 %v396, 4294901760
        %7825 = vmatpush.msra.mxu0 %v7824
        %v7826 = vand.u32 %v395, 4294901760
        %7827 = vmatpush.msra.mxu0 %v7826
        %v7828 = vand.u32 %v394, 4294901760
        %7829 = vmatpush.msra.mxu0 %v7828
        %v7830 = vand.u32 %v393, 4294901760
        %7831 = vmatpush.msra.mxu0 %v7830
        %v7832 = vand.u32 %v7333, 4294901760
        %v7833 = vsub.f32 %v7333, %v7832
        %v7834 = vand.u32 %v7833, 4294901760
        %7835 = vmatmul.f32.gmra.mxu0 %v7834
        %v7836 = vpop.f32.mrf.mxu0
        %v7837 = vadd.f32 %v7723, %v7836
        %v7838 = vand.u32 %v7334, 4294901760
        %v7839 = vsub.f32 %v7334, %v7838
        %v7840 = vand.u32 %v7839, 4294901760
        %7841 = vmatmul.f32.gmra.mxu0 %v7840
        %v7842 = vpop.f32.mrf.mxu0
        %v7843 = vadd.f32 %v7728, %v7842
        %v7844 = vand.u32 %v7335, 4294901760
        %v7845 = vsub.f32 %v7335, %v7844
        %v7846 = vand.u32 %v7845, 4294901760
        %7847 = vmatmul.f32.gmra.mxu0 %v7846
        %v7848 = vpop.f32.mrf.mxu0
        %v7849 = vadd.f32 %v7733, %v7848
        %v7850 = vand.u32 %v7336, 4294901760
        %v7851 = vsub.f32 %v7336, %v7850
        %v7852 = vand.u32 %v7851, 4294901760
        %7853 = vmatmul.f32.gmra.mxu0 %v7852
        %v7854 = vpop.f32.mrf.mxu0
        %v7855 = vadd.f32 %v7738, %v7854
        %v7856 = vand.u32 %v7337, 4294901760
        %v7857 = vsub.f32 %v7337, %v7856
        %v7858 = vand.u32 %v7857, 4294901760
        %7859 = vmatmul.f32.gmra.mxu0 %v7858
        %v7860 = vpop.f32.mrf.mxu0
        %v7861 = vadd.f32 %v7743, %v7860
        %v7862 = vand.u32 %v7338, 4294901760
        %v7863 = vsub.f32 %v7338, %v7862
        %v7864 = vand.u32 %v7863, 4294901760
        %7865 = vmatmul.f32.gmra.mxu0 %v7864
        %v7866 = vpop.f32.mrf.mxu0
        %v7867 = vadd.f32 %v7748, %v7866
        %v7868 = vand.u32 %v7339, 4294901760
        %v7869 = vsub.f32 %v7339, %v7868
        %v7870 = vand.u32 %v7869, 4294901760
        %7871 = vmatmul.f32.gmra.mxu0 %v7870
        %v7872 = vpop.f32.mrf.mxu0
        %v7873 = vadd.f32 %v7753, %v7872
        %v7874 = vand.u32 %v7340, 4294901760
        %v7875 = vsub.f32 %v7340, %v7874
        %v7876 = vand.u32 %v7875, 4294901760
        %7877 = vmatmul.f32.gmra.mxu0 %v7876
        %v7878 = vpop.f32.mrf.mxu0
        %v7879 = vadd.f32 %v7758, %v7878
        %v7880 = vand.u32 %v7341, 4294901760
        %v7881 = vsub.f32 %v7341, %v7880
        %v7882 = vand.u32 %v7881, 4294901760
        %7883 = vmatmul.f32.gmra.mxu0 %v7882
        %v7884 = vpop.f32.mrf.mxu0
        %v7885 = vadd.f32 %v7763, %v7884
        %v7886 = vand.u32 %v7342, 4294901760
        %v7887 = vsub.f32 %v7342, %v7886
        %v7888 = vand.u32 %v7887, 4294901760
        %7889 = vmatmul.f32.gmra.mxu0 %v7888
        %v7890 = vpop.f32.mrf.mxu0
        %v7891 = vadd.f32 %v7768, %v7890
        %v7892 = vand.u32 %v7343, 4294901760
        %v7893 = vsub.f32 %v7343, %v7892
        %v7894 = vand.u32 %v7893, 4294901760
        %7895 = vmatmul.f32.gmra.mxu0 %v7894
        %v7896 = vpop.f32.mrf.mxu0
        %v7897 = vadd.f32 %v7773, %v7896
        %v7898 = vand.u32 %v7344, 4294901760
        %v7899 = vsub.f32 %v7344, %v7898
        %v7900 = vand.u32 %v7899, 4294901760
        %7901 = vmatmul.f32.gmra.mxu0 %v7900
        %v7902 = vpop.f32.mrf.mxu0
        %v7903 = vadd.f32 %v7778, %v7902
        %v7904 = vand.u32 %v7345, 4294901760
        %v7905 = vsub.f32 %v7345, %v7904
        %v7906 = vand.u32 %v7905, 4294901760
        %7907 = vmatmul.f32.gmra.mxu0 %v7906
        %v7908 = vpop.f32.mrf.mxu0
        %v7909 = vadd.f32 %v7783, %v7908
        %v7910 = vand.u32 %v7346, 4294901760
        %v7911 = vsub.f32 %v7346, %v7910
        %v7912 = vand.u32 %v7911, 4294901760
        %7913 = vmatmul.f32.gmra.mxu0 %v7912
        %v7914 = vpop.f32.mrf.mxu0
        %v7915 = vadd.f32 %v7788, %v7914
        %v7916 = vand.u32 %v7347, 4294901760
        %v7917 = vsub.f32 %v7347, %v7916
        %v7918 = vand.u32 %v7917, 4294901760
        %7919 = vmatmul.f32.gmra.mxu0 %v7918
        %v7920 = vpop.f32.mrf.mxu0
        %v7921 = vadd.f32 %v7793, %v7920
        %v7922 = vand.u32 %v7348, 4294901760
        %v7923 = vsub.f32 %v7348, %v7922
        %v7924 = vand.u32 %v7923, 4294901760
        %7925 = vmatmul.f32.gmra.mxu0 %v7924
        %v7926 = vpop.f32.mrf.mxu0
        %v7927 = vadd.f32 %v7798, %v7926
        %7928 = vdwg.mxu0
        %v7929 = vand.u32 %v408, 4294901760
        %v7930 = vsub.f32 %v408, %v7929
        %v7931 = vand.u32 %v7930, 4294901760
        %7932 = vmatpush.msra.mxu0 %v7931
        %v7933 = vand.u32 %v407, 4294901760
        %v7934 = vsub.f32 %v407, %v7933
        %v7935 = vand.u32 %v7934, 4294901760
        %7936 = vmatpush.msra.mxu0 %v7935
        %v7937 = vand.u32 %v406, 4294901760
        %v7938 = vsub.f32 %v406, %v7937
        %v7939 = vand.u32 %v7938, 4294901760
        %7940 = vmatpush.msra.mxu0 %v7939
        %v7941 = vand.u32 %v405, 4294901760
        %v7942 = vsub.f32 %v405, %v7941
        %v7943 = vand.u32 %v7942, 4294901760
        %7944 = vmatpush.msra.mxu0 %v7943
        %v7945 = vand.u32 %v404, 4294901760
        %v7946 = vsub.f32 %v404, %v7945
        %v7947 = vand.u32 %v7946, 4294901760
        %7948 = vmatpush.msra.mxu0 %v7947
        %v7949 = vand.u32 %v403, 4294901760
        %v7950 = vsub.f32 %v403, %v7949
        %v7951 = vand.u32 %v7950, 4294901760
        %7952 = vmatpush.msra.mxu0 %v7951
        %v7953 = vand.u32 %v402, 4294901760
        %v7954 = vsub.f32 %v402, %v7953
        %v7955 = vand.u32 %v7954, 4294901760
        %7956 = vmatpush.msra.mxu0 %v7955
        %v7957 = vand.u32 %v401, 4294901760
        %v7958 = vsub.f32 %v401, %v7957
        %v7959 = vand.u32 %v7958, 4294901760
        %7960 = vmatpush.msra.mxu0 %v7959
        %v7961 = vand.u32 %v400, 4294901760
        %v7962 = vsub.f32 %v400, %v7961
        %v7963 = vand.u32 %v7962, 4294901760
        %7964 = vmatpush.msra.mxu0 %v7963
        %v7965 = vand.u32 %v399, 4294901760
        %v7966 = vsub.f32 %v399, %v7965
        %v7967 = vand.u32 %v7966, 4294901760
        %7968 = vmatpush.msra.mxu0 %v7967
        %v7969 = vand.u32 %v398, 4294901760
        %v7970 = vsub.f32 %v398, %v7969
        %v7971 = vand.u32 %v7970, 4294901760
        %7972 = vmatpush.msra.mxu0 %v7971
        %v7973 = vand.u32 %v397, 4294901760
        %v7974 = vsub.f32 %v397, %v7973
        %v7975 = vand.u32 %v7974, 4294901760
        %7976 = vmatpush.msra.mxu0 %v7975
        %v7977 = vand.u32 %v396, 4294901760
        %v7978 = vsub.f32 %v396, %v7977
        %v7979 = vand.u32 %v7978, 4294901760
        %7980 = vmatpush.msra.mxu0 %v7979
        %v7981 = vand.u32 %v395, 4294901760
        %v7982 = vsub.f32 %v395, %v7981
        %v7983 = vand.u32 %v7982, 4294901760
        %7984 = vmatpush.msra.mxu0 %v7983
        %v7985 = vand.u32 %v394, 4294901760
        %v7986 = vsub.f32 %v394, %v7985
        %v7987 = vand.u32 %v7986, 4294901760
        %7988 = vmatpush.msra.mxu0 %v7987
        %v7989 = vand.u32 %v393, 4294901760
        %v7990 = vsub.f32 %v393, %v7989
        %v7991 = vand.u32 %v7990, 4294901760
        %7992 = vmatpush.msra.mxu0 %v7991
        %v7993 = vand.u32 %v7333, 4294901760
        %7994 = vmatmul.f32.gmra.mxu0 %v7993
        %v7995 = vpop.f32.mrf.mxu0
        %v7996 = vadd.f32 %v7837, %v7995
        %v7997 = vand.u32 %v7334, 4294901760
        %7998 = vmatmul.f32.gmra.mxu0 %v7997
        %v7999 = vpop.f32.mrf.mxu0
        %v8000 = vadd.f32 %v7843, %v7999
        %v8001 = vand.u32 %v7335, 4294901760
        %8002 = vmatmul.f32.gmra.mxu0 %v8001
        %v8003 = vpop.f32.mrf.mxu0
        %v8004 = vadd.f32 %v7849, %v8003
        %v8005 = vand.u32 %v7336, 4294901760
        %8006 = vmatmul.f32.gmra.mxu0 %v8005
        %v8007 = vpop.f32.mrf.mxu0
        %v8008 = vadd.f32 %v7855, %v8007
        %v8009 = vand.u32 %v7337, 4294901760
        %8010 = vmatmul.f32.gmra.mxu0 %v8009
        %v8011 = vpop.f32.mrf.mxu0
        %v8012 = vadd.f32 %v7861, %v8011
        %v8013 = vand.u32 %v7338, 4294901760
        %8014 = vmatmul.f32.gmra.mxu0 %v8013
        %v8015 = vpop.f32.mrf.mxu0
        %v8016 = vadd.f32 %v7867, %v8015
        %v8017 = vand.u32 %v7339, 4294901760
        %8018 = vmatmul.f32.gmra.mxu0 %v8017
        %v8019 = vpop.f32.mrf.mxu0
        %v8020 = vadd.f32 %v7873, %v8019
        %v8021 = vand.u32 %v7340, 4294901760
        %8022 = vmatmul.f32.gmra.mxu0 %v8021
        %v8023 = vpop.f32.mrf.mxu0
        %v8024 = vadd.f32 %v7879, %v8023
        %v8025 = vand.u32 %v7341, 4294901760
        %8026 = vmatmul.f32.gmra.mxu0 %v8025
        %v8027 = vpop.f32.mrf.mxu0
        %v8028 = vadd.f32 %v7885, %v8027
        %v8029 = vand.u32 %v7342, 4294901760
        %8030 = vmatmul.f32.gmra.mxu0 %v8029
        %v8031 = vpop.f32.mrf.mxu0
        %v8032 = vadd.f32 %v7891, %v8031
        %v8033 = vand.u32 %v7343, 4294901760
        %8034 = vmatmul.f32.gmra.mxu0 %v8033
        %v8035 = vpop.f32.mrf.mxu0
        %v8036 = vadd.f32 %v7897, %v8035
        %v8037 = vand.u32 %v7344, 4294901760
        %8038 = vmatmul.f32.gmra.mxu0 %v8037
        %v8039 = vpop.f32.mrf.mxu0
        %v8040 = vadd.f32 %v7903, %v8039
        %v8041 = vand.u32 %v7345, 4294901760
        %8042 = vmatmul.f32.gmra.mxu0 %v8041
        %v8043 = vpop.f32.mrf.mxu0
        %v8044 = vadd.f32 %v7909, %v8043
        %v8045 = vand.u32 %v7346, 4294901760
        %8046 = vmatmul.f32.gmra.mxu0 %v8045
        %v8047 = vpop.f32.mrf.mxu0
        %v8048 = vadd.f32 %v7915, %v8047
        %v8049 = vand.u32 %v7347, 4294901760
        %8050 = vmatmul.f32.gmra.mxu0 %v8049
        %v8051 = vpop.f32.mrf.mxu0
        %v8052 = vadd.f32 %v7921, %v8051
        %v8053 = vand.u32 %v7348, 4294901760
        %8054 = vmatmul.f32.gmra.mxu0 %v8053
        %v8055 = vpop.f32.mrf.mxu0
        %v8056 = vadd.f32 %v7927, %v8055
        %8057 = vdwg.mxu0
        %v8058 = vand.u32 %v408, 4294901760
        %8059 = vmatpush.msra.mxu0 %v8058
        %v8060 = vand.u32 %v407, 4294901760
        %8061 = vmatpush.msra.mxu0 %v8060
        %v8062 = vand.u32 %v406, 4294901760
        %8063 = vmatpush.msra.mxu0 %v8062
        %v8064 = vand.u32 %v405, 4294901760
        %8065 = vmatpush.msra.mxu0 %v8064
        %v8066 = vand.u32 %v404, 4294901760
        %8067 = vmatpush.msra.mxu0 %v8066
        %v8068 = vand.u32 %v403, 4294901760
        %8069 = vmatpush.msra.mxu0 %v8068
        %v8070 = vand.u32 %v402, 4294901760
        %8071 = vmatpush.msra.mxu0 %v8070
        %v8072 = vand.u32 %v401, 4294901760
        %8073 = vmatpush.msra.mxu0 %v8072
        %v8074 = vand.u32 %v400, 4294901760
        %8075 = vmatpush.msra.mxu0 %v8074
        %v8076 = vand.u32 %v399, 4294901760
        %8077 = vmatpush.msra.mxu0 %v8076
        %v8078 = vand.u32 %v398, 4294901760
        %8079 = vmatpush.msra.mxu0 %v8078
        %v8080 = vand.u32 %v397, 4294901760
        %8081 = vmatpush.msra.mxu0 %v8080
        %v8082 = vand.u32 %v396, 4294901760
        %8083 = vmatpush.msra.mxu0 %v8082
        %v8084 = vand.u32 %v395, 4294901760
        %8085 = vmatpush.msra.mxu0 %v8084
        %v8086 = vand.u32 %v394, 4294901760
        %8087 = vmatpush.msra.mxu0 %v8086
        %v8088 = vand.u32 %v393, 4294901760
        %8089 = vmatpush.msra.mxu0 %v8088
        %v8090 = vand.u32 %v7333, 4294901760
        %8091 = vmatmul.f32.gmra.mxu0 %v8090
        %v8092 = vpop.f32.mrf.mxu0
        %v8093 = vadd.f32 %v7996, %v8092
        %v8094 = vand.u32 %v7334, 4294901760
        %8095 = vmatmul.f32.gmra.mxu0 %v8094
        %v8096 = vpop.f32.mrf.mxu0
        %v8097 = vadd.f32 %v8000, %v8096
        %v8098 = vand.u32 %v7335, 4294901760
        %8099 = vmatmul.f32.gmra.mxu0 %v8098
        %v8100 = vpop.f32.mrf.mxu0
        %v8101 = vadd.f32 %v8004, %v8100
        %v8102 = vand.u32 %v7336, 4294901760
        %8103 = vmatmul.f32.gmra.mxu0 %v8102
        %v8104 = vpop.f32.mrf.mxu0
        %v8105 = vadd.f32 %v8008, %v8104
        %v8106 = vand.u32 %v7337, 4294901760
        %8107 = vmatmul.f32.gmra.mxu0 %v8106
        %v8108 = vpop.f32.mrf.mxu0
        %v8109 = vadd.f32 %v8012, %v8108
        %v8110 = vand.u32 %v7338, 4294901760
        %8111 = vmatmul.f32.gmra.mxu0 %v8110
        %v8112 = vpop.f32.mrf.mxu0
        %v8113 = vadd.f32 %v8016, %v8112
        %v8114 = vand.u32 %v7339, 4294901760
        %8115 = vmatmul.f32.gmra.mxu0 %v8114
        %v8116 = vpop.f32.mrf.mxu0
        %v8117 = vadd.f32 %v8020, %v8116
        %v8118 = vand.u32 %v7340, 4294901760
        %8119 = vmatmul.f32.gmra.mxu0 %v8118
        %v8120 = vpop.f32.mrf.mxu0
        %v8121 = vadd.f32 %v8024, %v8120
        %v8122 = vand.u32 %v7341, 4294901760
        %8123 = vmatmul.f32.gmra.mxu0 %v8122
        %v8124 = vpop.f32.mrf.mxu0
        %v8125 = vadd.f32 %v8028, %v8124
        %v8126 = vand.u32 %v7342, 4294901760
        %8127 = vmatmul.f32.gmra.mxu0 %v8126
        %v8128 = vpop.f32.mrf.mxu0
        %v8129 = vadd.f32 %v8032, %v8128
        %v8130 = vand.u32 %v7343, 4294901760
        %8131 = vmatmul.f32.gmra.mxu0 %v8130
        %v8132 = vpop.f32.mrf.mxu0
        %v8133 = vadd.f32 %v8036, %v8132
        %v8134 = vand.u32 %v7344, 4294901760
        %8135 = vmatmul.f32.gmra.mxu0 %v8134
        %v8136 = vpop.f32.mrf.mxu0
        %v8137 = vadd.f32 %v8040, %v8136
        %v8138 = vand.u32 %v7345, 4294901760
        %8139 = vmatmul.f32.gmra.mxu0 %v8138
        %v8140 = vpop.f32.mrf.mxu0
        %v8141 = vadd.f32 %v8044, %v8140
        %v8142 = vand.u32 %v7346, 4294901760
        %8143 = vmatmul.f32.gmra.mxu0 %v8142
        %v8144 = vpop.f32.mrf.mxu0
        %v8145 = vadd.f32 %v8048, %v8144
        %v8146 = vand.u32 %v7347, 4294901760
        %8147 = vmatmul.f32.gmra.mxu0 %v8146
        %v8148 = vpop.f32.mrf.mxu0
        %v8149 = vadd.f32 %v8052, %v8148
        %v8150 = vand.u32 %v7348, 4294901760
        %8151 = vmatmul.f32.gmra.mxu0 %v8150
        %v8152 = vpop.f32.mrf.mxu0
        %v8153 = vadd.f32 %v8056, %v8152
        %8154 = vdwg.mxu0
        %v8155 = vand.u32 %v8153, 4294901760
        %8156 = vmatpush.msra.mxu0 %v8155
        %v8157 = vand.u32 %v8149, 4294901760
        %8158 = vmatpush.msra.mxu0 %v8157
        %v8159 = vand.u32 %v8145, 4294901760
        %8160 = vmatpush.msra.mxu0 %v8159
        %v8161 = vand.u32 %v8141, 4294901760
        %8162 = vmatpush.msra.mxu0 %v8161
        %v8163 = vand.u32 %v8137, 4294901760
        %8164 = vmatpush.msra.mxu0 %v8163
        %v8165 = vand.u32 %v8133, 4294901760
        %8166 = vmatpush.msra.mxu0 %v8165
        %v8167 = vand.u32 %v8129, 4294901760
        %8168 = vmatpush.msra.mxu0 %v8167
        %v8169 = vand.u32 %v8125, 4294901760
        %8170 = vmatpush.msra.mxu0 %v8169
        %v8171 = vand.u32 %v8121, 4294901760
        %8172 = vmatpush.msra.mxu0 %v8171
        %v8173 = vand.u32 %v8117, 4294901760
        %8174 = vmatpush.msra.mxu0 %v8173
        %v8175 = vand.u32 %v8113, 4294901760
        %8176 = vmatpush.msra.mxu0 %v8175
        %v8177 = vand.u32 %v8109, 4294901760
        %8178 = vmatpush.msra.mxu0 %v8177
        %v8179 = vand.u32 %v8105, 4294901760
        %8180 = vmatpush.msra.mxu0 %v8179
        %v8181 = vand.u32 %v8101, 4294901760
        %8182 = vmatpush.msra.mxu0 %v8181
        %v8183 = vand.u32 %v8097, 4294901760
        %8184 = vmatpush.msra.mxu0 %v8183
        %v8185 = vand.u32 %v8093, 4294901760
        %8186 = vmatpush.msra.mxu0 %v8185
        %v8187 = vand.u32 %v385, 4294901760
        %v8188 = vsub.f32 %v385, %v8187
        %v8189 = vand.u32 %v8188, 4294901760
        %v8190 = vsub.f32 %v8188, %v8189
        %v8191 = vand.u32 %v8190, 4294901760
        %8192 = vmatmul.f32.gmra.mxu0 %v8191
        %v8193 = vpop.f32.mrf.mxu0
        %v8194 = vadd.f32 0.0, %v8193
        %v8195 = vand.u32 %v386, 4294901760
        %v8196 = vsub.f32 %v386, %v8195
        %v8197 = vand.u32 %v8196, 4294901760
        %v8198 = vsub.f32 %v8196, %v8197
        %v8199 = vand.u32 %v8198, 4294901760
        %8200 = vmatmul.f32.gmra.mxu0 %v8199
        %v8201 = vpop.f32.mrf.mxu0
        %v8202 = vadd.f32 0.0, %v8201
        %v8203 = vand.u32 %v387, 4294901760
        %v8204 = vsub.f32 %v387, %v8203
        %v8205 = vand.u32 %v8204, 4294901760
        %v8206 = vsub.f32 %v8204, %v8205
        %v8207 = vand.u32 %v8206, 4294901760
        %8208 = vmatmul.f32.gmra.mxu0 %v8207
        %v8209 = vpop.f32.mrf.mxu0
        %v8210 = vadd.f32 0.0, %v8209
        %v8211 = vand.u32 %v388, 4294901760
        %v8212 = vsub.f32 %v388, %v8211
        %v8213 = vand.u32 %v8212, 4294901760
        %v8214 = vsub.f32 %v8212, %v8213
        %v8215 = vand.u32 %v8214, 4294901760
        %8216 = vmatmul.f32.gmra.mxu0 %v8215
        %v8217 = vpop.f32.mrf.mxu0
        %v8218 = vadd.f32 0.0, %v8217
        %8219 = vdwg.mxu0
        %v8220 = vand.u32 %v8153, 4294901760
        %v8221 = vsub.f32 %v8153, %v8220
        %v8222 = vand.u32 %v8221, 4294901760
        %v8223 = vsub.f32 %v8221, %v8222
        %v8224 = vand.u32 %v8223, 4294901760
        %8225 = vmatpush.msra.mxu0 %v8224
        %v8226 = vand.u32 %v8149, 4294901760
        %v8227 = vsub.f32 %v8149, %v8226
        %v8228 = vand.u32 %v8227, 4294901760
        %v8229 = vsub.f32 %v8227, %v8228
        %v8230 = vand.u32 %v8229, 4294901760
        %8231 = vmatpush.msra.mxu0 %v8230
        %v8232 = vand.u32 %v8145, 4294901760
        %v8233 = vsub.f32 %v8145, %v8232
        %v8234 = vand.u32 %v8233, 4294901760
        %v8235 = vsub.f32 %v8233, %v8234
        %v8236 = vand.u32 %v8235, 4294901760
        %8237 = vmatpush.msra.mxu0 %v8236
        %v8238 = vand.u32 %v8141, 4294901760
        %v8239 = vsub.f32 %v8141, %v8238
        %v8240 = vand.u32 %v8239, 4294901760
        %v8241 = vsub.f32 %v8239, %v8240
        %v8242 = vand.u32 %v8241, 4294901760
        %8243 = vmatpush.msra.mxu0 %v8242
        %v8244 = vand.u32 %v8137, 4294901760
        %v8245 = vsub.f32 %v8137, %v8244
        %v8246 = vand.u32 %v8245, 4294901760
        %v8247 = vsub.f32 %v8245, %v8246
        %v8248 = vand.u32 %v8247, 4294901760
        %8249 = vmatpush.msra.mxu0 %v8248
        %v8250 = vand.u32 %v8133, 4294901760
        %v8251 = vsub.f32 %v8133, %v8250
        %v8252 = vand.u32 %v8251, 4294901760
        %v8253 = vsub.f32 %v8251, %v8252
        %v8254 = vand.u32 %v8253, 4294901760
        %8255 = vmatpush.msra.mxu0 %v8254
        %v8256 = vand.u32 %v8129, 4294901760
        %v8257 = vsub.f32 %v8129, %v8256
        %v8258 = vand.u32 %v8257, 4294901760
        %v8259 = vsub.f32 %v8257, %v8258
        %v8260 = vand.u32 %v8259, 4294901760
        %8261 = vmatpush.msra.mxu0 %v8260
        %v8262 = vand.u32 %v8125, 4294901760
        %v8263 = vsub.f32 %v8125, %v8262
        %v8264 = vand.u32 %v8263, 4294901760
        %v8265 = vsub.f32 %v8263, %v8264
        %v8266 = vand.u32 %v8265, 4294901760
        %8267 = vmatpush.msra.mxu0 %v8266
        %v8268 = vand.u32 %v8121, 4294901760
        %v8269 = vsub.f32 %v8121, %v8268
        %v8270 = vand.u32 %v8269, 4294901760
        %v8271 = vsub.f32 %v8269, %v8270
        %v8272 = vand.u32 %v8271, 4294901760
        %8273 = vmatpush.msra.mxu0 %v8272
        %v8274 = vand.u32 %v8117, 4294901760
        %v8275 = vsub.f32 %v8117, %v8274
        %v8276 = vand.u32 %v8275, 4294901760
        %v8277 = vsub.f32 %v8275, %v8276
        %v8278 = vand.u32 %v8277, 4294901760
        %8279 = vmatpush.msra.mxu0 %v8278
        %v8280 = vand.u32 %v8113, 4294901760
        %v8281 = vsub.f32 %v8113, %v8280
        %v8282 = vand.u32 %v8281, 4294901760
        %v8283 = vsub.f32 %v8281, %v8282
        %v8284 = vand.u32 %v8283, 4294901760
        %8285 = vmatpush.msra.mxu0 %v8284
        %v8286 = vand.u32 %v8109, 4294901760
        %v8287 = vsub.f32 %v8109, %v8286
        %v8288 = vand.u32 %v8287, 4294901760
        %v8289 = vsub.f32 %v8287, %v8288
        %v8290 = vand.u32 %v8289, 4294901760
        %8291 = vmatpush.msra.mxu0 %v8290
        %v8292 = vand.u32 %v8105, 4294901760
        %v8293 = vsub.f32 %v8105, %v8292
        %v8294 = vand.u32 %v8293, 4294901760
        %v8295 = vsub.f32 %v8293, %v8294
        %v8296 = vand.u32 %v8295, 4294901760
        %8297 = vmatpush.msra.mxu0 %v8296
        %v8298 = vand.u32 %v8101, 4294901760
        %v8299 = vsub.f32 %v8101, %v8298
        %v8300 = vand.u32 %v8299, 4294901760
        %v8301 = vsub.f32 %v8299, %v8300
        %v8302 = vand.u32 %v8301, 4294901760
        %8303 = vmatpush.msra.mxu0 %v8302
        %v8304 = vand.u32 %v8097, 4294901760
        %v8305 = vsub.f32 %v8097, %v8304
        %v8306 = vand.u32 %v8305, 4294901760
        %v8307 = vsub.f32 %v8305, %v8306
        %v8308 = vand.u32 %v8307, 4294901760
        %8309 = vmatpush.msra.mxu0 %v8308
        %v8310 = vand.u32 %v8093, 4294901760
        %v8311 = vsub.f32 %v8093, %v8310
        %v8312 = vand.u32 %v8311, 4294901760
        %v8313 = vsub.f32 %v8311, %v8312
        %v8314 = vand.u32 %v8313, 4294901760
        %8315 = vmatpush.msra.mxu0 %v8314
        %v8316 = vand.u32 %v385, 4294901760
        %8317 = vmatmul.f32.gmra.mxu0 %v8316
        %v8318 = vpop.f32.mrf.mxu0
        %v8319 = vadd.f32 %v8194, %v8318
        %v8320 = vand.u32 %v386, 4294901760
        %8321 = vmatmul.f32.gmra.mxu0 %v8320
        %v8322 = vpop.f32.mrf.mxu0
        %v8323 = vadd.f32 %v8202, %v8322
        %v8324 = vand.u32 %v387, 4294901760
        %8325 = vmatmul.f32.gmra.mxu0 %v8324
        %v8326 = vpop.f32.mrf.mxu0
        %v8327 = vadd.f32 %v8210, %v8326
        %v8328 = vand.u32 %v388, 4294901760
        %8329 = vmatmul.f32.gmra.mxu0 %v8328
        %v8330 = vpop.f32.mrf.mxu0
        %v8331 = vadd.f32 %v8218, %v8330
        %8332 = vdwg.mxu0
        %v8333 = vand.u32 %v8153, 4294901760
        %v8334 = vsub.f32 %v8153, %v8333
        %8335 = vmatpush.msra.mxu0 %v8334
        %v8336 = vand.u32 %v8149, 4294901760
        %v8337 = vsub.f32 %v8149, %v8336
        %8338 = vmatpush.msra.mxu0 %v8337
        %v8339 = vand.u32 %v8145, 4294901760
        %v8340 = vsub.f32 %v8145, %v8339
        %8341 = vmatpush.msra.mxu0 %v8340
        %v8342 = vand.u32 %v8141, 4294901760
        %v8343 = vsub.f32 %v8141, %v8342
        %8344 = vmatpush.msra.mxu0 %v8343
        %v8345 = vand.u32 %v8137, 4294901760
        %v8346 = vsub.f32 %v8137, %v8345
        %8347 = vmatpush.msra.mxu0 %v8346
        %v8348 = vand.u32 %v8133, 4294901760
        %v8349 = vsub.f32 %v8133, %v8348
        %8350 = vmatpush.msra.mxu0 %v8349
        %v8351 = vand.u32 %v8129, 4294901760
        %v8352 = vsub.f32 %v8129, %v8351
        %8353 = vmatpush.msra.mxu0 %v8352
        %v8354 = vand.u32 %v8125, 4294901760
        %v8355 = vsub.f32 %v8125, %v8354
        %8356 = vmatpush.msra.mxu0 %v8355
        %v8357 = vand.u32 %v8121, 4294901760
        %v8358 = vsub.f32 %v8121, %v8357
        %8359 = vmatpush.msra.mxu0 %v8358
        %v8360 = vand.u32 %v8117, 4294901760
        %v8361 = vsub.f32 %v8117, %v8360
        %8362 = vmatpush.msra.mxu0 %v8361
        %v8363 = vand.u32 %v8113, 4294901760
        %v8364 = vsub.f32 %v8113, %v8363
        %8365 = vmatpush.msra.mxu0 %v8364
        %v8366 = vand.u32 %v8109, 4294901760
        %v8367 = vsub.f32 %v8109, %v8366
        %8368 = vmatpush.msra.mxu0 %v8367
        %v8369 = vand.u32 %v8105, 4294901760
        %v8370 = vsub.f32 %v8105, %v8369
        %8371 = vmatpush.msra.mxu0 %v8370
        %v8372 = vand.u32 %v8101, 4294901760
        %v8373 = vsub.f32 %v8101, %v8372
        %8374 = vmatpush.msra.mxu0 %v8373
        %v8375 = vand.u32 %v8097, 4294901760
        %v8376 = vsub.f32 %v8097, %v8375
        %8377 = vmatpush.msra.mxu0 %v8376
        %v8378 = vand.u32 %v8093, 4294901760
        %v8379 = vsub.f32 %v8093, %v8378
        %8380 = vmatpush.msra.mxu0 %v8379
        %v8381 = vand.u32 %v385, 4294901760
        %v8382 = vsub.f32 %v385, %v8381
        %8383 = vmatmul.f32.gmra.mxu0 %v8382
        %v8384 = vpop.f32.mrf.mxu0
        %v8385 = vadd.f32 %v8319, %v8384
        %v8386 = vand.u32 %v386, 4294901760
        %v8387 = vsub.f32 %v386, %v8386
        %8388 = vmatmul.f32.gmra.mxu0 %v8387
        %v8389 = vpop.f32.mrf.mxu0
        %v8390 = vadd.f32 %v8323, %v8389
        %v8391 = vand.u32 %v387, 4294901760
        %v8392 = vsub.f32 %v387, %v8391
        %8393 = vmatmul.f32.gmra.mxu0 %v8392
        %v8394 = vpop.f32.mrf.mxu0
        %v8395 = vadd.f32 %v8327, %v8394
        %v8396 = vand.u32 %v388, 4294901760
        %v8397 = vsub.f32 %v388, %v8396
        %8398 = vmatmul.f32.gmra.mxu0 %v8397
        %v8399 = vpop.f32.mrf.mxu0
        %v8400 = vadd.f32 %v8331, %v8399
        %8401 = vdwg.mxu0
        %v8402 = vand.u32 %v8153, 4294901760
        %8403 = vmatpush.msra.mxu0 %v8402
        %v8404 = vand.u32 %v8149, 4294901760
        %8405 = vmatpush.msra.mxu0 %v8404
        %v8406 = vand.u32 %v8145, 4294901760
        %8407 = vmatpush.msra.mxu0 %v8406
        %v8408 = vand.u32 %v8141, 4294901760
        %8409 = vmatpush.msra.mxu0 %v8408
        %v8410 = vand.u32 %v8137, 4294901760
        %8411 = vmatpush.msra.mxu0 %v8410
        %v8412 = vand.u32 %v8133, 4294901760
        %8413 = vmatpush.msra.mxu0 %v8412
        %v8414 = vand.u32 %v8129, 4294901760
        %8415 = vmatpush.msra.mxu0 %v8414
        %v8416 = vand.u32 %v8125, 4294901760
        %8417 = vmatpush.msra.mxu0 %v8416
        %v8418 = vand.u32 %v8121, 4294901760
        %8419 = vmatpush.msra.mxu0 %v8418
        %v8420 = vand.u32 %v8117, 4294901760
        %8421 = vmatpush.msra.mxu0 %v8420
        %v8422 = vand.u32 %v8113, 4294901760
        %8423 = vmatpush.msra.mxu0 %v8422
        %v8424 = vand.u32 %v8109, 4294901760
        %8425 = vmatpush.msra.mxu0 %v8424
        %v8426 = vand.u32 %v8105, 4294901760
        %8427 = vmatpush.msra.mxu0 %v8426
        %v8428 = vand.u32 %v8101, 4294901760
        %8429 = vmatpush.msra.mxu0 %v8428
        %v8430 = vand.u32 %v8097, 4294901760
        %8431 = vmatpush.msra.mxu0 %v8430
        %v8432 = vand.u32 %v8093, 4294901760
        %8433 = vmatpush.msra.mxu0 %v8432
        %v8434 = vand.u32 %v385, 4294901760
        %v8435 = vsub.f32 %v385, %v8434
        %v8436 = vand.u32 %v8435, 4294901760
        %8437 = vmatmul.f32.gmra.mxu0 %v8436
        %v8438 = vpop.f32.mrf.mxu0
        %v8439 = vadd.f32 %v8385, %v8438
        %v8440 = vand.u32 %v386, 4294901760
        %v8441 = vsub.f32 %v386, %v8440
        %v8442 = vand.u32 %v8441, 4294901760
        %8443 = vmatmul.f32.gmra.mxu0 %v8442
        %v8444 = vpop.f32.mrf.mxu0
        %v8445 = vadd.f32 %v8390, %v8444
        %v8446 = vand.u32 %v387, 4294901760
        %v8447 = vsub.f32 %v387, %v8446
        %v8448 = vand.u32 %v8447, 4294901760
        %8449 = vmatmul.f32.gmra.mxu0 %v8448
        %v8450 = vpop.f32.mrf.mxu0
        %v8451 = vadd.f32 %v8395, %v8450
        %v8452 = vand.u32 %v388, 4294901760
        %v8453 = vsub.f32 %v388, %v8452
        %v8454 = vand.u32 %v8453, 4294901760
        %8455 = vmatmul.f32.gmra.mxu0 %v8454
        %v8456 = vpop.f32.mrf.mxu0
        %v8457 = vadd.f32 %v8400, %v8456
        %8458 = vdwg.mxu0
        %v8459 = vand.u32 %v8153, 4294901760
        %v8460 = vsub.f32 %v8153, %v8459
        %v8461 = vand.u32 %v8460, 4294901760
        %8462 = vmatpush.msra.mxu0 %v8461
        %v8463 = vand.u32 %v8149, 4294901760
        %v8464 = vsub.f32 %v8149, %v8463
        %v8465 = vand.u32 %v8464, 4294901760
        %8466 = vmatpush.msra.mxu0 %v8465
        %v8467 = vand.u32 %v8145, 4294901760
        %v8468 = vsub.f32 %v8145, %v8467
        %v8469 = vand.u32 %v8468, 4294901760
        %8470 = vmatpush.msra.mxu0 %v8469
        %v8471 = vand.u32 %v8141, 4294901760
        %v8472 = vsub.f32 %v8141, %v8471
        %v8473 = vand.u32 %v8472, 4294901760
        %8474 = vmatpush.msra.mxu0 %v8473
        %v8475 = vand.u32 %v8137, 4294901760
        %v8476 = vsub.f32 %v8137, %v8475
        %v8477 = vand.u32 %v8476, 4294901760
        %8478 = vmatpush.msra.mxu0 %v8477
        %v8479 = vand.u32 %v8133, 4294901760
        %v8480 = vsub.f32 %v8133, %v8479
        %v8481 = vand.u32 %v8480, 4294901760
        %8482 = vmatpush.msra.mxu0 %v8481
        %v8483 = vand.u32 %v8129, 4294901760
        %v8484 = vsub.f32 %v8129, %v8483
        %v8485 = vand.u32 %v8484, 4294901760
        %8486 = vmatpush.msra.mxu0 %v8485
        %v8487 = vand.u32 %v8125, 4294901760
        %v8488 = vsub.f32 %v8125, %v8487
        %v8489 = vand.u32 %v8488, 4294901760
        %8490 = vmatpush.msra.mxu0 %v8489
        %v8491 = vand.u32 %v8121, 4294901760
        %v8492 = vsub.f32 %v8121, %v8491
        %v8493 = vand.u32 %v8492, 4294901760
        %8494 = vmatpush.msra.mxu0 %v8493
        %v8495 = vand.u32 %v8117, 4294901760
        %v8496 = vsub.f32 %v8117, %v8495
        %v8497 = vand.u32 %v8496, 4294901760
        %8498 = vmatpush.msra.mxu0 %v8497
        %v8499 = vand.u32 %v8113, 4294901760
        %v8500 = vsub.f32 %v8113, %v8499
        %v8501 = vand.u32 %v8500, 4294901760
        %8502 = vmatpush.msra.mxu0 %v8501
        %v8503 = vand.u32 %v8109, 4294901760
        %v8504 = vsub.f32 %v8109, %v8503
        %v8505 = vand.u32 %v8504, 4294901760
        %8506 = vmatpush.msra.mxu0 %v8505
        %v8507 = vand.u32 %v8105, 4294901760
        %v8508 = vsub.f32 %v8105, %v8507
        %v8509 = vand.u32 %v8508, 4294901760
        %8510 = vmatpush.msra.mxu0 %v8509
        %v8511 = vand.u32 %v8101, 4294901760
        %v8512 = vsub.f32 %v8101, %v8511
        %v8513 = vand.u32 %v8512, 4294901760
        %8514 = vmatpush.msra.mxu0 %v8513
        %v8515 = vand.u32 %v8097, 4294901760
        %v8516 = vsub.f32 %v8097, %v8515
        %v8517 = vand.u32 %v8516, 4294901760
        %8518 = vmatpush.msra.mxu0 %v8517
        %v8519 = vand.u32 %v8093, 4294901760
        %v8520 = vsub.f32 %v8093, %v8519
        %v8521 = vand.u32 %v8520, 4294901760
        %8522 = vmatpush.msra.mxu0 %v8521
        %v8523 = vand.u32 %v385, 4294901760
        %8524 = vmatmul.f32.gmra.mxu0 %v8523
        %v8525 = vpop.f32.mrf.mxu0
        %v8526 = vadd.f32 %v8439, %v8525
        %v8527 = vand.u32 %v386, 4294901760
        %8528 = vmatmul.f32.gmra.mxu0 %v8527
        %v8529 = vpop.f32.mrf.mxu0
        %v8530 = vadd.f32 %v8445, %v8529
        %v8531 = vand.u32 %v387, 4294901760
        %8532 = vmatmul.f32.gmra.mxu0 %v8531
        %v8533 = vpop.f32.mrf.mxu0
        %v8534 = vadd.f32 %v8451, %v8533
        %v8535 = vand.u32 %v388, 4294901760
        %8536 = vmatmul.f32.gmra.mxu0 %v8535
        %v8537 = vpop.f32.mrf.mxu0
        %v8538 = vadd.f32 %v8457, %v8537
        %8539 = vdwg.mxu0
        %v8540 = vand.u32 %v8153, 4294901760
        %8541 = vmatpush.msra.mxu0 %v8540
        %v8542 = vand.u32 %v8149, 4294901760
        %8543 = vmatpush.msra.mxu0 %v8542
        %v8544 = vand.u32 %v8145, 4294901760
        %8545 = vmatpush.msra.mxu0 %v8544
        %v8546 = vand.u32 %v8141, 4294901760
        %8547 = vmatpush.msra.mxu0 %v8546
        %v8548 = vand.u32 %v8137, 4294901760
        %8549 = vmatpush.msra.mxu0 %v8548
        %v8550 = vand.u32 %v8133, 4294901760
        %8551 = vmatpush.msra.mxu0 %v8550
        %v8552 = vand.u32 %v8129, 4294901760
        %8553 = vmatpush.msra.mxu0 %v8552
        %v8554 = vand.u32 %v8125, 4294901760
        %8555 = vmatpush.msra.mxu0 %v8554
        %v8556 = vand.u32 %v8121, 4294901760
        %8557 = vmatpush.msra.mxu0 %v8556
        %v8558 = vand.u32 %v8117, 4294901760
        %8559 = vmatpush.msra.mxu0 %v8558
        %v8560 = vand.u32 %v8113, 4294901760
        %8561 = vmatpush.msra.mxu0 %v8560
        %v8562 = vand.u32 %v8109, 4294901760
        %8563 = vmatpush.msra.mxu0 %v8562
        %v8564 = vand.u32 %v8105, 4294901760
        %8565 = vmatpush.msra.mxu0 %v8564
        %v8566 = vand.u32 %v8101, 4294901760
        %8567 = vmatpush.msra.mxu0 %v8566
        %v8568 = vand.u32 %v8097, 4294901760
        %8569 = vmatpush.msra.mxu0 %v8568
        %v8570 = vand.u32 %v8093, 4294901760
        %8571 = vmatpush.msra.mxu0 %v8570
        %v8572 = vand.u32 %v385, 4294901760
        %8573 = vmatmul.f32.gmra.mxu0 %v8572
        %v8574 = vpop.f32.mrf.mxu0
        %v8575 = vadd.f32 %v8526, %v8574
        %v8576 = vand.u32 %v386, 4294901760
        %8577 = vmatmul.f32.gmra.mxu0 %v8576
        %v8578 = vpop.f32.mrf.mxu0
        %v8579 = vadd.f32 %v8530, %v8578
        %v8580 = vand.u32 %v387, 4294901760
        %8581 = vmatmul.f32.gmra.mxu0 %v8580
        %v8582 = vpop.f32.mrf.mxu0
        %v8583 = vadd.f32 %v8534, %v8582
        %v8584 = vand.u32 %v388, 4294901760
        %8585 = vmatmul.f32.gmra.mxu0 %v8584
        %v8586 = vpop.f32.mrf.mxu0
        %v8587 = vadd.f32 %v8538, %v8586
        %8588 = vdwg.mxu0
        %v8589 = vand.u32 %v8153, 4294901760
        %8590 = vmatpush.msra.mxu0 %v8589
        %v8591 = vand.u32 %v8149, 4294901760
        %8592 = vmatpush.msra.mxu0 %v8591
        %v8593 = vand.u32 %v8145, 4294901760
        %8594 = vmatpush.msra.mxu0 %v8593
        %v8595 = vand.u32 %v8141, 4294901760
        %8596 = vmatpush.msra.mxu0 %v8595
        %v8597 = vand.u32 %v8137, 4294901760
        %8598 = vmatpush.msra.mxu0 %v8597
        %v8599 = vand.u32 %v8133, 4294901760
        %8600 = vmatpush.msra.mxu0 %v8599
        %v8601 = vand.u32 %v8129, 4294901760
        %8602 = vmatpush.msra.mxu0 %v8601
        %v8603 = vand.u32 %v8125, 4294901760
        %8604 = vmatpush.msra.mxu0 %v8603
        %v8605 = vand.u32 %v8121, 4294901760
        %8606 = vmatpush.msra.mxu0 %v8605
        %v8607 = vand.u32 %v8117, 4294901760
        %8608 = vmatpush.msra.mxu0 %v8607
        %v8609 = vand.u32 %v8113, 4294901760
        %8610 = vmatpush.msra.mxu0 %v8609
        %v8611 = vand.u32 %v8109, 4294901760
        %8612 = vmatpush.msra.mxu0 %v8611
        %v8613 = vand.u32 %v8105, 4294901760
        %8614 = vmatpush.msra.mxu0 %v8613
        %v8615 = vand.u32 %v8101, 4294901760
        %8616 = vmatpush.msra.mxu0 %v8615
        %v8617 = vand.u32 %v8097, 4294901760
        %8618 = vmatpush.msra.mxu0 %v8617
        %v8619 = vand.u32 %v8093, 4294901760
        %8620 = vmatpush.msra.mxu0 %v8619
        %v8621 = vand.u32 %v389, 4294901760
        %v8622 = vsub.f32 %v389, %v8621
        %v8623 = vand.u32 %v8622, 4294901760
        %v8624 = vsub.f32 %v8622, %v8623
        %v8625 = vand.u32 %v8624, 4294901760
        %8626 = vmatmul.f32.gmra.mxu0 %v8625
        %v8627 = vpop.f32.mrf.mxu0
        %v8628 = vadd.f32 0.0, %v8627
        %v8629 = vand.u32 %v390, 4294901760
        %v8630 = vsub.f32 %v390, %v8629
        %v8631 = vand.u32 %v8630, 4294901760
        %v8632 = vsub.f32 %v8630, %v8631
        %v8633 = vand.u32 %v8632, 4294901760
        %8634 = vmatmul.f32.gmra.mxu0 %v8633
        %v8635 = vpop.f32.mrf.mxu0
        %v8636 = vadd.f32 0.0, %v8635
        %v8637 = vand.u32 %v391, 4294901760
        %v8638 = vsub.f32 %v391, %v8637
        %v8639 = vand.u32 %v8638, 4294901760
        %v8640 = vsub.f32 %v8638, %v8639
        %v8641 = vand.u32 %v8640, 4294901760
        %8642 = vmatmul.f32.gmra.mxu0 %v8641
        %v8643 = vpop.f32.mrf.mxu0
        %v8644 = vadd.f32 0.0, %v8643
        %v8645 = vand.u32 %v392, 4294901760
        %v8646 = vsub.f32 %v392, %v8645
        %v8647 = vand.u32 %v8646, 4294901760
        %v8648 = vsub.f32 %v8646, %v8647
        %v8649 = vand.u32 %v8648, 4294901760
        %8650 = vmatmul.f32.gmra.mxu0 %v8649
        %v8651 = vpop.f32.mrf.mxu0
        %v8652 = vadd.f32 0.0, %v8651
        %8653 = vdwg.mxu0
        %v8654 = vand.u32 %v8153, 4294901760
        %v8655 = vsub.f32 %v8153, %v8654
        %v8656 = vand.u32 %v8655, 4294901760
        %v8657 = vsub.f32 %v8655, %v8656
        %v8658 = vand.u32 %v8657, 4294901760
        %8659 = vmatpush.msra.mxu0 %v8658
        %v8660 = vand.u32 %v8149, 4294901760
        %v8661 = vsub.f32 %v8149, %v8660
        %v8662 = vand.u32 %v8661, 4294901760
        %v8663 = vsub.f32 %v8661, %v8662
        %v8664 = vand.u32 %v8663, 4294901760
        %8665 = vmatpush.msra.mxu0 %v8664
        %v8666 = vand.u32 %v8145, 4294901760
        %v8667 = vsub.f32 %v8145, %v8666
        %v8668 = vand.u32 %v8667, 4294901760
        %v8669 = vsub.f32 %v8667, %v8668
        %v8670 = vand.u32 %v8669, 4294901760
        %8671 = vmatpush.msra.mxu0 %v8670
        %v8672 = vand.u32 %v8141, 4294901760
        %v8673 = vsub.f32 %v8141, %v8672
        %v8674 = vand.u32 %v8673, 4294901760
        %v8675 = vsub.f32 %v8673, %v8674
        %v8676 = vand.u32 %v8675, 4294901760
        %8677 = vmatpush.msra.mxu0 %v8676
        %v8678 = vand.u32 %v8137, 4294901760
        %v8679 = vsub.f32 %v8137, %v8678
        %v8680 = vand.u32 %v8679, 4294901760
        %v8681 = vsub.f32 %v8679, %v8680
        %v8682 = vand.u32 %v8681, 4294901760
        %8683 = vmatpush.msra.mxu0 %v8682
        %v8684 = vand.u32 %v8133, 4294901760
        %v8685 = vsub.f32 %v8133, %v8684
        %v8686 = vand.u32 %v8685, 4294901760
        %v8687 = vsub.f32 %v8685, %v8686
        %v8688 = vand.u32 %v8687, 4294901760
        %8689 = vmatpush.msra.mxu0 %v8688
        %v8690 = vand.u32 %v8129, 4294901760
        %v8691 = vsub.f32 %v8129, %v8690
        %v8692 = vand.u32 %v8691, 4294901760
        %v8693 = vsub.f32 %v8691, %v8692
        %v8694 = vand.u32 %v8693, 4294901760
        %8695 = vmatpush.msra.mxu0 %v8694
        %v8696 = vand.u32 %v8125, 4294901760
        %v8697 = vsub.f32 %v8125, %v8696
        %v8698 = vand.u32 %v8697, 4294901760
        %v8699 = vsub.f32 %v8697, %v8698
        %v8700 = vand.u32 %v8699, 4294901760
        %8701 = vmatpush.msra.mxu0 %v8700
        %v8702 = vand.u32 %v8121, 4294901760
        %v8703 = vsub.f32 %v8121, %v8702
        %v8704 = vand.u32 %v8703, 4294901760
        %v8705 = vsub.f32 %v8703, %v8704
        %v8706 = vand.u32 %v8705, 4294901760
        %8707 = vmatpush.msra.mxu0 %v8706
        %v8708 = vand.u32 %v8117, 4294901760
        %v8709 = vsub.f32 %v8117, %v8708
        %v8710 = vand.u32 %v8709, 4294901760
        %v8711 = vsub.f32 %v8709, %v8710
        %v8712 = vand.u32 %v8711, 4294901760
        %8713 = vmatpush.msra.mxu0 %v8712
        %v8714 = vand.u32 %v8113, 4294901760
        %v8715 = vsub.f32 %v8113, %v8714
        %v8716 = vand.u32 %v8715, 4294901760
        %v8717 = vsub.f32 %v8715, %v8716
        %v8718 = vand.u32 %v8717, 4294901760
        %8719 = vmatpush.msra.mxu0 %v8718
        %v8720 = vand.u32 %v8109, 4294901760
        %v8721 = vsub.f32 %v8109, %v8720
        %v8722 = vand.u32 %v8721, 4294901760
        %v8723 = vsub.f32 %v8721, %v8722
        %v8724 = vand.u32 %v8723, 4294901760
        %8725 = vmatpush.msra.mxu0 %v8724
        %v8726 = vand.u32 %v8105, 4294901760
        %v8727 = vsub.f32 %v8105, %v8726
        %v8728 = vand.u32 %v8727, 4294901760
        %v8729 = vsub.f32 %v8727, %v8728
        %v8730 = vand.u32 %v8729, 4294901760
        %8731 = vmatpush.msra.mxu0 %v8730
        %v8732 = vand.u32 %v8101, 4294901760
        %v8733 = vsub.f32 %v8101, %v8732
        %v8734 = vand.u32 %v8733, 4294901760
        %v8735 = vsub.f32 %v8733, %v8734
        %v8736 = vand.u32 %v8735, 4294901760
        %8737 = vmatpush.msra.mxu0 %v8736
        %v8738 = vand.u32 %v8097, 4294901760
        %v8739 = vsub.f32 %v8097, %v8738
        %v8740 = vand.u32 %v8739, 4294901760
        %v8741 = vsub.f32 %v8739, %v8740
        %v8742 = vand.u32 %v8741, 4294901760
        %8743 = vmatpush.msra.mxu0 %v8742
        %v8744 = vand.u32 %v8093, 4294901760
        %v8745 = vsub.f32 %v8093, %v8744
        %v8746 = vand.u32 %v8745, 4294901760
        %v8747 = vsub.f32 %v8745, %v8746
        %v8748 = vand.u32 %v8747, 4294901760
        %8749 = vmatpush.msra.mxu0 %v8748
        %v8750 = vand.u32 %v389, 4294901760
        %8751 = vmatmul.f32.gmra.mxu0 %v8750
        %v8752 = vpop.f32.mrf.mxu0
        %v8753 = vadd.f32 %v8628, %v8752
        %v8754 = vand.u32 %v390, 4294901760
        %8755 = vmatmul.f32.gmra.mxu0 %v8754
        %v8756 = vpop.f32.mrf.mxu0
        %v8757 = vadd.f32 %v8636, %v8756
        %v8758 = vand.u32 %v391, 4294901760
        %8759 = vmatmul.f32.gmra.mxu0 %v8758
        %v8760 = vpop.f32.mrf.mxu0
        %v8761 = vadd.f32 %v8644, %v8760
        %v8762 = vand.u32 %v392, 4294901760
        %8763 = vmatmul.f32.gmra.mxu0 %v8762
        %v8764 = vpop.f32.mrf.mxu0
        %v8765 = vadd.f32 %v8652, %v8764
        %8766 = vdwg.mxu0
        %v8767 = vand.u32 %v8153, 4294901760
        %v8768 = vsub.f32 %v8153, %v8767
        %8769 = vmatpush.msra.mxu0 %v8768
        %v8770 = vand.u32 %v8149, 4294901760
        %v8771 = vsub.f32 %v8149, %v8770
        %8772 = vmatpush.msra.mxu0 %v8771
        %v8773 = vand.u32 %v8145, 4294901760
        %v8774 = vsub.f32 %v8145, %v8773
        %8775 = vmatpush.msra.mxu0 %v8774
        %v8776 = vand.u32 %v8141, 4294901760
        %v8777 = vsub.f32 %v8141, %v8776
        %8778 = vmatpush.msra.mxu0 %v8777
        %v8779 = vand.u32 %v8137, 4294901760
        %v8780 = vsub.f32 %v8137, %v8779
        %8781 = vmatpush.msra.mxu0 %v8780
        %v8782 = vand.u32 %v8133, 4294901760
        %v8783 = vsub.f32 %v8133, %v8782
        %8784 = vmatpush.msra.mxu0 %v8783
        %v8785 = vand.u32 %v8129, 4294901760
        %v8786 = vsub.f32 %v8129, %v8785
        %8787 = vmatpush.msra.mxu0 %v8786
        %v8788 = vand.u32 %v8125, 4294901760
        %v8789 = vsub.f32 %v8125, %v8788
        %8790 = vmatpush.msra.mxu0 %v8789
        %v8791 = vand.u32 %v8121, 4294901760
        %v8792 = vsub.f32 %v8121, %v8791
        %8793 = vmatpush.msra.mxu0 %v8792
        %v8794 = vand.u32 %v8117, 4294901760
        %v8795 = vsub.f32 %v8117, %v8794
        %8796 = vmatpush.msra.mxu0 %v8795
        %v8797 = vand.u32 %v8113, 4294901760
        %v8798 = vsub.f32 %v8113, %v8797
        %8799 = vmatpush.msra.mxu0 %v8798
        %v8800 = vand.u32 %v8109, 4294901760
        %v8801 = vsub.f32 %v8109, %v8800
        %8802 = vmatpush.msra.mxu0 %v8801
        %v8803 = vand.u32 %v8105, 4294901760
        %v8804 = vsub.f32 %v8105, %v8803
        %8805 = vmatpush.msra.mxu0 %v8804
        %v8806 = vand.u32 %v8101, 4294901760
        %v8807 = vsub.f32 %v8101, %v8806
        %8808 = vmatpush.msra.mxu0 %v8807
        %v8809 = vand.u32 %v8097, 4294901760
        %v8810 = vsub.f32 %v8097, %v8809
        %8811 = vmatpush.msra.mxu0 %v8810
        %v8812 = vand.u32 %v8093, 4294901760
        %v8813 = vsub.f32 %v8093, %v8812
        %8814 = vmatpush.msra.mxu0 %v8813
        %v8815 = vand.u32 %v389, 4294901760
        %v8816 = vsub.f32 %v389, %v8815
        %8817 = vmatmul.f32.gmra.mxu0 %v8816
        %v8818 = vpop.f32.mrf.mxu0
        %v8819 = vadd.f32 %v8753, %v8818
        %v8820 = vand.u32 %v390, 4294901760
        %v8821 = vsub.f32 %v390, %v8820
        %8822 = vmatmul.f32.gmra.mxu0 %v8821
        %v8823 = vpop.f32.mrf.mxu0
        %v8824 = vadd.f32 %v8757, %v8823
        %v8825 = vand.u32 %v391, 4294901760
        %v8826 = vsub.f32 %v391, %v8825
        %8827 = vmatmul.f32.gmra.mxu0 %v8826
        %v8828 = vpop.f32.mrf.mxu0
        %v8829 = vadd.f32 %v8761, %v8828
        %v8830 = vand.u32 %v392, 4294901760
        %v8831 = vsub.f32 %v392, %v8830
        %8832 = vmatmul.f32.gmra.mxu0 %v8831
        %v8833 = vpop.f32.mrf.mxu0
        %v8834 = vadd.f32 %v8765, %v8833
        %8835 = vdwg.mxu0
        %v8836 = vand.u32 %v8153, 4294901760
        %8837 = vmatpush.msra.mxu0 %v8836
        %v8838 = vand.u32 %v8149, 4294901760
        %8839 = vmatpush.msra.mxu0 %v8838
        %v8840 = vand.u32 %v8145, 4294901760
        %8841 = vmatpush.msra.mxu0 %v8840
        %v8842 = vand.u32 %v8141, 4294901760
        %8843 = vmatpush.msra.mxu0 %v8842
        %v8844 = vand.u32 %v8137, 4294901760
        %8845 = vmatpush.msra.mxu0 %v8844
        %v8846 = vand.u32 %v8133, 4294901760
        %8847 = vmatpush.msra.mxu0 %v8846
        %v8848 = vand.u32 %v8129, 4294901760
        %8849 = vmatpush.msra.mxu0 %v8848
        %v8850 = vand.u32 %v8125, 4294901760
        %8851 = vmatpush.msra.mxu0 %v8850
        %v8852 = vand.u32 %v8121, 4294901760
        %8853 = vmatpush.msra.mxu0 %v8852
        %v8854 = vand.u32 %v8117, 4294901760
        %8855 = vmatpush.msra.mxu0 %v8854
        %v8856 = vand.u32 %v8113, 4294901760
        %8857 = vmatpush.msra.mxu0 %v8856
        %v8858 = vand.u32 %v8109, 4294901760
        %8859 = vmatpush.msra.mxu0 %v8858
        %v8860 = vand.u32 %v8105, 4294901760
        %8861 = vmatpush.msra.mxu0 %v8860
        %v8862 = vand.u32 %v8101, 4294901760
        %8863 = vmatpush.msra.mxu0 %v8862
        %v8864 = vand.u32 %v8097, 4294901760
        %8865 = vmatpush.msra.mxu0 %v8864
        %v8866 = vand.u32 %v8093, 4294901760
        %8867 = vmatpush.msra.mxu0 %v8866
        %v8868 = vand.u32 %v389, 4294901760
        %v8869 = vsub.f32 %v389, %v8868
        %v8870 = vand.u32 %v8869, 4294901760
        %8871 = vmatmul.f32.gmra.mxu0 %v8870
        %v8872 = vpop.f32.mrf.mxu0
        %v8873 = vadd.f32 %v8819, %v8872
        %v8874 = vand.u32 %v390, 4294901760
        %v8875 = vsub.f32 %v390, %v8874
        %v8876 = vand.u32 %v8875, 4294901760
        %8877 = vmatmul.f32.gmra.mxu0 %v8876
        %v8878 = vpop.f32.mrf.mxu0
        %v8879 = vadd.f32 %v8824, %v8878
        %v8880 = vand.u32 %v391, 4294901760
        %v8881 = vsub.f32 %v391, %v8880
        %v8882 = vand.u32 %v8881, 4294901760
        %8883 = vmatmul.f32.gmra.mxu0 %v8882
        %v8884 = vpop.f32.mrf.mxu0
        %v8885 = vadd.f32 %v8829, %v8884
        %v8886 = vand.u32 %v392, 4294901760
        %v8887 = vsub.f32 %v392, %v8886
        %v8888 = vand.u32 %v8887, 4294901760
        %8889 = vmatmul.f32.gmra.mxu0 %v8888
        %v8890 = vpop.f32.mrf.mxu0
        %v8891 = vadd.f32 %v8834, %v8890
        %8892 = vdwg.mxu0
        %v8893 = vand.u32 %v8153, 4294901760
        %v8894 = vsub.f32 %v8153, %v8893
        %v8895 = vand.u32 %v8894, 4294901760
        %8896 = vmatpush.msra.mxu0 %v8895
        %v8897 = vand.u32 %v8149, 4294901760
        %v8898 = vsub.f32 %v8149, %v8897
        %v8899 = vand.u32 %v8898, 4294901760
        %8900 = vmatpush.msra.mxu0 %v8899
        %v8901 = vand.u32 %v8145, 4294901760
        %v8902 = vsub.f32 %v8145, %v8901
        %v8903 = vand.u32 %v8902, 4294901760
        %8904 = vmatpush.msra.mxu0 %v8903
        %v8905 = vand.u32 %v8141, 4294901760
        %v8906 = vsub.f32 %v8141, %v8905
        %v8907 = vand.u32 %v8906, 4294901760
        %8908 = vmatpush.msra.mxu0 %v8907
        %v8909 = vand.u32 %v8137, 4294901760
        %v8910 = vsub.f32 %v8137, %v8909
        %v8911 = vand.u32 %v8910, 4294901760
        %8912 = vmatpush.msra.mxu0 %v8911
        %v8913 = vand.u32 %v8133, 4294901760
        %v8914 = vsub.f32 %v8133, %v8913
        %v8915 = vand.u32 %v8914, 4294901760
        %8916 = vmatpush.msra.mxu0 %v8915
        %v8917 = vand.u32 %v8129, 4294901760
        %v8918 = vsub.f32 %v8129, %v8917
        %v8919 = vand.u32 %v8918, 4294901760
        %8920 = vmatpush.msra.mxu0 %v8919
        %v8921 = vand.u32 %v8125, 4294901760
        %v8922 = vsub.f32 %v8125, %v8921
        %v8923 = vand.u32 %v8922, 4294901760
        %8924 = vmatpush.msra.mxu0 %v8923
        %v8925 = vand.u32 %v8121, 4294901760
        %v8926 = vsub.f32 %v8121, %v8925
        %v8927 = vand.u32 %v8926, 4294901760
        %8928 = vmatpush.msra.mxu0 %v8927
        %v8929 = vand.u32 %v8117, 4294901760
        %v8930 = vsub.f32 %v8117, %v8929
        %v8931 = vand.u32 %v8930, 4294901760
        %8932 = vmatpush.msra.mxu0 %v8931
        %v8933 = vand.u32 %v8113, 4294901760
        %v8934 = vsub.f32 %v8113, %v8933
        %v8935 = vand.u32 %v8934, 4294901760
        %8936 = vmatpush.msra.mxu0 %v8935
        %v8937 = vand.u32 %v8109, 4294901760
        %v8938 = vsub.f32 %v8109, %v8937
        %v8939 = vand.u32 %v8938, 4294901760
        %8940 = vmatpush.msra.mxu0 %v8939
        %v8941 = vand.u32 %v8105, 4294901760
        %v8942 = vsub.f32 %v8105, %v8941
        %v8943 = vand.u32 %v8942, 4294901760
        %8944 = vmatpush.msra.mxu0 %v8943
        %v8945 = vand.u32 %v8101, 4294901760
        %v8946 = vsub.f32 %v8101, %v8945
        %v8947 = vand.u32 %v8946, 4294901760
        %8948 = vmatpush.msra.mxu0 %v8947
        %v8949 = vand.u32 %v8097, 4294901760
        %v8950 = vsub.f32 %v8097, %v8949
        %v8951 = vand.u32 %v8950, 4294901760
        %8952 = vmatpush.msra.mxu0 %v8951
        %v8953 = vand.u32 %v8093, 4294901760
        %v8954 = vsub.f32 %v8093, %v8953
        %v8955 = vand.u32 %v8954, 4294901760
        %8956 = vmatpush.msra.mxu0 %v8955
        %v8957 = vand.u32 %v389, 4294901760
        %8958 = vmatmul.f32.gmra.mxu0 %v8957
        %v8959 = vpop.f32.mrf.mxu0
        %v8960 = vadd.f32 %v8873, %v8959
        %v8961 = vand.u32 %v390, 4294901760
        %8962 = vmatmul.f32.gmra.mxu0 %v8961
        %v8963 = vpop.f32.mrf.mxu0
        %v8964 = vadd.f32 %v8879, %v8963
        %v8965 = vand.u32 %v391, 4294901760
        %8966 = vmatmul.f32.gmra.mxu0 %v8965
        %v8967 = vpop.f32.mrf.mxu0
        %v8968 = vadd.f32 %v8885, %v8967
        %v8969 = vand.u32 %v392, 4294901760
        %8970 = vmatmul.f32.gmra.mxu0 %v8969
        %v8971 = vpop.f32.mrf.mxu0
        %v8972 = vadd.f32 %v8891, %v8971
        %8973 = vdwg.mxu0
        %v8974 = vand.u32 %v8153, 4294901760
        %8975 = vmatpush.msra.mxu0 %v8974
        %v8976 = vand.u32 %v8149, 4294901760
        %8977 = vmatpush.msra.mxu0 %v8976
        %v8978 = vand.u32 %v8145, 4294901760
        %8979 = vmatpush.msra.mxu0 %v8978
        %v8980 = vand.u32 %v8141, 4294901760
        %8981 = vmatpush.msra.mxu0 %v8980
        %v8982 = vand.u32 %v8137, 4294901760
        %8983 = vmatpush.msra.mxu0 %v8982
        %v8984 = vand.u32 %v8133, 4294901760
        %8985 = vmatpush.msra.mxu0 %v8984
        %v8986 = vand.u32 %v8129, 4294901760
        %8987 = vmatpush.msra.mxu0 %v8986
        %v8988 = vand.u32 %v8125, 4294901760
        %8989 = vmatpush.msra.mxu0 %v8988
        %v8990 = vand.u32 %v8121, 4294901760
        %8991 = vmatpush.msra.mxu0 %v8990
        %v8992 = vand.u32 %v8117, 4294901760
        %8993 = vmatpush.msra.mxu0 %v8992
        %v8994 = vand.u32 %v8113, 4294901760
        %8995 = vmatpush.msra.mxu0 %v8994
        %v8996 = vand.u32 %v8109, 4294901760
        %8997 = vmatpush.msra.mxu0 %v8996
        %v8998 = vand.u32 %v8105, 4294901760
        %8999 = vmatpush.msra.mxu0 %v8998
        %v9000 = vand.u32 %v8101, 4294901760
        %9001 = vmatpush.msra.mxu0 %v9000
        %v9002 = vand.u32 %v8097, 4294901760
        %9003 = vmatpush.msra.mxu0 %v9002
        %v9004 = vand.u32 %v8093, 4294901760
        %9005 = vmatpush.msra.mxu0 %v9004
        %v9006 = vand.u32 %v389, 4294901760
        %9007 = vmatmul.f32.gmra.mxu0 %v9006
        %v9008 = vpop.f32.mrf.mxu0
        %v9009 = vadd.f32 %v8960, %v9008
        %v9010 = vand.u32 %v390, 4294901760
        %9011 = vmatmul.f32.gmra.mxu0 %v9010
        %v9012 = vpop.f32.mrf.mxu0
        %v9013 = vadd.f32 %v8964, %v9012
        %v9014 = vand.u32 %v391, 4294901760
        %9015 = vmatmul.f32.gmra.mxu0 %v9014
        %v9016 = vpop.f32.mrf.mxu0
        %v9017 = vadd.f32 %v8968, %v9016
        %v9018 = vand.u32 %v392, 4294901760
        %9019 = vmatmul.f32.gmra.mxu0 %v9018
        %v9020 = vpop.f32.mrf.mxu0
        %v9021 = vadd.f32 %v8972, %v9020
        %9022 = vdwg.mxu0
        %v9023 = vsel %vm346, %v9009, %v8575
        %v9024 = vsel %vm346, %v9013, %v8579
        %v9025 = vsel %vm346, %v9017, %v8583
        %v9026 = vsel %vm346, %v9021, %v8587
        %v9027 = vadd.f32 %v7232, %v9023
        %v9028 = vadd.f32 %v7233, %v9024
        %v9029 = vadd.f32 %v7234, %v9025
        %v9030 = vadd.f32 %v7235, %v9026
        %v9031 = vadd.f32 %v9027, %v2578
        %v9032 = vadd.f32 %v9028, %v2578
        %v9033 = vadd.f32 %v9029, %v2578
        %v9034 = vadd.f32 %v9030, %v2578
        %s9035 = scalar_lea.vmem %s325, 96
        %9036 = vst [vmem:[%s9035] sm:$0xff] %v9031
        %9037 = vst [vmem:[%s9035 + $0x8] sm:$0xff] %v9032
        %9038 = vst [vmem:[%s9035 + $0x10] sm:$0xff] %v9033
        %9039 = vst [vmem:[%s9035 + $0x18] sm:$0xff] %v9034
        %s9040 = smul.u32 4, %s20
        %p9041 = scmp.lt.s32.totalorder %s9040, 7
        %s9042 = scalar_select %p9041, %s9040, 7
        %s9043 = smul.addr %s9042, 4
        %s9044 = smul.addr %s9043, 8
        %s9045 = scalar_lea.vmem %s7, %s9044
        // Predicated region
        $region53: #{model_forward.1} parent=47 // pred_check
          %p9046 = pneg %p195
        $region54: #{model_forward.1} parent=47 // pred_check_branch
          %9048 = sbr.rel (%p9046) target = $region56
        $region55: #{model_forward.1} parent=47 // pred_region
          %s9049 = smul.u32 4, %s20
        $region56: #{model_forward.1} parent=47 // pred_fallthru
          _
      $region48: #{model_forward.1} parent=5 // pred_fallthru
        _
      %p9050 = scmp.le.s32.totalorder 2, %s15
      // Predicated region
      $region57: #{model_forward.1} parent=5 // pred_check
        %p9051 = pneg %p9050
      $region58: #{model_forward.1} parent=5 // pred_check_branch
        %9053 = sbr.rel (%p9051) target = $region60
      $region59: #{model_forward.1} parent=5 // pred_region
        %s9054 = ssub.s32 %s15, 2
        // Predicated region
        $region61: #{model_forward.1} parent=59 // pred_check
          %p9055 = pneg %p201
        $region62: #{model_forward.1} parent=59 // pred_check_branch
          %9057 = sbr.rel (%p9055) target = $region64
        $region63: #{model_forward.1} parent=59 // pred_region
          %s9058 = smul.u32 4, %s21
          %p9059 = scmp.lt.s32.totalorder %s9058, 7
          %s9060 = scalar_select %p9059, %s9058, 7
          %s9061 = smul.addr %s9060, 4
          %s9062 = smul.addr %s9061, 8
          %s9063 = scalar_lea.vmem %s7, %s9062
        $region64: #{model_forward.1} parent=59 // pred_fallthru
          _
      $region60: #{model_forward.1} parent=5 // pred_fallthru
        _
    $region6: #{model_forward.1} parent=1 // loop_footer
      %s19 = sadd.s32 1, %s15
    $region7: #{model_forward.1} parent=1 // loop_footer_branch
      %14 = sbr.rel target = $region3
    $region8: #{model_forward.1} parent=1 // loop_exit
      _
    %9064 = vsyncpa [#allocation4], 1
    %s9065 = scalar_lea.sflag [#allocation4], 1
    %9066 = vsyncpa %s9065, 1

</llo_original>
